<compile_context>
chip_gen: v7x
topology: tpu7x:2x2x1
jax: 0.10.0
libtpu: 0.0.40
codegen_flags: <defaults>
</compile_context>

<pallas_src>
import functools
import re

import jax
import jax.numpy as jnp
from jax import lax
from jax.experimental import pallas as pl
from jax.experimental.pallas import tpu as pltpu

D_IN = 768
D_MID = 256
D_OUT = 1024
LN_EPS = 1e-12


def _fused_kernel(x28_ref, x63_ref, w0_ref, b0_ref, gamma_ref, beta_ref,
                  w1_ref, b1_ref, out_ref, *, approximate_gelu, bf16_tail):
    # --- Linear 768 -> 256 ---------------------------------------------------
    # Per-tile bf16 cast in VMEM (input stays f32 in HBM: no extra wrapper
    # round trip); MXU matmul with f32 accumulation.
    x = x28_ref[...].astype(jnp.bfloat16)
    h = jnp.dot(x, w0_ref[...], preferred_element_type=jnp.float32)
    # bias + residual add (f32)
    h = h + b0_ref[...] + x63_ref[...]

    # --- LayerNorm over last dim (256), eps=1e-12, affine (f32) --------------
    # Two-pass form kept on purpose (E[x^2]-mean^2 can cancel badly in f32
    # when |mean| >> std after the residual add).
    inv_d = jnp.float32(1.0 / D_MID)
    mean = jnp.sum(h, axis=-1, keepdims=True) * inv_d
    centered = h - mean
    var = jnp.sum(centered * centered, axis=-1, keepdims=True) * inv_d
    scale = lax.rsqrt(var + jnp.float32(LN_EPS)) * gamma_ref[...]
    h = centered * scale + beta_ref[...]

    # --- Linear 256 -> 1024 (bf16 MXU, f32 accumulate) -----------------------
    y = jnp.dot(h.astype(jnp.bfloat16), w1_ref[...],
                preferred_element_type=jnp.float32)
    y = y + b1_ref[...]

    # --- GELU -----------------------------------------------------------------
    # Python-float constants keep y's dtype (weak typing), so the tanh tail can
    # run fully in bf16 on v6e/v7x.  Exact erf (torch default) stays in f32.
    if approximate_gelu:
        if bf16_tail:
            y = y.astype(jnp.bfloat16)
        c = 0.7978845608028654  # sqrt(2/pi)
        y = 0.5 * y * (1.0 + jnp.tanh(c * (y + 0.044715 * (y * y * y))))
    else:
        y = 0.5 * y * (1.0 + lax.erf(y * 0.7071067811865476))

    out_ref[...] = y.astype(out_ref.dtype)


def _tpu_generation():
    """Best-effort TPU generation from device_kind (e.g. 'TPU v6e' -> 6)."""
    try:
        kind = jax.devices()[0].device_kind
    except Exception:
        return 6
    m = re.search(r"(\d+)", kind)
    return int(m.group(1)) if m else 6


def _choose_tile_m(M, gen):
    """Row-tile size: VMEM-safe cap per generation; >=2 grid steps per core."""
    # v5e's default scoped VMEM (16 MiB) is the tightest -> smaller cap there.
    cap = 256 if gen <= 5 else 512
    num_cores = 2 if gen >= 7 else 1          # v7x: 2 TensorCores / chip
    min_tiles = 2 * num_cores                 # keep each core's pipeline busy
    if M >= min_tiles * cap:
        return cap
    tile = pl.cdiv(M, min_tiles)
    tile = max(8, ((tile + 7) // 8) * 8)      # sublane-aligned
    return int(min(tile, cap))


def _build_specs(tile_m, single_buffer_consts):
    # Resident (constant-index) operands never change block index, so a single
    # VMEM buffer is enough; saves ~0.9 MiB vs. the default double buffering.
    const_kw = {"pipeline_mode": pl.Buffered(1)} if single_buffer_consts else {}
    in_specs = [
        pl.BlockSpec((tile_m, D_IN), lambda i: (i, 0)),              # x28 rows (f32)
        pl.BlockSpec((tile_m, D_MID), lambda i: (i, 0)),             # x63 rows (f32)
        pl.BlockSpec((D_IN, D_MID), lambda i: (0, 0), **const_kw),   # W0 (bf16, resident)
        pl.BlockSpec((1, D_MID), lambda i: (0, 0), **const_kw),      # b0
        pl.BlockSpec((1, D_MID), lambda i: (0, 0), **const_kw),      # ln gamma
        pl.BlockSpec((1, D_MID), lambda i: (0, 0), **const_kw),      # ln beta
        pl.BlockSpec((D_MID, D_OUT), lambda i: (0, 0), **const_kw),  # W1 (bf16, resident)
        pl.BlockSpec((1, D_OUT), lambda i: (0, 0), **const_kw),      # b1
    ]
    out_spec = pl.BlockSpec((tile_m, D_OUT), lambda i: (i, 0))
    return in_specs, out_spec


def fused_forward(x28, x63, w0, b0, gamma, beta, w1, b1, *,
                  tile_m=None, approximate_gelu=False,
                  out_dtype=jnp.bfloat16):
    """Fused Linear+Add+LayerNorm+Linear+GELU.

    Defaults: exact-erf GELU (torch semantics) with bf16 output storage (f32
    accumulate / f32 LN inside).  Pass out_dtype=jnp.float32 for a full-f32
    output, approximate_gelu=True for the tanh fast path.
    """
    B, S, _ = x28.shape
    M = B * S
    gen = _tpu_generation()
    if tile_m is None:
        tile_m = _choose_tile_m(M, gen)
    n_tiles = pl.cdiv(M, tile_m)

    # No wrapper-side cast / pad / slice: each of those is a full extra HBM
    # pass over a large array.  Activations are handed to the kernel as-is.
    x28_2d = x28.reshape(M, D_IN)
    x63_2d = x63.reshape(M, D_MID)

    # Weights pre-cast once to bf16 (MXU-native, tiny & reused every tile);
    # biases / LN params stay f32.
    w0_bf = w0.astype(jnp.bfloat16)
    w1_bf = w1.astype(jnp.bfloat16)
    b0_2d = b0.reshape(1, D_MID).astype(jnp.float32)
    b1_2d = b1.reshape(1, D_OUT).astype(jnp.float32)
    gamma_2d = gamma.reshape(1, D_MID).astype(jnp.float32)
    beta_2d = beta.reshape(1, D_MID).astype(jnp.float32)

    # bf16 GELU tail only where the VPU/EUP are bf16-capable (v6e / v7x) and
    # only for the tanh form; v5e keeps the tail in f32.
    bf16_tail = bool(approximate_gelu) and gen >= 6

    out_itemsize = jnp.dtype(out_dtype).itemsize
    cost = pl.CostEstimate(
        flops=2 * M * (D_IN * D_MID + D_MID * D_OUT),
        transcendentals=M * D_OUT,
        bytes_accessed=(M * D_IN * 4                 # x28 (f32)
                        + M * D_MID * 4              # x63 (f32)
                        + D_IN * D_MID * 2           # W0 (bf16)
                        + D_MID * D_OUT * 2          # W1 (bf16)
                        + (3 * D_MID + D_OUT) * 4    # biases + LN params
                        + M * D_OUT * out_itemsize), # output
    )

    kernel = functools.partial(_fused_kernel,
                               approximate_gelu=approximate_gelu,
                               bf16_tail=bf16_tail)
    args = (x28_2d, x63_2d, w0_bf, b0_2d, gamma_2d, beta_2d, w1_bf, b1_2d)

    def run(single_buffer_consts):
        in_specs, out_spec = _build_specs(tile_m, single_buffer_consts)
        return pl.pallas_call(
            kernel,
            out_shape=jax.ShapeDtypeStruct((M, D_OUT), out_dtype),
            grid_spec=pltpu.PrefetchScalarGridSpec(
                num_scalar_prefetch=0,
                grid=(n_tiles,),
                in_specs=in_specs,
                out_specs=out_spec,
            ),
            compiler_params=pltpu.CompilerParams(
                dimension_semantics=("parallel",)),
            cost_estimate=cost,
        )(*args)

    try:
        out = run(single_buffer_consts=True)
    except Exception:
        # Fallback if this JAX build rejects pipeline_mode=pl.Buffered(1);
        # only costs a bit of VMEM for the resident weights.
        out = run(single_buffer_consts=False)

    return out.reshape(B, S, D_OUT)


def reference_forward(x28, x63, w0, b0, gamma, beta, w1, b1):
    # Pure f32 / exact-erf reference (torch semantics).
    h = jnp.einsum("bsd,df->bsf", x28, w0) + b0
    h = x63 + h
    mean = jnp.mean(h, axis=-1, keepdims=True)
    var = jnp.mean((h - mean) ** 2, axis=-1, keepdims=True)
    h = (h - mean) / jnp.sqrt(var + LN_EPS) * gamma + beta
    y = jnp.einsum("bsf,fg->bsg", h, w1) + b1
    return 0.5 * y * (1.0 + lax.erf(y / jnp.sqrt(2.0)))


if __name__ == "__main__":
    key = jax.random.PRNGKey(0)
    k1, k2, k3, k4, k5, k6 = jax.random.split(key, 6)

    B, S = 1, 384
    x28 = jax.random.normal(k1, (B, S, D_IN), dtype=jnp.float32)
    x63 = jax.random.normal(k2, (B, S, D_MID), dtype=jnp.float32)

    # Deterministic synthetic parameters (small uniform init like torch Linear).
    w0 = jax.random.uniform(k3, (D_IN, D_MID), jnp.float32,
                            minval=-1.0, maxval=1.0) / jnp.sqrt(D_IN)
    b0 = jax.random.uniform(k4, (D_MID,), jnp.float32,
                            minval=-1.0, maxval=1.0) / jnp.sqrt(D_IN)
    w1 = jax.random.uniform(k5, (D_MID, D_OUT), jnp.float32,
                            minval=-1.0, maxval=1.0) / jnp.sqrt(D_MID)
    b1 = jax.random.uniform(k6, (D_OUT,), jnp.float32,
                            minval=-1.0, maxval=1.0) / jnp.sqrt(D_MID)
    gamma = jnp.ones((D_MID,), jnp.float32)   # LayerNorm default init
    beta = jnp.zeros((D_MID,), jnp.float32)

    ref = reference_forward(x28, x63, w0, b0, gamma, beta, w1, b1)

    # Default path: exact-erf GELU (torch semantics), bf16 output storage.
    out = fused_forward(x28, x63, w0, b0, gamma, beta, w1, b1)
    out = jax.block_until_ready(out)
    assert out.shape == (B, S, D_OUT)
    assert out.dtype == jnp.bfloat16
    err = float(jnp.max(jnp.abs(out.astype(jnp.float32) - ref)))
    assert err < 5e-2, err

    # f32-output path (closest to the torch reference numerics).
    out_f32 = fused_forward(x28, x63, w0, b0, gamma, beta, w1, b1,
                            out_dtype=jnp.float32)
    out_f32 = jax.block_until_ready(out_f32)
    err_f32 = float(jnp.max(jnp.abs(out_f32 - ref)))
    assert err_f32 < 5e-2, err_f32

    # Opt-in fast path: tanh GELU (bf16 tail on v6e/v7x) + bf16 output.
    out_fast = fused_forward(x28, x63, w0, b0, gamma, beta, w1, b1,
                             approximate_gelu=True)
    out_fast = jax.block_until_ready(out_fast)
    err_fast = float(jnp.max(jnp.abs(out_fast.astype(jnp.float32) - ref)))
    assert err_fast < 5e-2, err_fast

    print("KERNEL_OK")
</pallas_src>

<mosaic_0001>
module attributes {stable_mosaic.version = 11 : i64} {
  func.func @_fused_kernel(%arg0: i32, %arg1: memref<192x768xf32, #tpu.memory_space<vmem>>, %arg2: memref<192x256xf32, #tpu.memory_space<vmem>>, %arg3: memref<768x256xbf16, #tpu.memory_space<vmem>>, %arg4: memref<1x256xf32, #tpu.memory_space<vmem>>, %arg5: memref<1x256xf32, #tpu.memory_space<vmem>>, %arg6: memref<1x256xf32, #tpu.memory_space<vmem>>, %arg7: memref<256x1024xbf16, #tpu.memory_space<vmem>>, %arg8: memref<1x1024xf32, #tpu.memory_space<vmem>>, %arg9: memref<192x1024xbf16, #tpu.memory_space<vmem>>) attributes {dimension_semantics = [#tpu.dimension_semantics<parallel>], iteration_bounds = array<i64: 2>, scalar_prefetch = 0 : i64, scratch_operands = 0 : i64, tpu.core_type = #tpu.core_type<tc>, window_params = [{transform_indices = @transform_0, window_bounds = array<i64: 192, 768>}, {transform_indices = @transform_1, window_bounds = array<i64: 192, 256>}, {pipeline_mode = #tpu.pipeline_mode<synchronous>, transform_indices = @transform_2, window_bounds = array<i64: 768, 256>}, {pipeline_mode = #tpu.pipeline_mode<synchronous>, transform_indices = @transform_3, window_bounds = array<i64: 1, 256>}, {pipeline_mode = #tpu.pipeline_mode<synchronous>, transform_indices = @transform_4, window_bounds = array<i64: 1, 256>}, {pipeline_mode = #tpu.pipeline_mode<synchronous>, transform_indices = @transform_5, window_bounds = array<i64: 1, 256>}, {pipeline_mode = #tpu.pipeline_mode<synchronous>, transform_indices = @transform_6, window_bounds = array<i64: 256, 1024>}, {pipeline_mode = #tpu.pipeline_mode<synchronous>, transform_indices = @transform_7, window_bounds = array<i64: 1, 1024>}, {transform_indices = @transform_8, window_bounds = array<i64: 192, 1024>}]} {
    %c0 = arith.constant 0 : index
    %c0_0 = arith.constant 0 : index
    %0 = vector.load %arg1[%c0, %c0_0] : memref<192x768xf32, #tpu.memory_space<vmem>>, vector<192x768xf32>
    %1 = arith.truncf %0 : vector<192x768xf32> to vector<192x768xbf16>
    %c0_1 = arith.constant 0 : index
    %c0_2 = arith.constant 0 : index
    %2 = vector.load %arg3[%c0_1, %c0_2] : memref<768x256xbf16, #tpu.memory_space<vmem>>, vector<768x256xbf16>
    %cst = arith.constant dense<0.000000e+00> : vector<192x256xf32>
    %3 = tpu.matmul %1, %2, %cst {dimension_numbers = #tpu.dot_dimension_numbers<[1], [0], [0], [1], [0, 0, 1, 1], [], []>} : vector<192x768xbf16>, vector<768x256xbf16>, vector<192x256xf32> -> vector<192x256xf32>
    %c0_3 = arith.constant 0 : index
    %c0_4 = arith.constant 0 : index
    %4 = vector.load %arg4[%c0_3, %c0_4] : memref<1x256xf32, #tpu.memory_space<vmem>>, vector<1x256xf32>
    %5 = vector.broadcast %4 : vector<1x256xf32> to vector<192x256xf32>
    %6 = arith.addf %3, %5 : vector<192x256xf32>
    %c0_5 = arith.constant 0 : index
    %c0_6 = arith.constant 0 : index
    %7 = vector.load %arg2[%c0_5, %c0_6] : memref<192x256xf32, #tpu.memory_space<vmem>>, vector<192x256xf32>
    %8 = arith.addf %6, %7 : vector<192x256xf32>
    %cst_7 = arith.constant dense<0.000000e+00> : vector<192xf32>
    %9 = vector.multi_reduction <add>, %8, %cst_7 [1] : vector<192x256xf32> to vector<192xf32>
    %10 = vector.shape_cast %9 : vector<192xf32> to vector<192x1xf32>
    %cst_8 = arith.constant 3.906250e-03 : f32
    %11 = vector.broadcast %cst_8 : f32 to vector<192x1xf32>
    %12 = arith.mulf %10, %11 : vector<192x1xf32>
    %13 = vector.broadcast %12 : vector<192x1xf32> to vector<192x256xf32>
    %14 = arith.subf %8, %13 : vector<192x256xf32>
    %15 = arith.mulf %14, %14 : vector<192x256xf32>
    %cst_9 = arith.constant dense<0.000000e+00> : vector<192xf32>
    %16 = vector.multi_reduction <add>, %15, %cst_9 [1] : vector<192x256xf32> to vector<192xf32>
    %17 = vector.shape_cast %16 : vector<192xf32> to vector<192x1xf32>
    %cst_10 = arith.constant 3.906250e-03 : f32
    %18 = vector.broadcast %cst_10 : f32 to vector<192x1xf32>
    %19 = arith.mulf %17, %18 : vector<192x1xf32>
    %cst_11 = arith.constant 9.99999996E-13 : f32
    %20 = vector.broadcast %cst_11 : f32 to vector<192x1xf32>
    %21 = arith.addf %19, %20 : vector<192x1xf32>
    %22 = math.rsqrt %21 : vector<192x1xf32>
    %c0_12 = arith.constant 0 : index
    %c0_13 = arith.constant 0 : index
    %23 = vector.load %arg5[%c0_12, %c0_13] : memref<1x256xf32, #tpu.memory_space<vmem>>, vector<1x256xf32>
    %24 = vector.broadcast %22 : vector<192x1xf32> to vector<192x256xf32>
    %25 = vector.broadcast %23 : vector<1x256xf32> to vector<192x256xf32>
    %26 = arith.mulf %24, %25 : vector<192x256xf32>
    %27 = arith.mulf %14, %26 : vector<192x256xf32>
    %c0_14 = arith.constant 0 : index
    %c0_15 = arith.constant 0 : index
    %28 = vector.load %arg6[%c0_14, %c0_15] : memref<1x256xf32, #tpu.memory_space<vmem>>, vector<1x256xf32>
    %29 = vector.broadcast %28 : vector<1x256xf32> to vector<192x256xf32>
    %30 = arith.addf %27, %29 : vector<192x256xf32>
    %31 = arith.truncf %30 : vector<192x256xf32> to vector<192x256xbf16>
    %c0_16 = arith.constant 0 : index
    %c0_17 = arith.constant 0 : index
    %32 = vector.load %arg7[%c0_16, %c0_17] : memref<256x1024xbf16, #tpu.memory_space<vmem>>, vector<256x1024xbf16>
    %cst_18 = arith.constant dense<0.000000e+00> : vector<192x1024xf32>
    %33 = tpu.matmul %31, %32, %cst_18 {dimension_numbers = #tpu.dot_dimension_numbers<[1], [0], [0], [1], [0, 0, 1, 1], [], []>} : vector<192x256xbf16>, vector<256x1024xbf16>, vector<192x1024xf32> -> vector<192x1024xf32>
    %c0_19 = arith.constant 0 : index
    %c0_20 = arith.constant 0 : index
    %34 = vector.load %arg8[%c0_19, %c0_20] : memref<1x1024xf32, #tpu.memory_space<vmem>>, vector<1x1024xf32>
    %35 = vector.broadcast %34 : vector<1x1024xf32> to vector<192x1024xf32>
    %36 = arith.addf %33, %35 : vector<192x1024xf32>
    %cst_21 = arith.constant 5.000000e-01 : f32
    %37 = vector.broadcast %cst_21 : f32 to vector<192x1024xf32>
    %38 = arith.mulf %37, %36 : vector<192x1024xf32>
    %cst_22 = arith.constant 0.707106769 : f32
    %39 = vector.broadcast %cst_22 : f32 to vector<192x1024xf32>
    %40 = arith.mulf %36, %39 : vector<192x1024xf32>
    %41 = math.erf %40 : vector<192x1024xf32>
    %cst_23 = arith.constant 1.000000e+00 : f32
    %42 = vector.broadcast %cst_23 : f32 to vector<192x1024xf32>
    %43 = arith.addf %42, %41 : vector<192x1024xf32>
    %44 = arith.mulf %38, %43 : vector<192x1024xf32>
    %45 = arith.truncf %44 : vector<192x1024xf32> to vector<192x1024xbf16>
    %c0_24 = arith.constant 0 : index
    %c0_25 = arith.constant 0 : index
    %46 = vector.load %arg9[%c0_24, %c0_25] : memref<192x1024xbf16, #tpu.memory_space<vmem>>, vector<192x1024xbf16>
    tpu.vector_store %arg9[%c0_24, %c0_25], %45 {strides = array<i32>} : memref<192x1024xbf16, #tpu.memory_space<vmem>>, vector<192x1024xbf16>,
    return
  }
  func.func @transform_0(%arg0: i32) -> (i32, i32) {
    %c0_i32 = arith.constant 0 : i32
    %c0_i32_0 = arith.constant 0 : i32
    return %arg0, %c0_i32 : i32, i32
  }
  func.func @transform_1(%arg0: i32) -> (i32, i32) {
    %c0_i32 = arith.constant 0 : i32
    %c0_i32_0 = arith.constant 0 : i32
    return %arg0, %c0_i32 : i32, i32
  }
  func.func @transform_2(%arg0: i32) -> (i32, i32) {
    %c0_i32 = arith.constant 0 : i32
    %c0_i32_0 = arith.constant 0 : i32
    %c0_i32_1 = arith.constant 0 : i32
    return %c0_i32, %c0_i32_0 : i32, i32
  }
  func.func @transform_3(%arg0: i32) -> (i32, i32) {
    %c0_i32 = arith.constant 0 : i32
    %c0_i32_0 = arith.constant 0 : i32
    %c0_i32_1 = arith.constant 0 : i32
    return %c0_i32, %c0_i32_0 : i32, i32
  }
  func.func @transform_4(%arg0: i32) -> (i32, i32) {
    %c0_i32 = arith.constant 0 : i32
    %c0_i32_0 = arith.constant 0 : i32
    %c0_i32_1 = arith.constant 0 : i32
    return %c0_i32, %c0_i32_0 : i32, i32
  }
  func.func @transform_5(%arg0: i32) -> (i32, i32) {
    %c0_i32 = arith.constant 0 : i32
    %c0_i32_0 = arith.constant 0 : i32
    %c0_i32_1 = arith.constant 0 : i32
    return %c0_i32, %c0_i32_0 : i32, i32
  }
  func.func @transform_6(%arg0: i32) -> (i32, i32) {
    %c0_i32 = arith.constant 0 : i32
    %c0_i32_0 = arith.constant 0 : i32
    %c0_i32_1 = arith.constant 0 : i32
    return %c0_i32, %c0_i32_0 : i32, i32
  }
  func.func @transform_7(%arg0: i32) -> (i32, i32) {
    %c0_i32 = arith.constant 0 : i32
    %c0_i32_0 = arith.constant 0 : i32
    %c0_i32_1 = arith.constant 0 : i32
    return %c0_i32, %c0_i32_0 : i32, i32
  }
  func.func @transform_8(%arg0: i32) -> (i32, i32) {
    %c0_i32 = arith.constant 0 : i32
    %c0_i32_0 = arith.constant 0 : i32
    return %arg0, %c0_i32 : i32, i32
  }
}

module attributes {stable_mosaic.version = 11 : i64} {
  func.func @_fused_kernel(%arg0: i32, %arg1: memref<192x768xf32, #tpu.memory_space<vmem>>, %arg2: memref<192x256xf32, #tpu.memory_space<vmem>>, %arg3: memref<768x256xbf16, #tpu.memory_space<vmem>>, %arg4: memref<1x256xf32, #tpu.memory_space<vmem>>, %arg5: memref<1x256xf32, #tpu.memory_space<vmem>>, %arg6: memref<1x256xf32, #tpu.memory_space<vmem>>, %arg7: memref<256x1024xbf16, #tpu.memory_space<vmem>>, %arg8: memref<1x1024xf32, #tpu.memory_space<vmem>>, %arg9: memref<192x1024xbf16, #tpu.memory_space<vmem>>) attributes {dimension_semantics = [#tpu.dimension_semantics<parallel>], iteration_bounds = array<i64: 2>, scalar_prefetch = 0 : i64, scratch_operands = 0 : i64, tpu.core_type = #tpu.core_type<tc>, window_params = [{transform_indices = @transform_0, window_bounds = array<i64: 192, 768>}, {transform_indices = @transform_1, window_bounds = array<i64: 192, 256>}, {pipeline_mode = #tpu.pipeline_mode<synchronous>, transform_indices = @transform_2, window_bounds = array<i64: 768, 256>}, {pipeline_mode = #tpu.pipeline_mode<synchronous>, transform_indices = @transform_3, window_bounds = array<i64: 1, 256>}, {pipeline_mode = #tpu.pipeline_mode<synchronous>, transform_indices = @transform_4, window_bounds = array<i64: 1, 256>}, {pipeline_mode = #tpu.pipeline_mode<synchronous>, transform_indices = @transform_5, window_bounds = array<i64: 1, 256>}, {pipeline_mode = #tpu.pipeline_mode<synchronous>, transform_indices = @transform_6, window_bounds = array<i64: 256, 1024>}, {pipeline_mode = #tpu.pipeline_mode<synchronous>, transform_indices = @transform_7, window_bounds = array<i64: 1, 1024>}, {transform_indices = @transform_8, window_bounds = array<i64: 192, 1024>}]} {
    %c0 = arith.constant 0 : index
    %c0_0 = arith.constant 0 : index
    %0 = vector.load %arg1[%c0, %c0_0] : memref<192x768xf32, #tpu.memory_space<vmem>>, vector<192x768xf32>
    %1 = arith.truncf %0 : vector<192x768xf32> to vector<192x768xbf16>
    %c0_1 = arith.constant 0 : index
    %c0_2 = arith.constant 0 : index
    %2 = vector.load %arg3[%c0_1, %c0_2] : memref<768x256xbf16, #tpu.memory_space<vmem>>, vector<768x256xbf16>
    %cst = arith.constant dense<0.000000e+00> : vector<192x256xf32>
    %3 = tpu.matmul %1, %2, %cst {dimension_numbers = #tpu.dot_dimension_numbers<[1], [0], [0], [1], [0, 0, 1, 1], [], []>} : vector<192x768xbf16>, vector<768x256xbf16>, vector<192x256xf32> -> vector<192x256xf32>
    %c0_3 = arith.constant 0 : index
    %c0_4 = arith.constant 0 : index
    %4 = vector.load %arg4[%c0_3, %c0_4] : memref<1x256xf32, #tpu.memory_space<vmem>>, vector<1x256xf32>
    %5 = vector.broadcast %4 : vector<1x256xf32> to vector<192x256xf32>
    %6 = arith.addf %3, %5 : vector<192x256xf32>
    %c0_5 = arith.constant 0 : index
    %c0_6 = arith.constant 0 : index
    %7 = vector.load %arg2[%c0_5, %c0_6] : memref<192x256xf32, #tpu.memory_space<vmem>>, vector<192x256xf32>
    %8 = arith.addf %6, %7 : vector<192x256xf32>
    %cst_7 = arith.constant dense<0.000000e+00> : vector<192xf32>
    %9 = vector.multi_reduction <add>, %8, %cst_7 [1] : vector<192x256xf32> to vector<192xf32>
    %10 = vector.shape_cast %9 : vector<192xf32> to vector<192x1xf32>
    %cst_8 = arith.constant 3.906250e-03 : f32
    %11 = vector.broadcast %cst_8 : f32 to vector<192x1xf32>
    %12 = arith.mulf %10, %11 : vector<192x1xf32>
    %13 = vector.broadcast %12 : vector<192x1xf32> to vector<192x256xf32>
    %14 = arith.subf %8, %13 : vector<192x256xf32>
    %15 = arith.mulf %14, %14 : vector<192x256xf32>
    %cst_9 = arith.constant dense<0.000000e+00> : vector<192xf32>
    %16 = vector.multi_reduction <add>, %15, %cst_9 [1] : vector<192x256xf32> to vector<192xf32>
    %17 = vector.shape_cast %16 : vector<192xf32> to vector<192x1xf32>
    %cst_10 = arith.constant 3.906250e-03 : f32
    %18 = vector.broadcast %cst_10 : f32 to vector<192x1xf32>
    %19 = arith.mulf %17, %18 : vector<192x1xf32>
    %cst_11 = arith.constant 9.99999996E-13 : f32
    %20 = vector.broadcast %cst_11 : f32 to vector<192x1xf32>
    %21 = arith.addf %19, %20 : vector<192x1xf32>
    %22 = math.rsqrt %21 : vector<192x1xf32>
    %c0_12 = arith.constant 0 : index
    %c0_13 = arith.constant 0 : index
    %23 = vector.load %arg5[%c0_12, %c0_13] : memref<1x256xf32, #tpu.memory_space<vmem>>, vector<1x256xf32>
    %24 = vector.broadcast %22 : vector<192x1xf32> to vector<192x256xf32>
    %25 = vector.broadcast %23 : vector<1x256xf32> to vector<192x256xf32>
    %26 = arith.mulf %24, %25 : vector<192x256xf32>
    %27 = arith.mulf %14, %26 : vector<192x256xf32>
    %c0_14 = arith.constant 0 : index
    %c0_15 = arith.constant 0 : index
    %28 = vector.load %arg6[%c0_14, %c0_15] : memref<1x256xf32, #tpu.memory_space<vmem>>, vector<1x256xf32>
    %29 = vector.broadcast %28 : vector<1x256xf32> to vector<192x256xf32>
    %30 = arith.addf %27, %29 : vector<192x256xf32>
    %31 = arith.truncf %30 : vector<192x256xf32> to vector<192x256xbf16>
    %c0_16 = arith.constant 0 : index
    %c0_17 = arith.constant 0 : index
    %32 = vector.load %arg7[%c0_16, %c0_17] : memref<256x1024xbf16, #tpu.memory_space<vmem>>, vector<256x1024xbf16>
    %cst_18 = arith.constant dense<0.000000e+00> : vector<192x1024xf32>
    %33 = tpu.matmul %31, %32, %cst_18 {dimension_numbers = #tpu.dot_dimension_numbers<[1], [0], [0], [1], [0, 0, 1, 1], [], []>} : vector<192x256xbf16>, vector<256x1024xbf16>, vector<192x1024xf32> -> vector<192x1024xf32>
    %c0_19 = arith.constant 0 : index
    %c0_20 = arith.constant 0 : index
    %34 = vector.load %arg8[%c0_19, %c0_20] : memref<1x1024xf32, #tpu.memory_space<vmem>>, vector<1x1024xf32>
    %35 = vector.broadcast %34 : vector<1x1024xf32> to vector<192x1024xf32>
    %36 = arith.addf %33, %35 : vector<192x1024xf32>
    %cst_21 = arith.constant 5.000000e-01 : f32
    %37 = vector.broadcast %cst_21 : f32 to vector<192x1024xf32>
    %38 = arith.mulf %37, %36 : vector<192x1024xf32>
    %cst_22 = arith.constant 0.707106769 : f32
    %39 = vector.broadcast %cst_22 : f32 to vector<192x1024xf32>
    %40 = arith.mulf %36, %39 : vector<192x1024xf32>
    %41 = math.erf %40 : vector<192x1024xf32>
    %cst_23 = arith.constant 1.000000e+00 : f32
    %42 = vector.broadcast %cst_23 : f32 to vector<192x1024xf32>
    %43 = arith.addf %42, %41 : vector<192x1024xf32>
    %44 = arith.mulf %38, %43 : vector<192x1024xf32>
    %45 = arith.truncf %44 : vector<192x1024xf32> to vector<192x1024xbf16>
    %c0_24 = arith.constant 0 : index
    %c0_25 = arith.constant 0 : index
    %46 = vector.load %arg9[%c0_24, %c0_25] : memref<192x1024xbf16, #tpu.memory_space<vmem>>, vector<192x1024xbf16>
    tpu.vector_store %arg9[%c0_24, %c0_25], %45 {strides = array<i32>} : memref<192x1024xbf16, #tpu.memory_space<vmem>>, vector<192x1024xbf16>,
    return
  }
  func.func @transform_0(%arg0: i32) -> (i32, i32) {
    %c0_i32 = arith.constant 0 : i32
    %c0_i32_0 = arith.constant 0 : i32
    return %arg0, %c0_i32 : i32, i32
  }
  func.func @transform_1(%arg0: i32) -> (i32, i32) {
    %c0_i32 = arith.constant 0 : i32
    %c0_i32_0 = arith.constant 0 : i32
    return %arg0, %c0_i32 : i32, i32
  }
  func.func @transform_2(%arg0: i32) -> (i32, i32) {
    %c0_i32 = arith.constant 0 : i32
    %c0_i32_0 = arith.constant 0 : i32
    %c0_i32_1 = arith.constant 0 : i32
    return %c0_i32, %c0_i32_0 : i32, i32
  }
  func.func @transform_3(%arg0: i32) -> (i32, i32) {
    %c0_i32 = arith.constant 0 : i32
    %c0_i32_0 = arith.constant 0 : i32
    %c0_i32_1 = arith.constant 0 : i32
    return %c0_i32, %c0_i32_0 : i32, i32
  }
  func.func @transform_4(%arg0: i32) -> (i32, i32) {
    %c0_i32 = arith.constant 0 : i32
    %c0_i32_0 = arith.constant 0 : i32
    %c0_i32_1 = arith.constant 0 : i32
    return %c0_i32, %c0_i32_0 : i32, i32
  }
  func.func @transform_5(%arg0: i32) -> (i32, i32) {
    %c0_i32 = arith.constant 0 : i32
    %c0_i32_0 = arith.constant 0 : i32
    %c0_i32_1 = arith.constant 0 : i32
    return %c0_i32, %c0_i32_0 : i32, i32
  }
  func.func @transform_6(%arg0: i32) -> (i32, i32) {
    %c0_i32 = arith.constant 0 : i32
    %c0_i32_0 = arith.constant 0 : i32
    %c0_i32_1 = arith.constant 0 : i32
    return %c0_i32, %c0_i32_0 : i32, i32
  }
  func.func @transform_7(%arg0: i32) -> (i32, i32) {
    %c0_i32 = arith.constant 0 : i32
    %c0_i32_0 = arith.constant 0 : i32
    %c0_i32_1 = arith.constant 0 : i32
    return %c0_i32, %c0_i32_0 : i32, i32
  }
  func.func @transform_8(%arg0: i32) -> (i32, i32) {
    %c0_i32 = arith.constant 0 : i32
    %c0_i32_0 = arith.constant 0 : i32
    return %arg0, %c0_i32 : i32, i32
  }
}

</mosaic_0001>

<llo_original>
// kernel: tpu_custom_call.1
$region0: #{tpu_custom_call.1}
  #allocation0 [shape = 'u32[]', space=smem, size = 0x4, offset = 0x4, fixed_abs, tag = 'smem constant byte address 0x4 - core index']
  #allocation1 [shape = 'u32[144,128]{1,0:T(1,128)}', space=vmem, size = 0x12000, scoped, tag = 'internal scratch']
  %s0 = inlined_call_operand.hbm [shape: f32[384,768], index: 0, kind: input, shape index: {}]
  %s1 = inlined_call_operand.hbm [shape: f32[384,256], index: 1, kind: input, shape index: {}]
  %s2 = inlined_call_operand.hbm [shape: bf16[768,256], index: 2, kind: input, shape index: {}]
  %s3 = inlined_call_operand.hbm [shape: f32[1,256], index: 3, kind: input, shape index: {}]
  %s4 = inlined_call_operand.hbm [shape: f32[1,256], index: 4, kind: input, shape index: {}]
  %s5 = inlined_call_operand.hbm [shape: f32[1,256], index: 5, kind: input, shape index: {}]
  %s6 = inlined_call_operand.hbm [shape: bf16[256,1024], index: 6, kind: input, shape index: {}]
  %s7 = inlined_call_operand.hbm [shape: f32[1,1024], index: 7, kind: input, shape index: {}]
  %s8 = inlined_call_operand.hbm [shape: bf16[384,1024], index: 8, kind: output, shape index: {}]
  %s9 = sld [smem:[#allocation0]]
  $region97: #{tpu_custom_call.1} parent=0
    _
  %s11 = ssub.s32 1, %s9
  %s12 = scalar_select 0, %s11, %s9
  $region1: #{tpu_custom_call.1} parent=0
    #allocation2 [shape = 'u8[1179648]{0}', space=vmem, size = 0x120000, scoped, tag = 'input window, operand 0']
    #allocation3 [shape = 's32[2]{0}', space=sflag, size = 0x8, scoped, tag = 'scoped memory for tpu_custom_call.1']
    #allocation4 [shape = 's32[2]{0}', space=sflag, size = 0x8, scoped, tag = 'scoped memory for tpu_custom_call.1']
    #allocation5 [shape = 'u8[393216]{0}', space=vmem, size = 0x60000, scoped, tag = 'input window, operand 1']
    #allocation6 [shape = 's32[2]{0}', space=sflag, size = 0x8, scoped, tag = 'scoped memory for tpu_custom_call.1']
    #allocation7 [shape = 'u8[393216]{0}', space=vmem, size = 0x60000, scoped, tag = 'input window, operand 2, single buffered']
    #allocation8 [shape = 'u8[1024]{0}', space=vmem, size = 0x400, scoped, tag = 'input window, operand 3, single buffered']
    #allocation9 [shape = 's32[1]{0}', space=sflag, size = 0x4, scoped, tag = 'scoped memory for tpu_custom_call.1']
    #allocation10 [shape = 'u8[1024]{0}', space=vmem, size = 0x400, scoped, tag = 'input window, operand 4, single buffered']
    #allocation11 [shape = 'u8[1024]{0}', space=vmem, size = 0x400, scoped, tag = 'input window, operand 5, single buffered']
    #allocation12 [shape = 's32[1]{0}', space=sflag, size = 0x4, scoped, tag = 'scoped memory for tpu_custom_call.1']
    #allocation13 [shape = 'u8[524288]{0}', space=vmem, size = 0x80000, scoped, tag = 'input window, operand 6, single buffered']
    #allocation14 [shape = 'u8[4096]{0}', space=vmem, size = 0x1000, scoped, tag = 'input window, operand 7, single buffered']
    #allocation15 [shape = 's32[1]{0}', space=sflag, size = 0x4, scoped, tag = 'scoped memory for tpu_custom_call.1']
    #allocation16 [shape = 'u8[786432]{0}', space=vmem, size = 0xc0000, scoped, tag = 'output window, operand 0']
    %13 = vsyncpa [#allocation3], 0
    %s14 = scalar_lea.sflag [#allocation3], 1
    %15 = vsyncpa %s14, 0
    %16 = vsyncpa [#allocation6], 0
    %s17 = scalar_lea.sflag [#allocation6], 1
    %18 = vsyncpa %s17, 0
    %19 = vsyncpa [#allocation9], 0
    %20 = vsyncpa [#allocation12], 0
    %21 = vsyncpa [#allocation15], 0
    %22 = vsyncpa [#allocation4], 0
    %s23 = scalar_lea.sflag [#allocation4], 1
    %24 = vsyncpa %s23, 0
    loop: start=0, step=1, limit=4
    $region2: #{tpu_custom_call.1} parent=1 // loop_pre_header
      _
    $region3: #{tpu_custom_call.1} parent=1 // loop_header
      %s26 = sphi 0, %s30
      %p27 = scmp.ge.s32.totalorder %s26, 4
      %s36 = sphi 0, %s38
      %s39 = sphi 0, %s36
      %s40 = sphi 0, %s39
      %s56 = sphi 0, %s40
      %s62 = sphi 0, %s64
      %s65 = sphi 0, %s62
      %s66 = sphi 0, %s65
      %s82 = sphi 0, %s66
      %s86 = sphi 0, %s86
      %s88 = sphi 0, %s86
      %s89 = sphi 0, %s88
      %s103 = sphi 0, %s89
      %s107 = sphi 0, %s107
      %s109 = sphi 0, %s107
      %s110 = sphi 0, %s109
      %s124 = sphi 0, %s110
      %s128 = sphi 0, %s128
      %s130 = sphi 0, %s128
      %s131 = sphi 0, %s130
      %s145 = sphi 0, %s131
      %s149 = sphi 0, %s149
      %s151 = sphi 0, %s149
      %s152 = sphi 0, %s151
      %s166 = sphi 0, %s152
      %s170 = sphi 0, %s170
      %s172 = sphi 0, %s170
      %s173 = sphi 0, %s172
      %s187 = sphi 0, %s173
      %s191 = sphi 0, %s191
      %s193 = sphi 0, %s191
      %s194 = sphi 0, %s193
      %s208 = sphi 0, %s194
      %s214 = sphi 0, %s216
      %s217 = sphi 0, %s214
      %s218 = sphi 0, %s217
      %s234 = sphi 0, %s218
    $region4: #{tpu_custom_call.1} parent=1 // loop_header_branch
      %29 = sbr.rel (%p27) target = $region8
    $region5: #{tpu_custom_call.1} parent=1 // loop_body
      %s31 = ssub.s32 %s26, 1
      %s32 = ssub.s32 %s26, 2
      %s33 = sadd.s32 %s26, 1
      %s34 = ssub.s32 %s26, %s33
      %p35 = scmp.eq.s32.totalorder %s34, 0
      %s37 = sadd.s32 %s36, 1
      %s38 = scalar_select %p35, %s36, %s37
      %p41 = pneg %p35
      %p42 = scmp.eq.s32.totalorder %s26, 1
      %p43 = por %p41, %p42
      %p44 = scmp.ne.s32.totalorder %s36, %s39
      %p45 = scmp.eq.s32.totalorder %s26, 0
      %p46 = por %p44, %p45
      %p47 = scmp.ne.s32.totalorder %s36, %s39
      %p48 = scmp.eq.s32.totalorder %s31, 1
      %p49 = por %p47, %p48
      %p50 = scmp.ne.s32.totalorder %s39, %s40
      %p51 = scmp.eq.s32.totalorder %s31, 0
      %p52 = por %p50, %p51
      %p53 = scmp.ne.s32.totalorder %s39, %s40
      %p54 = scmp.eq.s32.totalorder %s32, 1
      %p55 = por %p53, %p54
      %p57 = scmp.ne.s32.totalorder %s40, %s56
      %p58 = scmp.eq.s32.totalorder %s32, 0
      %p59 = por %p57, %p58
      %s60 = ssub.s32 %s26, %s33
      %p61 = scmp.eq.s32.totalorder %s60, 0
      %s63 = sadd.s32 %s62, 1
      %s64 = scalar_select %p61, %s62, %s63
      %p67 = pneg %p61
      %p68 = scmp.eq.s32.totalorder %s26, 1
      %p69 = por %p67, %p68
      %p70 = scmp.ne.s32.totalorder %s62, %s65
      %p71 = scmp.eq.s32.totalorder %s26, 0
      %p72 = por %p70, %p71
      %p73 = scmp.ne.s32.totalorder %s62, %s65
      %p74 = scmp.eq.s32.totalorder %s31, 1
      %p75 = por %p73, %p74
      %p76 = scmp.ne.s32.totalorder %s65, %s66
      %p77 = scmp.eq.s32.totalorder %s31, 0
      %p78 = por %p76, %p77
      %p79 = scmp.ne.s32.totalorder %s65, %s66
      %p80 = scmp.eq.s32.totalorder %s32, 1
      %p81 = por %p79, %p80
      %p83 = scmp.ne.s32.totalorder %s66, %s82
      %p84 = scmp.eq.s32.totalorder %s32, 0
      %p85 = por %p83, %p84
      %s87 = sadd.s32 %s86, 1
      %p90 = scmp.eq.s32.totalorder %s26, 1
      %p91 = scmp.ne.s32.totalorder %s86, %s88
      %p92 = scmp.eq.s32.totalorder %s26, 0
      %p93 = por %p91, %p92
      %p94 = scmp.ne.s32.totalorder %s86, %s88
      %p95 = scmp.eq.s32.totalorder %s31, 1
      %p96 = por %p94, %p95
      %p97 = scmp.ne.s32.totalorder %s88, %s89
      %p98 = scmp.eq.s32.totalorder %s31, 0
      %p99 = por %p97, %p98
      %p100 = scmp.ne.s32.totalorder %s88, %s89
      %p101 = scmp.eq.s32.totalorder %s32, 1
      %p102 = por %p100, %p101
      %p104 = scmp.ne.s32.totalorder %s89, %s103
      %p105 = scmp.eq.s32.totalorder %s32, 0
      %p106 = por %p104, %p105
      %s108 = sadd.s32 %s107, 1
      %p111 = scmp.eq.s32.totalorder %s26, 1
      %p112 = scmp.ne.s32.totalorder %s107, %s109
      %p113 = scmp.eq.s32.totalorder %s26, 0
      %p114 = por %p112, %p113
      %p115 = scmp.ne.s32.totalorder %s107, %s109
      %p116 = scmp.eq.s32.totalorder %s31, 1
      %p117 = por %p115, %p116
      %p118 = scmp.ne.s32.totalorder %s109, %s110
      %p119 = scmp.eq.s32.totalorder %s31, 0
      %p120 = por %p118, %p119
      %p121 = scmp.ne.s32.totalorder %s109, %s110
      %p122 = scmp.eq.s32.totalorder %s32, 1
      %p123 = por %p121, %p122
      %p125 = scmp.ne.s32.totalorder %s110, %s124
      %p126 = scmp.eq.s32.totalorder %s32, 0
      %p127 = por %p125, %p126
      %s129 = sadd.s32 %s128, 1
      %p132 = scmp.eq.s32.totalorder %s26, 1
      %p133 = scmp.ne.s32.totalorder %s128, %s130
      %p134 = scmp.eq.s32.totalorder %s26, 0
      %p135 = por %p133, %p134
      %p136 = scmp.ne.s32.totalorder %s128, %s130
      %p137 = scmp.eq.s32.totalorder %s31, 1
      %p138 = por %p136, %p137
      %p139 = scmp.ne.s32.totalorder %s130, %s131
      %p140 = scmp.eq.s32.totalorder %s31, 0
      %p141 = por %p139, %p140
      %p142 = scmp.ne.s32.totalorder %s130, %s131
      %p143 = scmp.eq.s32.totalorder %s32, 1
      %p144 = por %p142, %p143
      %p146 = scmp.ne.s32.totalorder %s131, %s145
      %p147 = scmp.eq.s32.totalorder %s32, 0
      %p148 = por %p146, %p147
      %s150 = sadd.s32 %s149, 1
      %p153 = scmp.eq.s32.totalorder %s26, 1
      %p154 = scmp.ne.s32.totalorder %s149, %s151
      %p155 = scmp.eq.s32.totalorder %s26, 0
      %p156 = por %p154, %p155
      %p157 = scmp.ne.s32.totalorder %s149, %s151
      %p158 = scmp.eq.s32.totalorder %s31, 1
      %p159 = por %p157, %p158
      %p160 = scmp.ne.s32.totalorder %s151, %s152
      %p161 = scmp.eq.s32.totalorder %s31, 0
      %p162 = por %p160, %p161
      %p163 = scmp.ne.s32.totalorder %s151, %s152
      %p164 = scmp.eq.s32.totalorder %s32, 1
      %p165 = por %p163, %p164
      %p167 = scmp.ne.s32.totalorder %s152, %s166
      %p168 = scmp.eq.s32.totalorder %s32, 0
      %p169 = por %p167, %p168
      %s171 = sadd.s32 %s170, 1
      %p174 = scmp.eq.s32.totalorder %s26, 1
      %p175 = scmp.ne.s32.totalorder %s170, %s172
      %p176 = scmp.eq.s32.totalorder %s26, 0
      %p177 = por %p175, %p176
      %p178 = scmp.ne.s32.totalorder %s170, %s172
      %p179 = scmp.eq.s32.totalorder %s31, 1
      %p180 = por %p178, %p179
      %p181 = scmp.ne.s32.totalorder %s172, %s173
      %p182 = scmp.eq.s32.totalorder %s31, 0
      %p183 = por %p181, %p182
      %p184 = scmp.ne.s32.totalorder %s172, %s173
      %p185 = scmp.eq.s32.totalorder %s32, 1
      %p186 = por %p184, %p185
      %p188 = scmp.ne.s32.totalorder %s173, %s187
      %p189 = scmp.eq.s32.totalorder %s32, 0
      %p190 = por %p188, %p189
      %s192 = sadd.s32 %s191, 1
      %p195 = scmp.eq.s32.totalorder %s26, 1
      %p196 = scmp.ne.s32.totalorder %s191, %s193
      %p197 = scmp.eq.s32.totalorder %s26, 0
      %p198 = por %p196, %p197
      %p199 = scmp.ne.s32.totalorder %s191, %s193
      %p200 = scmp.eq.s32.totalorder %s31, 1
      %p201 = por %p199, %p200
      %p202 = scmp.ne.s32.totalorder %s193, %s194
      %p203 = scmp.eq.s32.totalorder %s31, 0
      %p204 = por %p202, %p203
      %p205 = scmp.ne.s32.totalorder %s193, %s194
      %p206 = scmp.eq.s32.totalorder %s32, 1
      %p207 = por %p205, %p206
      %p209 = scmp.ne.s32.totalorder %s194, %s208
      %p210 = scmp.eq.s32.totalorder %s32, 0
      %p211 = por %p209, %p210
      %s212 = ssub.s32 %s26, %s33
      %p213 = scmp.eq.s32.totalorder %s212, 0
      %s215 = sadd.s32 %s214, 1
      %s216 = scalar_select %p213, %s214, %s215
      %p219 = pneg %p213
      %p220 = scmp.eq.s32.totalorder %s26, 1
      %p221 = por %p219, %p220
      %p222 = scmp.ne.s32.totalorder %s214, %s217
      %p223 = scmp.eq.s32.totalorder %s26, 0
      %p224 = por %p222, %p223
      %p225 = scmp.ne.s32.totalorder %s214, %s217
      %p226 = scmp.eq.s32.totalorder %s31, 1
      %p227 = por %p225, %p226
      %p228 = scmp.ne.s32.totalorder %s217, %s218
      %p229 = scmp.eq.s32.totalorder %s31, 0
      %p230 = por %p228, %p229
      %p231 = scmp.ne.s32.totalorder %s217, %s218
      %p232 = scmp.eq.s32.totalorder %s32, 1
      %p233 = por %p231, %p232
      %p235 = scmp.ne.s32.totalorder %s218, %s234
      %p236 = scmp.eq.s32.totalorder %s32, 0
      %p237 = por %p235, %p236
      %p238 = scmp.le.s32.totalorder 1, %s26
      %p239 = scmp.lt.s32.totalorder %s26, 3
      %p240 = pnand %p238, %p239
      %p241 = pneg %p240
      // Predicated region
      $region9: #{tpu_custom_call.1} parent=5 // pred_check
        _
      $region10: #{tpu_custom_call.1} parent=5 // pred_check_branch
        %243 = sbr.rel (%p240) target = $region12
      $region11: #{tpu_custom_call.1} parent=5 // pred_region
        %s244 = ssub.s32 %s26, 1
        // Predicated region
        $region13: #{tpu_custom_call.1} parent=11 // pred_check
          %p245 = pneg %p99
        $region14: #{tpu_custom_call.1} parent=11 // pred_check_branch
          %247 = sbr.rel (%p245) target = $region16
        $region15: #{tpu_custom_call.1} parent=11 // pred_region
          %s249 = ssub.s32 12288, 12288
          %250 = vsyncadd [#allocation6], %s249
          %s251 = sshll.u32 [#allocation7], 4
          %s252 = int_to_ptr.vmem [resolvable:$true] %s251
          %257 = dma.hbm_to_vmem [thread:$0]  %s2, 12288, %s252, [#allocation6], 128, 128, 8
        $region16: #{tpu_custom_call.1} parent=11 // pred_fallthru
          _
        // Predicated region
        $region17: #{tpu_custom_call.1} parent=11 // pred_check
          %p258 = pneg %p120
        $region18: #{tpu_custom_call.1} parent=11 // pred_check_branch
          %260 = sbr.rel (%p258) target = $region20
        $region19: #{tpu_custom_call.1} parent=11 // pred_region
          %s262 = ssub.s32 32, 32
          %263 = vsyncadd [#allocation9], %s262
          %s265 = sshll.u32 [#allocation8], 4
          %s266 = int_to_ptr.vmem [resolvable:$true] %s265
          %268 = dma.hbm_to_vmem [thread:$0]  %s3, 32, %s266, [#allocation9]
        $region20: #{tpu_custom_call.1} parent=11 // pred_fallthru
          _
        // Predicated region
        $region21: #{tpu_custom_call.1} parent=11 // pred_check
          %p269 = pneg %p141
        $region22: #{tpu_custom_call.1} parent=11 // pred_check_branch
          %271 = sbr.rel (%p269) target = $region24
        $region23: #{tpu_custom_call.1} parent=11 // pred_region
          %s273 = ssub.s32 32, 32
          %274 = vsyncadd [#allocation9], %s273
          %s276 = sshll.u32 [#allocation10], 4
          %s277 = int_to_ptr.vmem [resolvable:$true] %s276
          %279 = dma.hbm_to_vmem [thread:$0]  %s4, 32, %s277, [#allocation9]
        $region24: #{tpu_custom_call.1} parent=11 // pred_fallthru
          _
        // Predicated region
        $region25: #{tpu_custom_call.1} parent=11 // pred_check
          %p280 = pneg %p162
        $region26: #{tpu_custom_call.1} parent=11 // pred_check_branch
          %282 = sbr.rel (%p280) target = $region28
        $region27: #{tpu_custom_call.1} parent=11 // pred_region
          %s284 = ssub.s32 32, 32
          %285 = vsyncadd [#allocation12], %s284
          %s287 = sshll.u32 [#allocation11], 4
          %s288 = int_to_ptr.vmem [resolvable:$true] %s287
          %290 = dma.hbm_to_vmem [thread:$0]  %s5, 32, %s288, [#allocation12]
        $region28: #{tpu_custom_call.1} parent=11 // pred_fallthru
          _
        // Predicated region
        $region29: #{tpu_custom_call.1} parent=11 // pred_check
          %p291 = pneg %p183
        $region30: #{tpu_custom_call.1} parent=11 // pred_check_branch
          %293 = sbr.rel (%p291) target = $region32
        $region31: #{tpu_custom_call.1} parent=11 // pred_region
          %s295 = ssub.s32 16384, 16384
          %296 = vsyncadd [#allocation12], %s295
          %s297 = sshll.u32 [#allocation13], 4
          %s298 = int_to_ptr.vmem [resolvable:$true] %s297
          %303 = dma.hbm_to_vmem [thread:$0]  %s6, 16384, %s298, [#allocation12], 512, 512, 32
        $region32: #{tpu_custom_call.1} parent=11 // pred_fallthru
          _
        // Predicated region
        $region33: #{tpu_custom_call.1} parent=11 // pred_check
          %p304 = pneg %p204
        $region34: #{tpu_custom_call.1} parent=11 // pred_check_branch
          %306 = sbr.rel (%p304) target = $region36
        $region35: #{tpu_custom_call.1} parent=11 // pred_region
          %s308 = ssub.s32 128, 128
          %309 = vsyncadd [#allocation15], %s308
          %s311 = sshll.u32 [#allocation14], 4
          %s312 = int_to_ptr.vmem [resolvable:$true] %s311
          %314 = dma.hbm_to_vmem [thread:$0]  %s7, 128, %s312, [#allocation15]
        $region36: #{tpu_custom_call.1} parent=11 // pred_fallthru
          _
      $region12: #{tpu_custom_call.1} parent=5 // pred_fallthru
        _
      %p315 = scmp.lt.s32.totalorder %s26, 2
      // Predicated region
      $region37: #{tpu_custom_call.1} parent=5 // pred_check
        %p316 = pneg %p315
      $region38: #{tpu_custom_call.1} parent=5 // pred_check_branch
        %318 = sbr.rel (%p316) target = $region40
      $region39: #{tpu_custom_call.1} parent=5 // pred_region
        // Predicated region
        $region41: #{tpu_custom_call.1} parent=39 // pred_check
          %p319 = pneg %p46
        $region42: #{tpu_custom_call.1} parent=39 // pred_check_branch
          %321 = sbr.rel (%p319) target = $region44
        $region43: #{tpu_custom_call.1} parent=39 // pred_region
          %s322 = sand.u32 %s36, 1
          %s323 = scalar_lea.sflag [#allocation3], %s322
          %s324 = sand.u32 %s36, 1
          %s325 = smul.addr %s324, 1152
          %s326 = scalar_lea.vmem [#allocation2], %s325
          %s327 = smul.u32 24, %s26
          %s329 = ssub.s32 18432, 18432
          %330 = vsyncadd %s323, %s329
          %s331 = smul.addr %s327, 6
          %s332 = smul.addr %s331, 128
          %s333 = scalar_lea.hbm %s0, %s332
          %s334 = sshll.u32 %s326, 4
          %s335 = int_to_ptr.vmem [resolvable:$true] %s334
          %340 = dma.hbm_to_vmem [thread:$0]  %s333, 18432, %s335, %s323, 768, 768, 48
        $region44: #{tpu_custom_call.1} parent=39 // pred_fallthru
          _
        // Predicated region
        $region45: #{tpu_custom_call.1} parent=39 // pred_check
          %p341 = pneg %p72
        $region46: #{tpu_custom_call.1} parent=39 // pred_check_branch
          %343 = sbr.rel (%p341) target = $region48
        $region47: #{tpu_custom_call.1} parent=39 // pred_region
          %s344 = sand.u32 %s26, 1
          %s345 = scalar_lea.sflag [#allocation6], %s344
          %s346 = sand.u32 %s62, 1
          %s347 = smul.addr %s346, 384
          %s348 = scalar_lea.vmem [#allocation5], %s347
          %s349 = smul.u32 24, %s26
          %s351 = ssub.s32 6144, 6144
          %352 = vsyncadd %s345, %s351
          %s353 = smul.addr %s349, 2
          %s354 = smul.addr %s353, 128
          %s355 = scalar_lea.hbm %s1, %s354
          %s356 = sshll.u32 %s348, 4
          %s357 = int_to_ptr.vmem [resolvable:$true] %s356
          %362 = dma.hbm_to_vmem [thread:$0]  %s355, 6144, %s357, %s345, 256, 256, 16
        $region48: #{tpu_custom_call.1} parent=39 // pred_fallthru
          _
      $region40: #{tpu_custom_call.1} parent=5 // pred_fallthru
        _
      %p363 = scmp.le.s32.totalorder 1, %s26
      %p364 = scmp.lt.s32.totalorder %s26, 3
      %p365 = pnand %p363, %p364
      %p366 = pneg %p365
      // Predicated region
      $region49: #{tpu_custom_call.1} parent=5 // pred_check
        _
      $region50: #{tpu_custom_call.1} parent=5 // pred_check_branch
        %368 = sbr.rel (%p365) target = $region52
      $region51: #{tpu_custom_call.1} parent=5 // pred_region
        %s369 = ssub.s32 %s26, 1
        %s370 = sand.u32 %s39, 1
        %s371 = scalar_lea.sflag [#allocation3], %s370
        %s372 = sand.u32 %s39, 1
        %s373 = smul.addr %s372, 1152
        %s374 = scalar_lea.vmem [#allocation2], %s373
        // Predicated region
        $region53: #{tpu_custom_call.1} parent=51 // pred_check
          %p375 = pneg %p52
        $region54: #{tpu_custom_call.1} parent=51 // pred_check_branch
          %377 = sbr.rel (%p375) target = $region56
        $region55: #{tpu_custom_call.1} parent=51 // pred_region
          %378 = dma.done %s371, 18432
        $region56: #{tpu_custom_call.1} parent=51 // pred_fallthru
          _
        %s379 = sand.u32 %s31, 1
        %s380 = scalar_lea.sflag [#allocation6], %s379
        %s381 = sand.u32 %s65, 1
        %s382 = smul.addr %s381, 384
        %s383 = scalar_lea.vmem [#allocation5], %s382
        // Predicated region
        $region57: #{tpu_custom_call.1} parent=51 // pred_check
          %p384 = pneg %p78
        $region58: #{tpu_custom_call.1} parent=51 // pred_check_branch
          %386 = sbr.rel (%p384) target = $region60
        $region59: #{tpu_custom_call.1} parent=51 // pred_region
          %387 = dma.done %s380, 6144
        $region60: #{tpu_custom_call.1} parent=51 // pred_fallthru
          _
        // Predicated region
        $region61: #{tpu_custom_call.1} parent=51 // pred_check
          %p388 = pneg %p99
        $region62: #{tpu_custom_call.1} parent=51 // pred_check_branch
          %390 = sbr.rel (%p388) target = $region64
        $region63: #{tpu_custom_call.1} parent=51 // pred_region
          %391 = dma.done [#allocation6], 12288
        $region64: #{tpu_custom_call.1} parent=51 // pred_fallthru
          _
        // Predicated region
        $region65: #{tpu_custom_call.1} parent=51 // pred_check
          %p392 = pneg %p120
        $region66: #{tpu_custom_call.1} parent=51 // pred_check_branch
          %394 = sbr.rel (%p392) target = $region68
        $region67: #{tpu_custom_call.1} parent=51 // pred_region
          %395 = dma.done [#allocation9], 32
        $region68: #{tpu_custom_call.1} parent=51 // pred_fallthru
          _
        // Predicated region
        $region69: #{tpu_custom_call.1} parent=51 // pred_check
          %p396 = pneg %p141
        $region70: #{tpu_custom_call.1} parent=51 // pred_check_branch
          %398 = sbr.rel (%p396) target = $region72
        $region71: #{tpu_custom_call.1} parent=51 // pred_region
          %399 = dma.done [#allocation9], 32
        $region72: #{tpu_custom_call.1} parent=51 // pred_fallthru
          _
        // Predicated region
        $region73: #{tpu_custom_call.1} parent=51 // pred_check
          %p400 = pneg %p162
        $region74: #{tpu_custom_call.1} parent=51 // pred_check_branch
          %402 = sbr.rel (%p400) target = $region76
        $region75: #{tpu_custom_call.1} parent=51 // pred_region
          %403 = dma.done [#allocation12], 32
        $region76: #{tpu_custom_call.1} parent=51 // pred_fallthru
          _
        // Predicated region
        $region77: #{tpu_custom_call.1} parent=51 // pred_check
          %p404 = pneg %p183
        $region78: #{tpu_custom_call.1} parent=51 // pred_check_branch
          %406 = sbr.rel (%p404) target = $region80
        $region79: #{tpu_custom_call.1} parent=51 // pred_region
          %407 = dma.done [#allocation12], 16384
        $region80: #{tpu_custom_call.1} parent=51 // pred_fallthru
          _
        // Predicated region
        $region81: #{tpu_custom_call.1} parent=51 // pred_check
          %p408 = pneg %p204
        $region82: #{tpu_custom_call.1} parent=51 // pred_check_branch
          %410 = sbr.rel (%p408) target = $region84
        $region83: #{tpu_custom_call.1} parent=51 // pred_region
          %411 = dma.done [#allocation15], 128
        $region84: #{tpu_custom_call.1} parent=51 // pred_fallthru
          _
        %s412 = sand.u32 %s39, 1
        %s413 = scalar_lea.sflag [#allocation3], %s412
        %s414 = sand.u32 %s39, 1
        %s415 = smul.addr %s414, 1152
        %s416 = scalar_lea.vmem [#allocation2], %s415
        %p417 = pneg %p52
        %p418 = pneg %p49
        %s419 = sand.u32 %s31, 1
        %s420 = scalar_lea.sflag [#allocation6], %s419
        %s421 = sand.u32 %s65, 1
        %s422 = smul.addr %s421, 384
        %s423 = scalar_lea.vmem [#allocation5], %s422
        %p424 = pneg %p78
        %p425 = pneg %p75
        %p426 = pneg %p99
        %p427 = pneg %p96
        %p428 = pneg %p120
        %p429 = pneg %p117
        %p430 = pneg %p141
        %p431 = pneg %p138
        %p432 = pneg %p162
        %p433 = pneg %p159
        %p434 = pneg %p183
        %p435 = pneg %p180
        %p436 = pneg %p204
        %p437 = pneg %p201
        %p438 = pneg %p230
        %p439 = pneg %p227
        %s440 = sand.u32 %s217, 1
        %s441 = scalar_lea.sflag [#allocation4], %s440
        %s442 = sand.u32 %s217, 1
        %s443 = smul.addr %s442, 768
        %s444 = scalar_lea.vmem [#allocation16], %s443
        %s445 = smul.u32 24, %s31
        %s446 = smul.u32 24, %s31
        %s447 = smul.u32 24, %s31
        %v448 = vld [vmem:[%s374] sm:$0xff]
        %v449 = vld [vmem:[%s374 + $0x8] sm:$0xff]
        %v450 = vld [vmem:[%s374 + $0x10] sm:$0xff]
        %v451 = vld [vmem:[%s374 + $0x18] sm:$0xff]
        %v452 = vld [vmem:[%s374 + $0x20] sm:$0xff]
        %v453 = vld [vmem:[%s374 + $0x28] sm:$0xff]
        %v454 = vld [vmem:[%s374 + $0x30] sm:$0xff]
        %v455 = vld [vmem:[%s374 + $0x38] sm:$0xff]
        %v456 = vld [vmem:[%s374 + $0x40] sm:$0xff]
        %v457 = vld [vmem:[%s374 + $0x48] sm:$0xff]
        %v458 = vld [vmem:[%s374 + $0x50] sm:$0xff]
        %v459 = vld [vmem:[%s374 + $0x58] sm:$0xff]
        %v460 = vld [vmem:[%s374 + $0x60] sm:$0xff]
        %v461 = vld [vmem:[%s374 + $0x68] sm:$0xff]
        %v462 = vld [vmem:[%s374 + $0x70] sm:$0xff]
        %v463 = vld [vmem:[%s374 + $0x78] sm:$0xff]
        %v464 = vld [vmem:[%s374 + $0x80] sm:$0xff]
        %v465 = vld [vmem:[%s374 + $0x88] sm:$0xff]
        %v466 = vld [vmem:[%s374 + $0x90] sm:$0xff]
        %v467 = vld [vmem:[%s374 + $0x98] sm:$0xff]
        %v468 = vld [vmem:[%s374 + $0xa0] sm:$0xff]
        %v469 = vld [vmem:[%s374 + $0xa8] sm:$0xff]
        %v470 = vld [vmem:[%s374 + $0xb0] sm:$0xff]
        %v471 = vld [vmem:[%s374 + $0xb8] sm:$0xff]
        %v472 = vld [vmem:[%s374 + $0xc0] sm:$0xff]
        %v473 = vld [vmem:[%s374 + $0xc8] sm:$0xff]
        %v474 = vld [vmem:[%s374 + $0xd0] sm:$0xff]
        %v475 = vld [vmem:[%s374 + $0xd8] sm:$0xff]
        %v476 = vld [vmem:[%s374 + $0xe0] sm:$0xff]
        %v477 = vld [vmem:[%s374 + $0xe8] sm:$0xff]
        %v478 = vld [vmem:[%s374 + $0xf0] sm:$0xff]
        %v479 = vld [vmem:[%s374 + $0xf8] sm:$0xff]
        %v480 = vld [vmem:[%s374 + $0x100] sm:$0xff]
        %v481 = vld [vmem:[%s374 + $0x108] sm:$0xff]
        %v482 = vld [vmem:[%s374 + $0x110] sm:$0xff]
        %v483 = vld [vmem:[%s374 + $0x118] sm:$0xff]
        %v484 = vld [vmem:[%s374 + $0x120] sm:$0xff]
        %v485 = vld [vmem:[%s374 + $0x128] sm:$0xff]
        %v486 = vld [vmem:[%s374 + $0x130] sm:$0xff]
        %v487 = vld [vmem:[%s374 + $0x138] sm:$0xff]
        %v488 = vld [vmem:[%s374 + $0x140] sm:$0xff]
        %v489 = vld [vmem:[%s374 + $0x148] sm:$0xff]
        %v490 = vld [vmem:[%s374 + $0x150] sm:$0xff]
        %v491 = vld [vmem:[%s374 + $0x158] sm:$0xff]
        %v492 = vld [vmem:[%s374 + $0x160] sm:$0xff]
        %v493 = vld [vmem:[%s374 + $0x168] sm:$0xff]
        %v494 = vld [vmem:[%s374 + $0x170] sm:$0xff]
        %v495 = vld [vmem:[%s374 + $0x178] sm:$0xff]
        %v496 = vld [vmem:[%s374 + $0x180] sm:$0xff]
        %v497 = vld [vmem:[%s374 + $0x188] sm:$0xff]
        %v498 = vld [vmem:[%s374 + $0x190] sm:$0xff]
        %v499 = vld [vmem:[%s374 + $0x198] sm:$0xff]
        %v500 = vld [vmem:[%s374 + $0x1a0] sm:$0xff]
        %v501 = vld [vmem:[%s374 + $0x1a8] sm:$0xff]
        %v502 = vld [vmem:[%s374 + $0x1b0] sm:$0xff]
        %v503 = vld [vmem:[%s374 + $0x1b8] sm:$0xff]
        %v504 = vld [vmem:[%s374 + $0x1c0] sm:$0xff]
        %v505 = vld [vmem:[%s374 + $0x1c8] sm:$0xff]
        %v506 = vld [vmem:[%s374 + $0x1d0] sm:$0xff]
        %v507 = vld [vmem:[%s374 + $0x1d8] sm:$0xff]
        %v508 = vld [vmem:[%s374 + $0x1e0] sm:$0xff]
        %v509 = vld [vmem:[%s374 + $0x1e8] sm:$0xff]
        %v510 = vld [vmem:[%s374 + $0x1f0] sm:$0xff]
        %v511 = vld [vmem:[%s374 + $0x1f8] sm:$0xff]
        %v512 = vld [vmem:[%s374 + $0x200] sm:$0xff]
        %v513 = vld [vmem:[%s374 + $0x208] sm:$0xff]
        %v514 = vld [vmem:[%s374 + $0x210] sm:$0xff]
        %v515 = vld [vmem:[%s374 + $0x218] sm:$0xff]
        %v516 = vld [vmem:[%s374 + $0x220] sm:$0xff]
        %v517 = vld [vmem:[%s374 + $0x228] sm:$0xff]
        %v518 = vld [vmem:[%s374 + $0x230] sm:$0xff]
        %v519 = vld [vmem:[%s374 + $0x238] sm:$0xff]
        %v520 = vld [vmem:[%s374 + $0x240] sm:$0xff]
        %v521 = vld [vmem:[%s374 + $0x248] sm:$0xff]
        %v522 = vld [vmem:[%s374 + $0x250] sm:$0xff]
        %v523 = vld [vmem:[%s374 + $0x258] sm:$0xff]
        %v524 = vld [vmem:[%s374 + $0x260] sm:$0xff]
        %v525 = vld [vmem:[%s374 + $0x268] sm:$0xff]
        %v526 = vld [vmem:[%s374 + $0x270] sm:$0xff]
        %v527 = vld [vmem:[%s374 + $0x278] sm:$0xff]
        %v528 = vld [vmem:[%s374 + $0x280] sm:$0xff]
        %v529 = vld [vmem:[%s374 + $0x288] sm:$0xff]
        %v530 = vld [vmem:[%s374 + $0x290] sm:$0xff]
        %v531 = vld [vmem:[%s374 + $0x298] sm:$0xff]
        %v532 = vld [vmem:[%s374 + $0x2a0] sm:$0xff]
        %v533 = vld [vmem:[%s374 + $0x2a8] sm:$0xff]
        %v534 = vld [vmem:[%s374 + $0x2b0] sm:$0xff]
        %v535 = vld [vmem:[%s374 + $0x2b8] sm:$0xff]
        %v536 = vld [vmem:[%s374 + $0x2c0] sm:$0xff]
        %v537 = vld [vmem:[%s374 + $0x2c8] sm:$0xff]
        %v538 = vld [vmem:[%s374 + $0x2d0] sm:$0xff]
        %v539 = vld [vmem:[%s374 + $0x2d8] sm:$0xff]
        %v540 = vld [vmem:[%s374 + $0x2e0] sm:$0xff]
        %v541 = vld [vmem:[%s374 + $0x2e8] sm:$0xff]
        %v542 = vld [vmem:[%s374 + $0x2f0] sm:$0xff]
        %v543 = vld [vmem:[%s374 + $0x2f8] sm:$0xff]
        %v544 = vld [vmem:[%s374 + $0x300] sm:$0xff]
        %v545 = vld [vmem:[%s374 + $0x308] sm:$0xff]
        %v546 = vld [vmem:[%s374 + $0x310] sm:$0xff]
        %v547 = vld [vmem:[%s374 + $0x318] sm:$0xff]
        %v548 = vld [vmem:[%s374 + $0x320] sm:$0xff]
        %v549 = vld [vmem:[%s374 + $0x328] sm:$0xff]
        %v550 = vld [vmem:[%s374 + $0x330] sm:$0xff]
        %v551 = vld [vmem:[%s374 + $0x338] sm:$0xff]
        %v552 = vld [vmem:[%s374 + $0x340] sm:$0xff]
        %v553 = vld [vmem:[%s374 + $0x348] sm:$0xff]
        %v554 = vld [vmem:[%s374 + $0x350] sm:$0xff]
        %v555 = vld [vmem:[%s374 + $0x358] sm:$0xff]
        %v556 = vld [vmem:[%s374 + $0x360] sm:$0xff]
        %v557 = vld [vmem:[%s374 + $0x368] sm:$0xff]
        %v558 = vld [vmem:[%s374 + $0x370] sm:$0xff]
        %v559 = vld [vmem:[%s374 + $0x378] sm:$0xff]
        %v560 = vld [vmem:[%s374 + $0x380] sm:$0xff]
        %v561 = vld [vmem:[%s374 + $0x388] sm:$0xff]
        %v562 = vld [vmem:[%s374 + $0x390] sm:$0xff]
        %v563 = vld [vmem:[%s374 + $0x398] sm:$0xff]
        %v564 = vld [vmem:[%s374 + $0x3a0] sm:$0xff]
        %v565 = vld [vmem:[%s374 + $0x3a8] sm:$0xff]
        %v566 = vld [vmem:[%s374 + $0x3b0] sm:$0xff]
        %v567 = vld [vmem:[%s374 + $0x3b8] sm:$0xff]
        %v568 = vld [vmem:[%s374 + $0x3c0] sm:$0xff]
        %v569 = vld [vmem:[%s374 + $0x3c8] sm:$0xff]
        %v570 = vld [vmem:[%s374 + $0x3d0] sm:$0xff]
        %v571 = vld [vmem:[%s374 + $0x3d8] sm:$0xff]
        %v572 = vld [vmem:[%s374 + $0x3e0] sm:$0xff]
        %v573 = vld [vmem:[%s374 + $0x3e8] sm:$0xff]
        %v574 = vld [vmem:[%s374 + $0x3f0] sm:$0xff]
        %v575 = vld [vmem:[%s374 + $0x3f8] sm:$0xff]
        %v576 = vld [vmem:[%s374 + $0x400] sm:$0xff]
        %v577 = vld [vmem:[%s374 + $0x408] sm:$0xff]
        %v578 = vld [vmem:[%s374 + $0x410] sm:$0xff]
        %v579 = vld [vmem:[%s374 + $0x418] sm:$0xff]
        %v580 = vld [vmem:[%s374 + $0x420] sm:$0xff]
        %v581 = vld [vmem:[%s374 + $0x428] sm:$0xff]
        %v582 = vld [vmem:[%s374 + $0x430] sm:$0xff]
        %v583 = vld [vmem:[%s374 + $0x438] sm:$0xff]
        %v584 = vld [vmem:[%s374 + $0x440] sm:$0xff]
        %v585 = vld [vmem:[%s374 + $0x448] sm:$0xff]
        %v586 = vld [vmem:[%s374 + $0x450] sm:$0xff]
        %v587 = vld [vmem:[%s374 + $0x458] sm:$0xff]
        %v588 = vld [vmem:[%s374 + $0x460] sm:$0xff]
        %v589 = vld [vmem:[%s374 + $0x468] sm:$0xff]
        %v590 = vld [vmem:[%s374 + $0x470] sm:$0xff]
        %v591 = vld [vmem:[%s374 + $0x478] sm:$0xff]
        %v592 = vpack.c.bf16 %v454, %v448
        %v593 = vpack.c.bf16 %v455, %v449
        %v594 = vpack.c.bf16 %v456, %v450
        %v595 = vpack.c.bf16 %v457, %v451
        %v596 = vpack.c.bf16 %v458, %v452
        %v597 = vpack.c.bf16 %v459, %v453
        %v598 = vpack.c.bf16 %v466, %v460
        %v599 = vpack.c.bf16 %v467, %v461
        %v600 = vpack.c.bf16 %v468, %v462
        %v601 = vpack.c.bf16 %v469, %v463
        %v602 = vpack.c.bf16 %v470, %v464
        %v603 = vpack.c.bf16 %v471, %v465
        %v604 = vpack.c.bf16 %v478, %v472
        %v605 = vpack.c.bf16 %v479, %v473
        %v606 = vpack.c.bf16 %v480, %v474
        %v607 = vpack.c.bf16 %v481, %v475
        %v608 = vpack.c.bf16 %v482, %v476
        %v609 = vpack.c.bf16 %v483, %v477
        %v610 = vpack.c.bf16 %v490, %v484
        %v611 = vpack.c.bf16 %v491, %v485
        %v612 = vpack.c.bf16 %v492, %v486
        %v613 = vpack.c.bf16 %v493, %v487
        %v614 = vpack.c.bf16 %v494, %v488
        %v615 = vpack.c.bf16 %v495, %v489
        %v616 = vpack.c.bf16 %v502, %v496
        %v617 = vpack.c.bf16 %v503, %v497
        %v618 = vpack.c.bf16 %v504, %v498
        %v619 = vpack.c.bf16 %v505, %v499
        %v620 = vpack.c.bf16 %v506, %v500
        %v621 = vpack.c.bf16 %v507, %v501
        %v622 = vpack.c.bf16 %v514, %v508
        %v623 = vpack.c.bf16 %v515, %v509
        %v624 = vpack.c.bf16 %v516, %v510
        %v625 = vpack.c.bf16 %v517, %v511
        %v626 = vpack.c.bf16 %v518, %v512
        %v627 = vpack.c.bf16 %v519, %v513
        %v628 = vpack.c.bf16 %v526, %v520
        %v629 = vpack.c.bf16 %v527, %v521
        %v630 = vpack.c.bf16 %v528, %v522
        %v631 = vpack.c.bf16 %v529, %v523
        %v632 = vpack.c.bf16 %v530, %v524
        %v633 = vpack.c.bf16 %v531, %v525
        %v634 = vpack.c.bf16 %v538, %v532
        %v635 = vpack.c.bf16 %v539, %v533
        %v636 = vpack.c.bf16 %v540, %v534
        %v637 = vpack.c.bf16 %v541, %v535
        %v638 = vpack.c.bf16 %v542, %v536
        %v639 = vpack.c.bf16 %v543, %v537
        %v640 = vpack.c.bf16 %v550, %v544
        %v641 = vpack.c.bf16 %v551, %v545
        %v642 = vpack.c.bf16 %v552, %v546
        %v643 = vpack.c.bf16 %v553, %v547
        %v644 = vpack.c.bf16 %v554, %v548
        %v645 = vpack.c.bf16 %v555, %v549
        %v646 = vpack.c.bf16 %v562, %v556
        %v647 = vpack.c.bf16 %v563, %v557
        %v648 = vpack.c.bf16 %v564, %v558
        %v649 = vpack.c.bf16 %v565, %v559
        %v650 = vpack.c.bf16 %v566, %v560
        %v651 = vpack.c.bf16 %v567, %v561
        %v652 = vpack.c.bf16 %v574, %v568
        %v653 = vpack.c.bf16 %v575, %v569
        %v654 = vpack.c.bf16 %v576, %v570
        %v655 = vpack.c.bf16 %v577, %v571
        %v656 = vpack.c.bf16 %v578, %v572
        %v657 = vpack.c.bf16 %v579, %v573
        %v658 = vpack.c.bf16 %v586, %v580
        %v659 = vpack.c.bf16 %v587, %v581
        %v660 = vpack.c.bf16 %v588, %v582
        %v661 = vpack.c.bf16 %v589, %v583
        %v662 = vpack.c.bf16 %v590, %v584
        %v663 = vpack.c.bf16 %v591, %v585
        %v664 = vld [vmem:[#allocation7] sm:$0xff]
        %v665 = vld [vmem:[#allocation7 + $0x8] sm:$0xff]
        %v666 = vld [vmem:[#allocation7 + $0x10] sm:$0xff]
        %v667 = vld [vmem:[#allocation7 + $0x18] sm:$0xff]
        %v668 = vld [vmem:[#allocation7 + $0x20] sm:$0xff]
        %v669 = vld [vmem:[#allocation7 + $0x28] sm:$0xff]
        %v670 = vld [vmem:[#allocation7 + $0x30] sm:$0xff]
        %v671 = vld [vmem:[#allocation7 + $0x38] sm:$0xff]
        %v672 = vld [vmem:[#allocation7 + $0x40] sm:$0xff]
        %v673 = vld [vmem:[#allocation7 + $0x48] sm:$0xff]
        %v674 = vld [vmem:[#allocation7 + $0x50] sm:$0xff]
        %v675 = vld [vmem:[#allocation7 + $0x58] sm:$0xff]
        %v676 = vld [vmem:[#allocation7 + $0x60] sm:$0xff]
        %v677 = vld [vmem:[#allocation7 + $0x68] sm:$0xff]
        %v678 = vld [vmem:[#allocation7 + $0x70] sm:$0xff]
        %v679 = vld [vmem:[#allocation7 + $0x78] sm:$0xff]
        %v680 = vld [vmem:[#allocation7 + $0x80] sm:$0xff]
        %v681 = vld [vmem:[#allocation7 + $0x88] sm:$0xff]
        %v682 = vld [vmem:[#allocation7 + $0x90] sm:$0xff]
        %v683 = vld [vmem:[#allocation7 + $0x98] sm:$0xff]
        %v684 = vld [vmem:[#allocation7 + $0xa0] sm:$0xff]
        %v685 = vld [vmem:[#allocation7 + $0xa8] sm:$0xff]
        %v686 = vld [vmem:[#allocation7 + $0xb0] sm:$0xff]
        %v687 = vld [vmem:[#allocation7 + $0xb8] sm:$0xff]
        %v688 = vld [vmem:[#allocation7 + $0xc0] sm:$0xff]
        %v689 = vld [vmem:[#allocation7 + $0xc8] sm:$0xff]
        %v690 = vld [vmem:[#allocation7 + $0xd0] sm:$0xff]
        %v691 = vld [vmem:[#allocation7 + $0xd8] sm:$0xff]
        %v692 = vld [vmem:[#allocation7 + $0xe0] sm:$0xff]
        %v693 = vld [vmem:[#allocation7 + $0xe8] sm:$0xff]
        %v694 = vld [vmem:[#allocation7 + $0xf0] sm:$0xff]
        %v695 = vld [vmem:[#allocation7 + $0xf8] sm:$0xff]
        %v696 = vld [vmem:[#allocation7 + $0x100] sm:$0xff]
        %v697 = vld [vmem:[#allocation7 + $0x108] sm:$0xff]
        %v698 = vld [vmem:[#allocation7 + $0x110] sm:$0xff]
        %v699 = vld [vmem:[#allocation7 + $0x118] sm:$0xff]
        %v700 = vld [vmem:[#allocation7 + $0x120] sm:$0xff]
        %v701 = vld [vmem:[#allocation7 + $0x128] sm:$0xff]
        %v702 = vld [vmem:[#allocation7 + $0x130] sm:$0xff]
        %v703 = vld [vmem:[#allocation7 + $0x138] sm:$0xff]
        %v704 = vld [vmem:[#allocation7 + $0x140] sm:$0xff]
        %v705 = vld [vmem:[#allocation7 + $0x148] sm:$0xff]
        %v706 = vld [vmem:[#allocation7 + $0x150] sm:$0xff]
        %v707 = vld [vmem:[#allocation7 + $0x158] sm:$0xff]
        %v708 = vld [vmem:[#allocation7 + $0x160] sm:$0xff]
        %v709 = vld [vmem:[#allocation7 + $0x168] sm:$0xff]
        %v710 = vld [vmem:[#allocation7 + $0x170] sm:$0xff]
        %v711 = vld [vmem:[#allocation7 + $0x178] sm:$0xff]
        %v712 = vld [vmem:[#allocation7 + $0x180] sm:$0xff]
        %v713 = vld [vmem:[#allocation7 + $0x188] sm:$0xff]
        %v714 = vld [vmem:[#allocation7 + $0x190] sm:$0xff]
        %v715 = vld [vmem:[#allocation7 + $0x198] sm:$0xff]
        %v716 = vld [vmem:[#allocation7 + $0x1a0] sm:$0xff]
        %v717 = vld [vmem:[#allocation7 + $0x1a8] sm:$0xff]
        %v718 = vld [vmem:[#allocation7 + $0x1b0] sm:$0xff]
        %v719 = vld [vmem:[#allocation7 + $0x1b8] sm:$0xff]
        %v720 = vld [vmem:[#allocation7 + $0x1c0] sm:$0xff]
        %v721 = vld [vmem:[#allocation7 + $0x1c8] sm:$0xff]
        %v722 = vld [vmem:[#allocation7 + $0x1d0] sm:$0xff]
        %v723 = vld [vmem:[#allocation7 + $0x1d8] sm:$0xff]
        %v724 = vld [vmem:[#allocation7 + $0x1e0] sm:$0xff]
        %v725 = vld [vmem:[#allocation7 + $0x1e8] sm:$0xff]
        %v726 = vld [vmem:[#allocation7 + $0x1f0] sm:$0xff]
        %v727 = vld [vmem:[#allocation7 + $0x1f8] sm:$0xff]
        %v728 = vld [vmem:[#allocation7 + $0x200] sm:$0xff]
        %v729 = vld [vmem:[#allocation7 + $0x208] sm:$0xff]
        %v730 = vld [vmem:[#allocation7 + $0x210] sm:$0xff]
        %v731 = vld [vmem:[#allocation7 + $0x218] sm:$0xff]
        %v732 = vld [vmem:[#allocation7 + $0x220] sm:$0xff]
        %v733 = vld [vmem:[#allocation7 + $0x228] sm:$0xff]
        %v734 = vld [vmem:[#allocation7 + $0x230] sm:$0xff]
        %v735 = vld [vmem:[#allocation7 + $0x238] sm:$0xff]
        %v736 = vld [vmem:[#allocation7 + $0x240] sm:$0xff]
        %v737 = vld [vmem:[#allocation7 + $0x248] sm:$0xff]
        %v738 = vld [vmem:[#allocation7 + $0x250] sm:$0xff]
        %v739 = vld [vmem:[#allocation7 + $0x258] sm:$0xff]
        %v740 = vld [vmem:[#allocation7 + $0x260] sm:$0xff]
        %v741 = vld [vmem:[#allocation7 + $0x268] sm:$0xff]
        %v742 = vld [vmem:[#allocation7 + $0x270] sm:$0xff]
        %v743 = vld [vmem:[#allocation7 + $0x278] sm:$0xff]
        %v744 = vld [vmem:[#allocation7 + $0x280] sm:$0xff]
        %v745 = vld [vmem:[#allocation7 + $0x288] sm:$0xff]
        %v746 = vld [vmem:[#allocation7 + $0x290] sm:$0xff]
        %v747 = vld [vmem:[#allocation7 + $0x298] sm:$0xff]
        %v748 = vld [vmem:[#allocation7 + $0x2a0] sm:$0xff]
        %v749 = vld [vmem:[#allocation7 + $0x2a8] sm:$0xff]
        %v750 = vld [vmem:[#allocation7 + $0x2b0] sm:$0xff]
        %v751 = vld [vmem:[#allocation7 + $0x2b8] sm:$0xff]
        %v752 = vld [vmem:[#allocation7 + $0x2c0] sm:$0xff]
        %v753 = vld [vmem:[#allocation7 + $0x2c8] sm:$0xff]
        %v754 = vld [vmem:[#allocation7 + $0x2d0] sm:$0xff]
        %v755 = vld [vmem:[#allocation7 + $0x2d8] sm:$0xff]
        %v756 = vld [vmem:[#allocation7 + $0x2e0] sm:$0xff]
        %v757 = vld [vmem:[#allocation7 + $0x2e8] sm:$0xff]
        %v758 = vld [vmem:[#allocation7 + $0x2f0] sm:$0xff]
        %v759 = vld [vmem:[#allocation7 + $0x2f8] sm:$0xff]
        %v760 = vld [vmem:[#allocation8] sm:$0x3]
        %v762 = vlaneseq
        %v763 = vshrl.u32 %v762, 7
        %v764 = vsub.s32 0, %v763
        %v765 = vrot.slane %v760, %v764
        %v766 = vlaneseq
        %v767 = vshrl.u32 %v766, 7
        %v768 = vsub.s32 1, %v767
        %v769 = vrot.slane %v760, %v768
        %v868 = vunpack.c.l.b16 %v664
        %v869 = vunpack.c.h.b16 %v664
        %v870 = vunpack.c.l.b16 %v665
        %v871 = vunpack.c.h.b16 %v665
        %v872 = vunpack.c.l.b16 %v666
        %v873 = vunpack.c.h.b16 %v666
        %v874 = vunpack.c.l.b16 %v667
        %v875 = vunpack.c.h.b16 %v667
        %v876 = vunpack.c.l.b16 %v668
        %v877 = vunpack.c.h.b16 %v668
        %v878 = vunpack.c.l.b16 %v669
        %v879 = vunpack.c.h.b16 %v669
        %v880 = vunpack.c.l.b16 %v670
        %v881 = vunpack.c.h.b16 %v670
        %v882 = vunpack.c.l.b16 %v671
        %v883 = vunpack.c.h.b16 %v671
        %v884 = vunpack.c.l.b16 %v672
        %v885 = vunpack.c.h.b16 %v672
        %v886 = vunpack.c.l.b16 %v673
        %v887 = vunpack.c.h.b16 %v673
        %v888 = vunpack.c.l.b16 %v674
        %v889 = vunpack.c.h.b16 %v674
        %v890 = vunpack.c.l.b16 %v675
        %v891 = vunpack.c.h.b16 %v675
        %v892 = vunpack.c.l.b16 %v676
        %v893 = vunpack.c.h.b16 %v676
        %v894 = vunpack.c.l.b16 %v677
        %v895 = vunpack.c.h.b16 %v677
        %v896 = vunpack.c.l.b16 %v678
        %v897 = vunpack.c.h.b16 %v678
        %v898 = vunpack.c.l.b16 %v679
        %v899 = vunpack.c.h.b16 %v679
        %v900 = vunpack.c.l.b16 %v680
        %v901 = vunpack.c.h.b16 %v680
        %v902 = vunpack.c.l.b16 %v681
        %v903 = vunpack.c.h.b16 %v681
        %v904 = vunpack.c.l.b16 %v682
        %v905 = vunpack.c.h.b16 %v682
        %v906 = vunpack.c.l.b16 %v683
        %v907 = vunpack.c.h.b16 %v683
        %v908 = vunpack.c.l.b16 %v684
        %v909 = vunpack.c.h.b16 %v684
        %v910 = vunpack.c.l.b16 %v685
        %v911 = vunpack.c.h.b16 %v685
        %v912 = vunpack.c.l.b16 %v686
        %v913 = vunpack.c.h.b16 %v686
        %v914 = vunpack.c.l.b16 %v687
        %v915 = vunpack.c.h.b16 %v687
        %v916 = vunpack.c.l.b16 %v688
        %v917 = vunpack.c.h.b16 %v688
        %v918 = vunpack.c.l.b16 %v689
        %v919 = vunpack.c.h.b16 %v689
        %v920 = vunpack.c.l.b16 %v690
        %v921 = vunpack.c.h.b16 %v690
        %v922 = vunpack.c.l.b16 %v691
        %v923 = vunpack.c.h.b16 %v691
        %v924 = vunpack.c.l.b16 %v692
        %v925 = vunpack.c.h.b16 %v692
        %v926 = vunpack.c.l.b16 %v693
        %v927 = vunpack.c.h.b16 %v693
        %v928 = vunpack.c.l.b16 %v694
        %v929 = vunpack.c.h.b16 %v694
        %v930 = vunpack.c.l.b16 %v695
        %v931 = vunpack.c.h.b16 %v695
        %v932 = vunpack.c.l.b16 %v696
        %v933 = vunpack.c.h.b16 %v696
        %v934 = vunpack.c.l.b16 %v697
        %v935 = vunpack.c.h.b16 %v697
        %v936 = vunpack.c.l.b16 %v698
        %v937 = vunpack.c.h.b16 %v698
        %v938 = vunpack.c.l.b16 %v699
        %v939 = vunpack.c.h.b16 %v699
        %v940 = vunpack.c.l.b16 %v700
        %v941 = vunpack.c.h.b16 %v700
        %v942 = vunpack.c.l.b16 %v701
        %v943 = vunpack.c.h.b16 %v701
        %v944 = vunpack.c.l.b16 %v702
        %v945 = vunpack.c.h.b16 %v702
        %v946 = vunpack.c.l.b16 %v703
        %v947 = vunpack.c.h.b16 %v703
        %v948 = vunpack.c.l.b16 %v704
        %v949 = vunpack.c.h.b16 %v704
        %v950 = vunpack.c.l.b16 %v705
        %v951 = vunpack.c.h.b16 %v705
        %v952 = vunpack.c.l.b16 %v706
        %v953 = vunpack.c.h.b16 %v706
        %v954 = vunpack.c.l.b16 %v707
        %v955 = vunpack.c.h.b16 %v707
        %v956 = vunpack.c.l.b16 %v708
        %v957 = vunpack.c.h.b16 %v708
        %v958 = vunpack.c.l.b16 %v709
        %v959 = vunpack.c.h.b16 %v709
        %v960 = vunpack.c.l.b16 %v710
        %v961 = vunpack.c.h.b16 %v710
        %v962 = vunpack.c.l.b16 %v711
        %v963 = vunpack.c.h.b16 %v711
        %v964 = vunpack.c.l.b16 %v712
        %v965 = vunpack.c.h.b16 %v712
        %v966 = vunpack.c.l.b16 %v713
        %v967 = vunpack.c.h.b16 %v713
        %v968 = vunpack.c.l.b16 %v714
        %v969 = vunpack.c.h.b16 %v714
        %v970 = vunpack.c.l.b16 %v715
        %v971 = vunpack.c.h.b16 %v715
        %v972 = vunpack.c.l.b16 %v716
        %v973 = vunpack.c.h.b16 %v716
        %v974 = vunpack.c.l.b16 %v717
        %v975 = vunpack.c.h.b16 %v717
        %v976 = vunpack.c.l.b16 %v718
        %v977 = vunpack.c.h.b16 %v718
        %v978 = vunpack.c.l.b16 %v719
        %v979 = vunpack.c.h.b16 %v719
        %v980 = vunpack.c.l.b16 %v720
        %v981 = vunpack.c.h.b16 %v720
        %v982 = vunpack.c.l.b16 %v721
        %v983 = vunpack.c.h.b16 %v721
        %v984 = vunpack.c.l.b16 %v722
        %v985 = vunpack.c.h.b16 %v722
        %v986 = vunpack.c.l.b16 %v723
        %v987 = vunpack.c.h.b16 %v723
        %v988 = vunpack.c.l.b16 %v724
        %v989 = vunpack.c.h.b16 %v724
        %v990 = vunpack.c.l.b16 %v725
        %v991 = vunpack.c.h.b16 %v725
        %v992 = vunpack.c.l.b16 %v726
        %v993 = vunpack.c.h.b16 %v726
        %v994 = vunpack.c.l.b16 %v727
        %v995 = vunpack.c.h.b16 %v727
        %v996 = vunpack.c.l.b16 %v728
        %v997 = vunpack.c.h.b16 %v728
        %v998 = vunpack.c.l.b16 %v729
        %v999 = vunpack.c.h.b16 %v729
        %v1000 = vunpack.c.l.b16 %v730
        %v1001 = vunpack.c.h.b16 %v730
        %v1002 = vunpack.c.l.b16 %v731
        %v1003 = vunpack.c.h.b16 %v731
        %v1004 = vunpack.c.l.b16 %v732
        %v1005 = vunpack.c.h.b16 %v732
        %v1006 = vunpack.c.l.b16 %v733
        %v1007 = vunpack.c.h.b16 %v733
        %v1008 = vunpack.c.l.b16 %v734
        %v1009 = vunpack.c.h.b16 %v734
        %v1010 = vunpack.c.l.b16 %v735
        %v1011 = vunpack.c.h.b16 %v735
        %v1012 = vunpack.c.l.b16 %v736
        %v1013 = vunpack.c.h.b16 %v736
        %v1014 = vunpack.c.l.b16 %v737
        %v1015 = vunpack.c.h.b16 %v737
        %v1016 = vunpack.c.l.b16 %v738
        %v1017 = vunpack.c.h.b16 %v738
        %v1018 = vunpack.c.l.b16 %v739
        %v1019 = vunpack.c.h.b16 %v739
        %v1020 = vunpack.c.l.b16 %v740
        %v1021 = vunpack.c.h.b16 %v740
        %v1022 = vunpack.c.l.b16 %v741
        %v1023 = vunpack.c.h.b16 %v741
        %v1024 = vunpack.c.l.b16 %v742
        %v1025 = vunpack.c.h.b16 %v742
        %v1026 = vunpack.c.l.b16 %v743
        %v1027 = vunpack.c.h.b16 %v743
        %v1028 = vunpack.c.l.b16 %v744
        %v1029 = vunpack.c.h.b16 %v744
        %v1030 = vunpack.c.l.b16 %v745
        %v1031 = vunpack.c.h.b16 %v745
        %v1032 = vunpack.c.l.b16 %v746
        %v1033 = vunpack.c.h.b16 %v746
        %v1034 = vunpack.c.l.b16 %v747
        %v1035 = vunpack.c.h.b16 %v747
        %v1036 = vunpack.c.l.b16 %v748
        %v1037 = vunpack.c.h.b16 %v748
        %v1038 = vunpack.c.l.b16 %v749
        %v1039 = vunpack.c.h.b16 %v749
        %v1040 = vunpack.c.l.b16 %v750
        %v1041 = vunpack.c.h.b16 %v750
        %v1042 = vunpack.c.l.b16 %v751
        %v1043 = vunpack.c.h.b16 %v751
        %v1044 = vunpack.c.l.b16 %v752
        %v1045 = vunpack.c.h.b16 %v752
        %v1046 = vunpack.c.l.b16 %v753
        %v1047 = vunpack.c.h.b16 %v753
        %v1048 = vunpack.c.l.b16 %v754
        %v1049 = vunpack.c.h.b16 %v754
        %v1050 = vunpack.c.l.b16 %v755
        %v1051 = vunpack.c.h.b16 %v755
        %v1052 = vunpack.c.l.b16 %v756
        %v1053 = vunpack.c.h.b16 %v756
        %v1054 = vunpack.c.l.b16 %v757
        %v1055 = vunpack.c.h.b16 %v757
        %v1056 = vunpack.c.l.b16 %v758
        %v1057 = vunpack.c.h.b16 %v758
        %v1058 = vunpack.c.l.b16 %v759
        %v1059 = vunpack.c.h.b16 %v759
        %v1060 = vpack.c.b16 %v870, %v868
        %v1061 = vpack.c.b16 %v871, %v869
        %v1062 = vpack.c.b16 %v874, %v872
        %v1063 = vpack.c.b16 %v875, %v873
        %v1064 = vpack.c.b16 %v878, %v876
        %v1065 = vpack.c.b16 %v879, %v877
        %v1066 = vpack.c.b16 %v882, %v880
        %v1067 = vpack.c.b16 %v883, %v881
        %v1068 = vpack.c.b16 %v886, %v884
        %v1069 = vpack.c.b16 %v887, %v885
        %v1070 = vpack.c.b16 %v890, %v888
        %v1071 = vpack.c.b16 %v891, %v889
        %v1072 = vpack.c.b16 %v894, %v892
        %v1073 = vpack.c.b16 %v895, %v893
        %v1074 = vpack.c.b16 %v898, %v896
        %v1075 = vpack.c.b16 %v899, %v897
        %v1076 = vpack.c.b16 %v902, %v900
        %v1077 = vpack.c.b16 %v903, %v901
        %v1078 = vpack.c.b16 %v906, %v904
        %v1079 = vpack.c.b16 %v907, %v905
        %v1080 = vpack.c.b16 %v910, %v908
        %v1081 = vpack.c.b16 %v911, %v909
        %v1082 = vpack.c.b16 %v914, %v912
        %v1083 = vpack.c.b16 %v915, %v913
        %v1084 = vpack.c.b16 %v918, %v916
        %v1085 = vpack.c.b16 %v919, %v917
        %v1086 = vpack.c.b16 %v922, %v920
        %v1087 = vpack.c.b16 %v923, %v921
        %v1088 = vpack.c.b16 %v926, %v924
        %v1089 = vpack.c.b16 %v927, %v925
        %v1090 = vpack.c.b16 %v930, %v928
        %v1091 = vpack.c.b16 %v931, %v929
        %v1092 = vpack.c.b16 %v934, %v932
        %v1093 = vpack.c.b16 %v935, %v933
        %v1094 = vpack.c.b16 %v938, %v936
        %v1095 = vpack.c.b16 %v939, %v937
        %v1096 = vpack.c.b16 %v942, %v940
        %v1097 = vpack.c.b16 %v943, %v941
        %v1098 = vpack.c.b16 %v946, %v944
        %v1099 = vpack.c.b16 %v947, %v945
        %v1100 = vpack.c.b16 %v950, %v948
        %v1101 = vpack.c.b16 %v951, %v949
        %v1102 = vpack.c.b16 %v954, %v952
        %v1103 = vpack.c.b16 %v955, %v953
        %v1104 = vpack.c.b16 %v958, %v956
        %v1105 = vpack.c.b16 %v959, %v957
        %v1106 = vpack.c.b16 %v962, %v960
        %v1107 = vpack.c.b16 %v963, %v961
        %v1108 = vpack.c.b16 %v966, %v964
        %v1109 = vpack.c.b16 %v967, %v965
        %v1110 = vpack.c.b16 %v970, %v968
        %v1111 = vpack.c.b16 %v971, %v969
        %v1112 = vpack.c.b16 %v974, %v972
        %v1113 = vpack.c.b16 %v975, %v973
        %v1114 = vpack.c.b16 %v978, %v976
        %v1115 = vpack.c.b16 %v979, %v977
        %v1116 = vpack.c.b16 %v982, %v980
        %v1117 = vpack.c.b16 %v983, %v981
        %v1118 = vpack.c.b16 %v986, %v984
        %v1119 = vpack.c.b16 %v987, %v985
        %v1120 = vpack.c.b16 %v990, %v988
        %v1121 = vpack.c.b16 %v991, %v989
        %v1122 = vpack.c.b16 %v994, %v992
        %v1123 = vpack.c.b16 %v995, %v993
        %v1124 = vpack.c.b16 %v998, %v996
        %v1125 = vpack.c.b16 %v999, %v997
        %v1126 = vpack.c.b16 %v1002, %v1000
        %v1127 = vpack.c.b16 %v1003, %v1001
        %v1128 = vpack.c.b16 %v1006, %v1004
        %v1129 = vpack.c.b16 %v1007, %v1005
        %v1130 = vpack.c.b16 %v1010, %v1008
        %v1131 = vpack.c.b16 %v1011, %v1009
        %v1132 = vpack.c.b16 %v1014, %v1012
        %v1133 = vpack.c.b16 %v1015, %v1013
        %v1134 = vpack.c.b16 %v1018, %v1016
        %v1135 = vpack.c.b16 %v1019, %v1017
        %v1136 = vpack.c.b16 %v1022, %v1020
        %v1137 = vpack.c.b16 %v1023, %v1021
        %v1138 = vpack.c.b16 %v1026, %v1024
        %v1139 = vpack.c.b16 %v1027, %v1025
        %v1140 = vpack.c.b16 %v1030, %v1028
        %v1141 = vpack.c.b16 %v1031, %v1029
        %v1142 = vpack.c.b16 %v1034, %v1032
        %v1143 = vpack.c.b16 %v1035, %v1033
        %v1144 = vpack.c.b16 %v1038, %v1036
        %v1145 = vpack.c.b16 %v1039, %v1037
        %v1146 = vpack.c.b16 %v1042, %v1040
        %v1147 = vpack.c.b16 %v1043, %v1041
        %v1148 = vpack.c.b16 %v1046, %v1044
        %v1149 = vpack.c.b16 %v1047, %v1045
        %v1150 = vpack.c.b16 %v1050, %v1048
        %v1151 = vpack.c.b16 %v1051, %v1049
        %v1152 = vpack.c.b16 %v1054, %v1052
        %v1153 = vpack.c.b16 %v1055, %v1053
        %v1154 = vpack.c.b16 %v1058, %v1056
        %v1155 = vpack.c.b16 %v1059, %v1057
        %1252 = vmatprep.subr.bf16.mxu0 %v1061
        %1253 = vmatpush1.bf16.msra.mxu0 %v1060
        %1254 = vmatprep.subr.bf16.mxu0 %v1063
        %1255 = vmatpush1.bf16.msra.mxu0 %v1062
        %1256 = vmatprep.subr.bf16.mxu0 %v1065
        %1257 = vmatpush1.bf16.msra.mxu0 %v1064
        %1258 = vmatprep.subr.bf16.mxu0 %v1067
        %1259 = vmatpush1.bf16.msra.mxu0 %v1066
        %1260 = vmatprep.subr.bf16.mxu0 %v1069
        %1261 = vmatpush1.bf16.msra.mxu0 %v1068
        %1262 = vmatprep.subr.bf16.mxu0 %v1071
        %1263 = vmatpush1.bf16.msra.mxu0 %v1070
        %1264 = vmatprep.subr.bf16.mxu0 %v1073
        %1265 = vmatpush1.bf16.msra.mxu0 %v1072
        %1266 = vmatprep.subr.bf16.mxu0 %v1075
        %1267 = vmatpush1.bf16.msra.mxu0 %v1074
        %1268 = vmatprep.subr.bf16.mxu0 %v1077
        %1269 = vmatpush1.bf16.msra.mxu0 %v1076
        %1270 = vmatprep.subr.bf16.mxu0 %v1079
        %1271 = vmatpush1.bf16.msra.mxu0 %v1078
        %1272 = vmatprep.subr.bf16.mxu0 %v1081
        %1273 = vmatpush1.bf16.msra.mxu0 %v1080
        %1274 = vmatprep.subr.bf16.mxu0 %v1083
        %1275 = vmatpush1.bf16.msra.mxu0 %v1082
        %1276 = vmatprep.subr.bf16.mxu0 %v1085
        %1277 = vmatpush1.bf16.msra.mxu0 %v1084
        %1278 = vmatprep.subr.bf16.mxu0 %v1087
        %1279 = vmatpush1.bf16.msra.mxu0 %v1086
        %1280 = vmatprep.subr.bf16.mxu0 %v1089
        %1281 = vmatpush1.bf16.msra.mxu0 %v1088
        %1282 = vmatprep.subr.bf16.mxu0 %v1091
        %1283 = vmatpush1.bf16.msra.mxu0 %v1090
        %1284 = vmatprep.mubr.bf16.mxu0 %v593
        %1285 = vmatmul.mubr.bf16.gmra.mrb[0].mxu0 %v592
        %v1286 = vpop.f32.mrb[0].mxu0
        %v1287 = vadd.f32 %v765, %v1286
        %v1288 = vpop.f32.mrb[0].mxu0
        %v1289 = vadd.f32 %v769, %v1288
        %v1290 = vpop.f32.mrb[0].mxu0
        %v1291 = vadd.f32 %v765, %v1290
        %v1292 = vpop.f32.mrb[0].mxu0
        %v1293 = vadd.f32 %v769, %v1292
        %1294 = vmatprep.mubr.bf16.mxu0 %v599
        %1295 = vmatmul.mubr.bf16.gmra.mrb[0].mxu0 %v598
        %v1296 = vpop.f32.mrb[0].mxu0
        %v1297 = vadd.f32 %v765, %v1296
        %v1298 = vpop.f32.mrb[0].mxu0
        %v1299 = vadd.f32 %v769, %v1298
        %v1300 = vpop.f32.mrb[0].mxu0
        %v1301 = vadd.f32 %v765, %v1300
        %v1302 = vpop.f32.mrb[0].mxu0
        %v1303 = vadd.f32 %v769, %v1302
        %1304 = vmatprep.mubr.bf16.mxu0 %v605
        %1305 = vmatmul.mubr.bf16.gmra.mrb[0].mxu0 %v604
        %v1306 = vpop.f32.mrb[0].mxu0
        %v1307 = vadd.f32 %v765, %v1306
        %v1308 = vpop.f32.mrb[0].mxu0
        %v1309 = vadd.f32 %v769, %v1308
        %v1310 = vpop.f32.mrb[0].mxu0
        %v1311 = vadd.f32 %v765, %v1310
        %v1312 = vpop.f32.mrb[0].mxu0
        %v1313 = vadd.f32 %v769, %v1312
        %1314 = vmatprep.mubr.bf16.mxu0 %v611
        %1315 = vmatmul.mubr.bf16.gmra.mrb[0].mxu0 %v610
        %v1316 = vpop.f32.mrb[0].mxu0
        %v1317 = vadd.f32 %v765, %v1316
        %v1318 = vpop.f32.mrb[0].mxu0
        %v1319 = vadd.f32 %v769, %v1318
        %v1320 = vpop.f32.mrb[0].mxu0
        %v1321 = vadd.f32 %v765, %v1320
        %v1322 = vpop.f32.mrb[0].mxu0
        %v1323 = vadd.f32 %v769, %v1322
        %1324 = vmatprep.mubr.bf16.mxu0 %v617
        %1325 = vmatmul.mubr.bf16.gmra.mrb[0].mxu0 %v616
        %v1326 = vpop.f32.mrb[0].mxu0
        %v1327 = vadd.f32 %v765, %v1326
        %v1328 = vpop.f32.mrb[0].mxu0
        %v1329 = vadd.f32 %v769, %v1328
        %v1330 = vpop.f32.mrb[0].mxu0
        %v1331 = vadd.f32 %v765, %v1330
        %v1332 = vpop.f32.mrb[0].mxu0
        %v1333 = vadd.f32 %v769, %v1332
        %1334 = vmatprep.mubr.bf16.mxu0 %v623
        %1335 = vmatmul.mubr.bf16.gmra.mrb[0].mxu0 %v622
        %v1336 = vpop.f32.mrb[0].mxu0
        %v1337 = vadd.f32 %v765, %v1336
        %v1338 = vpop.f32.mrb[0].mxu0
        %v1339 = vadd.f32 %v769, %v1338
        %v1340 = vpop.f32.mrb[0].mxu0
        %v1341 = vadd.f32 %v765, %v1340
        %v1342 = vpop.f32.mrb[0].mxu0
        %v1343 = vadd.f32 %v769, %v1342
        %1344 = vmatprep.mubr.bf16.mxu0 %v629
        %1345 = vmatmul.mubr.bf16.gmra.mrb[0].mxu0 %v628
        %v1346 = vpop.f32.mrb[0].mxu0
        %v1347 = vadd.f32 %v765, %v1346
        %v1348 = vpop.f32.mrb[0].mxu0
        %v1349 = vadd.f32 %v769, %v1348
        %v1350 = vpop.f32.mrb[0].mxu0
        %v1351 = vadd.f32 %v765, %v1350
        %v1352 = vpop.f32.mrb[0].mxu0
        %v1353 = vadd.f32 %v769, %v1352
        %1354 = vmatprep.mubr.bf16.mxu0 %v635
        %1355 = vmatmul.mubr.bf16.gmra.mrb[0].mxu0 %v634
        %v1356 = vpop.f32.mrb[0].mxu0
        %v1357 = vadd.f32 %v765, %v1356
        %v1358 = vpop.f32.mrb[0].mxu0
        %v1359 = vadd.f32 %v769, %v1358
        %v1360 = vpop.f32.mrb[0].mxu0
        %v1361 = vadd.f32 %v765, %v1360
        %v1362 = vpop.f32.mrb[0].mxu0
        %v1363 = vadd.f32 %v769, %v1362
        %1364 = vmatprep.mubr.bf16.mxu0 %v641
        %1365 = vmatmul.mubr.bf16.gmra.mrb[0].mxu0 %v640
        %v1366 = vpop.f32.mrb[0].mxu0
        %v1367 = vadd.f32 %v765, %v1366
        %v1368 = vpop.f32.mrb[0].mxu0
        %v1369 = vadd.f32 %v769, %v1368
        %v1370 = vpop.f32.mrb[0].mxu0
        %v1371 = vadd.f32 %v765, %v1370
        %v1372 = vpop.f32.mrb[0].mxu0
        %v1373 = vadd.f32 %v769, %v1372
        %1374 = vmatprep.mubr.bf16.mxu0 %v647
        %1375 = vmatmul.mubr.bf16.gmra.mrb[0].mxu0 %v646
        %v1376 = vpop.f32.mrb[0].mxu0
        %v1377 = vadd.f32 %v765, %v1376
        %v1378 = vpop.f32.mrb[0].mxu0
        %v1379 = vadd.f32 %v769, %v1378
        %v1380 = vpop.f32.mrb[0].mxu0
        %v1381 = vadd.f32 %v765, %v1380
        %v1382 = vpop.f32.mrb[0].mxu0
        %v1383 = vadd.f32 %v769, %v1382
        %1384 = vmatprep.mubr.bf16.mxu0 %v653
        %1385 = vmatmul.mubr.bf16.gmra.mrb[0].mxu0 %v652
        %v1386 = vpop.f32.mrb[0].mxu0
        %v1387 = vadd.f32 %v765, %v1386
        %v1388 = vpop.f32.mrb[0].mxu0
        %v1389 = vadd.f32 %v769, %v1388
        %v1390 = vpop.f32.mrb[0].mxu0
        %v1391 = vadd.f32 %v765, %v1390
        %v1392 = vpop.f32.mrb[0].mxu0
        %v1393 = vadd.f32 %v769, %v1392
        %1394 = vmatprep.mubr.bf16.mxu0 %v659
        %1395 = vmatmul.mubr.bf16.gmra.mrb[0].mxu0 %v658
        %v1396 = vpop.f32.mrb[0].mxu0
        %v1397 = vadd.f32 %v765, %v1396
        %v1398 = vpop.f32.mrb[0].mxu0
        %v1399 = vadd.f32 %v769, %v1398
        %v1400 = vpop.f32.mrb[0].mxu0
        %v1401 = vadd.f32 %v765, %v1400
        %v1402 = vpop.f32.mrb[0].mxu0
        %v1403 = vadd.f32 %v769, %v1402
        %1404 = vdwg.mxu0
        %1405 = vmatprep.subr.bf16.mxu0 %v1093
        %1406 = vmatpush1.bf16.msra.mxu0 %v1092
        %1407 = vmatprep.subr.bf16.mxu0 %v1095
        %1408 = vmatpush1.bf16.msra.mxu0 %v1094
        %1409 = vmatprep.subr.bf16.mxu0 %v1097
        %1410 = vmatpush1.bf16.msra.mxu0 %v1096
        %1411 = vmatprep.subr.bf16.mxu0 %v1099
        %1412 = vmatpush1.bf16.msra.mxu0 %v1098
        %1413 = vmatprep.subr.bf16.mxu0 %v1101
        %1414 = vmatpush1.bf16.msra.mxu0 %v1100
        %1415 = vmatprep.subr.bf16.mxu0 %v1103
        %1416 = vmatpush1.bf16.msra.mxu0 %v1102
        %1417 = vmatprep.subr.bf16.mxu0 %v1105
        %1418 = vmatpush1.bf16.msra.mxu0 %v1104
        %1419 = vmatprep.subr.bf16.mxu0 %v1107
        %1420 = vmatpush1.bf16.msra.mxu0 %v1106
        %1421 = vmatprep.subr.bf16.mxu0 %v1109
        %1422 = vmatpush1.bf16.msra.mxu0 %v1108
        %1423 = vmatprep.subr.bf16.mxu0 %v1111
        %1424 = vmatpush1.bf16.msra.mxu0 %v1110
        %1425 = vmatprep.subr.bf16.mxu0 %v1113
        %1426 = vmatpush1.bf16.msra.mxu0 %v1112
        %1427 = vmatprep.subr.bf16.mxu0 %v1115
        %1428 = vmatpush1.bf16.msra.mxu0 %v1114
        %1429 = vmatprep.subr.bf16.mxu0 %v1117
        %1430 = vmatpush1.bf16.msra.mxu0 %v1116
        %1431 = vmatprep.subr.bf16.mxu0 %v1119
        %1432 = vmatpush1.bf16.msra.mxu0 %v1118
        %1433 = vmatprep.subr.bf16.mxu0 %v1121
        %1434 = vmatpush1.bf16.msra.mxu0 %v1120
        %1435 = vmatprep.subr.bf16.mxu0 %v1123
        %1436 = vmatpush1.bf16.msra.mxu0 %v1122
        %1437 = vmatprep.mubr.bf16.mxu0 %v595
        %1438 = vmatmul.mubr.bf16.gmra.mrb[0].mxu0 %v594
        %v1439 = vpop.f32.mrb[0].mxu0
        %v1440 = vadd.f32 %v1287, %v1439
        %v1441 = vpop.f32.mrb[0].mxu0
        %v1442 = vadd.f32 %v1289, %v1441
        %v1443 = vpop.f32.mrb[0].mxu0
        %v1444 = vadd.f32 %v1291, %v1443
        %v1445 = vpop.f32.mrb[0].mxu0
        %v1446 = vadd.f32 %v1293, %v1445
        %1447 = vmatprep.mubr.bf16.mxu0 %v601
        %1448 = vmatmul.mubr.bf16.gmra.mrb[0].mxu0 %v600
        %v1449 = vpop.f32.mrb[0].mxu0
        %v1450 = vadd.f32 %v1297, %v1449
        %v1451 = vpop.f32.mrb[0].mxu0
        %v1452 = vadd.f32 %v1299, %v1451
        %v1453 = vpop.f32.mrb[0].mxu0
        %v1454 = vadd.f32 %v1301, %v1453
        %v1455 = vpop.f32.mrb[0].mxu0
        %v1456 = vadd.f32 %v1303, %v1455
        %1457 = vmatprep.mubr.bf16.mxu0 %v607
        %1458 = vmatmul.mubr.bf16.gmra.mrb[0].mxu0 %v606
        %v1459 = vpop.f32.mrb[0].mxu0
        %v1460 = vadd.f32 %v1307, %v1459
        %v1461 = vpop.f32.mrb[0].mxu0
        %v1462 = vadd.f32 %v1309, %v1461
        %v1463 = vpop.f32.mrb[0].mxu0
        %v1464 = vadd.f32 %v1311, %v1463
        %v1465 = vpop.f32.mrb[0].mxu0
        %v1466 = vadd.f32 %v1313, %v1465
        %1467 = vmatprep.mubr.bf16.mxu0 %v613
        %1468 = vmatmul.mubr.bf16.gmra.mrb[0].mxu0 %v612
        %v1469 = vpop.f32.mrb[0].mxu0
        %v1470 = vadd.f32 %v1317, %v1469
        %v1471 = vpop.f32.mrb[0].mxu0
        %v1472 = vadd.f32 %v1319, %v1471
        %v1473 = vpop.f32.mrb[0].mxu0
        %v1474 = vadd.f32 %v1321, %v1473
        %v1475 = vpop.f32.mrb[0].mxu0
        %v1476 = vadd.f32 %v1323, %v1475
        %1477 = vmatprep.mubr.bf16.mxu0 %v619
        %1478 = vmatmul.mubr.bf16.gmra.mrb[0].mxu0 %v618
        %v1479 = vpop.f32.mrb[0].mxu0
        %v1480 = vadd.f32 %v1327, %v1479
        %v1481 = vpop.f32.mrb[0].mxu0
        %v1482 = vadd.f32 %v1329, %v1481
        %v1483 = vpop.f32.mrb[0].mxu0
        %v1484 = vadd.f32 %v1331, %v1483
        %v1485 = vpop.f32.mrb[0].mxu0
        %v1486 = vadd.f32 %v1333, %v1485
        %1487 = vmatprep.mubr.bf16.mxu0 %v625
        %1488 = vmatmul.mubr.bf16.gmra.mrb[0].mxu0 %v624
        %v1489 = vpop.f32.mrb[0].mxu0
        %v1490 = vadd.f32 %v1337, %v1489
        %v1491 = vpop.f32.mrb[0].mxu0
        %v1492 = vadd.f32 %v1339, %v1491
        %v1493 = vpop.f32.mrb[0].mxu0
        %v1494 = vadd.f32 %v1341, %v1493
        %v1495 = vpop.f32.mrb[0].mxu0
        %v1496 = vadd.f32 %v1343, %v1495
        %1497 = vmatprep.mubr.bf16.mxu0 %v631
        %1498 = vmatmul.mubr.bf16.gmra.mrb[0].mxu0 %v630
        %v1499 = vpop.f32.mrb[0].mxu0
        %v1500 = vadd.f32 %v1347, %v1499
        %v1501 = vpop.f32.mrb[0].mxu0
        %v1502 = vadd.f32 %v1349, %v1501
        %v1503 = vpop.f32.mrb[0].mxu0
        %v1504 = vadd.f32 %v1351, %v1503
        %v1505 = vpop.f32.mrb[0].mxu0
        %v1506 = vadd.f32 %v1353, %v1505
        %1507 = vmatprep.mubr.bf16.mxu0 %v637
        %1508 = vmatmul.mubr.bf16.gmra.mrb[0].mxu0 %v636
        %v1509 = vpop.f32.mrb[0].mxu0
        %v1510 = vadd.f32 %v1357, %v1509
        %v1511 = vpop.f32.mrb[0].mxu0
        %v1512 = vadd.f32 %v1359, %v1511
        %v1513 = vpop.f32.mrb[0].mxu0
        %v1514 = vadd.f32 %v1361, %v1513
        %v1515 = vpop.f32.mrb[0].mxu0
        %v1516 = vadd.f32 %v1363, %v1515
        %1517 = vmatprep.mubr.bf16.mxu0 %v643
        %1518 = vmatmul.mubr.bf16.gmra.mrb[0].mxu0 %v642
        %v1519 = vpop.f32.mrb[0].mxu0
        %v1520 = vadd.f32 %v1367, %v1519
        %v1521 = vpop.f32.mrb[0].mxu0
        %v1522 = vadd.f32 %v1369, %v1521
        %v1523 = vpop.f32.mrb[0].mxu0
        %v1524 = vadd.f32 %v1371, %v1523
        %v1525 = vpop.f32.mrb[0].mxu0
        %v1526 = vadd.f32 %v1373, %v1525
        %1527 = vmatprep.mubr.bf16.mxu0 %v649
        %1528 = vmatmul.mubr.bf16.gmra.mrb[0].mxu0 %v648
        %v1529 = vpop.f32.mrb[0].mxu0
        %v1530 = vadd.f32 %v1377, %v1529
        %v1531 = vpop.f32.mrb[0].mxu0
        %v1532 = vadd.f32 %v1379, %v1531
        %v1533 = vpop.f32.mrb[0].mxu0
        %v1534 = vadd.f32 %v1381, %v1533
        %v1535 = vpop.f32.mrb[0].mxu0
        %v1536 = vadd.f32 %v1383, %v1535
        %1537 = vmatprep.mubr.bf16.mxu0 %v655
        %1538 = vmatmul.mubr.bf16.gmra.mrb[0].mxu0 %v654
        %v1539 = vpop.f32.mrb[0].mxu0
        %v1540 = vadd.f32 %v1387, %v1539
        %v1541 = vpop.f32.mrb[0].mxu0
        %v1542 = vadd.f32 %v1389, %v1541
        %v1543 = vpop.f32.mrb[0].mxu0
        %v1544 = vadd.f32 %v1391, %v1543
        %v1545 = vpop.f32.mrb[0].mxu0
        %v1546 = vadd.f32 %v1393, %v1545
        %1547 = vmatprep.mubr.bf16.mxu0 %v661
        %1548 = vmatmul.mubr.bf16.gmra.mrb[0].mxu0 %v660
        %v1549 = vpop.f32.mrb[0].mxu0
        %v1550 = vadd.f32 %v1397, %v1549
        %v1551 = vpop.f32.mrb[0].mxu0
        %v1552 = vadd.f32 %v1399, %v1551
        %v1553 = vpop.f32.mrb[0].mxu0
        %v1554 = vadd.f32 %v1401, %v1553
        %v1555 = vpop.f32.mrb[0].mxu0
        %v1556 = vadd.f32 %v1403, %v1555
        %1557 = vdwg.mxu0
        %1558 = vmatprep.subr.bf16.mxu0 %v1125
        %1559 = vmatpush1.bf16.msra.mxu0 %v1124
        %1560 = vmatprep.subr.bf16.mxu0 %v1127
        %1561 = vmatpush1.bf16.msra.mxu0 %v1126
        %1562 = vmatprep.subr.bf16.mxu0 %v1129
        %1563 = vmatpush1.bf16.msra.mxu0 %v1128
        %1564 = vmatprep.subr.bf16.mxu0 %v1131
        %1565 = vmatpush1.bf16.msra.mxu0 %v1130
        %1566 = vmatprep.subr.bf16.mxu0 %v1133
        %1567 = vmatpush1.bf16.msra.mxu0 %v1132
        %1568 = vmatprep.subr.bf16.mxu0 %v1135
        %1569 = vmatpush1.bf16.msra.mxu0 %v1134
        %1570 = vmatprep.subr.bf16.mxu0 %v1137
        %1571 = vmatpush1.bf16.msra.mxu0 %v1136
        %1572 = vmatprep.subr.bf16.mxu0 %v1139
        %1573 = vmatpush1.bf16.msra.mxu0 %v1138
        %1574 = vmatprep.subr.bf16.mxu0 %v1141
        %1575 = vmatpush1.bf16.msra.mxu0 %v1140
        %1576 = vmatprep.subr.bf16.mxu0 %v1143
        %1577 = vmatpush1.bf16.msra.mxu0 %v1142
        %1578 = vmatprep.subr.bf16.mxu0 %v1145
        %1579 = vmatpush1.bf16.msra.mxu0 %v1144
        %1580 = vmatprep.subr.bf16.mxu0 %v1147
        %1581 = vmatpush1.bf16.msra.mxu0 %v1146
        %1582 = vmatprep.subr.bf16.mxu0 %v1149
        %1583 = vmatpush1.bf16.msra.mxu0 %v1148
        %1584 = vmatprep.subr.bf16.mxu0 %v1151
        %1585 = vmatpush1.bf16.msra.mxu0 %v1150
        %1586 = vmatprep.subr.bf16.mxu0 %v1153
        %1587 = vmatpush1.bf16.msra.mxu0 %v1152
        %1588 = vmatprep.subr.bf16.mxu0 %v1155
        %1589 = vmatpush1.bf16.msra.mxu0 %v1154
        %1590 = vmatprep.mubr.bf16.mxu0 %v597
        %1591 = vmatmul.mubr.bf16.gmra.mrb[0].mxu0 %v596
        %v1592 = vpop.f32.mrb[0].mxu0
        %v1593 = vadd.f32 %v1440, %v1592
        %v1594 = vpop.f32.mrb[0].mxu0
        %v1595 = vadd.f32 %v1442, %v1594
        %v1596 = vpop.f32.mrb[0].mxu0
        %v1597 = vadd.f32 %v1444, %v1596
        %v1598 = vpop.f32.mrb[0].mxu0
        %v1599 = vadd.f32 %v1446, %v1598
        %1600 = vmatprep.mubr.bf16.mxu0 %v603
        %1601 = vmatmul.mubr.bf16.gmra.mrb[0].mxu0 %v602
        %v1602 = vpop.f32.mrb[0].mxu0
        %v1603 = vadd.f32 %v1450, %v1602
        %v1604 = vpop.f32.mrb[0].mxu0
        %v1605 = vadd.f32 %v1452, %v1604
        %v1606 = vpop.f32.mrb[0].mxu0
        %v1607 = vadd.f32 %v1454, %v1606
        %v1608 = vpop.f32.mrb[0].mxu0
        %v1609 = vadd.f32 %v1456, %v1608
        %1610 = vmatprep.mubr.bf16.mxu0 %v609
        %1611 = vmatmul.mubr.bf16.gmra.mrb[0].mxu0 %v608
        %v1612 = vpop.f32.mrb[0].mxu0
        %v1613 = vadd.f32 %v1460, %v1612
        %v1614 = vpop.f32.mrb[0].mxu0
        %v1615 = vadd.f32 %v1462, %v1614
        %v1616 = vpop.f32.mrb[0].mxu0
        %v1617 = vadd.f32 %v1464, %v1616
        %v1618 = vpop.f32.mrb[0].mxu0
        %v1619 = vadd.f32 %v1466, %v1618
        %1620 = vmatprep.mubr.bf16.mxu0 %v615
        %1621 = vmatmul.mubr.bf16.gmra.mrb[0].mxu0 %v614
        %v1622 = vpop.f32.mrb[0].mxu0
        %v1623 = vadd.f32 %v1470, %v1622
        %v1624 = vpop.f32.mrb[0].mxu0
        %v1625 = vadd.f32 %v1472, %v1624
        %v1626 = vpop.f32.mrb[0].mxu0
        %v1627 = vadd.f32 %v1474, %v1626
        %v1628 = vpop.f32.mrb[0].mxu0
        %v1629 = vadd.f32 %v1476, %v1628
        %1630 = vmatprep.mubr.bf16.mxu0 %v621
        %1631 = vmatmul.mubr.bf16.gmra.mrb[0].mxu0 %v620
        %v1632 = vpop.f32.mrb[0].mxu0
        %v1633 = vadd.f32 %v1480, %v1632
        %v1634 = vpop.f32.mrb[0].mxu0
        %v1635 = vadd.f32 %v1482, %v1634
        %v1636 = vpop.f32.mrb[0].mxu0
        %v1637 = vadd.f32 %v1484, %v1636
        %v1638 = vpop.f32.mrb[0].mxu0
        %v1639 = vadd.f32 %v1486, %v1638
        %1640 = vmatprep.mubr.bf16.mxu0 %v627
        %1641 = vmatmul.mubr.bf16.gmra.mrb[0].mxu0 %v626
        %v1642 = vpop.f32.mrb[0].mxu0
        %v1643 = vadd.f32 %v1490, %v1642
        %v1644 = vpop.f32.mrb[0].mxu0
        %v1645 = vadd.f32 %v1492, %v1644
        %v1646 = vpop.f32.mrb[0].mxu0
        %v1647 = vadd.f32 %v1494, %v1646
        %v1648 = vpop.f32.mrb[0].mxu0
        %v1649 = vadd.f32 %v1496, %v1648
        %1650 = vmatprep.mubr.bf16.mxu0 %v633
        %1651 = vmatmul.mubr.bf16.gmra.mrb[0].mxu0 %v632
        %v1652 = vpop.f32.mrb[0].mxu0
        %v1653 = vadd.f32 %v1500, %v1652
        %v1654 = vpop.f32.mrb[0].mxu0
        %v1655 = vadd.f32 %v1502, %v1654
        %v1656 = vpop.f32.mrb[0].mxu0
        %v1657 = vadd.f32 %v1504, %v1656
        %v1658 = vpop.f32.mrb[0].mxu0
        %v1659 = vadd.f32 %v1506, %v1658
        %1660 = vmatprep.mubr.bf16.mxu0 %v639
        %1661 = vmatmul.mubr.bf16.gmra.mrb[0].mxu0 %v638
        %v1662 = vpop.f32.mrb[0].mxu0
        %v1663 = vadd.f32 %v1510, %v1662
        %v1664 = vpop.f32.mrb[0].mxu0
        %v1665 = vadd.f32 %v1512, %v1664
        %v1666 = vpop.f32.mrb[0].mxu0
        %v1667 = vadd.f32 %v1514, %v1666
        %v1668 = vpop.f32.mrb[0].mxu0
        %v1669 = vadd.f32 %v1516, %v1668
        %1670 = vmatprep.mubr.bf16.mxu0 %v645
        %1671 = vmatmul.mubr.bf16.gmra.mrb[0].mxu0 %v644
        %v1672 = vpop.f32.mrb[0].mxu0
        %v1673 = vadd.f32 %v1520, %v1672
        %v1674 = vpop.f32.mrb[0].mxu0
        %v1675 = vadd.f32 %v1522, %v1674
        %v1676 = vpop.f32.mrb[0].mxu0
        %v1677 = vadd.f32 %v1524, %v1676
        %v1678 = vpop.f32.mrb[0].mxu0
        %v1679 = vadd.f32 %v1526, %v1678
        %1680 = vmatprep.mubr.bf16.mxu0 %v651
        %1681 = vmatmul.mubr.bf16.gmra.mrb[0].mxu0 %v650
        %v1682 = vpop.f32.mrb[0].mxu0
        %v1683 = vadd.f32 %v1530, %v1682
        %v1684 = vpop.f32.mrb[0].mxu0
        %v1685 = vadd.f32 %v1532, %v1684
        %v1686 = vpop.f32.mrb[0].mxu0
        %v1687 = vadd.f32 %v1534, %v1686
        %v1688 = vpop.f32.mrb[0].mxu0
        %v1689 = vadd.f32 %v1536, %v1688
        %1690 = vmatprep.mubr.bf16.mxu0 %v657
        %1691 = vmatmul.mubr.bf16.gmra.mrb[0].mxu0 %v656
        %v1692 = vpop.f32.mrb[0].mxu0
        %v1693 = vadd.f32 %v1540, %v1692
        %v1694 = vpop.f32.mrb[0].mxu0
        %v1695 = vadd.f32 %v1542, %v1694
        %v1696 = vpop.f32.mrb[0].mxu0
        %v1697 = vadd.f32 %v1544, %v1696
        %v1698 = vpop.f32.mrb[0].mxu0
        %v1699 = vadd.f32 %v1546, %v1698
        %1700 = vmatprep.mubr.bf16.mxu0 %v663
        %1701 = vmatmul.mubr.bf16.gmra.mrb[0].mxu0 %v662
        %v1702 = vpop.f32.mrb[0].mxu0
        %v1703 = vadd.f32 %v1550, %v1702
        %v1704 = vpop.f32.mrb[0].mxu0
        %v1705 = vadd.f32 %v1552, %v1704
        %v1706 = vpop.f32.mrb[0].mxu0
        %v1707 = vadd.f32 %v1554, %v1706
        %v1708 = vpop.f32.mrb[0].mxu0
        %v1709 = vadd.f32 %v1556, %v1708
        %1710 = vdwg.mxu0
        %v1711 = vld [vmem:[%s383] sm:$0xff]
        %v1712 = vld [vmem:[%s383 + $0x8] sm:$0xff]
        %v1713 = vld [vmem:[%s383 + $0x10] sm:$0xff]
        %v1714 = vld [vmem:[%s383 + $0x18] sm:$0xff]
        %v1715 = vld [vmem:[%s383 + $0x20] sm:$0xff]
        %v1716 = vld [vmem:[%s383 + $0x28] sm:$0xff]
        %v1717 = vld [vmem:[%s383 + $0x30] sm:$0xff]
        %v1718 = vld [vmem:[%s383 + $0x38] sm:$0xff]
        %v1719 = vld [vmem:[%s383 + $0x40] sm:$0xff]
        %v1720 = vld [vmem:[%s383 + $0x48] sm:$0xff]
        %v1721 = vld [vmem:[%s383 + $0x50] sm:$0xff]
        %v1722 = vld [vmem:[%s383 + $0x58] sm:$0xff]
        %v1723 = vld [vmem:[%s383 + $0x60] sm:$0xff]
        %v1724 = vld [vmem:[%s383 + $0x68] sm:$0xff]
        %v1725 = vld [vmem:[%s383 + $0x70] sm:$0xff]
        %v1726 = vld [vmem:[%s383 + $0x78] sm:$0xff]
        %v1727 = vld [vmem:[%s383 + $0x80] sm:$0xff]
        %v1728 = vld [vmem:[%s383 + $0x88] sm:$0xff]
        %v1729 = vld [vmem:[%s383 + $0x90] sm:$0xff]
        %v1730 = vld [vmem:[%s383 + $0x98] sm:$0xff]
        %v1731 = vld [vmem:[%s383 + $0xa0] sm:$0xff]
        %v1732 = vld [vmem:[%s383 + $0xa8] sm:$0xff]
        %v1733 = vld [vmem:[%s383 + $0xb0] sm:$0xff]
        %v1734 = vld [vmem:[%s383 + $0xb8] sm:$0xff]
        %v1735 = vld [vmem:[%s383 + $0xc0] sm:$0xff]
        %v1736 = vld [vmem:[%s383 + $0xc8] sm:$0xff]
        %v1737 = vld [vmem:[%s383 + $0xd0] sm:$0xff]
        %v1738 = vld [vmem:[%s383 + $0xd8] sm:$0xff]
        %v1739 = vld [vmem:[%s383 + $0xe0] sm:$0xff]
        %v1740 = vld [vmem:[%s383 + $0xe8] sm:$0xff]
        %v1741 = vld [vmem:[%s383 + $0xf0] sm:$0xff]
        %v1742 = vld [vmem:[%s383 + $0xf8] sm:$0xff]
        %v1743 = vld [vmem:[%s383 + $0x100] sm:$0xff]
        %v1744 = vld [vmem:[%s383 + $0x108] sm:$0xff]
        %v1745 = vld [vmem:[%s383 + $0x110] sm:$0xff]
        %v1746 = vld [vmem:[%s383 + $0x118] sm:$0xff]
        %v1747 = vld [vmem:[%s383 + $0x120] sm:$0xff]
        %v1748 = vld [vmem:[%s383 + $0x128] sm:$0xff]
        %v1749 = vld [vmem:[%s383 + $0x130] sm:$0xff]
        %v1750 = vld [vmem:[%s383 + $0x138] sm:$0xff]
        %v1751 = vld [vmem:[%s383 + $0x140] sm:$0xff]
        %v1752 = vld [vmem:[%s383 + $0x148] sm:$0xff]
        %v1753 = vld [vmem:[%s383 + $0x150] sm:$0xff]
        %v1754 = vld [vmem:[%s383 + $0x158] sm:$0xff]
        %v1755 = vld [vmem:[%s383 + $0x160] sm:$0xff]
        %v1756 = vld [vmem:[%s383 + $0x168] sm:$0xff]
        %v1757 = vld [vmem:[%s383 + $0x170] sm:$0xff]
        %v1758 = vld [vmem:[%s383 + $0x178] sm:$0xff]
        %v1759 = vadd.f32 %v1593, %v1711
        %v1760 = vadd.f32 %v1595, %v1712
        %v1761 = vadd.f32 %v1597, %v1713
        %v1762 = vadd.f32 %v1599, %v1714
        %v1763 = vadd.f32 %v1603, %v1715
        %v1764 = vadd.f32 %v1605, %v1716
        %v1765 = vadd.f32 %v1607, %v1717
        %v1766 = vadd.f32 %v1609, %v1718
        %v1767 = vadd.f32 %v1613, %v1719
        %v1768 = vadd.f32 %v1615, %v1720
        %v1769 = vadd.f32 %v1617, %v1721
        %v1770 = vadd.f32 %v1619, %v1722
        %v1771 = vadd.f32 %v1623, %v1723
        %v1772 = vadd.f32 %v1625, %v1724
        %v1773 = vadd.f32 %v1627, %v1725
        %v1774 = vadd.f32 %v1629, %v1726
        %v1775 = vadd.f32 %v1633, %v1727
        %v1776 = vadd.f32 %v1635, %v1728
        %v1777 = vadd.f32 %v1637, %v1729
        %v1778 = vadd.f32 %v1639, %v1730
        %v1779 = vadd.f32 %v1643, %v1731
        %v1780 = vadd.f32 %v1645, %v1732
        %v1781 = vadd.f32 %v1647, %v1733
        %v1782 = vadd.f32 %v1649, %v1734
        %v1783 = vadd.f32 %v1653, %v1735
        %v1784 = vadd.f32 %v1655, %v1736
        %v1785 = vadd.f32 %v1657, %v1737
        %v1786 = vadd.f32 %v1659, %v1738
        %v1787 = vadd.f32 %v1663, %v1739
        %v1788 = vadd.f32 %v1665, %v1740
        %v1789 = vadd.f32 %v1667, %v1741
        %v1790 = vadd.f32 %v1669, %v1742
        %v1791 = vadd.f32 %v1673, %v1743
        %v1792 = vadd.f32 %v1675, %v1744
        %v1793 = vadd.f32 %v1677, %v1745
        %v1794 = vadd.f32 %v1679, %v1746
        %v1795 = vadd.f32 %v1683, %v1747
        %v1796 = vadd.f32 %v1685, %v1748
        %v1797 = vadd.f32 %v1687, %v1749
        %v1798 = vadd.f32 %v1689, %v1750
        %v1799 = vadd.f32 %v1693, %v1751
        %v1800 = vadd.f32 %v1695, %v1752
        %v1801 = vadd.f32 %v1697, %v1753
        %v1802 = vadd.f32 %v1699, %v1754
        %v1803 = vadd.f32 %v1703, %v1755
        %v1804 = vadd.f32 %v1705, %v1756
        %v1805 = vadd.f32 %v1707, %v1757
        %v1806 = vadd.f32 %v1709, %v1758
        %v1807 = vadd.f32 %v1759, %v1760
        %1808 = vadd.xlane.f32.xlu0 %v1807
        %v1809 = vpop.xlane.xlu0 %1808
        %v1810 = vadd.f32 %v1761, %v1762
        %1811 = vadd.xlane.f32.xlu0 %v1810
        %v1812 = vpop.xlane.xlu0 %1811
        %v1813 = vadd.f32 %v1763, %v1764
        %1814 = vadd.xlane.f32.xlu0 %v1813
        %v1815 = vpop.xlane.xlu0 %1814
        %v1816 = vadd.f32 %v1765, %v1766
        %1817 = vadd.xlane.f32.xlu0 %v1816
        %v1818 = vpop.xlane.xlu0 %1817
        %v1819 = vadd.f32 %v1767, %v1768
        %1820 = vadd.xlane.f32.xlu0 %v1819
        %v1821 = vpop.xlane.xlu0 %1820
        %v1822 = vadd.f32 %v1769, %v1770
        %1823 = vadd.xlane.f32.xlu0 %v1822
        %v1824 = vpop.xlane.xlu0 %1823
        %v1825 = vadd.f32 %v1771, %v1772
        %1826 = vadd.xlane.f32.xlu0 %v1825
        %v1827 = vpop.xlane.xlu0 %1826
        %v1828 = vadd.f32 %v1773, %v1774
        %1829 = vadd.xlane.f32.xlu0 %v1828
        %v1830 = vpop.xlane.xlu0 %1829
        %v1831 = vadd.f32 %v1775, %v1776
        %1832 = vadd.xlane.f32.xlu0 %v1831
        %v1833 = vpop.xlane.xlu0 %1832
        %v1834 = vadd.f32 %v1777, %v1778
        %1835 = vadd.xlane.f32.xlu0 %v1834
        %v1836 = vpop.xlane.xlu0 %1835
        %v1837 = vadd.f32 %v1779, %v1780
        %1838 = vadd.xlane.f32.xlu0 %v1837
        %v1839 = vpop.xlane.xlu0 %1838
        %v1840 = vadd.f32 %v1781, %v1782
        %1841 = vadd.xlane.f32.xlu0 %v1840
        %v1842 = vpop.xlane.xlu0 %1841
        %v1843 = vadd.f32 %v1783, %v1784
        %1844 = vadd.xlane.f32.xlu0 %v1843
        %v1845 = vpop.xlane.xlu0 %1844
        %v1846 = vadd.f32 %v1785, %v1786
        %1847 = vadd.xlane.f32.xlu0 %v1846
        %v1848 = vpop.xlane.xlu0 %1847
        %v1849 = vadd.f32 %v1787, %v1788
        %1850 = vadd.xlane.f32.xlu0 %v1849
        %v1851 = vpop.xlane.xlu0 %1850
        %v1852 = vadd.f32 %v1789, %v1790
        %1853 = vadd.xlane.f32.xlu0 %v1852
        %v1854 = vpop.xlane.xlu0 %1853
        %v1855 = vadd.f32 %v1791, %v1792
        %1856 = vadd.xlane.f32.xlu0 %v1855
        %v1857 = vpop.xlane.xlu0 %1856
        %v1858 = vadd.f32 %v1793, %v1794
        %1859 = vadd.xlane.f32.xlu0 %v1858
        %v1860 = vpop.xlane.xlu0 %1859
        %v1861 = vadd.f32 %v1795, %v1796
        %1862 = vadd.xlane.f32.xlu0 %v1861
        %v1863 = vpop.xlane.xlu0 %1862
        %v1864 = vadd.f32 %v1797, %v1798
        %1865 = vadd.xlane.f32.xlu0 %v1864
        %v1866 = vpop.xlane.xlu0 %1865
        %v1867 = vadd.f32 %v1799, %v1800
        %1868 = vadd.xlane.f32.xlu0 %v1867
        %v1869 = vpop.xlane.xlu0 %1868
        %v1870 = vadd.f32 %v1801, %v1802
        %1871 = vadd.xlane.f32.xlu0 %v1870
        %v1872 = vpop.xlane.xlu0 %1871
        %v1873 = vadd.f32 %v1803, %v1804
        %1874 = vadd.xlane.f32.xlu0 %v1873
        %v1875 = vpop.xlane.xlu0 %1874
        %v1876 = vadd.f32 %v1805, %v1806
        %1877 = vadd.xlane.f32.xlu0 %v1876
        %v1878 = vpop.xlane.xlu0 %1877
        %v1879 = vmul.f32 %v1809, 0.00390625
        %v1880 = vmul.f32 %v1812, 0.00390625
        %v1881 = vmul.f32 %v1815, 0.00390625
        %v1882 = vmul.f32 %v1818, 0.00390625
        %v1883 = vmul.f32 %v1821, 0.00390625
        %v1884 = vmul.f32 %v1824, 0.00390625
        %v1885 = vmul.f32 %v1827, 0.00390625
        %v1886 = vmul.f32 %v1830, 0.00390625
        %v1887 = vmul.f32 %v1833, 0.00390625
        %v1888 = vmul.f32 %v1836, 0.00390625
        %v1889 = vmul.f32 %v1839, 0.00390625
        %v1890 = vmul.f32 %v1842, 0.00390625
        %v1891 = vmul.f32 %v1845, 0.00390625
        %v1892 = vmul.f32 %v1848, 0.00390625
        %v1893 = vmul.f32 %v1851, 0.00390625
        %v1894 = vmul.f32 %v1854, 0.00390625
        %v1895 = vmul.f32 %v1857, 0.00390625
        %v1896 = vmul.f32 %v1860, 0.00390625
        %v1897 = vmul.f32 %v1863, 0.00390625
        %v1898 = vmul.f32 %v1866, 0.00390625
        %v1899 = vmul.f32 %v1869, 0.00390625
        %v1900 = vmul.f32 %v1872, 0.00390625
        %v1901 = vmul.f32 %v1875, 0.00390625
        %v1902 = vmul.f32 %v1878, 0.00390625
        %v1903 = vsub.f32 %v1759, %v1879
        %v1904 = vsub.f32 %v1760, %v1879
        %v1905 = vsub.f32 %v1761, %v1880
        %v1906 = vsub.f32 %v1762, %v1880
        %v1907 = vsub.f32 %v1763, %v1881
        %v1908 = vsub.f32 %v1764, %v1881
        %v1909 = vsub.f32 %v1765, %v1882
        %v1910 = vsub.f32 %v1766, %v1882
        %v1911 = vsub.f32 %v1767, %v1883
        %v1912 = vsub.f32 %v1768, %v1883
        %v1913 = vsub.f32 %v1769, %v1884
        %v1914 = vsub.f32 %v1770, %v1884
        %v1915 = vsub.f32 %v1771, %v1885
        %v1916 = vsub.f32 %v1772, %v1885
        %v1917 = vsub.f32 %v1773, %v1886
        %v1918 = vsub.f32 %v1774, %v1886
        %v1919 = vsub.f32 %v1775, %v1887
        %v1920 = vsub.f32 %v1776, %v1887
        %v1921 = vsub.f32 %v1777, %v1888
        %v1922 = vsub.f32 %v1778, %v1888
        %v1923 = vsub.f32 %v1779, %v1889
        %v1924 = vsub.f32 %v1780, %v1889
        %v1925 = vsub.f32 %v1781, %v1890
        %v1926 = vsub.f32 %v1782, %v1890
        %v1927 = vsub.f32 %v1783, %v1891
        %v1928 = vsub.f32 %v1784, %v1891
        %v1929 = vsub.f32 %v1785, %v1892
        %v1930 = vsub.f32 %v1786, %v1892
        %v1931 = vsub.f32 %v1787, %v1893
        %v1932 = vsub.f32 %v1788, %v1893
        %v1933 = vsub.f32 %v1789, %v1894
        %v1934 = vsub.f32 %v1790, %v1894
        %v1935 = vsub.f32 %v1791, %v1895
        %v1936 = vsub.f32 %v1792, %v1895
        %v1937 = vsub.f32 %v1793, %v1896
        %v1938 = vsub.f32 %v1794, %v1896
        %v1939 = vsub.f32 %v1795, %v1897
        %v1940 = vsub.f32 %v1796, %v1897
        %v1941 = vsub.f32 %v1797, %v1898
        %v1942 = vsub.f32 %v1798, %v1898
        %v1943 = vsub.f32 %v1799, %v1899
        %v1944 = vsub.f32 %v1800, %v1899
        %v1945 = vsub.f32 %v1801, %v1900
        %v1946 = vsub.f32 %v1802, %v1900
        %v1947 = vsub.f32 %v1803, %v1901
        %v1948 = vsub.f32 %v1804, %v1901
        %v1949 = vsub.f32 %v1805, %v1902
        %v1950 = vsub.f32 %v1806, %v1902
        %v1951 = vmul.f32 %v1903, %v1903
        %v1952 = vmul.f32 %v1904, %v1904
        %v1953 = vmul.f32 %v1905, %v1905
        %v1954 = vmul.f32 %v1906, %v1906
        %v1955 = vmul.f32 %v1907, %v1907
        %v1956 = vmul.f32 %v1908, %v1908
        %v1957 = vmul.f32 %v1909, %v1909
        %v1958 = vmul.f32 %v1910, %v1910
        %v1959 = vmul.f32 %v1911, %v1911
        %v1960 = vmul.f32 %v1912, %v1912
        %v1961 = vmul.f32 %v1913, %v1913
        %v1962 = vmul.f32 %v1914, %v1914
        %v1963 = vmul.f32 %v1915, %v1915
        %v1964 = vmul.f32 %v1916, %v1916
        %v1965 = vmul.f32 %v1917, %v1917
        %v1966 = vmul.f32 %v1918, %v1918
        %v1967 = vmul.f32 %v1919, %v1919
        %v1968 = vmul.f32 %v1920, %v1920
        %v1969 = vmul.f32 %v1921, %v1921
        %v1970 = vmul.f32 %v1922, %v1922
        %v1971 = vmul.f32 %v1923, %v1923
        %v1972 = vmul.f32 %v1924, %v1924
        %v1973 = vmul.f32 %v1925, %v1925
        %v1974 = vmul.f32 %v1926, %v1926
        %v1975 = vmul.f32 %v1927, %v1927
        %v1976 = vmul.f32 %v1928, %v1928
        %v1977 = vmul.f32 %v1929, %v1929
        %v1978 = vmul.f32 %v1930, %v1930
        %v1979 = vmul.f32 %v1931, %v1931
        %v1980 = vmul.f32 %v1932, %v1932
        %v1981 = vmul.f32 %v1933, %v1933
        %v1982 = vmul.f32 %v1934, %v1934
        %v1983 = vmul.f32 %v1935, %v1935
        %v1984 = vmul.f32 %v1936, %v1936
        %v1985 = vmul.f32 %v1937, %v1937
        %v1986 = vmul.f32 %v1938, %v1938
        %v1987 = vmul.f32 %v1939, %v1939
        %v1988 = vmul.f32 %v1940, %v1940
        %v1989 = vmul.f32 %v1941, %v1941
        %v1990 = vmul.f32 %v1942, %v1942
        %v1991 = vmul.f32 %v1943, %v1943
        %v1992 = vmul.f32 %v1944, %v1944
        %v1993 = vmul.f32 %v1945, %v1945
        %v1994 = vmul.f32 %v1946, %v1946
        %v1995 = vmul.f32 %v1947, %v1947
        %v1996 = vmul.f32 %v1948, %v1948
        %v1997 = vmul.f32 %v1949, %v1949
        %v1998 = vmul.f32 %v1950, %v1950
        %v1999 = vadd.f32 %v1951, %v1952
        %2000 = vadd.xlane.f32.xlu0 %v1999
        %v2001 = vpop.xlane.xlu0 %2000
        %v2002 = vadd.f32 %v1953, %v1954
        %2003 = vadd.xlane.f32.xlu0 %v2002
        %v2004 = vpop.xlane.xlu0 %2003
        %v2005 = vadd.f32 %v1955, %v1956
        %2006 = vadd.xlane.f32.xlu0 %v2005
        %v2007 = vpop.xlane.xlu0 %2006
        %v2008 = vadd.f32 %v1957, %v1958
        %2009 = vadd.xlane.f32.xlu0 %v2008
        %v2010 = vpop.xlane.xlu0 %2009
        %v2011 = vadd.f32 %v1959, %v1960
        %2012 = vadd.xlane.f32.xlu0 %v2011
        %v2013 = vpop.xlane.xlu0 %2012
        %v2014 = vadd.f32 %v1961, %v1962
        %2015 = vadd.xlane.f32.xlu0 %v2014
        %v2016 = vpop.xlane.xlu0 %2015
        %v2017 = vadd.f32 %v1963, %v1964
        %2018 = vadd.xlane.f32.xlu0 %v2017
        %v2019 = vpop.xlane.xlu0 %2018
        %v2020 = vadd.f32 %v1965, %v1966
        %2021 = vadd.xlane.f32.xlu0 %v2020
        %v2022 = vpop.xlane.xlu0 %2021
        %v2023 = vadd.f32 %v1967, %v1968
        %2024 = vadd.xlane.f32.xlu0 %v2023
        %v2025 = vpop.xlane.xlu0 %2024
        %v2026 = vadd.f32 %v1969, %v1970
        %2027 = vadd.xlane.f32.xlu0 %v2026
        %v2028 = vpop.xlane.xlu0 %2027
        %v2029 = vadd.f32 %v1971, %v1972
        %2030 = vadd.xlane.f32.xlu0 %v2029
        %v2031 = vpop.xlane.xlu0 %2030
        %v2032 = vadd.f32 %v1973, %v1974
        %2033 = vadd.xlane.f32.xlu0 %v2032
        %v2034 = vpop.xlane.xlu0 %2033
        %v2035 = vadd.f32 %v1975, %v1976
        %2036 = vadd.xlane.f32.xlu0 %v2035
        %v2037 = vpop.xlane.xlu0 %2036
        %v2038 = vadd.f32 %v1977, %v1978
        %2039 = vadd.xlane.f32.xlu0 %v2038
        %v2040 = vpop.xlane.xlu0 %2039
        %v2041 = vadd.f32 %v1979, %v1980
        %2042 = vadd.xlane.f32.xlu0 %v2041
        %v2043 = vpop.xlane.xlu0 %2042
        %v2044 = vadd.f32 %v1981, %v1982
        %2045 = vadd.xlane.f32.xlu0 %v2044
        %v2046 = vpop.xlane.xlu0 %2045
        %v2047 = vadd.f32 %v1983, %v1984
        %2048 = vadd.xlane.f32.xlu0 %v2047
        %v2049 = vpop.xlane.xlu0 %2048
        %v2050 = vadd.f32 %v1985, %v1986
        %2051 = vadd.xlane.f32.xlu0 %v2050
        %v2052 = vpop.xlane.xlu0 %2051
        %v2053 = vadd.f32 %v1987, %v1988
        %2054 = vadd.xlane.f32.xlu0 %v2053
        %v2055 = vpop.xlane.xlu0 %2054
        %v2056 = vadd.f32 %v1989, %v1990
        %2057 = vadd.xlane.f32.xlu0 %v2056
        %v2058 = vpop.xlane.xlu0 %2057
        %v2059 = vadd.f32 %v1991, %v1992
        %2060 = vadd.xlane.f32.xlu0 %v2059
        %v2061 = vpop.xlane.xlu0 %2060
        %v2062 = vadd.f32 %v1993, %v1994
        %2063 = vadd.xlane.f32.xlu0 %v2062
        %v2064 = vpop.xlane.xlu0 %2063
        %v2065 = vadd.f32 %v1995, %v1996
        %2066 = vadd.xlane.f32.xlu0 %v2065
        %v2067 = vpop.xlane.xlu0 %2066
        %v2068 = vadd.f32 %v1997, %v1998
        %2069 = vadd.xlane.f32.xlu0 %v2068
        %v2070 = vpop.xlane.xlu0 %2069
        %v2071 = vmul.f32 %v2001, 0.00390625
        %v2072 = vmul.f32 %v2004, 0.00390625
        %v2073 = vmul.f32 %v2007, 0.00390625
        %v2074 = vmul.f32 %v2010, 0.00390625
        %v2075 = vmul.f32 %v2013, 0.00390625
        %v2076 = vmul.f32 %v2016, 0.00390625
        %v2077 = vmul.f32 %v2019, 0.00390625
        %v2078 = vmul.f32 %v2022, 0.00390625
        %v2079 = vmul.f32 %v2025, 0.00390625
        %v2080 = vmul.f32 %v2028, 0.00390625
        %v2081 = vmul.f32 %v2031, 0.00390625
        %v2082 = vmul.f32 %v2034, 0.00390625
        %v2083 = vmul.f32 %v2037, 0.00390625
        %v2084 = vmul.f32 %v2040, 0.00390625
        %v2085 = vmul.f32 %v2043, 0.00390625
        %v2086 = vmul.f32 %v2046, 0.00390625
        %v2087 = vmul.f32 %v2049, 0.00390625
        %v2088 = vmul.f32 %v2052, 0.00390625
        %v2089 = vmul.f32 %v2055, 0.00390625
        %v2090 = vmul.f32 %v2058, 0.00390625
        %v2091 = vmul.f32 %v2061, 0.00390625
        %v2092 = vmul.f32 %v2064, 0.00390625
        %v2093 = vmul.f32 %v2067, 0.00390625
        %v2094 = vmul.f32 %v2070, 0.00390625
        %v2095 = vadd.f32 %v2071, 1e-12
        %v2096 = vadd.f32 %v2072, 1e-12
        %v2097 = vadd.f32 %v2073, 1e-12
        %v2098 = vadd.f32 %v2074, 1e-12
        %v2099 = vadd.f32 %v2075, 1e-12
        %v2100 = vadd.f32 %v2076, 1e-12
        %v2101 = vadd.f32 %v2077, 1e-12
        %v2102 = vadd.f32 %v2078, 1e-12
        %v2103 = vadd.f32 %v2079, 1e-12
        %v2104 = vadd.f32 %v2080, 1e-12
        %v2105 = vadd.f32 %v2081, 1e-12
        %v2106 = vadd.f32 %v2082, 1e-12
        %v2107 = vadd.f32 %v2083, 1e-12
        %v2108 = vadd.f32 %v2084, 1e-12
        %v2109 = vadd.f32 %v2085, 1e-12
        %v2110 = vadd.f32 %v2086, 1e-12
        %v2111 = vadd.f32 %v2087, 1e-12
        %v2112 = vadd.f32 %v2088, 1e-12
        %v2113 = vadd.f32 %v2089, 1e-12
        %v2114 = vadd.f32 %v2090, 1e-12
        %v2115 = vadd.f32 %v2091, 1e-12
        %v2116 = vadd.f32 %v2092, 1e-12
        %v2117 = vadd.f32 %v2093, 1e-12
        %v2118 = vadd.f32 %v2094, 1e-12
        %v2119 = vrsqrt.pop %v2095
        %v2120 = vrsqrt.pop %v2096
        %v2121 = vrsqrt.pop %v2097
        %v2122 = vrsqrt.pop %v2098
        %v2123 = vrsqrt.pop %v2099
        %v2124 = vrsqrt.pop %v2100
        %v2125 = vrsqrt.pop %v2101
        %v2126 = vrsqrt.pop %v2102
        %v2127 = vrsqrt.pop %v2103
        %v2128 = vrsqrt.pop %v2104
        %v2129 = vrsqrt.pop %v2105
        %v2130 = vrsqrt.pop %v2106
        %v2131 = vrsqrt.pop %v2107
        %v2132 = vrsqrt.pop %v2108
        %v2133 = vrsqrt.pop %v2109
        %v2134 = vrsqrt.pop %v2110
        %v2135 = vrsqrt.pop %v2111
        %v2136 = vrsqrt.pop %v2112
        %v2137 = vrsqrt.pop %v2113
        %v2138 = vrsqrt.pop %v2114
        %v2139 = vrsqrt.pop %v2115
        %v2140 = vrsqrt.pop %v2116
        %v2141 = vrsqrt.pop %v2117
        %v2142 = vrsqrt.pop %v2118
        %v2143 = vld [vmem:[#allocation10] sm:$0x3]
        %v2145 = vlaneseq
        %v2146 = vshrl.u32 %v2145, 7
        %v2147 = vsub.s32 0, %v2146
        %v2148 = vrot.slane %v2143, %v2147
        %v2149 = vlaneseq
        %v2150 = vshrl.u32 %v2149, 7
        %v2151 = vsub.s32 1, %v2150
        %v2152 = vrot.slane %v2143, %v2151
        %v2155 = vmul.f32 %v2119, %v2148
        %v2156 = vmul.f32 %v2119, %v2152
        %v2157 = vmul.f32 %v2120, %v2148
        %v2158 = vmul.f32 %v2120, %v2152
        %v2159 = vmul.f32 %v2121, %v2148
        %v2160 = vmul.f32 %v2121, %v2152
        %v2161 = vmul.f32 %v2122, %v2148
        %v2162 = vmul.f32 %v2122, %v2152
        %v2163 = vmul.f32 %v2123, %v2148
        %v2164 = vmul.f32 %v2123, %v2152
        %v2165 = vmul.f32 %v2124, %v2148
        %v2166 = vmul.f32 %v2124, %v2152
        %v2167 = vmul.f32 %v2125, %v2148
        %v2168 = vmul.f32 %v2125, %v2152
        %v2169 = vmul.f32 %v2126, %v2148
        %v2170 = vmul.f32 %v2126, %v2152
        %v2171 = vmul.f32 %v2127, %v2148
        %v2172 = vmul.f32 %v2127, %v2152
        %v2173 = vmul.f32 %v2128, %v2148
        %v2174 = vmul.f32 %v2128, %v2152
        %v2175 = vmul.f32 %v2129, %v2148
        %v2176 = vmul.f32 %v2129, %v2152
        %v2177 = vmul.f32 %v2130, %v2148
        %v2178 = vmul.f32 %v2130, %v2152
        %v2179 = vmul.f32 %v2131, %v2148
        %v2180 = vmul.f32 %v2131, %v2152
        %v2181 = vmul.f32 %v2132, %v2148
        %v2182 = vmul.f32 %v2132, %v2152
        %v2183 = vmul.f32 %v2133, %v2148
        %v2184 = vmul.f32 %v2133, %v2152
        %v2185 = vmul.f32 %v2134, %v2148
        %v2186 = vmul.f32 %v2134, %v2152
        %v2187 = vmul.f32 %v2135, %v2148
        %v2188 = vmul.f32 %v2135, %v2152
        %v2189 = vmul.f32 %v2136, %v2148
        %v2190 = vmul.f32 %v2136, %v2152
        %v2191 = vmul.f32 %v2137, %v2148
        %v2192 = vmul.f32 %v2137, %v2152
        %v2193 = vmul.f32 %v2138, %v2148
        %v2194 = vmul.f32 %v2138, %v2152
        %v2195 = vmul.f32 %v2139, %v2148
        %v2196 = vmul.f32 %v2139, %v2152
        %v2197 = vmul.f32 %v2140, %v2148
        %v2198 = vmul.f32 %v2140, %v2152
        %v2199 = vmul.f32 %v2141, %v2148
        %v2200 = vmul.f32 %v2141, %v2152
        %v2201 = vmul.f32 %v2142, %v2148
        %v2202 = vmul.f32 %v2142, %v2152
        %v2203 = vmul.f32 %v1903, %v2155
        %v2204 = vmul.f32 %v1904, %v2156
        %v2205 = vmul.f32 %v1905, %v2157
        %v2206 = vmul.f32 %v1906, %v2158
        %v2207 = vmul.f32 %v1907, %v2159
        %v2208 = vmul.f32 %v1908, %v2160
        %v2209 = vmul.f32 %v1909, %v2161
        %v2210 = vmul.f32 %v1910, %v2162
        %v2211 = vmul.f32 %v1911, %v2163
        %v2212 = vmul.f32 %v1912, %v2164
        %v2213 = vmul.f32 %v1913, %v2165
        %v2214 = vmul.f32 %v1914, %v2166
        %v2215 = vmul.f32 %v1915, %v2167
        %v2216 = vmul.f32 %v1916, %v2168
        %v2217 = vmul.f32 %v1917, %v2169
        %v2218 = vmul.f32 %v1918, %v2170
        %v2219 = vmul.f32 %v1919, %v2171
        %v2220 = vmul.f32 %v1920, %v2172
        %v2221 = vmul.f32 %v1921, %v2173
        %v2222 = vmul.f32 %v1922, %v2174
        %v2223 = vmul.f32 %v1923, %v2175
        %v2224 = vmul.f32 %v1924, %v2176
        %v2225 = vmul.f32 %v1925, %v2177
        %v2226 = vmul.f32 %v1926, %v2178
        %v2227 = vmul.f32 %v1927, %v2179
        %v2228 = vmul.f32 %v1928, %v2180
        %v2229 = vmul.f32 %v1929, %v2181
        %v2230 = vmul.f32 %v1930, %v2182
        %v2231 = vmul.f32 %v1931, %v2183
        %v2232 = vmul.f32 %v1932, %v2184
        %v2233 = vmul.f32 %v1933, %v2185
        %v2234 = vmul.f32 %v1934, %v2186
        %v2235 = vmul.f32 %v1935, %v2187
        %v2236 = vmul.f32 %v1936, %v2188
        %v2237 = vmul.f32 %v1937, %v2189
        %v2238 = vmul.f32 %v1938, %v2190
        %v2239 = vmul.f32 %v1939, %v2191
        %v2240 = vmul.f32 %v1940, %v2192
        %v2241 = vmul.f32 %v1941, %v2193
        %v2242 = vmul.f32 %v1942, %v2194
        %v2243 = vmul.f32 %v1943, %v2195
        %v2244 = vmul.f32 %v1944, %v2196
        %v2245 = vmul.f32 %v1945, %v2197
        %v2246 = vmul.f32 %v1946, %v2198
        %v2247 = vmul.f32 %v1947, %v2199
        %v2248 = vmul.f32 %v1948, %v2200
        %v2249 = vmul.f32 %v1949, %v2201
        %v2250 = vmul.f32 %v1950, %v2202
        %v2251 = vld [vmem:[#allocation11] sm:$0x3]
        %v2253 = vlaneseq
        %v2254 = vshrl.u32 %v2253, 7
        %v2255 = vsub.s32 0, %v2254
        %v2256 = vrot.slane %v2251, %v2255
        %v2257 = vlaneseq
        %v2258 = vshrl.u32 %v2257, 7
        %v2259 = vsub.s32 1, %v2258
        %v2260 = vrot.slane %v2251, %v2259
        %v2263 = vadd.f32 %v2203, %v2256
        %v2264 = vadd.f32 %v2204, %v2260
        %v2265 = vadd.f32 %v2205, %v2256
        %v2266 = vadd.f32 %v2206, %v2260
        %v2267 = vadd.f32 %v2207, %v2256
        %v2268 = vadd.f32 %v2208, %v2260
        %v2269 = vadd.f32 %v2209, %v2256
        %v2270 = vadd.f32 %v2210, %v2260
        %v2271 = vadd.f32 %v2211, %v2256
        %v2272 = vadd.f32 %v2212, %v2260
        %v2273 = vadd.f32 %v2213, %v2256
        %v2274 = vadd.f32 %v2214, %v2260
        %v2275 = vadd.f32 %v2215, %v2256
        %v2276 = vadd.f32 %v2216, %v2260
        %v2277 = vadd.f32 %v2217, %v2256
        %v2278 = vadd.f32 %v2218, %v2260
        %v2279 = vadd.f32 %v2219, %v2256
        %v2280 = vadd.f32 %v2220, %v2260
        %v2281 = vadd.f32 %v2221, %v2256
        %v2282 = vadd.f32 %v2222, %v2260
        %v2283 = vadd.f32 %v2223, %v2256
        %v2284 = vadd.f32 %v2224, %v2260
        %v2285 = vadd.f32 %v2225, %v2256
        %v2286 = vadd.f32 %v2226, %v2260
        %v2287 = vadd.f32 %v2227, %v2256
        %v2288 = vadd.f32 %v2228, %v2260
        %v2289 = vadd.f32 %v2229, %v2256
        %v2290 = vadd.f32 %v2230, %v2260
        %v2291 = vadd.f32 %v2231, %v2256
        %v2292 = vadd.f32 %v2232, %v2260
        %v2293 = vadd.f32 %v2233, %v2256
        %v2294 = vadd.f32 %v2234, %v2260
        %v2295 = vadd.f32 %v2235, %v2256
        %v2296 = vadd.f32 %v2236, %v2260
        %v2297 = vadd.f32 %v2237, %v2256
        %v2298 = vadd.f32 %v2238, %v2260
        %v2299 = vadd.f32 %v2239, %v2256
        %v2300 = vadd.f32 %v2240, %v2260
        %v2301 = vadd.f32 %v2241, %v2256
        %v2302 = vadd.f32 %v2242, %v2260
        %v2303 = vadd.f32 %v2243, %v2256
        %v2304 = vadd.f32 %v2244, %v2260
        %v2305 = vadd.f32 %v2245, %v2256
        %v2306 = vadd.f32 %v2246, %v2260
        %v2307 = vadd.f32 %v2247, %v2256
        %v2308 = vadd.f32 %v2248, %v2260
        %v2309 = vadd.f32 %v2249, %v2256
        %v2310 = vadd.f32 %v2250, %v2260
        %v2311 = vpack.c.bf16 %v2265, %v2263
        %v2312 = vpack.c.bf16 %v2266, %v2264
        %v2313 = vpack.c.bf16 %v2269, %v2267
        %v2314 = vpack.c.bf16 %v2270, %v2268
        %v2315 = vpack.c.bf16 %v2273, %v2271
        %v2316 = vpack.c.bf16 %v2274, %v2272
        %v2317 = vpack.c.bf16 %v2277, %v2275
        %v2318 = vpack.c.bf16 %v2278, %v2276
        %v2319 = vpack.c.bf16 %v2281, %v2279
        %v2320 = vpack.c.bf16 %v2282, %v2280
        %v2321 = vpack.c.bf16 %v2285, %v2283
        %v2322 = vpack.c.bf16 %v2286, %v2284
        %v2323 = vpack.c.bf16 %v2289, %v2287
        %v2324 = vpack.c.bf16 %v2290, %v2288
        %v2325 = vpack.c.bf16 %v2293, %v2291
        %v2326 = vpack.c.bf16 %v2294, %v2292
        %v2327 = vpack.c.bf16 %v2297, %v2295
        %v2328 = vpack.c.bf16 %v2298, %v2296
        %v2329 = vpack.c.bf16 %v2301, %v2299
        %v2330 = vpack.c.bf16 %v2302, %v2300
        %v2331 = vpack.c.bf16 %v2305, %v2303
        %v2332 = vpack.c.bf16 %v2306, %v2304
        %v2333 = vpack.c.bf16 %v2309, %v2307
        %v2334 = vpack.c.bf16 %v2310, %v2308
        %v2335 = vld [vmem:[#allocation13] sm:$0xff]
        %v2336 = vld [vmem:[#allocation13 + $0x8] sm:$0xff]
        %v2337 = vld [vmem:[#allocation13 + $0x10] sm:$0xff]
        %v2338 = vld [vmem:[#allocation13 + $0x18] sm:$0xff]
        %v2339 = vld [vmem:[#allocation13 + $0x20] sm:$0xff]
        %v2340 = vld [vmem:[#allocation13 + $0x28] sm:$0xff]
        %v2341 = vld [vmem:[#allocation13 + $0x30] sm:$0xff]
        %v2342 = vld [vmem:[#allocation13 + $0x38] sm:$0xff]
        %v2343 = vld [vmem:[#allocation13 + $0x40] sm:$0xff]
        %v2344 = vld [vmem:[#allocation13 + $0x48] sm:$0xff]
        %v2345 = vld [vmem:[#allocation13 + $0x50] sm:$0xff]
        %v2346 = vld [vmem:[#allocation13 + $0x58] sm:$0xff]
        %v2347 = vld [vmem:[#allocation13 + $0x60] sm:$0xff]
        %v2348 = vld [vmem:[#allocation13 + $0x68] sm:$0xff]
        %v2349 = vld [vmem:[#allocation13 + $0x70] sm:$0xff]
        %v2350 = vld [vmem:[#allocation13 + $0x78] sm:$0xff]
        %v2351 = vld [vmem:[#allocation13 + $0x80] sm:$0xff]
        %v2352 = vld [vmem:[#allocation13 + $0x88] sm:$0xff]
        %v2353 = vld [vmem:[#allocation13 + $0x90] sm:$0xff]
        %v2354 = vld [vmem:[#allocation13 + $0x98] sm:$0xff]
        %v2355 = vld [vmem:[#allocation13 + $0xa0] sm:$0xff]
        %v2356 = vld [vmem:[#allocation13 + $0xa8] sm:$0xff]
        %v2357 = vld [vmem:[#allocation13 + $0xb0] sm:$0xff]
        %v2358 = vld [vmem:[#allocation13 + $0xb8] sm:$0xff]
        %v2359 = vld [vmem:[#allocation13 + $0xc0] sm:$0xff]
        %v2360 = vld [vmem:[#allocation13 + $0xc8] sm:$0xff]
        %v2361 = vld [vmem:[#allocation13 + $0xd0] sm:$0xff]
        %v2362 = vld [vmem:[#allocation13 + $0xd8] sm:$0xff]
        %v2363 = vld [vmem:[#allocation13 + $0xe0] sm:$0xff]
        %v2364 = vld [vmem:[#allocation13 + $0xe8] sm:$0xff]
        %v2365 = vld [vmem:[#allocation13 + $0xf0] sm:$0xff]
        %v2366 = vld [vmem:[#allocation13 + $0xf8] sm:$0xff]
        %v2367 = vld [vmem:[#allocation13 + $0x100] sm:$0xff]
        %v2368 = vld [vmem:[#allocation13 + $0x108] sm:$0xff]
        %v2369 = vld [vmem:[#allocation13 + $0x110] sm:$0xff]
        %v2370 = vld [vmem:[#allocation13 + $0x118] sm:$0xff]
        %v2371 = vld [vmem:[#allocation13 + $0x120] sm:$0xff]
        %v2372 = vld [vmem:[#allocation13 + $0x128] sm:$0xff]
        %v2373 = vld [vmem:[#allocation13 + $0x130] sm:$0xff]
        %v2374 = vld [vmem:[#allocation13 + $0x138] sm:$0xff]
        %v2375 = vld [vmem:[#allocation13 + $0x140] sm:$0xff]
        %v2376 = vld [vmem:[#allocation13 + $0x148] sm:$0xff]
        %v2377 = vld [vmem:[#allocation13 + $0x150] sm:$0xff]
        %v2378 = vld [vmem:[#allocation13 + $0x158] sm:$0xff]
        %v2379 = vld [vmem:[#allocation13 + $0x160] sm:$0xff]
        %v2380 = vld [vmem:[#allocation13 + $0x168] sm:$0xff]
        %v2381 = vld [vmem:[#allocation13 + $0x170] sm:$0xff]
        %v2382 = vld [vmem:[#allocation13 + $0x178] sm:$0xff]
        %v2383 = vld [vmem:[#allocation13 + $0x180] sm:$0xff]
        %v2384 = vld [vmem:[#allocation13 + $0x188] sm:$0xff]
        %v2385 = vld [vmem:[#allocation13 + $0x190] sm:$0xff]
        %v2386 = vld [vmem:[#allocation13 + $0x198] sm:$0xff]
        %v2387 = vld [vmem:[#allocation13 + $0x1a0] sm:$0xff]
        %v2388 = vld [vmem:[#allocation13 + $0x1a8] sm:$0xff]
        %v2389 = vld [vmem:[#allocation13 + $0x1b0] sm:$0xff]
        %v2390 = vld [vmem:[#allocation13 + $0x1b8] sm:$0xff]
        %v2391 = vld [vmem:[#allocation13 + $0x1c0] sm:$0xff]
        %v2392 = vld [vmem:[#allocation13 + $0x1c8] sm:$0xff]
        %v2393 = vld [vmem:[#allocation13 + $0x1d0] sm:$0xff]
        %v2394 = vld [vmem:[#allocation13 + $0x1d8] sm:$0xff]
        %v2395 = vld [vmem:[#allocation13 + $0x1e0] sm:$0xff]
        %v2396 = vld [vmem:[#allocation13 + $0x1e8] sm:$0xff]
        %v2397 = vld [vmem:[#allocation13 + $0x1f0] sm:$0xff]
        %v2398 = vld [vmem:[#allocation13 + $0x1f8] sm:$0xff]
        %v2399 = vld [vmem:[#allocation13 + $0x200] sm:$0xff]
        %v2400 = vld [vmem:[#allocation13 + $0x208] sm:$0xff]
        %v2401 = vld [vmem:[#allocation13 + $0x210] sm:$0xff]
        %v2402 = vld [vmem:[#allocation13 + $0x218] sm:$0xff]
        %v2403 = vld [vmem:[#allocation13 + $0x220] sm:$0xff]
        %v2404 = vld [vmem:[#allocation13 + $0x228] sm:$0xff]
        %v2405 = vld [vmem:[#allocation13 + $0x230] sm:$0xff]
        %v2406 = vld [vmem:[#allocation13 + $0x238] sm:$0xff]
        %v2407 = vld [vmem:[#allocation13 + $0x240] sm:$0xff]
        %v2408 = vld [vmem:[#allocation13 + $0x248] sm:$0xff]
        %v2409 = vld [vmem:[#allocation13 + $0x250] sm:$0xff]
        %v2410 = vld [vmem:[#allocation13 + $0x258] sm:$0xff]
        %v2411 = vld [vmem:[#allocation13 + $0x260] sm:$0xff]
        %v2412 = vld [vmem:[#allocation13 + $0x268] sm:$0xff]
        %v2413 = vld [vmem:[#allocation13 + $0x270] sm:$0xff]
        %v2414 = vld [vmem:[#allocation13 + $0x278] sm:$0xff]
        %v2415 = vld [vmem:[#allocation13 + $0x280] sm:$0xff]
        %v2416 = vld [vmem:[#allocation13 + $0x288] sm:$0xff]
        %v2417 = vld [vmem:[#allocation13 + $0x290] sm:$0xff]
        %v2418 = vld [vmem:[#allocation13 + $0x298] sm:$0xff]
        %v2419 = vld [vmem:[#allocation13 + $0x2a0] sm:$0xff]
        %v2420 = vld [vmem:[#allocation13 + $0x2a8] sm:$0xff]
        %v2421 = vld [vmem:[#allocation13 + $0x2b0] sm:$0xff]
        %v2422 = vld [vmem:[#allocation13 + $0x2b8] sm:$0xff]
        %v2423 = vld [vmem:[#allocation13 + $0x2c0] sm:$0xff]
        %v2424 = vld [vmem:[#allocation13 + $0x2c8] sm:$0xff]
        %v2425 = vld [vmem:[#allocation13 + $0x2d0] sm:$0xff]
        %v2426 = vld [vmem:[#allocation13 + $0x2d8] sm:$0xff]
        %v2427 = vld [vmem:[#allocation13 + $0x2e0] sm:$0xff]
        %v2428 = vld [vmem:[#allocation13 + $0x2e8] sm:$0xff]
        %v2429 = vld [vmem:[#allocation13 + $0x2f0] sm:$0xff]
        %v2430 = vld [vmem:[#allocation13 + $0x2f8] sm:$0xff]
        %v2431 = vld [vmem:[#allocation13 + $0x300] sm:$0xff]
        %v2432 = vld [vmem:[#allocation13 + $0x308] sm:$0xff]
        %v2433 = vld [vmem:[#allocation13 + $0x310] sm:$0xff]
        %v2434 = vld [vmem:[#allocation13 + $0x318] sm:$0xff]
        %v2435 = vld [vmem:[#allocation13 + $0x320] sm:$0xff]
        %v2436 = vld [vmem:[#allocation13 + $0x328] sm:$0xff]
        %v2437 = vld [vmem:[#allocation13 + $0x330] sm:$0xff]
        %v2438 = vld [vmem:[#allocation13 + $0x338] sm:$0xff]
        %v2439 = vld [vmem:[#allocation13 + $0x340] sm:$0xff]
        %v2440 = vld [vmem:[#allocation13 + $0x348] sm:$0xff]
        %v2441 = vld [vmem:[#allocation13 + $0x350] sm:$0xff]
        %v2442 = vld [vmem:[#allocation13 + $0x358] sm:$0xff]
        %v2443 = vld [vmem:[#allocation13 + $0x360] sm:$0xff]
        %v2444 = vld [vmem:[#allocation13 + $0x368] sm:$0xff]
        %v2445 = vld [vmem:[#allocation13 + $0x370] sm:$0xff]
        %v2446 = vld [vmem:[#allocation13 + $0x378] sm:$0xff]
        %v2447 = vld [vmem:[#allocation13 + $0x380] sm:$0xff]
        %v2448 = vld [vmem:[#allocation13 + $0x388] sm:$0xff]
        %v2449 = vld [vmem:[#allocation13 + $0x390] sm:$0xff]
        %v2450 = vld [vmem:[#allocation13 + $0x398] sm:$0xff]
        %v2451 = vld [vmem:[#allocation13 + $0x3a0] sm:$0xff]
        %v2452 = vld [vmem:[#allocation13 + $0x3a8] sm:$0xff]
        %v2453 = vld [vmem:[#allocation13 + $0x3b0] sm:$0xff]
        %v2454 = vld [vmem:[#allocation13 + $0x3b8] sm:$0xff]
        %v2455 = vld [vmem:[#allocation13 + $0x3c0] sm:$0xff]
        %v2456 = vld [vmem:[#allocation13 + $0x3c8] sm:$0xff]
        %v2457 = vld [vmem:[#allocation13 + $0x3d0] sm:$0xff]
        %v2458 = vld [vmem:[#allocation13 + $0x3d8] sm:$0xff]
        %v2459 = vld [vmem:[#allocation13 + $0x3e0] sm:$0xff]
        %v2460 = vld [vmem:[#allocation13 + $0x3e8] sm:$0xff]
        %v2461 = vld [vmem:[#allocation13 + $0x3f0] sm:$0xff]
        %v2462 = vld [vmem:[#allocation13 + $0x3f8] sm:$0xff]
        %v2463 = vld [vmem:[#allocation14] sm:$0xff]
        %v2465 = vlaneseq
        %v2466 = vshrl.u32 %v2465, 7
        %v2467 = vsub.s32 0, %v2466
        %v2468 = vrot.slane %v2463, %v2467
        %v2469 = vlaneseq
        %v2470 = vshrl.u32 %v2469, 7
        %v2471 = vsub.s32 1, %v2470
        %v2472 = vrot.slane %v2463, %v2471
        %v2473 = vlaneseq
        %v2474 = vshrl.u32 %v2473, 7
        %v2475 = vsub.s32 2, %v2474
        %v2476 = vrot.slane %v2463, %v2475
        %v2477 = vlaneseq
        %v2478 = vshrl.u32 %v2477, 7
        %v2479 = vsub.s32 3, %v2478
        %v2480 = vrot.slane %v2463, %v2479
        %v2481 = vlaneseq
        %v2482 = vshrl.u32 %v2481, 7
        %v2483 = vsub.s32 4, %v2482
        %v2484 = vrot.slane %v2463, %v2483
        %v2485 = vlaneseq
        %v2486 = vshrl.u32 %v2485, 7
        %v2487 = vsub.s32 5, %v2486
        %v2488 = vrot.slane %v2463, %v2487
        %v2489 = vlaneseq
        %v2490 = vshrl.u32 %v2489, 7
        %v2491 = vsub.s32 6, %v2490
        %v2492 = vrot.slane %v2463, %v2491
        %v2493 = vlaneseq
        %v2494 = vshrl.u32 %v2493, 7
        %v2495 = vsub.s32 7, %v2494
        %v2496 = vrot.slane %v2463, %v2495
        %v2633 = vunpack.c.l.b16 %v2335
        %v2634 = vunpack.c.h.b16 %v2335
        %v2635 = vunpack.c.l.b16 %v2336
        %v2636 = vunpack.c.h.b16 %v2336
        %v2637 = vunpack.c.l.b16 %v2337
        %v2638 = vunpack.c.h.b16 %v2337
        %v2639 = vunpack.c.l.b16 %v2338
        %v2640 = vunpack.c.h.b16 %v2338
        %v2641 = vunpack.c.l.b16 %v2339
        %v2642 = vunpack.c.h.b16 %v2339
        %v2643 = vunpack.c.l.b16 %v2340
        %v2644 = vunpack.c.h.b16 %v2340
        %v2645 = vunpack.c.l.b16 %v2341
        %v2646 = vunpack.c.h.b16 %v2341
        %v2647 = vunpack.c.l.b16 %v2342
        %v2648 = vunpack.c.h.b16 %v2342
        %v2649 = vunpack.c.l.b16 %v2343
        %v2650 = vunpack.c.h.b16 %v2343
        %v2651 = vunpack.c.l.b16 %v2344
        %v2652 = vunpack.c.h.b16 %v2344
        %v2653 = vunpack.c.l.b16 %v2345
        %v2654 = vunpack.c.h.b16 %v2345
        %v2655 = vunpack.c.l.b16 %v2346
        %v2656 = vunpack.c.h.b16 %v2346
        %v2657 = vunpack.c.l.b16 %v2347
        %v2658 = vunpack.c.h.b16 %v2347
        %v2659 = vunpack.c.l.b16 %v2348
        %v2660 = vunpack.c.h.b16 %v2348
        %v2661 = vunpack.c.l.b16 %v2349
        %v2662 = vunpack.c.h.b16 %v2349
        %v2663 = vunpack.c.l.b16 %v2350
        %v2664 = vunpack.c.h.b16 %v2350
        %v2665 = vunpack.c.l.b16 %v2351
        %v2666 = vunpack.c.h.b16 %v2351
        %v2667 = vunpack.c.l.b16 %v2352
        %v2668 = vunpack.c.h.b16 %v2352
        %v2669 = vunpack.c.l.b16 %v2353
        %v2670 = vunpack.c.h.b16 %v2353
        %v2671 = vunpack.c.l.b16 %v2354
        %v2672 = vunpack.c.h.b16 %v2354
        %v2673 = vunpack.c.l.b16 %v2355
        %v2674 = vunpack.c.h.b16 %v2355
        %v2675 = vunpack.c.l.b16 %v2356
        %v2676 = vunpack.c.h.b16 %v2356
        %v2677 = vunpack.c.l.b16 %v2357
        %v2678 = vunpack.c.h.b16 %v2357
        %v2679 = vunpack.c.l.b16 %v2358
        %v2680 = vunpack.c.h.b16 %v2358
        %v2681 = vunpack.c.l.b16 %v2359
        %v2682 = vunpack.c.h.b16 %v2359
        %v2683 = vunpack.c.l.b16 %v2360
        %v2684 = vunpack.c.h.b16 %v2360
        %v2685 = vunpack.c.l.b16 %v2361
        %v2686 = vunpack.c.h.b16 %v2361
        %v2687 = vunpack.c.l.b16 %v2362
        %v2688 = vunpack.c.h.b16 %v2362
        %v2689 = vunpack.c.l.b16 %v2363
        %v2690 = vunpack.c.h.b16 %v2363
        %v2691 = vunpack.c.l.b16 %v2364
        %v2692 = vunpack.c.h.b16 %v2364
        %v2693 = vunpack.c.l.b16 %v2365
        %v2694 = vunpack.c.h.b16 %v2365
        %v2695 = vunpack.c.l.b16 %v2366
        %v2696 = vunpack.c.h.b16 %v2366
        %v2697 = vunpack.c.l.b16 %v2367
        %v2698 = vunpack.c.h.b16 %v2367
        %v2699 = vunpack.c.l.b16 %v2368
        %v2700 = vunpack.c.h.b16 %v2368
        %v2701 = vunpack.c.l.b16 %v2369
        %v2702 = vunpack.c.h.b16 %v2369
        %v2703 = vunpack.c.l.b16 %v2370
        %v2704 = vunpack.c.h.b16 %v2370
        %v2705 = vunpack.c.l.b16 %v2371
        %v2706 = vunpack.c.h.b16 %v2371
        %v2707 = vunpack.c.l.b16 %v2372
        %v2708 = vunpack.c.h.b16 %v2372
        %v2709 = vunpack.c.l.b16 %v2373
        %v2710 = vunpack.c.h.b16 %v2373
        %v2711 = vunpack.c.l.b16 %v2374
        %v2712 = vunpack.c.h.b16 %v2374
        %v2713 = vunpack.c.l.b16 %v2375
        %v2714 = vunpack.c.h.b16 %v2375
        %v2715 = vunpack.c.l.b16 %v2376
        %v2716 = vunpack.c.h.b16 %v2376
        %v2717 = vunpack.c.l.b16 %v2377
        %v2718 = vunpack.c.h.b16 %v2377
        %v2719 = vunpack.c.l.b16 %v2378
        %v2720 = vunpack.c.h.b16 %v2378
        %v2721 = vunpack.c.l.b16 %v2379
        %v2722 = vunpack.c.h.b16 %v2379
        %v2723 = vunpack.c.l.b16 %v2380
        %v2724 = vunpack.c.h.b16 %v2380
        %v2725 = vunpack.c.l.b16 %v2381
        %v2726 = vunpack.c.h.b16 %v2381
        %v2727 = vunpack.c.l.b16 %v2382
        %v2728 = vunpack.c.h.b16 %v2382
        %v2729 = vunpack.c.l.b16 %v2383
        %v2730 = vunpack.c.h.b16 %v2383
        %v2731 = vunpack.c.l.b16 %v2384
        %v2732 = vunpack.c.h.b16 %v2384
        %v2733 = vunpack.c.l.b16 %v2385
        %v2734 = vunpack.c.h.b16 %v2385
        %v2735 = vunpack.c.l.b16 %v2386
        %v2736 = vunpack.c.h.b16 %v2386
        %v2737 = vunpack.c.l.b16 %v2387
        %v2738 = vunpack.c.h.b16 %v2387
        %v2739 = vunpack.c.l.b16 %v2388
        %v2740 = vunpack.c.h.b16 %v2388
        %v2741 = vunpack.c.l.b16 %v2389
        %v2742 = vunpack.c.h.b16 %v2389
        %v2743 = vunpack.c.l.b16 %v2390
        %v2744 = vunpack.c.h.b16 %v2390
        %v2745 = vunpack.c.l.b16 %v2391
        %v2746 = vunpack.c.h.b16 %v2391
        %v2747 = vunpack.c.l.b16 %v2392
        %v2748 = vunpack.c.h.b16 %v2392
        %v2749 = vunpack.c.l.b16 %v2393
        %v2750 = vunpack.c.h.b16 %v2393
        %v2751 = vunpack.c.l.b16 %v2394
        %v2752 = vunpack.c.h.b16 %v2394
        %v2753 = vunpack.c.l.b16 %v2395
        %v2754 = vunpack.c.h.b16 %v2395
        %v2755 = vunpack.c.l.b16 %v2396
        %v2756 = vunpack.c.h.b16 %v2396
        %v2757 = vunpack.c.l.b16 %v2397
        %v2758 = vunpack.c.h.b16 %v2397
        %v2759 = vunpack.c.l.b16 %v2398
        %v2760 = vunpack.c.h.b16 %v2398
        %v2761 = vunpack.c.l.b16 %v2399
        %v2762 = vunpack.c.h.b16 %v2399
        %v2763 = vunpack.c.l.b16 %v2400
        %v2764 = vunpack.c.h.b16 %v2400
        %v2765 = vunpack.c.l.b16 %v2401
        %v2766 = vunpack.c.h.b16 %v2401
        %v2767 = vunpack.c.l.b16 %v2402
        %v2768 = vunpack.c.h.b16 %v2402
        %v2769 = vunpack.c.l.b16 %v2403
        %v2770 = vunpack.c.h.b16 %v2403
        %v2771 = vunpack.c.l.b16 %v2404
        %v2772 = vunpack.c.h.b16 %v2404
        %v2773 = vunpack.c.l.b16 %v2405
        %v2774 = vunpack.c.h.b16 %v2405
        %v2775 = vunpack.c.l.b16 %v2406
        %v2776 = vunpack.c.h.b16 %v2406
        %v2777 = vunpack.c.l.b16 %v2407
        %v2778 = vunpack.c.h.b16 %v2407
        %v2779 = vunpack.c.l.b16 %v2408
        %v2780 = vunpack.c.h.b16 %v2408
        %v2781 = vunpack.c.l.b16 %v2409
        %v2782 = vunpack.c.h.b16 %v2409
        %v2783 = vunpack.c.l.b16 %v2410
        %v2784 = vunpack.c.h.b16 %v2410
        %v2785 = vunpack.c.l.b16 %v2411
        %v2786 = vunpack.c.h.b16 %v2411
        %v2787 = vunpack.c.l.b16 %v2412
        %v2788 = vunpack.c.h.b16 %v2412
        %v2789 = vunpack.c.l.b16 %v2413
        %v2790 = vunpack.c.h.b16 %v2413
        %v2791 = vunpack.c.l.b16 %v2414
        %v2792 = vunpack.c.h.b16 %v2414
        %v2793 = vunpack.c.l.b16 %v2415
        %v2794 = vunpack.c.h.b16 %v2415
        %v2795 = vunpack.c.l.b16 %v2416
        %v2796 = vunpack.c.h.b16 %v2416
        %v2797 = vunpack.c.l.b16 %v2417
        %v2798 = vunpack.c.h.b16 %v2417
        %v2799 = vunpack.c.l.b16 %v2418
        %v2800 = vunpack.c.h.b16 %v2418
        %v2801 = vunpack.c.l.b16 %v2419
        %v2802 = vunpack.c.h.b16 %v2419
        %v2803 = vunpack.c.l.b16 %v2420
        %v2804 = vunpack.c.h.b16 %v2420
        %v2805 = vunpack.c.l.b16 %v2421
        %v2806 = vunpack.c.h.b16 %v2421
        %v2807 = vunpack.c.l.b16 %v2422
        %v2808 = vunpack.c.h.b16 %v2422
        %v2809 = vunpack.c.l.b16 %v2423
        %v2810 = vunpack.c.h.b16 %v2423
        %v2811 = vunpack.c.l.b16 %v2424
        %v2812 = vunpack.c.h.b16 %v2424
        %v2813 = vunpack.c.l.b16 %v2425
        %v2814 = vunpack.c.h.b16 %v2425
        %v2815 = vunpack.c.l.b16 %v2426
        %v2816 = vunpack.c.h.b16 %v2426
        %v2817 = vunpack.c.l.b16 %v2427
        %v2818 = vunpack.c.h.b16 %v2427
        %v2819 = vunpack.c.l.b16 %v2428
        %v2820 = vunpack.c.h.b16 %v2428
        %v2821 = vunpack.c.l.b16 %v2429
        %v2822 = vunpack.c.h.b16 %v2429
        %v2823 = vunpack.c.l.b16 %v2430
        %v2824 = vunpack.c.h.b16 %v2430
        %v2825 = vunpack.c.l.b16 %v2431
        %v2826 = vunpack.c.h.b16 %v2431
        %v2827 = vunpack.c.l.b16 %v2432
        %v2828 = vunpack.c.h.b16 %v2432
        %v2829 = vunpack.c.l.b16 %v2433
        %v2830 = vunpack.c.h.b16 %v2433
        %v2831 = vunpack.c.l.b16 %v2434
        %v2832 = vunpack.c.h.b16 %v2434
        %v2833 = vunpack.c.l.b16 %v2435
        %v2834 = vunpack.c.h.b16 %v2435
        %v2835 = vunpack.c.l.b16 %v2436
        %v2836 = vunpack.c.h.b16 %v2436
        %v2837 = vunpack.c.l.b16 %v2437
        %v2838 = vunpack.c.h.b16 %v2437
        %v2839 = vunpack.c.l.b16 %v2438
        %v2840 = vunpack.c.h.b16 %v2438
        %v2841 = vunpack.c.l.b16 %v2439
        %v2842 = vunpack.c.h.b16 %v2439
        %v2843 = vunpack.c.l.b16 %v2440
        %v2844 = vunpack.c.h.b16 %v2440
        %v2845 = vunpack.c.l.b16 %v2441
        %v2846 = vunpack.c.h.b16 %v2441
        %v2847 = vunpack.c.l.b16 %v2442
        %v2848 = vunpack.c.h.b16 %v2442
        %v2849 = vunpack.c.l.b16 %v2443
        %v2850 = vunpack.c.h.b16 %v2443
        %v2851 = vunpack.c.l.b16 %v2444
        %v2852 = vunpack.c.h.b16 %v2444
        %v2853 = vunpack.c.l.b16 %v2445
        %v2854 = vunpack.c.h.b16 %v2445
        %v2855 = vunpack.c.l.b16 %v2446
        %v2856 = vunpack.c.h.b16 %v2446
        %v2857 = vunpack.c.l.b16 %v2447
        %v2858 = vunpack.c.h.b16 %v2447
        %v2859 = vunpack.c.l.b16 %v2448
        %v2860 = vunpack.c.h.b16 %v2448
        %v2861 = vunpack.c.l.b16 %v2449
        %v2862 = vunpack.c.h.b16 %v2449
        %v2863 = vunpack.c.l.b16 %v2450
        %v2864 = vunpack.c.h.b16 %v2450
        %v2865 = vunpack.c.l.b16 %v2451
        %v2866 = vunpack.c.h.b16 %v2451
        %v2867 = vunpack.c.l.b16 %v2452
        %v2868 = vunpack.c.h.b16 %v2452
        %v2869 = vunpack.c.l.b16 %v2453
        %v2870 = vunpack.c.h.b16 %v2453
        %v2871 = vunpack.c.l.b16 %v2454
        %v2872 = vunpack.c.h.b16 %v2454
        %v2873 = vunpack.c.l.b16 %v2455
        %v2874 = vunpack.c.h.b16 %v2455
        %v2875 = vunpack.c.l.b16 %v2456
        %v2876 = vunpack.c.h.b16 %v2456
        %v2877 = vunpack.c.l.b16 %v2457
        %v2878 = vunpack.c.h.b16 %v2457
        %v2879 = vunpack.c.l.b16 %v2458
        %v2880 = vunpack.c.h.b16 %v2458
        %v2881 = vunpack.c.l.b16 %v2459
        %v2882 = vunpack.c.h.b16 %v2459
        %v2883 = vunpack.c.l.b16 %v2460
        %v2884 = vunpack.c.h.b16 %v2460
        %v2885 = vunpack.c.l.b16 %v2461
        %v2886 = vunpack.c.h.b16 %v2461
        %v2887 = vunpack.c.l.b16 %v2462
        %v2888 = vunpack.c.h.b16 %v2462
        %v2889 = vpack.c.b16 %v2641, %v2633
        %v2890 = vpack.c.b16 %v2642, %v2634
        %v2891 = vpack.c.b16 %v2643, %v2635
        %v2892 = vpack.c.b16 %v2644, %v2636
        %v2893 = vpack.c.b16 %v2645, %v2637
        %v2894 = vpack.c.b16 %v2646, %v2638
        %v2895 = vpack.c.b16 %v2647, %v2639
        %v2896 = vpack.c.b16 %v2648, %v2640
        %v2897 = vpack.c.b16 %v2657, %v2649
        %v2898 = vpack.c.b16 %v2658, %v2650
        %v2899 = vpack.c.b16 %v2659, %v2651
        %v2900 = vpack.c.b16 %v2660, %v2652
        %v2901 = vpack.c.b16 %v2661, %v2653
        %v2902 = vpack.c.b16 %v2662, %v2654
        %v2903 = vpack.c.b16 %v2663, %v2655
        %v2904 = vpack.c.b16 %v2664, %v2656
        %v2905 = vpack.c.b16 %v2673, %v2665
        %v2906 = vpack.c.b16 %v2674, %v2666
        %v2907 = vpack.c.b16 %v2675, %v2667
        %v2908 = vpack.c.b16 %v2676, %v2668
        %v2909 = vpack.c.b16 %v2677, %v2669
        %v2910 = vpack.c.b16 %v2678, %v2670
        %v2911 = vpack.c.b16 %v2679, %v2671
        %v2912 = vpack.c.b16 %v2680, %v2672
        %v2913 = vpack.c.b16 %v2689, %v2681
        %v2914 = vpack.c.b16 %v2690, %v2682
        %v2915 = vpack.c.b16 %v2691, %v2683
        %v2916 = vpack.c.b16 %v2692, %v2684
        %v2917 = vpack.c.b16 %v2693, %v2685
        %v2918 = vpack.c.b16 %v2694, %v2686
        %v2919 = vpack.c.b16 %v2695, %v2687
        %v2920 = vpack.c.b16 %v2696, %v2688
        %v2921 = vpack.c.b16 %v2705, %v2697
        %v2922 = vpack.c.b16 %v2706, %v2698
        %v2923 = vpack.c.b16 %v2707, %v2699
        %v2924 = vpack.c.b16 %v2708, %v2700
        %v2925 = vpack.c.b16 %v2709, %v2701
        %v2926 = vpack.c.b16 %v2710, %v2702
        %v2927 = vpack.c.b16 %v2711, %v2703
        %v2928 = vpack.c.b16 %v2712, %v2704
        %v2929 = vpack.c.b16 %v2721, %v2713
        %v2930 = vpack.c.b16 %v2722, %v2714
        %v2931 = vpack.c.b16 %v2723, %v2715
        %v2932 = vpack.c.b16 %v2724, %v2716
        %v2933 = vpack.c.b16 %v2725, %v2717
        %v2934 = vpack.c.b16 %v2726, %v2718
        %v2935 = vpack.c.b16 %v2727, %v2719
        %v2936 = vpack.c.b16 %v2728, %v2720
        %v2937 = vpack.c.b16 %v2737, %v2729
        %v2938 = vpack.c.b16 %v2738, %v2730
        %v2939 = vpack.c.b16 %v2739, %v2731
        %v2940 = vpack.c.b16 %v2740, %v2732
        %v2941 = vpack.c.b16 %v2741, %v2733
        %v2942 = vpack.c.b16 %v2742, %v2734
        %v2943 = vpack.c.b16 %v2743, %v2735
        %v2944 = vpack.c.b16 %v2744, %v2736
        %v2945 = vpack.c.b16 %v2753, %v2745
        %v2946 = vpack.c.b16 %v2754, %v2746
        %v2947 = vpack.c.b16 %v2755, %v2747
        %v2948 = vpack.c.b16 %v2756, %v2748
        %v2949 = vpack.c.b16 %v2757, %v2749
        %v2950 = vpack.c.b16 %v2758, %v2750
        %v2951 = vpack.c.b16 %v2759, %v2751
        %v2952 = vpack.c.b16 %v2760, %v2752
        %v2953 = vpack.c.b16 %v2769, %v2761
        %v2954 = vpack.c.b16 %v2770, %v2762
        %v2955 = vpack.c.b16 %v2771, %v2763
        %v2956 = vpack.c.b16 %v2772, %v2764
        %v2957 = vpack.c.b16 %v2773, %v2765
        %v2958 = vpack.c.b16 %v2774, %v2766
        %v2959 = vpack.c.b16 %v2775, %v2767
        %v2960 = vpack.c.b16 %v2776, %v2768
        %v2961 = vpack.c.b16 %v2785, %v2777
        %v2962 = vpack.c.b16 %v2786, %v2778
        %v2963 = vpack.c.b16 %v2787, %v2779
        %v2964 = vpack.c.b16 %v2788, %v2780
        %v2965 = vpack.c.b16 %v2789, %v2781
        %v2966 = vpack.c.b16 %v2790, %v2782
        %v2967 = vpack.c.b16 %v2791, %v2783
        %v2968 = vpack.c.b16 %v2792, %v2784
        %v2969 = vpack.c.b16 %v2801, %v2793
        %v2970 = vpack.c.b16 %v2802, %v2794
        %v2971 = vpack.c.b16 %v2803, %v2795
        %v2972 = vpack.c.b16 %v2804, %v2796
        %v2973 = vpack.c.b16 %v2805, %v2797
        %v2974 = vpack.c.b16 %v2806, %v2798
        %v2975 = vpack.c.b16 %v2807, %v2799
        %v2976 = vpack.c.b16 %v2808, %v2800
        %v2977 = vpack.c.b16 %v2817, %v2809
        %v2978 = vpack.c.b16 %v2818, %v2810
        %v2979 = vpack.c.b16 %v2819, %v2811
        %v2980 = vpack.c.b16 %v2820, %v2812
        %v2981 = vpack.c.b16 %v2821, %v2813
        %v2982 = vpack.c.b16 %v2822, %v2814
        %v2983 = vpack.c.b16 %v2823, %v2815
        %v2984 = vpack.c.b16 %v2824, %v2816
        %v2985 = vpack.c.b16 %v2833, %v2825
        %v2986 = vpack.c.b16 %v2834, %v2826
        %v2987 = vpack.c.b16 %v2835, %v2827
        %v2988 = vpack.c.b16 %v2836, %v2828
        %v2989 = vpack.c.b16 %v2837, %v2829
        %v2990 = vpack.c.b16 %v2838, %v2830
        %v2991 = vpack.c.b16 %v2839, %v2831
        %v2992 = vpack.c.b16 %v2840, %v2832
        %v2993 = vpack.c.b16 %v2849, %v2841
        %v2994 = vpack.c.b16 %v2850, %v2842
        %v2995 = vpack.c.b16 %v2851, %v2843
        %v2996 = vpack.c.b16 %v2852, %v2844
        %v2997 = vpack.c.b16 %v2853, %v2845
        %v2998 = vpack.c.b16 %v2854, %v2846
        %v2999 = vpack.c.b16 %v2855, %v2847
        %v3000 = vpack.c.b16 %v2856, %v2848
        %v3001 = vpack.c.b16 %v2865, %v2857
        %v3002 = vpack.c.b16 %v2866, %v2858
        %v3003 = vpack.c.b16 %v2867, %v2859
        %v3004 = vpack.c.b16 %v2868, %v2860
        %v3005 = vpack.c.b16 %v2869, %v2861
        %v3006 = vpack.c.b16 %v2870, %v2862
        %v3007 = vpack.c.b16 %v2871, %v2863
        %v3008 = vpack.c.b16 %v2872, %v2864
        %v3009 = vpack.c.b16 %v2881, %v2873
        %v3010 = vpack.c.b16 %v2882, %v2874
        %v3011 = vpack.c.b16 %v2883, %v2875
        %v3012 = vpack.c.b16 %v2884, %v2876
        %v3013 = vpack.c.b16 %v2885, %v2877
        %v3014 = vpack.c.b16 %v2886, %v2878
        %v3015 = vpack.c.b16 %v2887, %v2879
        %v3016 = vpack.c.b16 %v2888, %v2880
        %3145 = vmatprep.subr.bf16.mxu0 %v2890
        %3146 = vmatpush1.bf16.msra.mxu0 %v2889
        %3147 = vmatprep.subr.bf16.mxu0 %v2898
        %3148 = vmatpush1.bf16.msra.mxu0 %v2897
        %3149 = vmatprep.subr.bf16.mxu0 %v2906
        %3150 = vmatpush1.bf16.msra.mxu0 %v2905
        %3151 = vmatprep.subr.bf16.mxu0 %v2914
        %3152 = vmatpush1.bf16.msra.mxu0 %v2913
        %3153 = vmatprep.subr.bf16.mxu0 %v2922
        %3154 = vmatpush1.bf16.msra.mxu0 %v2921
        %3155 = vmatprep.subr.bf16.mxu0 %v2930
        %3156 = vmatpush1.bf16.msra.mxu0 %v2929
        %3157 = vmatprep.subr.bf16.mxu0 %v2938
        %3158 = vmatpush1.bf16.msra.mxu0 %v2937
        %3159 = vmatprep.subr.bf16.mxu0 %v2946
        %3160 = vmatpush1.bf16.msra.mxu0 %v2945
        %3161 = vmatprep.subr.bf16.mxu0 %v2954
        %3162 = vmatpush1.bf16.msra.mxu0 %v2953
        %3163 = vmatprep.subr.bf16.mxu0 %v2962
        %3164 = vmatpush1.bf16.msra.mxu0 %v2961
        %3165 = vmatprep.subr.bf16.mxu0 %v2970
        %3166 = vmatpush1.bf16.msra.mxu0 %v2969
        %3167 = vmatprep.subr.bf16.mxu0 %v2978
        %3168 = vmatpush1.bf16.msra.mxu0 %v2977
        %3169 = vmatprep.subr.bf16.mxu0 %v2986
        %3170 = vmatpush1.bf16.msra.mxu0 %v2985
        %3171 = vmatprep.subr.bf16.mxu0 %v2994
        %3172 = vmatpush1.bf16.msra.mxu0 %v2993
        %3173 = vmatprep.subr.bf16.mxu0 %v3002
        %3174 = vmatpush1.bf16.msra.mxu0 %v3001
        %3175 = vmatprep.subr.bf16.mxu0 %v3010
        %3176 = vmatpush1.bf16.msra.mxu0 %v3009
        %3177 = vmatprep.mubr.bf16.mxu0 %v2312
        %3178 = vmatmul.mubr.bf16.gmra.mrb[0].mxu0 %v2311
        %v3179 = vpop.f32.mrb[0].mxu0
        %v3180 = vadd.f32 %v2468, %v3179
        %v3181 = vpop.f32.mrb[0].mxu0
        %v3182 = vadd.f32 %v2472, %v3181
        %v3183 = vpop.f32.mrb[0].mxu0
        %v3184 = vadd.f32 %v2468, %v3183
        %v3185 = vpop.f32.mrb[0].mxu0
        %v3186 = vadd.f32 %v2472, %v3185
        %3187 = vmatprep.mubr.bf16.mxu0 %v2314
        %3188 = vmatmul.mubr.bf16.gmra.mrb[0].mxu0 %v2313
        %v3189 = vpop.f32.mrb[0].mxu0
        %v3190 = vadd.f32 %v2468, %v3189
        %v3191 = vpop.f32.mrb[0].mxu0
        %v3192 = vadd.f32 %v2472, %v3191
        %v3193 = vpop.f32.mrb[0].mxu0
        %v3194 = vadd.f32 %v2468, %v3193
        %v3195 = vpop.f32.mrb[0].mxu0
        %v3196 = vadd.f32 %v2472, %v3195
        %3197 = vmatprep.mubr.bf16.mxu0 %v2316
        %3198 = vmatmul.mubr.bf16.gmra.mrb[0].mxu0 %v2315
        %v3199 = vpop.f32.mrb[0].mxu0
        %v3200 = vadd.f32 %v2468, %v3199
        %v3201 = vpop.f32.mrb[0].mxu0
        %v3202 = vadd.f32 %v2472, %v3201
        %v3203 = vpop.f32.mrb[0].mxu0
        %v3204 = vadd.f32 %v2468, %v3203
        %v3205 = vpop.f32.mrb[0].mxu0
        %v3206 = vadd.f32 %v2472, %v3205
        %3207 = vmatprep.mubr.bf16.mxu0 %v2318
        %3208 = vmatmul.mubr.bf16.gmra.mrb[0].mxu0 %v2317
        %v3209 = vpop.f32.mrb[0].mxu0
        %v3210 = vadd.f32 %v2468, %v3209
        %v3211 = vpop.f32.mrb[0].mxu0
        %v3212 = vadd.f32 %v2472, %v3211
        %v3213 = vpop.f32.mrb[0].mxu0
        %v3214 = vadd.f32 %v2468, %v3213
        %v3215 = vpop.f32.mrb[0].mxu0
        %v3216 = vadd.f32 %v2472, %v3215
        %3217 = vmatprep.mubr.bf16.mxu0 %v2320
        %3218 = vmatmul.mubr.bf16.gmra.mrb[0].mxu0 %v2319
        %v3219 = vpop.f32.mrb[0].mxu0
        %v3220 = vadd.f32 %v2468, %v3219
        %v3221 = vpop.f32.mrb[0].mxu0
        %v3222 = vadd.f32 %v2472, %v3221
        %v3223 = vpop.f32.mrb[0].mxu0
        %v3224 = vadd.f32 %v2468, %v3223
        %v3225 = vpop.f32.mrb[0].mxu0
        %v3226 = vadd.f32 %v2472, %v3225
        %3227 = vmatprep.mubr.bf16.mxu0 %v2322
        %3228 = vmatmul.mubr.bf16.gmra.mrb[0].mxu0 %v2321
        %v3229 = vpop.f32.mrb[0].mxu0
        %v3230 = vadd.f32 %v2468, %v3229
        %v3231 = vpop.f32.mrb[0].mxu0
        %v3232 = vadd.f32 %v2472, %v3231
        %v3233 = vpop.f32.mrb[0].mxu0
        %v3234 = vadd.f32 %v2468, %v3233
        %v3235 = vpop.f32.mrb[0].mxu0
        %v3236 = vadd.f32 %v2472, %v3235
        %3237 = vmatprep.mubr.bf16.mxu0 %v2324
        %3238 = vmatmul.mubr.bf16.gmra.mrb[0].mxu0 %v2323
        %v3239 = vpop.f32.mrb[0].mxu0
        %v3240 = vadd.f32 %v2468, %v3239
        %v3241 = vpop.f32.mrb[0].mxu0
        %v3242 = vadd.f32 %v2472, %v3241
        %v3243 = vpop.f32.mrb[0].mxu0
        %v3244 = vadd.f32 %v2468, %v3243
        %v3245 = vpop.f32.mrb[0].mxu0
        %v3246 = vadd.f32 %v2472, %v3245
        %3247 = vmatprep.mubr.bf16.mxu0 %v2326
        %3248 = vmatmul.mubr.bf16.gmra.mrb[0].mxu0 %v2325
        %v3249 = vpop.f32.mrb[0].mxu0
        %v3250 = vadd.f32 %v2468, %v3249
        %v3251 = vpop.f32.mrb[0].mxu0
        %v3252 = vadd.f32 %v2472, %v3251
        %v3253 = vpop.f32.mrb[0].mxu0
        %v3254 = vadd.f32 %v2468, %v3253
        %v3255 = vpop.f32.mrb[0].mxu0
        %v3256 = vadd.f32 %v2472, %v3255
        %3257 = vmatprep.mubr.bf16.mxu0 %v2328
        %3258 = vmatmul.mubr.bf16.gmra.mrb[0].mxu0 %v2327
        %v3259 = vpop.f32.mrb[0].mxu0
        %v3260 = vadd.f32 %v2468, %v3259
        %v3261 = vpop.f32.mrb[0].mxu0
        %v3262 = vadd.f32 %v2472, %v3261
        %v3263 = vpop.f32.mrb[0].mxu0
        %v3264 = vadd.f32 %v2468, %v3263
        %v3265 = vpop.f32.mrb[0].mxu0
        %v3266 = vadd.f32 %v2472, %v3265
        %3267 = vmatprep.mubr.bf16.mxu0 %v2330
        %3268 = vmatmul.mubr.bf16.gmra.mrb[0].mxu0 %v2329
        %v3269 = vpop.f32.mrb[0].mxu0
        %v3270 = vadd.f32 %v2468, %v3269
        %v3271 = vpop.f32.mrb[0].mxu0
        %v3272 = vadd.f32 %v2472, %v3271
        %v3273 = vpop.f32.mrb[0].mxu0
        %v3274 = vadd.f32 %v2468, %v3273
        %v3275 = vpop.f32.mrb[0].mxu0
        %v3276 = vadd.f32 %v2472, %v3275
        %3277 = vmatprep.mubr.bf16.mxu0 %v2332
        %3278 = vmatmul.mubr.bf16.gmra.mrb[0].mxu0 %v2331
        %v3279 = vpop.f32.mrb[0].mxu0
        %v3280 = vadd.f32 %v2468, %v3279
        %v3281 = vpop.f32.mrb[0].mxu0
        %v3282 = vadd.f32 %v2472, %v3281
        %v3283 = vpop.f32.mrb[0].mxu0
        %v3284 = vadd.f32 %v2468, %v3283
        %v3285 = vpop.f32.mrb[0].mxu0
        %v3286 = vadd.f32 %v2472, %v3285
        %3287 = vmatprep.mubr.bf16.mxu0 %v2334
        %3288 = vmatmul.mubr.bf16.gmra.mrb[0].mxu0 %v2333
        %v3289 = vpop.f32.mrb[0].mxu0
        %v3290 = vadd.f32 %v2468, %v3289
        %v3291 = vpop.f32.mrb[0].mxu0
        %v3292 = vadd.f32 %v2472, %v3291
        %v3293 = vpop.f32.mrb[0].mxu0
        %v3294 = vadd.f32 %v2468, %v3293
        %v3295 = vpop.f32.mrb[0].mxu0
        %v3296 = vadd.f32 %v2472, %v3295
        %3297 = vdwg.mxu0
        %3298 = vmatprep.subr.bf16.mxu0 %v2892
        %3299 = vmatpush1.bf16.msra.mxu0 %v2891
        %3300 = vmatprep.subr.bf16.mxu0 %v2900
        %3301 = vmatpush1.bf16.msra.mxu0 %v2899
        %3302 = vmatprep.subr.bf16.mxu0 %v2908
        %3303 = vmatpush1.bf16.msra.mxu0 %v2907
        %3304 = vmatprep.subr.bf16.mxu0 %v2916
        %3305 = vmatpush1.bf16.msra.mxu0 %v2915
        %3306 = vmatprep.subr.bf16.mxu0 %v2924
        %3307 = vmatpush1.bf16.msra.mxu0 %v2923
        %3308 = vmatprep.subr.bf16.mxu0 %v2932
        %3309 = vmatpush1.bf16.msra.mxu0 %v2931
        %3310 = vmatprep.subr.bf16.mxu0 %v2940
        %3311 = vmatpush1.bf16.msra.mxu0 %v2939
        %3312 = vmatprep.subr.bf16.mxu0 %v2948
        %3313 = vmatpush1.bf16.msra.mxu0 %v2947
        %3314 = vmatprep.subr.bf16.mxu0 %v2956
        %3315 = vmatpush1.bf16.msra.mxu0 %v2955
        %3316 = vmatprep.subr.bf16.mxu0 %v2964
        %3317 = vmatpush1.bf16.msra.mxu0 %v2963
        %3318 = vmatprep.subr.bf16.mxu0 %v2972
        %3319 = vmatpush1.bf16.msra.mxu0 %v2971
        %3320 = vmatprep.subr.bf16.mxu0 %v2980
        %3321 = vmatpush1.bf16.msra.mxu0 %v2979
        %3322 = vmatprep.subr.bf16.mxu0 %v2988
        %3323 = vmatpush1.bf16.msra.mxu0 %v2987
        %3324 = vmatprep.subr.bf16.mxu0 %v2996
        %3325 = vmatpush1.bf16.msra.mxu0 %v2995
        %3326 = vmatprep.subr.bf16.mxu0 %v3004
        %3327 = vmatpush1.bf16.msra.mxu0 %v3003
        %3328 = vmatprep.subr.bf16.mxu0 %v3012
        %3329 = vmatpush1.bf16.msra.mxu0 %v3011
        %3330 = vmatprep.mubr.bf16.mxu0 %v2312
        %3331 = vmatmul.mubr.bf16.gmra.mrb[0].mxu0 %v2311
        %v3332 = vpop.f32.mrb[0].mxu0
        %v3333 = vadd.f32 %v2476, %v3332
        %v3334 = vpop.f32.mrb[0].mxu0
        %v3335 = vadd.f32 %v2480, %v3334
        %v3336 = vpop.f32.mrb[0].mxu0
        %v3337 = vadd.f32 %v2476, %v3336
        %v3338 = vpop.f32.mrb[0].mxu0
        %v3339 = vadd.f32 %v2480, %v3338
        %3340 = vmatprep.mubr.bf16.mxu0 %v2314
        %3341 = vmatmul.mubr.bf16.gmra.mrb[0].mxu0 %v2313
        %v3342 = vpop.f32.mrb[0].mxu0
        %v3343 = vadd.f32 %v2476, %v3342
        %v3344 = vpop.f32.mrb[0].mxu0
        %v3345 = vadd.f32 %v2480, %v3344
        %v3346 = vpop.f32.mrb[0].mxu0
        %v3347 = vadd.f32 %v2476, %v3346
        %v3348 = vpop.f32.mrb[0].mxu0
        %v3349 = vadd.f32 %v2480, %v3348
        %3350 = vmatprep.mubr.bf16.mxu0 %v2316
        %3351 = vmatmul.mubr.bf16.gmra.mrb[0].mxu0 %v2315
        %v3352 = vpop.f32.mrb[0].mxu0
        %v3353 = vadd.f32 %v2476, %v3352
        %v3354 = vpop.f32.mrb[0].mxu0
        %v3355 = vadd.f32 %v2480, %v3354
        %v3356 = vpop.f32.mrb[0].mxu0
        %v3357 = vadd.f32 %v2476, %v3356
        %v3358 = vpop.f32.mrb[0].mxu0
        %v3359 = vadd.f32 %v2480, %v3358
        %3360 = vmatprep.mubr.bf16.mxu0 %v2318
        %3361 = vmatmul.mubr.bf16.gmra.mrb[0].mxu0 %v2317
        %v3362 = vpop.f32.mrb[0].mxu0
        %v3363 = vadd.f32 %v2476, %v3362
        %v3364 = vpop.f32.mrb[0].mxu0
        %v3365 = vadd.f32 %v2480, %v3364
        %v3366 = vpop.f32.mrb[0].mxu0
        %v3367 = vadd.f32 %v2476, %v3366
        %v3368 = vpop.f32.mrb[0].mxu0
        %v3369 = vadd.f32 %v2480, %v3368
        %3370 = vmatprep.mubr.bf16.mxu0 %v2320
        %3371 = vmatmul.mubr.bf16.gmra.mrb[0].mxu0 %v2319
        %v3372 = vpop.f32.mrb[0].mxu0
        %v3373 = vadd.f32 %v2476, %v3372
        %v3374 = vpop.f32.mrb[0].mxu0
        %v3375 = vadd.f32 %v2480, %v3374
        %v3376 = vpop.f32.mrb[0].mxu0
        %v3377 = vadd.f32 %v2476, %v3376
        %v3378 = vpop.f32.mrb[0].mxu0
        %v3379 = vadd.f32 %v2480, %v3378
        %3380 = vmatprep.mubr.bf16.mxu0 %v2322
        %3381 = vmatmul.mubr.bf16.gmra.mrb[0].mxu0 %v2321
        %v3382 = vpop.f32.mrb[0].mxu0
        %v3383 = vadd.f32 %v2476, %v3382
        %v3384 = vpop.f32.mrb[0].mxu0
        %v3385 = vadd.f32 %v2480, %v3384
        %v3386 = vpop.f32.mrb[0].mxu0
        %v3387 = vadd.f32 %v2476, %v3386
        %v3388 = vpop.f32.mrb[0].mxu0
        %v3389 = vadd.f32 %v2480, %v3388
        %3390 = vmatprep.mubr.bf16.mxu0 %v2324
        %3391 = vmatmul.mubr.bf16.gmra.mrb[0].mxu0 %v2323
        %v3392 = vpop.f32.mrb[0].mxu0
        %v3393 = vadd.f32 %v2476, %v3392
        %v3394 = vpop.f32.mrb[0].mxu0
        %v3395 = vadd.f32 %v2480, %v3394
        %v3396 = vpop.f32.mrb[0].mxu0
        %v3397 = vadd.f32 %v2476, %v3396
        %v3398 = vpop.f32.mrb[0].mxu0
        %v3399 = vadd.f32 %v2480, %v3398
        %3400 = vmatprep.mubr.bf16.mxu0 %v2326
        %3401 = vmatmul.mubr.bf16.gmra.mrb[0].mxu0 %v2325
        %v3402 = vpop.f32.mrb[0].mxu0
        %v3403 = vadd.f32 %v2476, %v3402
        %v3404 = vpop.f32.mrb[0].mxu0
        %v3405 = vadd.f32 %v2480, %v3404
        %v3406 = vpop.f32.mrb[0].mxu0
        %v3407 = vadd.f32 %v2476, %v3406
        %v3408 = vpop.f32.mrb[0].mxu0
        %v3409 = vadd.f32 %v2480, %v3408
        %3410 = vmatprep.mubr.bf16.mxu0 %v2328
        %3411 = vmatmul.mubr.bf16.gmra.mrb[0].mxu0 %v2327
        %v3412 = vpop.f32.mrb[0].mxu0
        %v3413 = vadd.f32 %v2476, %v3412
        %v3414 = vpop.f32.mrb[0].mxu0
        %v3415 = vadd.f32 %v2480, %v3414
        %v3416 = vpop.f32.mrb[0].mxu0
        %v3417 = vadd.f32 %v2476, %v3416
        %v3418 = vpop.f32.mrb[0].mxu0
        %v3419 = vadd.f32 %v2480, %v3418
        %3420 = vmatprep.mubr.bf16.mxu0 %v2330
        %3421 = vmatmul.mubr.bf16.gmra.mrb[0].mxu0 %v2329
        %v3422 = vpop.f32.mrb[0].mxu0
        %v3423 = vadd.f32 %v2476, %v3422
        %v3424 = vpop.f32.mrb[0].mxu0
        %v3425 = vadd.f32 %v2480, %v3424
        %v3426 = vpop.f32.mrb[0].mxu0
        %v3427 = vadd.f32 %v2476, %v3426
        %v3428 = vpop.f32.mrb[0].mxu0
        %v3429 = vadd.f32 %v2480, %v3428
        %3430 = vmatprep.mubr.bf16.mxu0 %v2332
        %3431 = vmatmul.mubr.bf16.gmra.mrb[0].mxu0 %v2331
        %v3432 = vpop.f32.mrb[0].mxu0
        %v3433 = vadd.f32 %v2476, %v3432
        %v3434 = vpop.f32.mrb[0].mxu0
        %v3435 = vadd.f32 %v2480, %v3434
        %v3436 = vpop.f32.mrb[0].mxu0
        %v3437 = vadd.f32 %v2476, %v3436
        %v3438 = vpop.f32.mrb[0].mxu0
        %v3439 = vadd.f32 %v2480, %v3438
        %3440 = vmatprep.mubr.bf16.mxu0 %v2334
        %3441 = vmatmul.mubr.bf16.gmra.mrb[0].mxu0 %v2333
        %v3442 = vpop.f32.mrb[0].mxu0
        %v3443 = vadd.f32 %v2476, %v3442
        %v3444 = vpop.f32.mrb[0].mxu0
        %v3445 = vadd.f32 %v2480, %v3444
        %v3446 = vpop.f32.mrb[0].mxu0
        %v3447 = vadd.f32 %v2476, %v3446
        %v3448 = vpop.f32.mrb[0].mxu0
        %v3449 = vadd.f32 %v2480, %v3448
        %3450 = vdwg.mxu0
        %3451 = vmatprep.subr.bf16.mxu0 %v2894
        %3452 = vmatpush1.bf16.msra.mxu0 %v2893
        %3453 = vmatprep.subr.bf16.mxu0 %v2902
        %3454 = vmatpush1.bf16.msra.mxu0 %v2901
        %3455 = vmatprep.subr.bf16.mxu0 %v2910
        %3456 = vmatpush1.bf16.msra.mxu0 %v2909
        %3457 = vmatprep.subr.bf16.mxu0 %v2918
        %3458 = vmatpush1.bf16.msra.mxu0 %v2917
        %3459 = vmatprep.subr.bf16.mxu0 %v2926
        %3460 = vmatpush1.bf16.msra.mxu0 %v2925
        %3461 = vmatprep.subr.bf16.mxu0 %v2934
        %3462 = vmatpush1.bf16.msra.mxu0 %v2933
        %3463 = vmatprep.subr.bf16.mxu0 %v2942
        %3464 = vmatpush1.bf16.msra.mxu0 %v2941
        %3465 = vmatprep.subr.bf16.mxu0 %v2950
        %3466 = vmatpush1.bf16.msra.mxu0 %v2949
        %3467 = vmatprep.subr.bf16.mxu0 %v2958
        %3468 = vmatpush1.bf16.msra.mxu0 %v2957
        %3469 = vmatprep.subr.bf16.mxu0 %v2966
        %3470 = vmatpush1.bf16.msra.mxu0 %v2965
        %3471 = vmatprep.subr.bf16.mxu0 %v2974
        %3472 = vmatpush1.bf16.msra.mxu0 %v2973
        %3473 = vmatprep.subr.bf16.mxu0 %v2982
        %3474 = vmatpush1.bf16.msra.mxu0 %v2981
        %3475 = vmatprep.subr.bf16.mxu0 %v2990
        %3476 = vmatpush1.bf16.msra.mxu0 %v2989
        %3477 = vmatprep.subr.bf16.mxu0 %v2998
        %3478 = vmatpush1.bf16.msra.mxu0 %v2997
        %3479 = vmatprep.subr.bf16.mxu0 %v3006
        %3480 = vmatpush1.bf16.msra.mxu0 %v3005
        %3481 = vmatprep.subr.bf16.mxu0 %v3014
        %3482 = vmatpush1.bf16.msra.mxu0 %v3013
        %3483 = vmatprep.mubr.bf16.mxu0 %v2312
        %3484 = vmatmul.mubr.bf16.gmra.mrb[0].mxu0 %v2311
        %v3485 = vpop.f32.mrb[0].mxu0
        %v3486 = vadd.f32 %v2484, %v3485
        %v3487 = vpop.f32.mrb[0].mxu0
        %v3488 = vadd.f32 %v2488, %v3487
        %v3489 = vpop.f32.mrb[0].mxu0
        %v3490 = vadd.f32 %v2484, %v3489
        %v3491 = vpop.f32.mrb[0].mxu0
        %v3492 = vadd.f32 %v2488, %v3491
        %3493 = vmatprep.mubr.bf16.mxu0 %v2314
        %3494 = vmatmul.mubr.bf16.gmra.mrb[0].mxu0 %v2313
        %v3495 = vpop.f32.mrb[0].mxu0
        %v3496 = vadd.f32 %v2484, %v3495
        %v3497 = vpop.f32.mrb[0].mxu0
        %v3498 = vadd.f32 %v2488, %v3497
        %v3499 = vpop.f32.mrb[0].mxu0
        %v3500 = vadd.f32 %v2484, %v3499
        %v3501 = vpop.f32.mrb[0].mxu0
        %v3502 = vadd.f32 %v2488, %v3501
        %3503 = vmatprep.mubr.bf16.mxu0 %v2316
        %3504 = vmatmul.mubr.bf16.gmra.mrb[0].mxu0 %v2315
        %v3505 = vpop.f32.mrb[0].mxu0
        %v3506 = vadd.f32 %v2484, %v3505
        %v3507 = vpop.f32.mrb[0].mxu0
        %v3508 = vadd.f32 %v2488, %v3507
        %v3509 = vpop.f32.mrb[0].mxu0
        %v3510 = vadd.f32 %v2484, %v3509
        %v3511 = vpop.f32.mrb[0].mxu0
        %v3512 = vadd.f32 %v2488, %v3511
        %3513 = vmatprep.mubr.bf16.mxu0 %v2318
        %3514 = vmatmul.mubr.bf16.gmra.mrb[0].mxu0 %v2317
        %v3515 = vpop.f32.mrb[0].mxu0
        %v3516 = vadd.f32 %v2484, %v3515
        %v3517 = vpop.f32.mrb[0].mxu0
        %v3518 = vadd.f32 %v2488, %v3517
        %v3519 = vpop.f32.mrb[0].mxu0
        %v3520 = vadd.f32 %v2484, %v3519
        %v3521 = vpop.f32.mrb[0].mxu0
        %v3522 = vadd.f32 %v2488, %v3521
        %3523 = vmatprep.mubr.bf16.mxu0 %v2320
        %3524 = vmatmul.mubr.bf16.gmra.mrb[0].mxu0 %v2319
        %v3525 = vpop.f32.mrb[0].mxu0
        %v3526 = vadd.f32 %v2484, %v3525
        %v3527 = vpop.f32.mrb[0].mxu0
        %v3528 = vadd.f32 %v2488, %v3527
        %v3529 = vpop.f32.mrb[0].mxu0
        %v3530 = vadd.f32 %v2484, %v3529
        %v3531 = vpop.f32.mrb[0].mxu0
        %v3532 = vadd.f32 %v2488, %v3531
        %3533 = vmatprep.mubr.bf16.mxu0 %v2322
        %3534 = vmatmul.mubr.bf16.gmra.mrb[0].mxu0 %v2321
        %v3535 = vpop.f32.mrb[0].mxu0
        %v3536 = vadd.f32 %v2484, %v3535
        %v3537 = vpop.f32.mrb[0].mxu0
        %v3538 = vadd.f32 %v2488, %v3537
        %v3539 = vpop.f32.mrb[0].mxu0
        %v3540 = vadd.f32 %v2484, %v3539
        %v3541 = vpop.f32.mrb[0].mxu0
        %v3542 = vadd.f32 %v2488, %v3541
        %3543 = vmatprep.mubr.bf16.mxu0 %v2324
        %3544 = vmatmul.mubr.bf16.gmra.mrb[0].mxu0 %v2323
        %v3545 = vpop.f32.mrb[0].mxu0
        %v3546 = vadd.f32 %v2484, %v3545
        %v3547 = vpop.f32.mrb[0].mxu0
        %v3548 = vadd.f32 %v2488, %v3547
        %v3549 = vpop.f32.mrb[0].mxu0
        %v3550 = vadd.f32 %v2484, %v3549
        %v3551 = vpop.f32.mrb[0].mxu0
        %v3552 = vadd.f32 %v2488, %v3551
        %3553 = vmatprep.mubr.bf16.mxu0 %v2326
        %3554 = vmatmul.mubr.bf16.gmra.mrb[0].mxu0 %v2325
        %v3555 = vpop.f32.mrb[0].mxu0
        %v3556 = vadd.f32 %v2484, %v3555
        %v3557 = vpop.f32.mrb[0].mxu0
        %v3558 = vadd.f32 %v2488, %v3557
        %v3559 = vpop.f32.mrb[0].mxu0
        %v3560 = vadd.f32 %v2484, %v3559
        %v3561 = vpop.f32.mrb[0].mxu0
        %v3562 = vadd.f32 %v2488, %v3561
        %3563 = vmatprep.mubr.bf16.mxu0 %v2328
        %3564 = vmatmul.mubr.bf16.gmra.mrb[0].mxu0 %v2327
        %v3565 = vpop.f32.mrb[0].mxu0
        %v3566 = vadd.f32 %v2484, %v3565
        %v3567 = vpop.f32.mrb[0].mxu0
        %v3568 = vadd.f32 %v2488, %v3567
        %v3569 = vpop.f32.mrb[0].mxu0
        %v3570 = vadd.f32 %v2484, %v3569
        %v3571 = vpop.f32.mrb[0].mxu0
        %v3572 = vadd.f32 %v2488, %v3571
        %3573 = vmatprep.mubr.bf16.mxu0 %v2330
        %3574 = vmatmul.mubr.bf16.gmra.mrb[0].mxu0 %v2329
        %v3575 = vpop.f32.mrb[0].mxu0
        %v3576 = vadd.f32 %v2484, %v3575
        %v3577 = vpop.f32.mrb[0].mxu0
        %v3578 = vadd.f32 %v2488, %v3577
        %v3579 = vpop.f32.mrb[0].mxu0
        %v3580 = vadd.f32 %v2484, %v3579
        %v3581 = vpop.f32.mrb[0].mxu0
        %v3582 = vadd.f32 %v2488, %v3581
        %3583 = vmatprep.mubr.bf16.mxu0 %v2332
        %3584 = vmatmul.mubr.bf16.gmra.mrb[0].mxu0 %v2331
        %v3585 = vpop.f32.mrb[0].mxu0
        %v3586 = vadd.f32 %v2484, %v3585
        %v3587 = vpop.f32.mrb[0].mxu0
        %v3588 = vadd.f32 %v2488, %v3587
        %v3589 = vpop.f32.mrb[0].mxu0
        %v3590 = vadd.f32 %v2484, %v3589
        %v3591 = vpop.f32.mrb[0].mxu0
        %v3592 = vadd.f32 %v2488, %v3591
        %3593 = vmatprep.mubr.bf16.mxu0 %v2334
        %3594 = vmatmul.mubr.bf16.gmra.mrb[0].mxu0 %v2333
        %v3595 = vpop.f32.mrb[0].mxu0
        %v3596 = vadd.f32 %v2484, %v3595
        %v3597 = vpop.f32.mrb[0].mxu0
        %v3598 = vadd.f32 %v2488, %v3597
        %v3599 = vpop.f32.mrb[0].mxu0
        %v3600 = vadd.f32 %v2484, %v3599
        %v3601 = vpop.f32.mrb[0].mxu0
        %v3602 = vadd.f32 %v2488, %v3601
        %3603 = vdwg.mxu0
        %3604 = vmatprep.subr.bf16.mxu0 %v2896
        %3605 = vmatpush1.bf16.msra.mxu0 %v2895
        %3606 = vmatprep.subr.bf16.mxu0 %v2904
        %3607 = vmatpush1.bf16.msra.mxu0 %v2903
        %3608 = vmatprep.subr.bf16.mxu0 %v2912
        %3609 = vmatpush1.bf16.msra.mxu0 %v2911
        %3610 = vmatprep.subr.bf16.mxu0 %v2920
        %3611 = vmatpush1.bf16.msra.mxu0 %v2919
        %3612 = vmatprep.subr.bf16.mxu0 %v2928
        %3613 = vmatpush1.bf16.msra.mxu0 %v2927
        %3614 = vmatprep.subr.bf16.mxu0 %v2936
        %3615 = vmatpush1.bf16.msra.mxu0 %v2935
        %3616 = vmatprep.subr.bf16.mxu0 %v2944
        %3617 = vmatpush1.bf16.msra.mxu0 %v2943
        %3618 = vmatprep.subr.bf16.mxu0 %v2952
        %3619 = vmatpush1.bf16.msra.mxu0 %v2951
        %3620 = vmatprep.subr.bf16.mxu0 %v2960
        %3621 = vmatpush1.bf16.msra.mxu0 %v2959
        %3622 = vmatprep.subr.bf16.mxu0 %v2968
        %3623 = vmatpush1.bf16.msra.mxu0 %v2967
        %3624 = vmatprep.subr.bf16.mxu0 %v2976
        %3625 = vmatpush1.bf16.msra.mxu0 %v2975
        %3626 = vmatprep.subr.bf16.mxu0 %v2984
        %3627 = vmatpush1.bf16.msra.mxu0 %v2983
        %3628 = vmatprep.subr.bf16.mxu0 %v2992
        %3629 = vmatpush1.bf16.msra.mxu0 %v2991
        %3630 = vmatprep.subr.bf16.mxu0 %v3000
        %3631 = vmatpush1.bf16.msra.mxu0 %v2999
        %3632 = vmatprep.subr.bf16.mxu0 %v3008
        %3633 = vmatpush1.bf16.msra.mxu0 %v3007
        %3634 = vmatprep.subr.bf16.mxu0 %v3016
        %3635 = vmatpush1.bf16.msra.mxu0 %v3015
        %3636 = vmatprep.mubr.bf16.mxu0 %v2312
        %3637 = vmatmul.mubr.bf16.gmra.mrb[0].mxu0 %v2311
        %v3638 = vpop.f32.mrb[0].mxu0
        %v3639 = vadd.f32 %v2492, %v3638
        %v3640 = vpop.f32.mrb[0].mxu0
        %v3641 = vadd.f32 %v2496, %v3640
        %v3642 = vpop.f32.mrb[0].mxu0
        %v3643 = vadd.f32 %v2492, %v3642
        %v3644 = vpop.f32.mrb[0].mxu0
        %v3645 = vadd.f32 %v2496, %v3644
        %3646 = vmatprep.mubr.bf16.mxu0 %v2314
        %3647 = vmatmul.mubr.bf16.gmra.mrb[0].mxu0 %v2313
        %v3648 = vpop.f32.mrb[0].mxu0
        %v3649 = vadd.f32 %v2492, %v3648
        %v3650 = vpop.f32.mrb[0].mxu0
        %v3651 = vadd.f32 %v2496, %v3650
        %v3652 = vpop.f32.mrb[0].mxu0
        %v3653 = vadd.f32 %v2492, %v3652
        %v3654 = vpop.f32.mrb[0].mxu0
        %v3655 = vadd.f32 %v2496, %v3654
        %3656 = vmatprep.mubr.bf16.mxu0 %v2316
        %3657 = vmatmul.mubr.bf16.gmra.mrb[0].mxu0 %v2315
        %v3658 = vpop.f32.mrb[0].mxu0
        %v3659 = vadd.f32 %v2492, %v3658
        %v3660 = vpop.f32.mrb[0].mxu0
        %v3661 = vadd.f32 %v2496, %v3660
        %v3662 = vpop.f32.mrb[0].mxu0
        %v3663 = vadd.f32 %v2492, %v3662
        %v3664 = vpop.f32.mrb[0].mxu0
        %v3665 = vadd.f32 %v2496, %v3664
        %3666 = vmatprep.mubr.bf16.mxu0 %v2318
        %3667 = vmatmul.mubr.bf16.gmra.mrb[0].mxu0 %v2317
        %v3668 = vpop.f32.mrb[0].mxu0
        %v3669 = vadd.f32 %v2492, %v3668
        %v3670 = vpop.f32.mrb[0].mxu0
        %v3671 = vadd.f32 %v2496, %v3670
        %v3672 = vpop.f32.mrb[0].mxu0
        %v3673 = vadd.f32 %v2492, %v3672
        %v3674 = vpop.f32.mrb[0].mxu0
        %v3675 = vadd.f32 %v2496, %v3674
        %3676 = vmatprep.mubr.bf16.mxu0 %v2320
        %3677 = vmatmul.mubr.bf16.gmra.mrb[0].mxu0 %v2319
        %v3678 = vpop.f32.mrb[0].mxu0
        %v3679 = vadd.f32 %v2492, %v3678
        %v3680 = vpop.f32.mrb[0].mxu0
        %v3681 = vadd.f32 %v2496, %v3680
        %v3682 = vpop.f32.mrb[0].mxu0
        %v3683 = vadd.f32 %v2492, %v3682
        %v3684 = vpop.f32.mrb[0].mxu0
        %v3685 = vadd.f32 %v2496, %v3684
        %3686 = vmatprep.mubr.bf16.mxu0 %v2322
        %3687 = vmatmul.mubr.bf16.gmra.mrb[0].mxu0 %v2321
        %v3688 = vpop.f32.mrb[0].mxu0
        %v3689 = vadd.f32 %v2492, %v3688
        %v3690 = vpop.f32.mrb[0].mxu0
        %v3691 = vadd.f32 %v2496, %v3690
        %v3692 = vpop.f32.mrb[0].mxu0
        %v3693 = vadd.f32 %v2492, %v3692
        %v3694 = vpop.f32.mrb[0].mxu0
        %v3695 = vadd.f32 %v2496, %v3694
        %3696 = vmatprep.mubr.bf16.mxu0 %v2324
        %3697 = vmatmul.mubr.bf16.gmra.mrb[0].mxu0 %v2323
        %v3698 = vpop.f32.mrb[0].mxu0
        %v3699 = vadd.f32 %v2492, %v3698
        %v3700 = vpop.f32.mrb[0].mxu0
        %v3701 = vadd.f32 %v2496, %v3700
        %v3702 = vpop.f32.mrb[0].mxu0
        %v3703 = vadd.f32 %v2492, %v3702
        %v3704 = vpop.f32.mrb[0].mxu0
        %v3705 = vadd.f32 %v2496, %v3704
        %3706 = vmatprep.mubr.bf16.mxu0 %v2326
        %3707 = vmatmul.mubr.bf16.gmra.mrb[0].mxu0 %v2325
        %v3708 = vpop.f32.mrb[0].mxu0
        %v3709 = vadd.f32 %v2492, %v3708
        %v3710 = vpop.f32.mrb[0].mxu0
        %v3711 = vadd.f32 %v2496, %v3710
        %v3712 = vpop.f32.mrb[0].mxu0
        %v3713 = vadd.f32 %v2492, %v3712
        %v3714 = vpop.f32.mrb[0].mxu0
        %v3715 = vadd.f32 %v2496, %v3714
        %3716 = vmatprep.mubr.bf16.mxu0 %v2328
        %3717 = vmatmul.mubr.bf16.gmra.mrb[0].mxu0 %v2327
        %v3718 = vpop.f32.mrb[0].mxu0
        %v3719 = vadd.f32 %v2492, %v3718
        %v3720 = vpop.f32.mrb[0].mxu0
        %v3721 = vadd.f32 %v2496, %v3720
        %v3722 = vpop.f32.mrb[0].mxu0
        %v3723 = vadd.f32 %v2492, %v3722
        %v3724 = vpop.f32.mrb[0].mxu0
        %v3725 = vadd.f32 %v2496, %v3724
        %3726 = vmatprep.mubr.bf16.mxu0 %v2330
        %3727 = vmatmul.mubr.bf16.gmra.mrb[0].mxu0 %v2329
        %v3728 = vpop.f32.mrb[0].mxu0
        %v3729 = vadd.f32 %v2492, %v3728
        %v3730 = vpop.f32.mrb[0].mxu0
        %v3731 = vadd.f32 %v2496, %v3730
        %v3732 = vpop.f32.mrb[0].mxu0
        %v3733 = vadd.f32 %v2492, %v3732
        %v3734 = vpop.f32.mrb[0].mxu0
        %v3735 = vadd.f32 %v2496, %v3734
        %3736 = vmatprep.mubr.bf16.mxu0 %v2332
        %3737 = vmatmul.mubr.bf16.gmra.mrb[0].mxu0 %v2331
        %v3738 = vpop.f32.mrb[0].mxu0
        %v3739 = vadd.f32 %v2492, %v3738
        %v3740 = vpop.f32.mrb[0].mxu0
        %v3741 = vadd.f32 %v2496, %v3740
        %v3742 = vpop.f32.mrb[0].mxu0
        %v3743 = vadd.f32 %v2492, %v3742
        %v3744 = vpop.f32.mrb[0].mxu0
        %v3745 = vadd.f32 %v2496, %v3744
        %3746 = vmatprep.mubr.bf16.mxu0 %v2334
        %3747 = vmatmul.mubr.bf16.gmra.mrb[0].mxu0 %v2333
        %v3748 = vpop.f32.mrb[0].mxu0
        %v3749 = vadd.f32 %v2492, %v3748
        %v3750 = vpop.f32.mrb[0].mxu0
        %v3751 = vadd.f32 %v2496, %v3750
        %v3752 = vpop.f32.mrb[0].mxu0
        %v3753 = vadd.f32 %v2492, %v3752
        %v3754 = vpop.f32.mrb[0].mxu0
        %v3755 = vadd.f32 %v2496, %v3754
        %3756 = vdwg.mxu0
        %v3757 = vmul.f32 %v3180, 0.5
        %v3758 = vmul.f32 %v3182, 0.5
        %v3759 = vmul.f32 %v3333, 0.5
        %v3760 = vmul.f32 %v3335, 0.5
        %v3761 = vmul.f32 %v3486, 0.5
        %v3762 = vmul.f32 %v3488, 0.5
        %v3763 = vmul.f32 %v3639, 0.5
        %v3764 = vmul.f32 %v3641, 0.5
        %v3765 = vmul.f32 %v3184, 0.5
        %v3766 = vmul.f32 %v3186, 0.5
        %v3767 = vmul.f32 %v3337, 0.5
        %v3768 = vmul.f32 %v3339, 0.5
        %v3769 = vmul.f32 %v3490, 0.5
        %v3770 = vmul.f32 %v3492, 0.5
        %v3771 = vmul.f32 %v3643, 0.5
        %v3772 = vmul.f32 %v3645, 0.5
        %v3773 = vmul.f32 %v3190, 0.5
        %v3774 = vmul.f32 %v3192, 0.5
        %v3775 = vmul.f32 %v3343, 0.5
        %v3776 = vmul.f32 %v3345, 0.5
        %v3777 = vmul.f32 %v3496, 0.5
        %v3778 = vmul.f32 %v3498, 0.5
        %v3779 = vmul.f32 %v3649, 0.5
        %v3780 = vmul.f32 %v3651, 0.5
        %v3781 = vmul.f32 %v3194, 0.5
        %v3782 = vmul.f32 %v3196, 0.5
        %v3783 = vmul.f32 %v3347, 0.5
        %v3784 = vmul.f32 %v3349, 0.5
        %v3785 = vmul.f32 %v3500, 0.5
        %v3786 = vmul.f32 %v3502, 0.5
        %v3787 = vmul.f32 %v3653, 0.5
        %v3788 = vmul.f32 %v3655, 0.5
        %v3789 = vmul.f32 %v3200, 0.5
        %v3790 = vmul.f32 %v3202, 0.5
        %v3791 = vmul.f32 %v3353, 0.5
        %v3792 = vmul.f32 %v3355, 0.5
        %v3793 = vmul.f32 %v3506, 0.5
        %v3794 = vmul.f32 %v3508, 0.5
        %v3795 = vmul.f32 %v3659, 0.5
        %v3796 = vmul.f32 %v3661, 0.5
        %v3797 = vmul.f32 %v3204, 0.5
        %v3798 = vmul.f32 %v3206, 0.5
        %v3799 = vmul.f32 %v3357, 0.5
        %v3800 = vmul.f32 %v3359, 0.5
        %v3801 = vmul.f32 %v3510, 0.5
        %v3802 = vmul.f32 %v3512, 0.5
        %v3803 = vmul.f32 %v3663, 0.5
        %v3804 = vmul.f32 %v3665, 0.5
        %v3805 = vmul.f32 %v3210, 0.5
        %v3806 = vmul.f32 %v3212, 0.5
        %v3807 = vmul.f32 %v3363, 0.5
        %v3808 = vmul.f32 %v3365, 0.5
        %v3809 = vmul.f32 %v3516, 0.5
        %v3810 = vmul.f32 %v3518, 0.5
        %v3811 = vmul.f32 %v3669, 0.5
        %v3812 = vmul.f32 %v3671, 0.5
        %v3813 = vmul.f32 %v3214, 0.5
        %v3814 = vmul.f32 %v3216, 0.5
        %v3815 = vmul.f32 %v3367, 0.5
        %v3816 = vmul.f32 %v3369, 0.5
        %v3817 = vmul.f32 %v3520, 0.5
        %v3818 = vmul.f32 %v3522, 0.5
        %v3819 = vmul.f32 %v3673, 0.5
        %v3820 = vmul.f32 %v3675, 0.5
        %v3821 = vmul.f32 %v3220, 0.5
        %v3822 = vmul.f32 %v3222, 0.5
        %v3823 = vmul.f32 %v3373, 0.5
        %v3824 = vmul.f32 %v3375, 0.5
        %v3825 = vmul.f32 %v3526, 0.5
        %v3826 = vmul.f32 %v3528, 0.5
        %v3827 = vmul.f32 %v3679, 0.5
        %v3828 = vmul.f32 %v3681, 0.5
        %v3829 = vmul.f32 %v3224, 0.5
        %v3830 = vmul.f32 %v3226, 0.5
        %v3831 = vmul.f32 %v3377, 0.5
        %v3832 = vmul.f32 %v3379, 0.5
        %v3833 = vmul.f32 %v3530, 0.5
        %v3834 = vmul.f32 %v3532, 0.5
        %v3835 = vmul.f32 %v3683, 0.5
        %v3836 = vmul.f32 %v3685, 0.5
        %v3837 = vmul.f32 %v3230, 0.5
        %v3838 = vmul.f32 %v3232, 0.5
        %v3839 = vmul.f32 %v3383, 0.5
        %v3840 = vmul.f32 %v3385, 0.5
        %v3841 = vmul.f32 %v3536, 0.5
        %v3842 = vmul.f32 %v3538, 0.5
        %v3843 = vmul.f32 %v3689, 0.5
        %v3844 = vmul.f32 %v3691, 0.5
        %v3845 = vmul.f32 %v3234, 0.5
        %v3846 = vmul.f32 %v3236, 0.5
        %v3847 = vmul.f32 %v3387, 0.5
        %v3848 = vmul.f32 %v3389, 0.5
        %v3849 = vmul.f32 %v3540, 0.5
        %v3850 = vmul.f32 %v3542, 0.5
        %v3851 = vmul.f32 %v3693, 0.5
        %v3852 = vmul.f32 %v3695, 0.5
        %v3853 = vmul.f32 %v3240, 0.5
        %v3854 = vmul.f32 %v3242, 0.5
        %v3855 = vmul.f32 %v3393, 0.5
        %v3856 = vmul.f32 %v3395, 0.5
        %v3857 = vmul.f32 %v3546, 0.5
        %v3858 = vmul.f32 %v3548, 0.5
        %v3859 = vmul.f32 %v3699, 0.5
        %v3860 = vmul.f32 %v3701, 0.5
        %v3861 = vmul.f32 %v3244, 0.5
        %v3862 = vmul.f32 %v3246, 0.5
        %v3863 = vmul.f32 %v3397, 0.5
        %v3864 = vmul.f32 %v3399, 0.5
        %v3865 = vmul.f32 %v3550, 0.5
        %v3866 = vmul.f32 %v3552, 0.5
        %v3867 = vmul.f32 %v3703, 0.5
        %v3868 = vmul.f32 %v3705, 0.5
        %v3869 = vmul.f32 %v3250, 0.5
        %v3870 = vmul.f32 %v3252, 0.5
        %v3871 = vmul.f32 %v3403, 0.5
        %v3872 = vmul.f32 %v3405, 0.5
        %v3873 = vmul.f32 %v3556, 0.5
        %v3874 = vmul.f32 %v3558, 0.5
        %v3875 = vmul.f32 %v3709, 0.5
        %v3876 = vmul.f32 %v3711, 0.5
        %v3877 = vmul.f32 %v3254, 0.5
        %v3878 = vmul.f32 %v3256, 0.5
        %v3879 = vmul.f32 %v3407, 0.5
        %v3880 = vmul.f32 %v3409, 0.5
        %v3881 = vmul.f32 %v3560, 0.5
        %v3882 = vmul.f32 %v3562, 0.5
        %v3883 = vmul.f32 %v3713, 0.5
        %v3884 = vmul.f32 %v3715, 0.5
        %v3885 = vmul.f32 %v3260, 0.5
        %v3886 = vmul.f32 %v3262, 0.5
        %v3887 = vmul.f32 %v3413, 0.5
        %v3888 = vmul.f32 %v3415, 0.5
        %v3889 = vmul.f32 %v3566, 0.5
        %v3890 = vmul.f32 %v3568, 0.5
        %v3891 = vmul.f32 %v3719, 0.5
        %v3892 = vmul.f32 %v3721, 0.5
        %v3893 = vmul.f32 %v3264, 0.5
        %v3894 = vmul.f32 %v3266, 0.5
        %v3895 = vmul.f32 %v3417, 0.5
        %v3896 = vmul.f32 %v3419, 0.5
        %v3897 = vmul.f32 %v3570, 0.5
        %v3898 = vmul.f32 %v3572, 0.5
        %v3899 = vmul.f32 %v3723, 0.5
        %v3900 = vmul.f32 %v3725, 0.5
        %v3901 = vmul.f32 %v3270, 0.5
        %v3902 = vmul.f32 %v3272, 0.5
        %v3903 = vmul.f32 %v3423, 0.5
        %v3904 = vmul.f32 %v3425, 0.5
        %v3905 = vmul.f32 %v3576, 0.5
        %v3906 = vmul.f32 %v3578, 0.5
        %v3907 = vmul.f32 %v3729, 0.5
        %v3908 = vmul.f32 %v3731, 0.5
        %v3909 = vmul.f32 %v3274, 0.5
        %v3910 = vmul.f32 %v3276, 0.5
        %v3911 = vmul.f32 %v3427, 0.5
        %v3912 = vmul.f32 %v3429, 0.5
        %v3913 = vmul.f32 %v3580, 0.5
        %v3914 = vmul.f32 %v3582, 0.5
        %v3915 = vmul.f32 %v3733, 0.5
        %v3916 = vmul.f32 %v3735, 0.5
        %v3917 = vmul.f32 %v3280, 0.5
        %v3918 = vmul.f32 %v3282, 0.5
        %v3919 = vmul.f32 %v3433, 0.5
        %v3920 = vmul.f32 %v3435, 0.5
        %v3921 = vmul.f32 %v3586, 0.5
        %v3922 = vmul.f32 %v3588, 0.5
        %v3923 = vmul.f32 %v3739, 0.5
        %v3924 = vmul.f32 %v3741, 0.5
        %v3925 = vmul.f32 %v3284, 0.5
        %v3926 = vmul.f32 %v3286, 0.5
        %v3927 = vmul.f32 %v3437, 0.5
        %v3928 = vmul.f32 %v3439, 0.5
        %v3929 = vmul.f32 %v3590, 0.5
        %v3930 = vmul.f32 %v3592, 0.5
        %v3931 = vmul.f32 %v3743, 0.5
        %v3932 = vmul.f32 %v3745, 0.5
        %v3933 = vmul.f32 %v3290, 0.5
        %v3934 = vmul.f32 %v3292, 0.5
        %v3935 = vmul.f32 %v3443, 0.5
        %v3936 = vmul.f32 %v3445, 0.5
        %v3937 = vmul.f32 %v3596, 0.5
        %v3938 = vmul.f32 %v3598, 0.5
        %v3939 = vmul.f32 %v3749, 0.5
        %v3940 = vmul.f32 %v3751, 0.5
        %v3941 = vmul.f32 %v3294, 0.5
        %v3942 = vmul.f32 %v3296, 0.5
        %v3943 = vmul.f32 %v3447, 0.5
        %v3944 = vmul.f32 %v3449, 0.5
        %v3945 = vmul.f32 %v3600, 0.5
        %v3946 = vmul.f32 %v3602, 0.5
        %v3947 = vmul.f32 %v3753, 0.5
        %v3948 = vmul.f32 %v3755, 0.5
        %v3949 = vmul.f32 %v3180, 0.70710677
        %v3950 = vmul.f32 %v3182, 0.70710677
        %v3951 = vmul.f32 %v3333, 0.70710677
        %v3952 = vmul.f32 %v3335, 0.70710677
        %v3953 = vmul.f32 %v3486, 0.70710677
        %v3954 = vmul.f32 %v3488, 0.70710677
        %v3955 = vmul.f32 %v3639, 0.70710677
        %v3956 = vmul.f32 %v3641, 0.70710677
        %v3957 = vmul.f32 %v3184, 0.70710677
        %v3958 = vmul.f32 %v3186, 0.70710677
        %v3959 = vmul.f32 %v3337, 0.70710677
        %v3960 = vmul.f32 %v3339, 0.70710677
        %v3961 = vmul.f32 %v3490, 0.70710677
        %v3962 = vmul.f32 %v3492, 0.70710677
        %v3963 = vmul.f32 %v3643, 0.70710677
        %v3964 = vmul.f32 %v3645, 0.70710677
        %v3965 = vmul.f32 %v3190, 0.70710677
        %v3966 = vmul.f32 %v3192, 0.70710677
        %v3967 = vmul.f32 %v3343, 0.70710677
        %v3968 = vmul.f32 %v3345, 0.70710677
        %v3969 = vmul.f32 %v3496, 0.70710677
        %v3970 = vmul.f32 %v3498, 0.70710677
        %v3971 = vmul.f32 %v3649, 0.70710677
        %v3972 = vmul.f32 %v3651, 0.70710677
        %v3973 = vmul.f32 %v3194, 0.70710677
        %v3974 = vmul.f32 %v3196, 0.70710677
        %v3975 = vmul.f32 %v3347, 0.70710677
        %v3976 = vmul.f32 %v3349, 0.70710677
        %v3977 = vmul.f32 %v3500, 0.70710677
        %v3978 = vmul.f32 %v3502, 0.70710677
        %v3979 = vmul.f32 %v3653, 0.70710677
        %v3980 = vmul.f32 %v3655, 0.70710677
        %v3981 = vmul.f32 %v3200, 0.70710677
        %v3982 = vmul.f32 %v3202, 0.70710677
        %v3983 = vmul.f32 %v3353, 0.70710677
        %v3984 = vmul.f32 %v3355, 0.70710677
        %v3985 = vmul.f32 %v3506, 0.70710677
        %v3986 = vmul.f32 %v3508, 0.70710677
        %v3987 = vmul.f32 %v3659, 0.70710677
        %v3988 = vmul.f32 %v3661, 0.70710677
        %v3989 = vmul.f32 %v3204, 0.70710677
        %v3990 = vmul.f32 %v3206, 0.70710677
        %v3991 = vmul.f32 %v3357, 0.70710677
        %v3992 = vmul.f32 %v3359, 0.70710677
        %v3993 = vmul.f32 %v3510, 0.70710677
        %v3994 = vmul.f32 %v3512, 0.70710677
        %v3995 = vmul.f32 %v3663, 0.70710677
        %v3996 = vmul.f32 %v3665, 0.70710677
        %v3997 = vmul.f32 %v3210, 0.70710677
        %v3998 = vmul.f32 %v3212, 0.70710677
        %v3999 = vmul.f32 %v3363, 0.70710677
        %v4000 = vmul.f32 %v3365, 0.70710677
        %v4001 = vmul.f32 %v3516, 0.70710677
        %v4002 = vmul.f32 %v3518, 0.70710677
        %v4003 = vmul.f32 %v3669, 0.70710677
        %v4004 = vmul.f32 %v3671, 0.70710677
        %v4005 = vmul.f32 %v3214, 0.70710677
        %v4006 = vmul.f32 %v3216, 0.70710677
        %v4007 = vmul.f32 %v3367, 0.70710677
        %v4008 = vmul.f32 %v3369, 0.70710677
        %v4009 = vmul.f32 %v3520, 0.70710677
        %v4010 = vmul.f32 %v3522, 0.70710677
        %v4011 = vmul.f32 %v3673, 0.70710677
        %v4012 = vmul.f32 %v3675, 0.70710677
        %v4013 = vmul.f32 %v3220, 0.70710677
        %v4014 = vmul.f32 %v3222, 0.70710677
        %v4015 = vmul.f32 %v3373, 0.70710677
        %v4016 = vmul.f32 %v3375, 0.70710677
        %v4017 = vmul.f32 %v3526, 0.70710677
        %v4018 = vmul.f32 %v3528, 0.70710677
        %v4019 = vmul.f32 %v3679, 0.70710677
        %v4020 = vmul.f32 %v3681, 0.70710677
        %v4021 = vmul.f32 %v3224, 0.70710677
        %v4022 = vmul.f32 %v3226, 0.70710677
        %v4023 = vmul.f32 %v3377, 0.70710677
        %v4024 = vmul.f32 %v3379, 0.70710677
        %v4025 = vmul.f32 %v3530, 0.70710677
        %v4026 = vmul.f32 %v3532, 0.70710677
        %v4027 = vmul.f32 %v3683, 0.70710677
        %v4028 = vmul.f32 %v3685, 0.70710677
        %v4029 = vmul.f32 %v3230, 0.70710677
        %v4030 = vmul.f32 %v3232, 0.70710677
        %v4031 = vmul.f32 %v3383, 0.70710677
        %v4032 = vmul.f32 %v3385, 0.70710677
        %v4033 = vmul.f32 %v3536, 0.70710677
        %v4034 = vmul.f32 %v3538, 0.70710677
        %v4035 = vmul.f32 %v3689, 0.70710677
        %v4036 = vmul.f32 %v3691, 0.70710677
        %v4037 = vmul.f32 %v3234, 0.70710677
        %v4038 = vmul.f32 %v3236, 0.70710677
        %v4039 = vmul.f32 %v3387, 0.70710677
        %v4040 = vmul.f32 %v3389, 0.70710677
        %v4041 = vmul.f32 %v3540, 0.70710677
        %v4042 = vmul.f32 %v3542, 0.70710677
        %v4043 = vmul.f32 %v3693, 0.70710677
        %v4044 = vmul.f32 %v3695, 0.70710677
        %v4045 = vmul.f32 %v3240, 0.70710677
        %v4046 = vmul.f32 %v3242, 0.70710677
        %v4047 = vmul.f32 %v3393, 0.70710677
        %v4048 = vmul.f32 %v3395, 0.70710677
        %v4049 = vmul.f32 %v3546, 0.70710677
        %v4050 = vmul.f32 %v3548, 0.70710677
        %v4051 = vmul.f32 %v3699, 0.70710677
        %v4052 = vmul.f32 %v3701, 0.70710677
        %v4053 = vmul.f32 %v3244, 0.70710677
        %v4054 = vmul.f32 %v3246, 0.70710677
        %v4055 = vmul.f32 %v3397, 0.70710677
        %v4056 = vmul.f32 %v3399, 0.70710677
        %v4057 = vmul.f32 %v3550, 0.70710677
        %v4058 = vmul.f32 %v3552, 0.70710677
        %v4059 = vmul.f32 %v3703, 0.70710677
        %v4060 = vmul.f32 %v3705, 0.70710677
        %v4061 = vmul.f32 %v3250, 0.70710677
        %v4062 = vmul.f32 %v3252, 0.70710677
        %v4063 = vmul.f32 %v3403, 0.70710677
        %v4064 = vmul.f32 %v3405, 0.70710677
        %v4065 = vmul.f32 %v3556, 0.70710677
        %v4066 = vmul.f32 %v3558, 0.70710677
        %v4067 = vmul.f32 %v3709, 0.70710677
        %v4068 = vmul.f32 %v3711, 0.70710677
        %v4069 = vmul.f32 %v3254, 0.70710677
        %v4070 = vmul.f32 %v3256, 0.70710677
        %v4071 = vmul.f32 %v3407, 0.70710677
        %v4072 = vmul.f32 %v3409, 0.70710677
        %v4073 = vmul.f32 %v3560, 0.70710677
        %v4074 = vmul.f32 %v3562, 0.70710677
        %v4075 = vmul.f32 %v3713, 0.70710677
        %v4076 = vmul.f32 %v3715, 0.70710677
        %v4077 = vmul.f32 %v3260, 0.70710677
        %v4078 = vmul.f32 %v3262, 0.70710677
        %v4079 = vmul.f32 %v3413, 0.70710677
        %v4080 = vmul.f32 %v3415, 0.70710677
        %v4081 = vmul.f32 %v3566, 0.70710677
        %v4082 = vmul.f32 %v3568, 0.70710677
        %v4083 = vmul.f32 %v3719, 0.70710677
        %v4084 = vmul.f32 %v3721, 0.70710677
        %v4085 = vmul.f32 %v3264, 0.70710677
        %v4086 = vmul.f32 %v3266, 0.70710677
        %v4087 = vmul.f32 %v3417, 0.70710677
        %v4088 = vmul.f32 %v3419, 0.70710677
        %v4089 = vmul.f32 %v3570, 0.70710677
        %v4090 = vmul.f32 %v3572, 0.70710677
        %v4091 = vmul.f32 %v3723, 0.70710677
        %v4092 = vmul.f32 %v3725, 0.70710677
        %v4093 = vmul.f32 %v3270, 0.70710677
        %v4094 = vmul.f32 %v3272, 0.70710677
        %v4095 = vmul.f32 %v3423, 0.70710677
        %v4096 = vmul.f32 %v3425, 0.70710677
        %v4097 = vmul.f32 %v3576, 0.70710677
        %v4098 = vmul.f32 %v3578, 0.70710677
        %v4099 = vmul.f32 %v3729, 0.70710677
        %v4100 = vmul.f32 %v3731, 0.70710677
        %v4101 = vmul.f32 %v3274, 0.70710677
        %v4102 = vmul.f32 %v3276, 0.70710677
        %v4103 = vmul.f32 %v3427, 0.70710677
        %v4104 = vmul.f32 %v3429, 0.70710677
        %v4105 = vmul.f32 %v3580, 0.70710677
        %v4106 = vmul.f32 %v3582, 0.70710677
        %v4107 = vmul.f32 %v3733, 0.70710677
        %v4108 = vmul.f32 %v3735, 0.70710677
        %v4109 = vmul.f32 %v3280, 0.70710677
        %v4110 = vmul.f32 %v3282, 0.70710677
        %v4111 = vmul.f32 %v3433, 0.70710677
        %v4112 = vmul.f32 %v3435, 0.70710677
        %v4113 = vmul.f32 %v3586, 0.70710677
        %v4114 = vmul.f32 %v3588, 0.70710677
        %v4115 = vmul.f32 %v3739, 0.70710677
        %v4116 = vmul.f32 %v3741, 0.70710677
        %v4117 = vmul.f32 %v3284, 0.70710677
        %v4118 = vmul.f32 %v3286, 0.70710677
        %v4119 = vmul.f32 %v3437, 0.70710677
        %v4120 = vmul.f32 %v3439, 0.70710677
        %v4121 = vmul.f32 %v3590, 0.70710677
        %v4122 = vmul.f32 %v3592, 0.70710677
        %v4123 = vmul.f32 %v3743, 0.70710677
        %v4124 = vmul.f32 %v3745, 0.70710677
        %v4125 = vmul.f32 %v3290, 0.70710677
        %v4126 = vmul.f32 %v3292, 0.70710677
        %v4127 = vmul.f32 %v3443, 0.70710677
        %v4128 = vmul.f32 %v3445, 0.70710677
        %v4129 = vmul.f32 %v3596, 0.70710677
        %v4130 = vmul.f32 %v3598, 0.70710677
        %v4131 = vmul.f32 %v3749, 0.70710677
        %v4132 = vmul.f32 %v3751, 0.70710677
        %v4133 = vmul.f32 %v3294, 0.70710677
        %v4134 = vmul.f32 %v3296, 0.70710677
        %v4135 = vmul.f32 %v3447, 0.70710677
        %v4136 = vmul.f32 %v3449, 0.70710677
        %v4137 = vmul.f32 %v3600, 0.70710677
        %v4138 = vmul.f32 %v3602, 0.70710677
        %v4139 = vmul.f32 %v3753, 0.70710677
        %v4140 = vmul.f32 %v3755, 0.70710677
        %v4141 = verf.f32.pop %v3949
        %v4142 = verf.f32.pop %v3950
        %v4143 = verf.f32.pop %v3951
        %v4144 = verf.f32.pop %v3952
        %v4145 = verf.f32.pop %v3953
        %v4146 = verf.f32.pop %v3954
        %v4147 = verf.f32.pop %v3955
        %v4148 = verf.f32.pop %v3956
        %v4149 = verf.f32.pop %v3957
        %v4150 = verf.f32.pop %v3958
        %v4151 = verf.f32.pop %v3959
        %v4152 = verf.f32.pop %v3960
        %v4153 = verf.f32.pop %v3961
        %v4154 = verf.f32.pop %v3962
        %v4155 = verf.f32.pop %v3963
        %v4156 = verf.f32.pop %v3964
        %v4157 = verf.f32.pop %v3965
        %v4158 = verf.f32.pop %v3966
        %v4159 = verf.f32.pop %v3967
        %v4160 = verf.f32.pop %v3968
        %v4161 = verf.f32.pop %v3969
        %v4162 = verf.f32.pop %v3970
        %v4163 = verf.f32.pop %v3971
        %v4164 = verf.f32.pop %v3972
        %v4165 = verf.f32.pop %v3973
        %v4166 = verf.f32.pop %v3974
        %v4167 = verf.f32.pop %v3975
        %v4168 = verf.f32.pop %v3976
        %v4169 = verf.f32.pop %v3977
        %v4170 = verf.f32.pop %v3978
        %v4171 = verf.f32.pop %v3979
        %v4172 = verf.f32.pop %v3980
        %v4173 = verf.f32.pop %v3981
        %v4174 = verf.f32.pop %v3982
        %v4175 = verf.f32.pop %v3983
        %v4176 = verf.f32.pop %v3984
        %v4177 = verf.f32.pop %v3985
        %v4178 = verf.f32.pop %v3986
        %v4179 = verf.f32.pop %v3987
        %v4180 = verf.f32.pop %v3988
        %v4181 = verf.f32.pop %v3989
        %v4182 = verf.f32.pop %v3990
        %v4183 = verf.f32.pop %v3991
        %v4184 = verf.f32.pop %v3992
        %v4185 = verf.f32.pop %v3993
        %v4186 = verf.f32.pop %v3994
        %v4187 = verf.f32.pop %v3995
        %v4188 = verf.f32.pop %v3996
        %v4189 = verf.f32.pop %v3997
        %v4190 = verf.f32.pop %v3998
        %v4191 = verf.f32.pop %v3999
        %v4192 = verf.f32.pop %v4000
        %v4193 = verf.f32.pop %v4001
        %v4194 = verf.f32.pop %v4002
        %v4195 = verf.f32.pop %v4003
        %v4196 = verf.f32.pop %v4004
        %v4197 = verf.f32.pop %v4005
        %v4198 = verf.f32.pop %v4006
        %v4199 = verf.f32.pop %v4007
        %v4200 = verf.f32.pop %v4008
        %v4201 = verf.f32.pop %v4009
        %v4202 = verf.f32.pop %v4010
        %v4203 = verf.f32.pop %v4011
        %v4204 = verf.f32.pop %v4012
        %v4205 = verf.f32.pop %v4013
        %v4206 = verf.f32.pop %v4014
        %v4207 = verf.f32.pop %v4015
        %v4208 = verf.f32.pop %v4016
        %v4209 = verf.f32.pop %v4017
        %v4210 = verf.f32.pop %v4018
        %v4211 = verf.f32.pop %v4019
        %v4212 = verf.f32.pop %v4020
        %v4213 = verf.f32.pop %v4021
        %v4214 = verf.f32.pop %v4022
        %v4215 = verf.f32.pop %v4023
        %v4216 = verf.f32.pop %v4024
        %v4217 = verf.f32.pop %v4025
        %v4218 = verf.f32.pop %v4026
        %v4219 = verf.f32.pop %v4027
        %v4220 = verf.f32.pop %v4028
        %v4221 = verf.f32.pop %v4029
        %v4222 = verf.f32.pop %v4030
        %v4223 = verf.f32.pop %v4031
        %v4224 = verf.f32.pop %v4032
        %v4225 = verf.f32.pop %v4033
        %v4226 = verf.f32.pop %v4034
        %v4227 = verf.f32.pop %v4035
        %v4228 = verf.f32.pop %v4036
        %v4229 = verf.f32.pop %v4037
        %v4230 = verf.f32.pop %v4038
        %v4231 = verf.f32.pop %v4039
        %v4232 = verf.f32.pop %v4040
        %v4233 = verf.f32.pop %v4041
        %v4234 = verf.f32.pop %v4042
        %v4235 = verf.f32.pop %v4043
        %v4236 = verf.f32.pop %v4044
        %v4237 = verf.f32.pop %v4045
        %v4238 = verf.f32.pop %v4046
        %v4239 = verf.f32.pop %v4047
        %v4240 = verf.f32.pop %v4048
        %v4241 = verf.f32.pop %v4049
        %v4242 = verf.f32.pop %v4050
        %v4243 = verf.f32.pop %v4051
        %v4244 = verf.f32.pop %v4052
        %v4245 = verf.f32.pop %v4053
        %v4246 = verf.f32.pop %v4054
        %v4247 = verf.f32.pop %v4055
        %v4248 = verf.f32.pop %v4056
        %v4249 = verf.f32.pop %v4057
        %v4250 = verf.f32.pop %v4058
        %v4251 = verf.f32.pop %v4059
        %v4252 = verf.f32.pop %v4060
        %v4253 = verf.f32.pop %v4061
        %v4254 = verf.f32.pop %v4062
        %v4255 = verf.f32.pop %v4063
        %v4256 = verf.f32.pop %v4064
        %v4257 = verf.f32.pop %v4065
        %v4258 = verf.f32.pop %v4066
        %v4259 = verf.f32.pop %v4067
        %v4260 = verf.f32.pop %v4068
        %v4261 = verf.f32.pop %v4069
        %v4262 = verf.f32.pop %v4070
        %v4263 = verf.f32.pop %v4071
        %v4264 = verf.f32.pop %v4072
        %v4265 = verf.f32.pop %v4073
        %v4266 = verf.f32.pop %v4074
        %v4267 = verf.f32.pop %v4075
        %v4268 = verf.f32.pop %v4076
        %v4269 = verf.f32.pop %v4077
        %v4270 = verf.f32.pop %v4078
        %v4271 = verf.f32.pop %v4079
        %v4272 = verf.f32.pop %v4080
        %v4273 = verf.f32.pop %v4081
        %v4274 = verf.f32.pop %v4082
        %v4275 = verf.f32.pop %v4083
        %v4276 = verf.f32.pop %v4084
        %v4277 = verf.f32.pop %v4085
        %v4278 = verf.f32.pop %v4086
        %v4279 = verf.f32.pop %v4087
        %v4280 = verf.f32.pop %v4088
        %v4281 = verf.f32.pop %v4089
        %v4282 = verf.f32.pop %v4090
        %v4283 = verf.f32.pop %v4091
        %v4284 = verf.f32.pop %v4092
        %v4285 = verf.f32.pop %v4093
        %v4286 = verf.f32.pop %v4094
        %v4287 = verf.f32.pop %v4095
        %v4288 = verf.f32.pop %v4096
        %v4289 = verf.f32.pop %v4097
        %v4290 = verf.f32.pop %v4098
        %v4291 = verf.f32.pop %v4099
        %v4292 = verf.f32.pop %v4100
        %v4293 = verf.f32.pop %v4101
        %v4294 = verf.f32.pop %v4102
        %v4295 = verf.f32.pop %v4103
        %v4296 = verf.f32.pop %v4104
        %v4297 = verf.f32.pop %v4105
        %v4298 = verf.f32.pop %v4106
        %v4299 = verf.f32.pop %v4107
        %v4300 = verf.f32.pop %v4108
        %v4301 = verf.f32.pop %v4109
        %v4302 = verf.f32.pop %v4110
        %v4303 = verf.f32.pop %v4111
        %v4304 = verf.f32.pop %v4112
        %v4305 = verf.f32.pop %v4113
        %v4306 = verf.f32.pop %v4114
        %v4307 = verf.f32.pop %v4115
        %v4308 = verf.f32.pop %v4116
        %v4309 = verf.f32.pop %v4117
        %v4310 = verf.f32.pop %v4118
        %v4311 = verf.f32.pop %v4119
        %v4312 = verf.f32.pop %v4120
        %v4313 = verf.f32.pop %v4121
        %v4314 = verf.f32.pop %v4122
        %v4315 = verf.f32.pop %v4123
        %v4316 = verf.f32.pop %v4124
        %v4317 = verf.f32.pop %v4125
        %v4318 = verf.f32.pop %v4126
        %v4319 = verf.f32.pop %v4127
        %v4320 = verf.f32.pop %v4128
        %v4321 = verf.f32.pop %v4129
        %v4322 = verf.f32.pop %v4130
        %v4323 = verf.f32.pop %v4131
        %v4324 = verf.f32.pop %v4132
        %v4325 = verf.f32.pop %v4133
        %v4326 = verf.f32.pop %v4134
        %v4327 = verf.f32.pop %v4135
        %v4328 = verf.f32.pop %v4136
        %v4329 = verf.f32.pop %v4137
        %v4330 = verf.f32.pop %v4138
        %v4331 = verf.f32.pop %v4139
        %v4332 = verf.f32.pop %v4140
        %v4333 = vadd.f32 %v4141, 1.0
        %v4334 = vadd.f32 %v4142, 1.0
        %v4335 = vadd.f32 %v4143, 1.0
        %v4336 = vadd.f32 %v4144, 1.0
        %v4337 = vadd.f32 %v4145, 1.0
        %v4338 = vadd.f32 %v4146, 1.0
        %v4339 = vadd.f32 %v4147, 1.0
        %v4340 = vadd.f32 %v4148, 1.0
        %v4341 = vadd.f32 %v4149, 1.0
        %v4342 = vadd.f32 %v4150, 1.0
        %v4343 = vadd.f32 %v4151, 1.0
        %v4344 = vadd.f32 %v4152, 1.0
        %v4345 = vadd.f32 %v4153, 1.0
        %v4346 = vadd.f32 %v4154, 1.0
        %v4347 = vadd.f32 %v4155, 1.0
        %v4348 = vadd.f32 %v4156, 1.0
        %v4349 = vadd.f32 %v4157, 1.0
        %v4350 = vadd.f32 %v4158, 1.0
        %v4351 = vadd.f32 %v4159, 1.0
        %v4352 = vadd.f32 %v4160, 1.0
        %v4353 = vadd.f32 %v4161, 1.0
        %v4354 = vadd.f32 %v4162, 1.0
        %v4355 = vadd.f32 %v4163, 1.0
        %v4356 = vadd.f32 %v4164, 1.0
        %v4357 = vadd.f32 %v4165, 1.0
        %v4358 = vadd.f32 %v4166, 1.0
        %v4359 = vadd.f32 %v4167, 1.0
        %v4360 = vadd.f32 %v4168, 1.0
        %v4361 = vadd.f32 %v4169, 1.0
        %v4362 = vadd.f32 %v4170, 1.0
        %v4363 = vadd.f32 %v4171, 1.0
        %v4364 = vadd.f32 %v4172, 1.0
        %v4365 = vadd.f32 %v4173, 1.0
        %v4366 = vadd.f32 %v4174, 1.0
        %v4367 = vadd.f32 %v4175, 1.0
        %v4368 = vadd.f32 %v4176, 1.0
        %v4369 = vadd.f32 %v4177, 1.0
        %v4370 = vadd.f32 %v4178, 1.0
        %v4371 = vadd.f32 %v4179, 1.0
        %v4372 = vadd.f32 %v4180, 1.0
        %v4373 = vadd.f32 %v4181, 1.0
        %v4374 = vadd.f32 %v4182, 1.0
        %v4375 = vadd.f32 %v4183, 1.0
        %v4376 = vadd.f32 %v4184, 1.0
        %v4377 = vadd.f32 %v4185, 1.0
        %v4378 = vadd.f32 %v4186, 1.0
        %v4379 = vadd.f32 %v4187, 1.0
        %v4380 = vadd.f32 %v4188, 1.0
        %v4381 = vadd.f32 %v4189, 1.0
        %v4382 = vadd.f32 %v4190, 1.0
        %v4383 = vadd.f32 %v4191, 1.0
        %v4384 = vadd.f32 %v4192, 1.0
        %v4385 = vadd.f32 %v4193, 1.0
        %v4386 = vadd.f32 %v4194, 1.0
        %v4387 = vadd.f32 %v4195, 1.0
        %v4388 = vadd.f32 %v4196, 1.0
        %v4389 = vadd.f32 %v4197, 1.0
        %v4390 = vadd.f32 %v4198, 1.0
        %v4391 = vadd.f32 %v4199, 1.0
        %v4392 = vadd.f32 %v4200, 1.0
        %v4393 = vadd.f32 %v4201, 1.0
        %v4394 = vadd.f32 %v4202, 1.0
        %v4395 = vadd.f32 %v4203, 1.0
        %v4396 = vadd.f32 %v4204, 1.0
        %v4397 = vadd.f32 %v4205, 1.0
        %v4398 = vadd.f32 %v4206, 1.0
        %v4399 = vadd.f32 %v4207, 1.0
        %v4400 = vadd.f32 %v4208, 1.0
        %v4401 = vadd.f32 %v4209, 1.0
        %v4402 = vadd.f32 %v4210, 1.0
        %v4403 = vadd.f32 %v4211, 1.0
        %v4404 = vadd.f32 %v4212, 1.0
        %v4405 = vadd.f32 %v4213, 1.0
        %v4406 = vadd.f32 %v4214, 1.0
        %v4407 = vadd.f32 %v4215, 1.0
        %v4408 = vadd.f32 %v4216, 1.0
        %v4409 = vadd.f32 %v4217, 1.0
        %v4410 = vadd.f32 %v4218, 1.0
        %v4411 = vadd.f32 %v4219, 1.0
        %v4412 = vadd.f32 %v4220, 1.0
        %v4413 = vadd.f32 %v4221, 1.0
        %v4414 = vadd.f32 %v4222, 1.0
        %v4415 = vadd.f32 %v4223, 1.0
        %v4416 = vadd.f32 %v4224, 1.0
        %v4417 = vadd.f32 %v4225, 1.0
        %v4418 = vadd.f32 %v4226, 1.0
        %v4419 = vadd.f32 %v4227, 1.0
        %v4420 = vadd.f32 %v4228, 1.0
        %v4421 = vadd.f32 %v4229, 1.0
        %v4422 = vadd.f32 %v4230, 1.0
        %v4423 = vadd.f32 %v4231, 1.0
        %v4424 = vadd.f32 %v4232, 1.0
        %v4425 = vadd.f32 %v4233, 1.0
        %v4426 = vadd.f32 %v4234, 1.0
        %v4427 = vadd.f32 %v4235, 1.0
        %v4428 = vadd.f32 %v4236, 1.0
        %v4429 = vadd.f32 %v4237, 1.0
        %v4430 = vadd.f32 %v4238, 1.0
        %v4431 = vadd.f32 %v4239, 1.0
        %v4432 = vadd.f32 %v4240, 1.0
        %v4433 = vadd.f32 %v4241, 1.0
        %v4434 = vadd.f32 %v4242, 1.0
        %v4435 = vadd.f32 %v4243, 1.0
        %v4436 = vadd.f32 %v4244, 1.0
        %v4437 = vadd.f32 %v4245, 1.0
        %v4438 = vadd.f32 %v4246, 1.0
        %v4439 = vadd.f32 %v4247, 1.0
        %v4440 = vadd.f32 %v4248, 1.0
        %v4441 = vadd.f32 %v4249, 1.0
        %v4442 = vadd.f32 %v4250, 1.0
        %v4443 = vadd.f32 %v4251, 1.0
        %v4444 = vadd.f32 %v4252, 1.0
        %v4445 = vadd.f32 %v4253, 1.0
        %v4446 = vadd.f32 %v4254, 1.0
        %v4447 = vadd.f32 %v4255, 1.0
        %v4448 = vadd.f32 %v4256, 1.0
        %v4449 = vadd.f32 %v4257, 1.0
        %v4450 = vadd.f32 %v4258, 1.0
        %v4451 = vadd.f32 %v4259, 1.0
        %v4452 = vadd.f32 %v4260, 1.0
        %v4453 = vadd.f32 %v4261, 1.0
        %v4454 = vadd.f32 %v4262, 1.0
        %v4455 = vadd.f32 %v4263, 1.0
        %v4456 = vadd.f32 %v4264, 1.0
        %v4457 = vadd.f32 %v4265, 1.0
        %v4458 = vadd.f32 %v4266, 1.0
        %v4459 = vadd.f32 %v4267, 1.0
        %v4460 = vadd.f32 %v4268, 1.0
        %v4461 = vadd.f32 %v4269, 1.0
        %v4462 = vadd.f32 %v4270, 1.0
        %v4463 = vadd.f32 %v4271, 1.0
        %v4464 = vadd.f32 %v4272, 1.0
        %v4465 = vadd.f32 %v4273, 1.0
        %v4466 = vadd.f32 %v4274, 1.0
        %v4467 = vadd.f32 %v4275, 1.0
        %v4468 = vadd.f32 %v4276, 1.0
        %v4469 = vadd.f32 %v4277, 1.0
        %v4470 = vadd.f32 %v4278, 1.0
        %v4471 = vadd.f32 %v4279, 1.0
        %v4472 = vadd.f32 %v4280, 1.0
        %v4473 = vadd.f32 %v4281, 1.0
        %v4474 = vadd.f32 %v4282, 1.0
        %v4475 = vadd.f32 %v4283, 1.0
        %v4476 = vadd.f32 %v4284, 1.0
        %v4477 = vadd.f32 %v4285, 1.0
        %v4478 = vadd.f32 %v4286, 1.0
        %v4479 = vadd.f32 %v4287, 1.0
        %v4480 = vadd.f32 %v4288, 1.0
        %v4481 = vadd.f32 %v4289, 1.0
        %v4482 = vadd.f32 %v4290, 1.0
        %v4483 = vadd.f32 %v4291, 1.0
        %v4484 = vadd.f32 %v4292, 1.0
        %v4485 = vadd.f32 %v4293, 1.0
        %v4486 = vadd.f32 %v4294, 1.0
        %v4487 = vadd.f32 %v4295, 1.0
        %v4488 = vadd.f32 %v4296, 1.0
        %v4489 = vadd.f32 %v4297, 1.0
        %v4490 = vadd.f32 %v4298, 1.0
        %v4491 = vadd.f32 %v4299, 1.0
        %v4492 = vadd.f32 %v4300, 1.0
        %v4493 = vadd.f32 %v4301, 1.0
        %v4494 = vadd.f32 %v4302, 1.0
        %v4495 = vadd.f32 %v4303, 1.0
        %v4496 = vadd.f32 %v4304, 1.0
        %v4497 = vadd.f32 %v4305, 1.0
        %v4498 = vadd.f32 %v4306, 1.0
        %v4499 = vadd.f32 %v4307, 1.0
        %v4500 = vadd.f32 %v4308, 1.0
        %v4501 = vadd.f32 %v4309, 1.0
        %v4502 = vadd.f32 %v4310, 1.0
        %v4503 = vadd.f32 %v4311, 1.0
        %v4504 = vadd.f32 %v4312, 1.0
        %v4505 = vadd.f32 %v4313, 1.0
        %v4506 = vadd.f32 %v4314, 1.0
        %v4507 = vadd.f32 %v4315, 1.0
        %v4508 = vadd.f32 %v4316, 1.0
        %v4509 = vadd.f32 %v4317, 1.0
        %v4510 = vadd.f32 %v4318, 1.0
        %v4511 = vadd.f32 %v4319, 1.0
        %v4512 = vadd.f32 %v4320, 1.0
        %v4513 = vadd.f32 %v4321, 1.0
        %v4514 = vadd.f32 %v4322, 1.0
        %v4515 = vadd.f32 %v4323, 1.0
        %v4516 = vadd.f32 %v4324, 1.0
        %v4517 = vadd.f32 %v4325, 1.0
        %v4518 = vadd.f32 %v4326, 1.0
        %v4519 = vadd.f32 %v4327, 1.0
        %v4520 = vadd.f32 %v4328, 1.0
        %v4521 = vadd.f32 %v4329, 1.0
        %v4522 = vadd.f32 %v4330, 1.0
        %v4523 = vadd.f32 %v4331, 1.0
        %v4524 = vadd.f32 %v4332, 1.0
        %v4525 = vmul.f32 %v3757, %v4333
        %v4526 = vmul.f32 %v3758, %v4334
        %v4527 = vmul.f32 %v3759, %v4335
        %v4528 = vmul.f32 %v3760, %v4336
        %v4529 = vmul.f32 %v3761, %v4337
        %v4530 = vmul.f32 %v3762, %v4338
        %v4531 = vmul.f32 %v3763, %v4339
        %v4532 = vmul.f32 %v3764, %v4340
        %v4533 = vmul.f32 %v3765, %v4341
        %v4534 = vmul.f32 %v3766, %v4342
        %v4535 = vmul.f32 %v3767, %v4343
        %v4536 = vmul.f32 %v3768, %v4344
        %v4537 = vmul.f32 %v3769, %v4345
        %v4538 = vmul.f32 %v3770, %v4346
        %v4539 = vmul.f32 %v3771, %v4347
        %v4540 = vmul.f32 %v3772, %v4348
        %v4541 = vmul.f32 %v3773, %v4349
        %v4542 = vmul.f32 %v3774, %v4350
        %v4543 = vmul.f32 %v3775, %v4351
        %v4544 = vmul.f32 %v3776, %v4352
        %v4545 = vmul.f32 %v3777, %v4353
        %v4546 = vmul.f32 %v3778, %v4354
        %v4547 = vmul.f32 %v3779, %v4355
        %v4548 = vmul.f32 %v3780, %v4356
        %v4549 = vmul.f32 %v3781, %v4357
        %v4550 = vmul.f32 %v3782, %v4358
        %v4551 = vmul.f32 %v3783, %v4359
        %v4552 = vmul.f32 %v3784, %v4360
        %v4553 = vmul.f32 %v3785, %v4361
        %v4554 = vmul.f32 %v3786, %v4362
        %v4555 = vmul.f32 %v3787, %v4363
        %v4556 = vmul.f32 %v3788, %v4364
        %v4557 = vmul.f32 %v3789, %v4365
        %v4558 = vmul.f32 %v3790, %v4366
        %v4559 = vmul.f32 %v3791, %v4367
        %v4560 = vmul.f32 %v3792, %v4368
        %v4561 = vmul.f32 %v3793, %v4369
        %v4562 = vmul.f32 %v3794, %v4370
        %v4563 = vmul.f32 %v3795, %v4371
        %v4564 = vmul.f32 %v3796, %v4372
        %v4565 = vmul.f32 %v3797, %v4373
        %v4566 = vmul.f32 %v3798, %v4374
        %v4567 = vmul.f32 %v3799, %v4375
        %v4568 = vmul.f32 %v3800, %v4376
        %v4569 = vmul.f32 %v3801, %v4377
        %v4570 = vmul.f32 %v3802, %v4378
        %v4571 = vmul.f32 %v3803, %v4379
        %v4572 = vmul.f32 %v3804, %v4380
        %v4573 = vmul.f32 %v3805, %v4381
        %v4574 = vmul.f32 %v3806, %v4382
        %v4575 = vmul.f32 %v3807, %v4383
        %v4576 = vmul.f32 %v3808, %v4384
        %v4577 = vmul.f32 %v3809, %v4385
        %v4578 = vmul.f32 %v3810, %v4386
        %v4579 = vmul.f32 %v3811, %v4387
        %v4580 = vmul.f32 %v3812, %v4388
        %v4581 = vmul.f32 %v3813, %v4389
        %v4582 = vmul.f32 %v3814, %v4390
        %v4583 = vmul.f32 %v3815, %v4391
        %v4584 = vmul.f32 %v3816, %v4392
        %v4585 = vmul.f32 %v3817, %v4393
        %v4586 = vmul.f32 %v3818, %v4394
        %v4587 = vmul.f32 %v3819, %v4395
        %v4588 = vmul.f32 %v3820, %v4396
        %v4589 = vmul.f32 %v3821, %v4397
        %v4590 = vmul.f32 %v3822, %v4398
        %v4591 = vmul.f32 %v3823, %v4399
        %v4592 = vmul.f32 %v3824, %v4400
        %v4593 = vmul.f32 %v3825, %v4401
        %v4594 = vmul.f32 %v3826, %v4402
        %v4595 = vmul.f32 %v3827, %v4403
        %v4596 = vmul.f32 %v3828, %v4404
        %v4597 = vmul.f32 %v3829, %v4405
        %v4598 = vmul.f32 %v3830, %v4406
        %v4599 = vmul.f32 %v3831, %v4407
        %v4600 = vmul.f32 %v3832, %v4408
        %v4601 = vmul.f32 %v3833, %v4409
        %v4602 = vmul.f32 %v3834, %v4410
        %v4603 = vmul.f32 %v3835, %v4411
        %v4604 = vmul.f32 %v3836, %v4412
        %v4605 = vmul.f32 %v3837, %v4413
        %v4606 = vmul.f32 %v3838, %v4414
        %v4607 = vmul.f32 %v3839, %v4415
        %v4608 = vmul.f32 %v3840, %v4416
        %v4609 = vmul.f32 %v3841, %v4417
        %v4610 = vmul.f32 %v3842, %v4418
        %v4611 = vmul.f32 %v3843, %v4419
        %v4612 = vmul.f32 %v3844, %v4420
        %v4613 = vmul.f32 %v3845, %v4421
        %v4614 = vmul.f32 %v3846, %v4422
        %v4615 = vmul.f32 %v3847, %v4423
        %v4616 = vmul.f32 %v3848, %v4424
        %v4617 = vmul.f32 %v3849, %v4425
        %v4618 = vmul.f32 %v3850, %v4426
        %v4619 = vmul.f32 %v3851, %v4427
        %v4620 = vmul.f32 %v3852, %v4428
        %v4621 = vmul.f32 %v3853, %v4429
        %v4622 = vmul.f32 %v3854, %v4430
        %v4623 = vmul.f32 %v3855, %v4431
        %v4624 = vmul.f32 %v3856, %v4432
        %v4625 = vmul.f32 %v3857, %v4433
        %v4626 = vmul.f32 %v3858, %v4434
        %v4627 = vmul.f32 %v3859, %v4435
        %v4628 = vmul.f32 %v3860, %v4436
        %v4629 = vmul.f32 %v3861, %v4437
        %v4630 = vmul.f32 %v3862, %v4438
        %v4631 = vmul.f32 %v3863, %v4439
        %v4632 = vmul.f32 %v3864, %v4440
        %v4633 = vmul.f32 %v3865, %v4441
        %v4634 = vmul.f32 %v3866, %v4442
        %v4635 = vmul.f32 %v3867, %v4443
        %v4636 = vmul.f32 %v3868, %v4444
        %v4637 = vmul.f32 %v3869, %v4445
        %v4638 = vmul.f32 %v3870, %v4446
        %v4639 = vmul.f32 %v3871, %v4447
        %v4640 = vmul.f32 %v3872, %v4448
        %v4641 = vmul.f32 %v3873, %v4449
        %v4642 = vmul.f32 %v3874, %v4450
        %v4643 = vmul.f32 %v3875, %v4451
        %v4644 = vmul.f32 %v3876, %v4452
        %v4645 = vmul.f32 %v3877, %v4453
        %v4646 = vmul.f32 %v3878, %v4454
        %v4647 = vmul.f32 %v3879, %v4455
        %v4648 = vmul.f32 %v3880, %v4456
        %v4649 = vmul.f32 %v3881, %v4457
        %v4650 = vmul.f32 %v3882, %v4458
        %v4651 = vmul.f32 %v3883, %v4459
        %v4652 = vmul.f32 %v3884, %v4460
        %v4653 = vmul.f32 %v3885, %v4461
        %v4654 = vmul.f32 %v3886, %v4462
        %v4655 = vmul.f32 %v3887, %v4463
        %v4656 = vmul.f32 %v3888, %v4464
        %v4657 = vmul.f32 %v3889, %v4465
        %v4658 = vmul.f32 %v3890, %v4466
        %v4659 = vmul.f32 %v3891, %v4467
        %v4660 = vmul.f32 %v3892, %v4468
        %v4661 = vmul.f32 %v3893, %v4469
        %v4662 = vmul.f32 %v3894, %v4470
        %v4663 = vmul.f32 %v3895, %v4471
        %v4664 = vmul.f32 %v3896, %v4472
        %v4665 = vmul.f32 %v3897, %v4473
        %v4666 = vmul.f32 %v3898, %v4474
        %v4667 = vmul.f32 %v3899, %v4475
        %v4668 = vmul.f32 %v3900, %v4476
        %v4669 = vmul.f32 %v3901, %v4477
        %v4670 = vmul.f32 %v3902, %v4478
        %v4671 = vmul.f32 %v3903, %v4479
        %v4672 = vmul.f32 %v3904, %v4480
        %v4673 = vmul.f32 %v3905, %v4481
        %v4674 = vmul.f32 %v3906, %v4482
        %v4675 = vmul.f32 %v3907, %v4483
        %v4676 = vmul.f32 %v3908, %v4484
        %v4677 = vmul.f32 %v3909, %v4485
        %v4678 = vmul.f32 %v3910, %v4486
        %v4679 = vmul.f32 %v3911, %v4487
        %v4680 = vmul.f32 %v3912, %v4488
        %v4681 = vmul.f32 %v3913, %v4489
        %v4682 = vmul.f32 %v3914, %v4490
        %v4683 = vmul.f32 %v3915, %v4491
        %v4684 = vmul.f32 %v3916, %v4492
        %v4685 = vmul.f32 %v3917, %v4493
        %v4686 = vmul.f32 %v3918, %v4494
        %v4687 = vmul.f32 %v3919, %v4495
        %v4688 = vmul.f32 %v3920, %v4496
        %v4689 = vmul.f32 %v3921, %v4497
        %v4690 = vmul.f32 %v3922, %v4498
        %v4691 = vmul.f32 %v3923, %v4499
        %v4692 = vmul.f32 %v3924, %v4500
        %v4693 = vmul.f32 %v3925, %v4501
        %v4694 = vmul.f32 %v3926, %v4502
        %v4695 = vmul.f32 %v3927, %v4503
        %v4696 = vmul.f32 %v3928, %v4504
        %v4697 = vmul.f32 %v3929, %v4505
        %v4698 = vmul.f32 %v3930, %v4506
        %v4699 = vmul.f32 %v3931, %v4507
        %v4700 = vmul.f32 %v3932, %v4508
        %v4701 = vmul.f32 %v3933, %v4509
        %v4702 = vmul.f32 %v3934, %v4510
        %v4703 = vmul.f32 %v3935, %v4511
        %v4704 = vmul.f32 %v3936, %v4512
        %v4705 = vmul.f32 %v3937, %v4513
        %v4706 = vmul.f32 %v3938, %v4514
        %v4707 = vmul.f32 %v3939, %v4515
        %v4708 = vmul.f32 %v3940, %v4516
        %v4709 = vmul.f32 %v3941, %v4517
        %v4710 = vmul.f32 %v3942, %v4518
        %v4711 = vmul.f32 %v3943, %v4519
        %v4712 = vmul.f32 %v3944, %v4520
        %v4713 = vmul.f32 %v3945, %v4521
        %v4714 = vmul.f32 %v3946, %v4522
        %v4715 = vmul.f32 %v3947, %v4523
        %v4716 = vmul.f32 %v3948, %v4524
        %v4717 = vpack.c.bf16 %v4533, %v4525
        %v4718 = vpack.c.bf16 %v4534, %v4526
        %v4719 = vpack.c.bf16 %v4535, %v4527
        %v4720 = vpack.c.bf16 %v4536, %v4528
        %v4721 = vpack.c.bf16 %v4537, %v4529
        %v4722 = vpack.c.bf16 %v4538, %v4530
        %v4723 = vpack.c.bf16 %v4539, %v4531
        %v4724 = vpack.c.bf16 %v4540, %v4532
        %v4725 = vpack.c.bf16 %v4549, %v4541
        %v4726 = vpack.c.bf16 %v4550, %v4542
        %v4727 = vpack.c.bf16 %v4551, %v4543
        %v4728 = vpack.c.bf16 %v4552, %v4544
        %v4729 = vpack.c.bf16 %v4553, %v4545
        %v4730 = vpack.c.bf16 %v4554, %v4546
        %v4731 = vpack.c.bf16 %v4555, %v4547
        %v4732 = vpack.c.bf16 %v4556, %v4548
        %v4733 = vpack.c.bf16 %v4565, %v4557
        %v4734 = vpack.c.bf16 %v4566, %v4558
        %v4735 = vpack.c.bf16 %v4567, %v4559
        %v4736 = vpack.c.bf16 %v4568, %v4560
        %v4737 = vpack.c.bf16 %v4569, %v4561
        %v4738 = vpack.c.bf16 %v4570, %v4562
        %v4739 = vpack.c.bf16 %v4571, %v4563
        %v4740 = vpack.c.bf16 %v4572, %v4564
        %v4741 = vpack.c.bf16 %v4581, %v4573
        %v4742 = vpack.c.bf16 %v4582, %v4574
        %v4743 = vpack.c.bf16 %v4583, %v4575
        %v4744 = vpack.c.bf16 %v4584, %v4576
        %v4745 = vpack.c.bf16 %v4585, %v4577
        %v4746 = vpack.c.bf16 %v4586, %v4578
        %v4747 = vpack.c.bf16 %v4587, %v4579
        %v4748 = vpack.c.bf16 %v4588, %v4580
        %v4749 = vpack.c.bf16 %v4597, %v4589
        %v4750 = vpack.c.bf16 %v4598, %v4590
        %v4751 = vpack.c.bf16 %v4599, %v4591
        %v4752 = vpack.c.bf16 %v4600, %v4592
        %v4753 = vpack.c.bf16 %v4601, %v4593
        %v4754 = vpack.c.bf16 %v4602, %v4594
        %v4755 = vpack.c.bf16 %v4603, %v4595
        %v4756 = vpack.c.bf16 %v4604, %v4596
        %v4757 = vpack.c.bf16 %v4613, %v4605
        %v4758 = vpack.c.bf16 %v4614, %v4606
        %v4759 = vpack.c.bf16 %v4615, %v4607
        %v4760 = vpack.c.bf16 %v4616, %v4608
        %v4761 = vpack.c.bf16 %v4617, %v4609
        %v4762 = vpack.c.bf16 %v4618, %v4610
        %v4763 = vpack.c.bf16 %v4619, %v4611
        %v4764 = vpack.c.bf16 %v4620, %v4612
        %v4765 = vpack.c.bf16 %v4629, %v4621
        %v4766 = vpack.c.bf16 %v4630, %v4622
        %v4767 = vpack.c.bf16 %v4631, %v4623
        %v4768 = vpack.c.bf16 %v4632, %v4624
        %v4769 = vpack.c.bf16 %v4633, %v4625
        %v4770 = vpack.c.bf16 %v4634, %v4626
        %v4771 = vpack.c.bf16 %v4635, %v4627
        %v4772 = vpack.c.bf16 %v4636, %v4628
        %v4773 = vpack.c.bf16 %v4645, %v4637
        %v4774 = vpack.c.bf16 %v4646, %v4638
        %v4775 = vpack.c.bf16 %v4647, %v4639
        %v4776 = vpack.c.bf16 %v4648, %v4640
        %v4777 = vpack.c.bf16 %v4649, %v4641
        %v4778 = vpack.c.bf16 %v4650, %v4642
        %v4779 = vpack.c.bf16 %v4651, %v4643
        %v4780 = vpack.c.bf16 %v4652, %v4644
        %v4781 = vpack.c.bf16 %v4661, %v4653
        %v4782 = vpack.c.bf16 %v4662, %v4654
        %v4783 = vpack.c.bf16 %v4663, %v4655
        %v4784 = vpack.c.bf16 %v4664, %v4656
        %v4785 = vpack.c.bf16 %v4665, %v4657
        %v4786 = vpack.c.bf16 %v4666, %v4658
        %v4787 = vpack.c.bf16 %v4667, %v4659
        %v4788 = vpack.c.bf16 %v4668, %v4660
        %v4789 = vpack.c.bf16 %v4677, %v4669
        %v4790 = vpack.c.bf16 %v4678, %v4670
        %v4791 = vpack.c.bf16 %v4679, %v4671
        %v4792 = vpack.c.bf16 %v4680, %v4672
        %v4793 = vpack.c.bf16 %v4681, %v4673
        %v4794 = vpack.c.bf16 %v4682, %v4674
        %v4795 = vpack.c.bf16 %v4683, %v4675
        %v4796 = vpack.c.bf16 %v4684, %v4676
        %v4797 = vpack.c.bf16 %v4693, %v4685
        %v4798 = vpack.c.bf16 %v4694, %v4686
        %v4799 = vpack.c.bf16 %v4695, %v4687
        %v4800 = vpack.c.bf16 %v4696, %v4688
        %v4801 = vpack.c.bf16 %v4697, %v4689
        %v4802 = vpack.c.bf16 %v4698, %v4690
        %v4803 = vpack.c.bf16 %v4699, %v4691
        %v4804 = vpack.c.bf16 %v4700, %v4692
        %v4805 = vpack.c.bf16 %v4709, %v4701
        %v4806 = vpack.c.bf16 %v4710, %v4702
        %v4807 = vpack.c.bf16 %v4711, %v4703
        %v4808 = vpack.c.bf16 %v4712, %v4704
        %v4809 = vpack.c.bf16 %v4713, %v4705
        %v4810 = vpack.c.bf16 %v4714, %v4706
        %v4811 = vpack.c.bf16 %v4715, %v4707
        %v4812 = vpack.c.bf16 %v4716, %v4708
        %v4909 = vunpack.c.l.b16 %v4717
        %v4910 = vunpack.c.l.b16 %v4718
        %v4911 = vunpack.c.l.b16 %v4719
        %v4912 = vunpack.c.l.b16 %v4720
        %v4913 = vunpack.c.l.b16 %v4721
        %v4914 = vunpack.c.l.b16 %v4722
        %v4915 = vunpack.c.l.b16 %v4723
        %v4916 = vunpack.c.l.b16 %v4724
        %v4917 = vunpack.c.h.b16 %v4717
        %v4918 = vunpack.c.h.b16 %v4718
        %v4919 = vunpack.c.h.b16 %v4719
        %v4920 = vunpack.c.h.b16 %v4720
        %v4921 = vunpack.c.h.b16 %v4721
        %v4922 = vunpack.c.h.b16 %v4722
        %v4923 = vunpack.c.h.b16 %v4723
        %v4924 = vunpack.c.h.b16 %v4724
        %v4925 = vunpack.c.l.b16 %v4725
        %v4926 = vunpack.c.l.b16 %v4726
        %v4927 = vunpack.c.l.b16 %v4727
        %v4928 = vunpack.c.l.b16 %v4728
        %v4929 = vunpack.c.l.b16 %v4729
        %v4930 = vunpack.c.l.b16 %v4730
        %v4931 = vunpack.c.l.b16 %v4731
        %v4932 = vunpack.c.l.b16 %v4732
        %v4933 = vunpack.c.h.b16 %v4725
        %v4934 = vunpack.c.h.b16 %v4726
        %v4935 = vunpack.c.h.b16 %v4727
        %v4936 = vunpack.c.h.b16 %v4728
        %v4937 = vunpack.c.h.b16 %v4729
        %v4938 = vunpack.c.h.b16 %v4730
        %v4939 = vunpack.c.h.b16 %v4731
        %v4940 = vunpack.c.h.b16 %v4732
        %v4941 = vunpack.c.l.b16 %v4733
        %v4942 = vunpack.c.l.b16 %v4734
        %v4943 = vunpack.c.l.b16 %v4735
        %v4944 = vunpack.c.l.b16 %v4736
        %v4945 = vunpack.c.l.b16 %v4737
        %v4946 = vunpack.c.l.b16 %v4738
        %v4947 = vunpack.c.l.b16 %v4739
        %v4948 = vunpack.c.l.b16 %v4740
        %v4949 = vunpack.c.h.b16 %v4733
        %v4950 = vunpack.c.h.b16 %v4734
        %v4951 = vunpack.c.h.b16 %v4735
        %v4952 = vunpack.c.h.b16 %v4736
        %v4953 = vunpack.c.h.b16 %v4737
        %v4954 = vunpack.c.h.b16 %v4738
        %v4955 = vunpack.c.h.b16 %v4739
        %v4956 = vunpack.c.h.b16 %v4740
        %v4957 = vunpack.c.l.b16 %v4741
        %v4958 = vunpack.c.l.b16 %v4742
        %v4959 = vunpack.c.l.b16 %v4743
        %v4960 = vunpack.c.l.b16 %v4744
        %v4961 = vunpack.c.l.b16 %v4745
        %v4962 = vunpack.c.l.b16 %v4746
        %v4963 = vunpack.c.l.b16 %v4747
        %v4964 = vunpack.c.l.b16 %v4748
        %v4965 = vunpack.c.h.b16 %v4741
        %v4966 = vunpack.c.h.b16 %v4742
        %v4967 = vunpack.c.h.b16 %v4743
        %v4968 = vunpack.c.h.b16 %v4744
        %v4969 = vunpack.c.h.b16 %v4745
        %v4970 = vunpack.c.h.b16 %v4746
        %v4971 = vunpack.c.h.b16 %v4747
        %v4972 = vunpack.c.h.b16 %v4748
        %v4973 = vunpack.c.l.b16 %v4749
        %v4974 = vunpack.c.l.b16 %v4750
        %v4975 = vunpack.c.l.b16 %v4751
        %v4976 = vunpack.c.l.b16 %v4752
        %v4977 = vunpack.c.l.b16 %v4753
        %v4978 = vunpack.c.l.b16 %v4754
        %v4979 = vunpack.c.l.b16 %v4755
        %v4980 = vunpack.c.l.b16 %v4756
        %v4981 = vunpack.c.h.b16 %v4749
        %v4982 = vunpack.c.h.b16 %v4750
        %v4983 = vunpack.c.h.b16 %v4751
        %v4984 = vunpack.c.h.b16 %v4752
        %v4985 = vunpack.c.h.b16 %v4753
        %v4986 = vunpack.c.h.b16 %v4754
        %v4987 = vunpack.c.h.b16 %v4755
        %v4988 = vunpack.c.h.b16 %v4756
        %v4989 = vunpack.c.l.b16 %v4757
        %v4990 = vunpack.c.l.b16 %v4758
        %v4991 = vunpack.c.l.b16 %v4759
        %v4992 = vunpack.c.l.b16 %v4760
        %v4993 = vunpack.c.l.b16 %v4761
        %v4994 = vunpack.c.l.b16 %v4762
        %v4995 = vunpack.c.l.b16 %v4763
        %v4996 = vunpack.c.l.b16 %v4764
        %v4997 = vunpack.c.h.b16 %v4757
        %v4998 = vunpack.c.h.b16 %v4758
        %v4999 = vunpack.c.h.b16 %v4759
        %v5000 = vunpack.c.h.b16 %v4760
        %v5001 = vunpack.c.h.b16 %v4761
        %v5002 = vunpack.c.h.b16 %v4762
        %v5003 = vunpack.c.h.b16 %v4763
        %v5004 = vunpack.c.h.b16 %v4764
        %v5005 = vunpack.c.l.b16 %v4765
        %v5006 = vunpack.c.l.b16 %v4766
        %v5007 = vunpack.c.l.b16 %v4767
        %v5008 = vunpack.c.l.b16 %v4768
        %v5009 = vunpack.c.l.b16 %v4769
        %v5010 = vunpack.c.l.b16 %v4770
        %v5011 = vunpack.c.l.b16 %v4771
        %v5012 = vunpack.c.l.b16 %v4772
        %v5013 = vunpack.c.h.b16 %v4765
        %v5014 = vunpack.c.h.b16 %v4766
        %v5015 = vunpack.c.h.b16 %v4767
        %v5016 = vunpack.c.h.b16 %v4768
        %v5017 = vunpack.c.h.b16 %v4769
        %v5018 = vunpack.c.h.b16 %v4770
        %v5019 = vunpack.c.h.b16 %v4771
        %v5020 = vunpack.c.h.b16 %v4772
        %v5021 = vunpack.c.l.b16 %v4773
        %v5022 = vunpack.c.l.b16 %v4774
        %v5023 = vunpack.c.l.b16 %v4775
        %v5024 = vunpack.c.l.b16 %v4776
        %v5025 = vunpack.c.l.b16 %v4777
        %v5026 = vunpack.c.l.b16 %v4778
        %v5027 = vunpack.c.l.b16 %v4779
        %v5028 = vunpack.c.l.b16 %v4780
        %v5029 = vunpack.c.h.b16 %v4773
        %v5030 = vunpack.c.h.b16 %v4774
        %v5031 = vunpack.c.h.b16 %v4775
        %v5032 = vunpack.c.h.b16 %v4776
        %v5033 = vunpack.c.h.b16 %v4777
        %v5034 = vunpack.c.h.b16 %v4778
        %v5035 = vunpack.c.h.b16 %v4779
        %v5036 = vunpack.c.h.b16 %v4780
        %v5037 = vunpack.c.l.b16 %v4781
        %v5038 = vunpack.c.l.b16 %v4782
        %v5039 = vunpack.c.l.b16 %v4783
        %v5040 = vunpack.c.l.b16 %v4784
        %v5041 = vunpack.c.l.b16 %v4785
        %v5042 = vunpack.c.l.b16 %v4786
        %v5043 = vunpack.c.l.b16 %v4787
        %v5044 = vunpack.c.l.b16 %v4788
        %v5045 = vunpack.c.h.b16 %v4781
        %v5046 = vunpack.c.h.b16 %v4782
        %v5047 = vunpack.c.h.b16 %v4783
        %v5048 = vunpack.c.h.b16 %v4784
        %v5049 = vunpack.c.h.b16 %v4785
        %v5050 = vunpack.c.h.b16 %v4786
        %v5051 = vunpack.c.h.b16 %v4787
        %v5052 = vunpack.c.h.b16 %v4788
        %v5053 = vunpack.c.l.b16 %v4789
        %v5054 = vunpack.c.l.b16 %v4790
        %v5055 = vunpack.c.l.b16 %v4791
        %v5056 = vunpack.c.l.b16 %v4792
        %v5057 = vunpack.c.l.b16 %v4793
        %v5058 = vunpack.c.l.b16 %v4794
        %v5059 = vunpack.c.l.b16 %v4795
        %v5060 = vunpack.c.l.b16 %v4796
        %v5061 = vunpack.c.h.b16 %v4789
        %v5062 = vunpack.c.h.b16 %v4790
        %v5063 = vunpack.c.h.b16 %v4791
        %v5064 = vunpack.c.h.b16 %v4792
        %v5065 = vunpack.c.h.b16 %v4793
        %v5066 = vunpack.c.h.b16 %v4794
        %v5067 = vunpack.c.h.b16 %v4795
        %v5068 = vunpack.c.h.b16 %v4796
        %v5069 = vunpack.c.l.b16 %v4797
        %v5070 = vunpack.c.l.b16 %v4798
        %v5071 = vunpack.c.l.b16 %v4799
        %v5072 = vunpack.c.l.b16 %v4800
        %v5073 = vunpack.c.l.b16 %v4801
        %v5074 = vunpack.c.l.b16 %v4802
        %v5075 = vunpack.c.l.b16 %v4803
        %v5076 = vunpack.c.l.b16 %v4804
        %v5077 = vunpack.c.h.b16 %v4797
        %v5078 = vunpack.c.h.b16 %v4798
        %v5079 = vunpack.c.h.b16 %v4799
        %v5080 = vunpack.c.h.b16 %v4800
        %v5081 = vunpack.c.h.b16 %v4801
        %v5082 = vunpack.c.h.b16 %v4802
        %v5083 = vunpack.c.h.b16 %v4803
        %v5084 = vunpack.c.h.b16 %v4804
        %v5085 = vunpack.c.l.b16 %v4805
        %v5086 = vunpack.c.l.b16 %v4806
        %v5087 = vunpack.c.l.b16 %v4807
        %v5088 = vunpack.c.l.b16 %v4808
        %v5089 = vunpack.c.l.b16 %v4809
        %v5090 = vunpack.c.l.b16 %v4810
        %v5091 = vunpack.c.l.b16 %v4811
        %v5092 = vunpack.c.l.b16 %v4812
        %v5093 = vunpack.c.h.b16 %v4805
        %v5094 = vunpack.c.h.b16 %v4806
        %v5095 = vunpack.c.h.b16 %v4807
        %v5096 = vunpack.c.h.b16 %v4808
        %v5097 = vunpack.c.h.b16 %v4809
        %v5098 = vunpack.c.h.b16 %v4810
        %v5099 = vunpack.c.h.b16 %v4811
        %v5100 = vunpack.c.h.b16 %v4812
        %v5101 = vpack.c.b16 %v4910, %v4909
        %v5102 = vpack.c.b16 %v4912, %v4911
        %v5103 = vpack.c.b16 %v4914, %v4913
        %v5104 = vpack.c.b16 %v4916, %v4915
        %v5105 = vpack.c.b16 %v4918, %v4917
        %v5106 = vpack.c.b16 %v4920, %v4919
        %v5107 = vpack.c.b16 %v4922, %v4921
        %v5108 = vpack.c.b16 %v4924, %v4923
        %v5109 = vpack.c.b16 %v4926, %v4925
        %v5110 = vpack.c.b16 %v4928, %v4927
        %v5111 = vpack.c.b16 %v4930, %v4929
        %v5112 = vpack.c.b16 %v4932, %v4931
        %v5113 = vpack.c.b16 %v4934, %v4933
        %v5114 = vpack.c.b16 %v4936, %v4935
        %v5115 = vpack.c.b16 %v4938, %v4937
        %v5116 = vpack.c.b16 %v4940, %v4939
        %v5117 = vpack.c.b16 %v4942, %v4941
        %v5118 = vpack.c.b16 %v4944, %v4943
        %v5119 = vpack.c.b16 %v4946, %v4945
        %v5120 = vpack.c.b16 %v4948, %v4947
        %v5121 = vpack.c.b16 %v4950, %v4949
        %v5122 = vpack.c.b16 %v4952, %v4951
        %v5123 = vpack.c.b16 %v4954, %v4953
        %v5124 = vpack.c.b16 %v4956, %v4955
        %v5125 = vpack.c.b16 %v4958, %v4957
        %v5126 = vpack.c.b16 %v4960, %v4959
        %v5127 = vpack.c.b16 %v4962, %v4961
        %v5128 = vpack.c.b16 %v4964, %v4963
        %v5129 = vpack.c.b16 %v4966, %v4965
        %v5130 = vpack.c.b16 %v4968, %v4967
        %v5131 = vpack.c.b16 %v4970, %v4969
        %v5132 = vpack.c.b16 %v4972, %v4971
        %v5133 = vpack.c.b16 %v4974, %v4973
        %v5134 = vpack.c.b16 %v4976, %v4975
        %v5135 = vpack.c.b16 %v4978, %v4977
        %v5136 = vpack.c.b16 %v4980, %v4979
        %v5137 = vpack.c.b16 %v4982, %v4981
        %v5138 = vpack.c.b16 %v4984, %v4983
        %v5139 = vpack.c.b16 %v4986, %v4985
        %v5140 = vpack.c.b16 %v4988, %v4987
        %v5141 = vpack.c.b16 %v4990, %v4989
        %v5142 = vpack.c.b16 %v4992, %v4991
        %v5143 = vpack.c.b16 %v4994, %v4993
        %v5144 = vpack.c.b16 %v4996, %v4995
        %v5145 = vpack.c.b16 %v4998, %v4997
        %v5146 = vpack.c.b16 %v5000, %v4999
        %v5147 = vpack.c.b16 %v5002, %v5001
        %v5148 = vpack.c.b16 %v5004, %v5003
        %v5149 = vpack.c.b16 %v5006, %v5005
        %v5150 = vpack.c.b16 %v5008, %v5007
        %v5151 = vpack.c.b16 %v5010, %v5009
        %v5152 = vpack.c.b16 %v5012, %v5011
        %v5153 = vpack.c.b16 %v5014, %v5013
        %v5154 = vpack.c.b16 %v5016, %v5015
        %v5155 = vpack.c.b16 %v5018, %v5017
        %v5156 = vpack.c.b16 %v5020, %v5019
        %v5157 = vpack.c.b16 %v5022, %v5021
        %v5158 = vpack.c.b16 %v5024, %v5023
        %v5159 = vpack.c.b16 %v5026, %v5025
        %v5160 = vpack.c.b16 %v5028, %v5027
        %v5161 = vpack.c.b16 %v5030, %v5029
        %v5162 = vpack.c.b16 %v5032, %v5031
        %v5163 = vpack.c.b16 %v5034, %v5033
        %v5164 = vpack.c.b16 %v5036, %v5035
        %v5165 = vpack.c.b16 %v5038, %v5037
        %v5166 = vpack.c.b16 %v5040, %v5039
        %v5167 = vpack.c.b16 %v5042, %v5041
        %v5168 = vpack.c.b16 %v5044, %v5043
        %v5169 = vpack.c.b16 %v5046, %v5045
        %v5170 = vpack.c.b16 %v5048, %v5047
        %v5171 = vpack.c.b16 %v5050, %v5049
        %v5172 = vpack.c.b16 %v5052, %v5051
        %v5173 = vpack.c.b16 %v5054, %v5053
        %v5174 = vpack.c.b16 %v5056, %v5055
        %v5175 = vpack.c.b16 %v5058, %v5057
        %v5176 = vpack.c.b16 %v5060, %v5059
        %v5177 = vpack.c.b16 %v5062, %v5061
        %v5178 = vpack.c.b16 %v5064, %v5063
        %v5179 = vpack.c.b16 %v5066, %v5065
        %v5180 = vpack.c.b16 %v5068, %v5067
        %v5181 = vpack.c.b16 %v5070, %v5069
        %v5182 = vpack.c.b16 %v5072, %v5071
        %v5183 = vpack.c.b16 %v5074, %v5073
        %v5184 = vpack.c.b16 %v5076, %v5075
        %v5185 = vpack.c.b16 %v5078, %v5077
        %v5186 = vpack.c.b16 %v5080, %v5079
        %v5187 = vpack.c.b16 %v5082, %v5081
        %v5188 = vpack.c.b16 %v5084, %v5083
        %v5189 = vpack.c.b16 %v5086, %v5085
        %v5190 = vpack.c.b16 %v5088, %v5087
        %v5191 = vpack.c.b16 %v5090, %v5089
        %v5192 = vpack.c.b16 %v5092, %v5091
        %v5193 = vpack.c.b16 %v5094, %v5093
        %v5194 = vpack.c.b16 %v5096, %v5095
        %v5195 = vpack.c.b16 %v5098, %v5097
        %v5196 = vpack.c.b16 %v5100, %v5099
        %5293 = vst [vmem:[%s444] sm:$0xff] %v5101
        %5294 = vst [vmem:[%s444 + $0x8] sm:$0xff] %v5102
        %5295 = vst [vmem:[%s444 + $0x10] sm:$0xff] %v5103
        %5296 = vst [vmem:[%s444 + $0x18] sm:$0xff] %v5104
        %5297 = vst [vmem:[%s444 + $0x20] sm:$0xff] %v5105
        %5298 = vst [vmem:[%s444 + $0x28] sm:$0xff] %v5106
        %5299 = vst [vmem:[%s444 + $0x30] sm:$0xff] %v5107
        %5300 = vst [vmem:[%s444 + $0x38] sm:$0xff] %v5108
        %5301 = vst [vmem:[%s444 + $0x40] sm:$0xff] %v5109
        %5302 = vst [vmem:[%s444 + $0x48] sm:$0xff] %v5110
        %5303 = vst [vmem:[%s444 + $0x50] sm:$0xff] %v5111
        %5304 = vst [vmem:[%s444 + $0x58] sm:$0xff] %v5112
        %5305 = vst [vmem:[%s444 + $0x60] sm:$0xff] %v5113
        %5306 = vst [vmem:[%s444 + $0x68] sm:$0xff] %v5114
        %5307 = vst [vmem:[%s444 + $0x70] sm:$0xff] %v5115
        %5308 = vst [vmem:[%s444 + $0x78] sm:$0xff] %v5116
        %5309 = vst [vmem:[%s444 + $0x80] sm:$0xff] %v5117
        %5310 = vst [vmem:[%s444 + $0x88] sm:$0xff] %v5118
        %5311 = vst [vmem:[%s444 + $0x90] sm:$0xff] %v5119
        %5312 = vst [vmem:[%s444 + $0x98] sm:$0xff] %v5120
        %5313 = vst [vmem:[%s444 + $0xa0] sm:$0xff] %v5121
        %5314 = vst [vmem:[%s444 + $0xa8] sm:$0xff] %v5122
        %5315 = vst [vmem:[%s444 + $0xb0] sm:$0xff] %v5123
        %5316 = vst [vmem:[%s444 + $0xb8] sm:$0xff] %v5124
        %5317 = vst [vmem:[%s444 + $0xc0] sm:$0xff] %v5125
        %5318 = vst [vmem:[%s444 + $0xc8] sm:$0xff] %v5126
        %5319 = vst [vmem:[%s444 + $0xd0] sm:$0xff] %v5127
        %5320 = vst [vmem:[%s444 + $0xd8] sm:$0xff] %v5128
        %5321 = vst [vmem:[%s444 + $0xe0] sm:$0xff] %v5129
        %5322 = vst [vmem:[%s444 + $0xe8] sm:$0xff] %v5130
        %5323 = vst [vmem:[%s444 + $0xf0] sm:$0xff] %v5131
        %5324 = vst [vmem:[%s444 + $0xf8] sm:$0xff] %v5132
        %5325 = vst [vmem:[%s444 + $0x100] sm:$0xff] %v5133
        %5326 = vst [vmem:[%s444 + $0x108] sm:$0xff] %v5134
        %5327 = vst [vmem:[%s444 + $0x110] sm:$0xff] %v5135
        %5328 = vst [vmem:[%s444 + $0x118] sm:$0xff] %v5136
        %5329 = vst [vmem:[%s444 + $0x120] sm:$0xff] %v5137
        %5330 = vst [vmem:[%s444 + $0x128] sm:$0xff] %v5138
        %5331 = vst [vmem:[%s444 + $0x130] sm:$0xff] %v5139
        %5332 = vst [vmem:[%s444 + $0x138] sm:$0xff] %v5140
        %5333 = vst [vmem:[%s444 + $0x140] sm:$0xff] %v5141
        %5334 = vst [vmem:[%s444 + $0x148] sm:$0xff] %v5142
        %5335 = vst [vmem:[%s444 + $0x150] sm:$0xff] %v5143
        %5336 = vst [vmem:[%s444 + $0x158] sm:$0xff] %v5144
        %5337 = vst [vmem:[%s444 + $0x160] sm:$0xff] %v5145
        %5338 = vst [vmem:[%s444 + $0x168] sm:$0xff] %v5146
        %5339 = vst [vmem:[%s444 + $0x170] sm:$0xff] %v5147
        %5340 = vst [vmem:[%s444 + $0x178] sm:$0xff] %v5148
        %5341 = vst [vmem:[%s444 + $0x180] sm:$0xff] %v5149
        %5342 = vst [vmem:[%s444 + $0x188] sm:$0xff] %v5150
        %5343 = vst [vmem:[%s444 + $0x190] sm:$0xff] %v5151
        %5344 = vst [vmem:[%s444 + $0x198] sm:$0xff] %v5152
        %5345 = vst [vmem:[%s444 + $0x1a0] sm:$0xff] %v5153
        %5346 = vst [vmem:[%s444 + $0x1a8] sm:$0xff] %v5154
        %5347 = vst [vmem:[%s444 + $0x1b0] sm:$0xff] %v5155
        %5348 = vst [vmem:[%s444 + $0x1b8] sm:$0xff] %v5156
        %5349 = vst [vmem:[%s444 + $0x1c0] sm:$0xff] %v5157
        %5350 = vst [vmem:[%s444 + $0x1c8] sm:$0xff] %v5158
        %5351 = vst [vmem:[%s444 + $0x1d0] sm:$0xff] %v5159
        %5352 = vst [vmem:[%s444 + $0x1d8] sm:$0xff] %v5160
        %5353 = vst [vmem:[%s444 + $0x1e0] sm:$0xff] %v5161
        %5354 = vst [vmem:[%s444 + $0x1e8] sm:$0xff] %v5162
        %5355 = vst [vmem:[%s444 + $0x1f0] sm:$0xff] %v5163
        %5356 = vst [vmem:[%s444 + $0x1f8] sm:$0xff] %v5164
        %5357 = vst [vmem:[%s444 + $0x200] sm:$0xff] %v5165
        %5358 = vst [vmem:[%s444 + $0x208] sm:$0xff] %v5166
        %5359 = vst [vmem:[%s444 + $0x210] sm:$0xff] %v5167
        %5360 = vst [vmem:[%s444 + $0x218] sm:$0xff] %v5168
        %5361 = vst [vmem:[%s444 + $0x220] sm:$0xff] %v5169
        %5362 = vst [vmem:[%s444 + $0x228] sm:$0xff] %v5170
        %5363 = vst [vmem:[%s444 + $0x230] sm:$0xff] %v5171
        %5364 = vst [vmem:[%s444 + $0x238] sm:$0xff] %v5172
        %5365 = vst [vmem:[%s444 + $0x240] sm:$0xff] %v5173
        %5366 = vst [vmem:[%s444 + $0x248] sm:$0xff] %v5174
        %5367 = vst [vmem:[%s444 + $0x250] sm:$0xff] %v5175
        %5368 = vst [vmem:[%s444 + $0x258] sm:$0xff] %v5176
        %5369 = vst [vmem:[%s444 + $0x260] sm:$0xff] %v5177
        %5370 = vst [vmem:[%s444 + $0x268] sm:$0xff] %v5178
        %5371 = vst [vmem:[%s444 + $0x270] sm:$0xff] %v5179
        %5372 = vst [vmem:[%s444 + $0x278] sm:$0xff] %v5180
        %5373 = vst [vmem:[%s444 + $0x280] sm:$0xff] %v5181
        %5374 = vst [vmem:[%s444 + $0x288] sm:$0xff] %v5182
        %5375 = vst [vmem:[%s444 + $0x290] sm:$0xff] %v5183
        %5376 = vst [vmem:[%s444 + $0x298] sm:$0xff] %v5184
        %5377 = vst [vmem:[%s444 + $0x2a0] sm:$0xff] %v5185
        %5378 = vst [vmem:[%s444 + $0x2a8] sm:$0xff] %v5186
        %5379 = vst [vmem:[%s444 + $0x2b0] sm:$0xff] %v5187
        %5380 = vst [vmem:[%s444 + $0x2b8] sm:$0xff] %v5188
        %5381 = vst [vmem:[%s444 + $0x2c0] sm:$0xff] %v5189
        %5382 = vst [vmem:[%s444 + $0x2c8] sm:$0xff] %v5190
        %5383 = vst [vmem:[%s444 + $0x2d0] sm:$0xff] %v5191
        %5384 = vst [vmem:[%s444 + $0x2d8] sm:$0xff] %v5192
        %5385 = vst [vmem:[%s444 + $0x2e0] sm:$0xff] %v5193
        %5386 = vst [vmem:[%s444 + $0x2e8] sm:$0xff] %v5194
        %5387 = vst [vmem:[%s444 + $0x2f0] sm:$0xff] %v5195
        %5388 = vst [vmem:[%s444 + $0x2f8] sm:$0xff] %v5196
        %s5389 = sand.u32 %s217, 1
        %s5390 = scalar_lea.sflag [#allocation4], %s5389
        %s5391 = sand.u32 %s217, 1
        %s5392 = smul.addr %s5391, 768
        %s5393 = scalar_lea.vmem [#allocation16], %s5392
        // Predicated region
        $region85: #{tpu_custom_call.1} parent=51 // pred_check
          %p5394 = pneg %p227
        $region86: #{tpu_custom_call.1} parent=51 // pred_check_branch
          %5396 = sbr.rel (%p5394) target = $region88
        $region87: #{tpu_custom_call.1} parent=51 // pred_region
          %s5397 = smul.u32 24, %s31
          %s5399 = ssub.s32 12288, 12288
          %5400 = vsyncadd %s5390, %s5399
          %s5401 = smul.addr %s5397, 8
          %s5402 = smul.addr %s5401, 64
          %s5403 = scalar_lea.hbm %s8, %s5402
          %s5404 = sshll.u32 %s5393, 4
          %s5405 = int_to_ptr.vmem [resolvable:$true] %s5404
          %5410 = dma.vmem_to_hbm [thread:$0]  %s5405, 12288, %s5403, %s5390, 512, 512, 32
        $region88: #{tpu_custom_call.1} parent=51 // pred_fallthru
          _
      $region52: #{tpu_custom_call.1} parent=5 // pred_fallthru
        _
      %p5411 = scmp.le.s32.totalorder 2, %s26
      // Predicated region
      $region89: #{tpu_custom_call.1} parent=5 // pred_check
        %p5412 = pneg %p5411
      $region90: #{tpu_custom_call.1} parent=5 // pred_check_branch
        %5414 = sbr.rel (%p5412) target = $region92
      $region91: #{tpu_custom_call.1} parent=5 // pred_region
        %s5415 = ssub.s32 %s26, 2
        // Predicated region
        $region93: #{tpu_custom_call.1} parent=91 // pred_check
          %p5416 = pneg %p233
        $region94: #{tpu_custom_call.1} parent=91 // pred_check_branch
          %5418 = sbr.rel (%p5416) target = $region96
        $region95: #{tpu_custom_call.1} parent=91 // pred_region
          %s5419 = sand.u32 %s218, 1
          %s5420 = scalar_lea.sflag [#allocation4], %s5419
          %s5421 = sand.u32 %s218, 1
          %s5422 = smul.addr %s5421, 768
          %s5423 = scalar_lea.vmem [#allocation16], %s5422
          %5424 = dma.done %s5420, 12288
        $region96: #{tpu_custom_call.1} parent=91 // pred_fallthru
          _
      $region92: #{tpu_custom_call.1} parent=5 // pred_fallthru
        _
    $region6: #{tpu_custom_call.1} parent=1 // loop_footer
      %s30 = sadd.s32 1, %s26
    $region7: #{tpu_custom_call.1} parent=1 // loop_footer_branch
      %25 = sbr.rel target = $region3
    $region8: #{tpu_custom_call.1} parent=1 // loop_exit
      _
    %5425 = vsyncpa [#allocation3], 1
    %s5426 = scalar_lea.sflag [#allocation3], 1
    %5427 = vsyncpa %s5426, 1
    %5428 = vsyncpa [#allocation6], 1
    %s5429 = scalar_lea.sflag [#allocation6], 1
    %5430 = vsyncpa %s5429, 1
    %5431 = vsyncpa [#allocation9], 1
    %5432 = vsyncpa [#allocation12], 1
    %5433 = vsyncpa [#allocation15], 1
    %5434 = vsyncpa [#allocation4], 1
    %s5435 = scalar_lea.sflag [#allocation4], 1
    %5436 = vsyncpa %s5435, 1

// kernel: tpu_custom_call.1
$region0: #{tpu_custom_call.1}
  #allocation0 [shape = 'u32[]', space=smem, size = 0x4, offset = 0x4, fixed_abs, tag = 'smem constant byte address 0x4 - core index']
  #allocation1 [shape = 'u32[144,128]{1,0:T(1,128)}', space=vmem, size = 0x12000, scoped, tag = 'internal scratch']
  %s0 = inlined_call_operand.hbm [shape: f32[384,768], index: 0, kind: input, shape index: {}]
  %s1 = inlined_call_operand.hbm [shape: f32[384,256], index: 1, kind: input, shape index: {}]
  %s2 = inlined_call_operand.hbm [shape: bf16[768,256], index: 2, kind: input, shape index: {}]
  %s3 = inlined_call_operand.hbm [shape: f32[1,256], index: 3, kind: input, shape index: {}]
  %s4 = inlined_call_operand.hbm [shape: f32[1,256], index: 4, kind: input, shape index: {}]
  %s5 = inlined_call_operand.hbm [shape: f32[1,256], index: 5, kind: input, shape index: {}]
  %s6 = inlined_call_operand.hbm [shape: bf16[256,1024], index: 6, kind: input, shape index: {}]
  %s7 = inlined_call_operand.hbm [shape: f32[1,1024], index: 7, kind: input, shape index: {}]
  %s8 = inlined_call_operand.hbm [shape: bf16[384,1024], index: 8, kind: output, shape index: {}]
  %s9 = sld [smem:[#allocation0]]
  $region97: #{tpu_custom_call.1} parent=0
    _
  %s11 = ssub.s32 1, %s9
  %s12 = scalar_select 0, %s11, %s9
  $region1: #{tpu_custom_call.1} parent=0
    #allocation2 [shape = 'u8[1179648]{0}', space=vmem, size = 0x120000, scoped, tag = 'input window, operand 0']
    #allocation3 [shape = 's32[2]{0}', space=sflag, size = 0x8, scoped, tag = 'scoped memory for tpu_custom_call.1']
    #allocation4 [shape = 's32[2]{0}', space=sflag, size = 0x8, scoped, tag = 'scoped memory for tpu_custom_call.1']
    #allocation5 [shape = 'u8[393216]{0}', space=vmem, size = 0x60000, scoped, tag = 'input window, operand 1']
    #allocation6 [shape = 's32[2]{0}', space=sflag, size = 0x8, scoped, tag = 'scoped memory for tpu_custom_call.1']
    #allocation7 [shape = 'u8[393216]{0}', space=vmem, size = 0x60000, scoped, tag = 'input window, operand 2, single buffered']
    #allocation8 [shape = 'u8[1024]{0}', space=vmem, size = 0x400, scoped, tag = 'input window, operand 3, single buffered']
    #allocation9 [shape = 's32[1]{0}', space=sflag, size = 0x4, scoped, tag = 'scoped memory for tpu_custom_call.1']
    #allocation10 [shape = 'u8[1024]{0}', space=vmem, size = 0x400, scoped, tag = 'input window, operand 4, single buffered']
    #allocation11 [shape = 'u8[1024]{0}', space=vmem, size = 0x400, scoped, tag = 'input window, operand 5, single buffered']
    #allocation12 [shape = 's32[1]{0}', space=sflag, size = 0x4, scoped, tag = 'scoped memory for tpu_custom_call.1']
    #allocation13 [shape = 'u8[524288]{0}', space=vmem, size = 0x80000, scoped, tag = 'input window, operand 6, single buffered']
    #allocation14 [shape = 'u8[4096]{0}', space=vmem, size = 0x1000, scoped, tag = 'input window, operand 7, single buffered']
    #allocation15 [shape = 's32[1]{0}', space=sflag, size = 0x4, scoped, tag = 'scoped memory for tpu_custom_call.1']
    #allocation16 [shape = 'u8[786432]{0}', space=vmem, size = 0xc0000, scoped, tag = 'output window, operand 0']
    %13 = vsyncpa [#allocation3], 0
    %s14 = scalar_lea.sflag [#allocation3], 1
    %15 = vsyncpa %s14, 0
    %16 = vsyncpa [#allocation6], 0
    %s17 = scalar_lea.sflag [#allocation6], 1
    %18 = vsyncpa %s17, 0
    %19 = vsyncpa [#allocation9], 0
    %20 = vsyncpa [#allocation12], 0
    %21 = vsyncpa [#allocation15], 0
    %22 = vsyncpa [#allocation4], 0
    %s23 = scalar_lea.sflag [#allocation4], 1
    %24 = vsyncpa %s23, 0
    loop: start=0, step=1, limit=4
    $region2: #{tpu_custom_call.1} parent=1 // loop_pre_header
      _
    $region3: #{tpu_custom_call.1} parent=1 // loop_header
      %s26 = sphi 0, %s30
      %p27 = scmp.ge.s32.totalorder %s26, 4
      %s36 = sphi 0, %s38
      %s39 = sphi 0, %s36
      %s40 = sphi 0, %s39
      %s56 = sphi 0, %s40
      %s62 = sphi 0, %s64
      %s65 = sphi 0, %s62
      %s66 = sphi 0, %s65
      %s82 = sphi 0, %s66
      %s86 = sphi 0, %s86
      %s88 = sphi 0, %s86
      %s89 = sphi 0, %s88
      %s103 = sphi 0, %s89
      %s107 = sphi 0, %s107
      %s109 = sphi 0, %s107
      %s110 = sphi 0, %s109
      %s124 = sphi 0, %s110
      %s128 = sphi 0, %s128
      %s130 = sphi 0, %s128
      %s131 = sphi 0, %s130
      %s145 = sphi 0, %s131
      %s149 = sphi 0, %s149
      %s151 = sphi 0, %s149
      %s152 = sphi 0, %s151
      %s166 = sphi 0, %s152
      %s170 = sphi 0, %s170
      %s172 = sphi 0, %s170
      %s173 = sphi 0, %s172
      %s187 = sphi 0, %s173
      %s191 = sphi 0, %s191
      %s193 = sphi 0, %s191
      %s194 = sphi 0, %s193
      %s208 = sphi 0, %s194
      %s214 = sphi 0, %s216
      %s217 = sphi 0, %s214
      %s218 = sphi 0, %s217
      %s234 = sphi 0, %s218
    $region4: #{tpu_custom_call.1} parent=1 // loop_header_branch
      %29 = sbr.rel (%p27) target = $region8
    $region5: #{tpu_custom_call.1} parent=1 // loop_body
      %s31 = ssub.s32 %s26, 1
      %s32 = ssub.s32 %s26, 2
      %s33 = sadd.s32 %s26, 1
      %s34 = ssub.s32 %s26, %s33
      %p35 = scmp.eq.s32.totalorder %s34, 0
      %s37 = sadd.s32 %s36, 1
      %s38 = scalar_select %p35, %s36, %s37
      %p41 = pneg %p35
      %p42 = scmp.eq.s32.totalorder %s26, 1
      %p43 = por %p41, %p42
      %p44 = scmp.ne.s32.totalorder %s36, %s39
      %p45 = scmp.eq.s32.totalorder %s26, 0
      %p46 = por %p44, %p45
      %p47 = scmp.ne.s32.totalorder %s36, %s39
      %p48 = scmp.eq.s32.totalorder %s31, 1
      %p49 = por %p47, %p48
      %p50 = scmp.ne.s32.totalorder %s39, %s40
      %p51 = scmp.eq.s32.totalorder %s31, 0
      %p52 = por %p50, %p51
      %p53 = scmp.ne.s32.totalorder %s39, %s40
      %p54 = scmp.eq.s32.totalorder %s32, 1
      %p55 = por %p53, %p54
      %p57 = scmp.ne.s32.totalorder %s40, %s56
      %p58 = scmp.eq.s32.totalorder %s32, 0
      %p59 = por %p57, %p58
      %s60 = ssub.s32 %s26, %s33
      %p61 = scmp.eq.s32.totalorder %s60, 0
      %s63 = sadd.s32 %s62, 1
      %s64 = scalar_select %p61, %s62, %s63
      %p67 = pneg %p61
      %p68 = scmp.eq.s32.totalorder %s26, 1
      %p69 = por %p67, %p68
      %p70 = scmp.ne.s32.totalorder %s62, %s65
      %p71 = scmp.eq.s32.totalorder %s26, 0
      %p72 = por %p70, %p71
      %p73 = scmp.ne.s32.totalorder %s62, %s65
      %p74 = scmp.eq.s32.totalorder %s31, 1
      %p75 = por %p73, %p74
      %p76 = scmp.ne.s32.totalorder %s65, %s66
      %p77 = scmp.eq.s32.totalorder %s31, 0
      %p78 = por %p76, %p77
      %p79 = scmp.ne.s32.totalorder %s65, %s66
      %p80 = scmp.eq.s32.totalorder %s32, 1
      %p81 = por %p79, %p80
      %p83 = scmp.ne.s32.totalorder %s66, %s82
      %p84 = scmp.eq.s32.totalorder %s32, 0
      %p85 = por %p83, %p84
      %s87 = sadd.s32 %s86, 1
      %p90 = scmp.eq.s32.totalorder %s26, 1
      %p91 = scmp.ne.s32.totalorder %s86, %s88
      %p92 = scmp.eq.s32.totalorder %s26, 0
      %p93 = por %p91, %p92
      %p94 = scmp.ne.s32.totalorder %s86, %s88
      %p95 = scmp.eq.s32.totalorder %s31, 1
      %p96 = por %p94, %p95
      %p97 = scmp.ne.s32.totalorder %s88, %s89
      %p98 = scmp.eq.s32.totalorder %s31, 0
      %p99 = por %p97, %p98
      %p100 = scmp.ne.s32.totalorder %s88, %s89
      %p101 = scmp.eq.s32.totalorder %s32, 1
      %p102 = por %p100, %p101
      %p104 = scmp.ne.s32.totalorder %s89, %s103
      %p105 = scmp.eq.s32.totalorder %s32, 0
      %p106 = por %p104, %p105
      %s108 = sadd.s32 %s107, 1
      %p111 = scmp.eq.s32.totalorder %s26, 1
      %p112 = scmp.ne.s32.totalorder %s107, %s109
      %p113 = scmp.eq.s32.totalorder %s26, 0
      %p114 = por %p112, %p113
      %p115 = scmp.ne.s32.totalorder %s107, %s109
      %p116 = scmp.eq.s32.totalorder %s31, 1
      %p117 = por %p115, %p116
      %p118 = scmp.ne.s32.totalorder %s109, %s110
      %p119 = scmp.eq.s32.totalorder %s31, 0
      %p120 = por %p118, %p119
      %p121 = scmp.ne.s32.totalorder %s109, %s110
      %p122 = scmp.eq.s32.totalorder %s32, 1
      %p123 = por %p121, %p122
      %p125 = scmp.ne.s32.totalorder %s110, %s124
      %p126 = scmp.eq.s32.totalorder %s32, 0
      %p127 = por %p125, %p126
      %s129 = sadd.s32 %s128, 1
      %p132 = scmp.eq.s32.totalorder %s26, 1
      %p133 = scmp.ne.s32.totalorder %s128, %s130
      %p134 = scmp.eq.s32.totalorder %s26, 0
      %p135 = por %p133, %p134
      %p136 = scmp.ne.s32.totalorder %s128, %s130
      %p137 = scmp.eq.s32.totalorder %s31, 1
      %p138 = por %p136, %p137
      %p139 = scmp.ne.s32.totalorder %s130, %s131
      %p140 = scmp.eq.s32.totalorder %s31, 0
      %p141 = por %p139, %p140
      %p142 = scmp.ne.s32.totalorder %s130, %s131
      %p143 = scmp.eq.s32.totalorder %s32, 1
      %p144 = por %p142, %p143
      %p146 = scmp.ne.s32.totalorder %s131, %s145
      %p147 = scmp.eq.s32.totalorder %s32, 0
      %p148 = por %p146, %p147
      %s150 = sadd.s32 %s149, 1
      %p153 = scmp.eq.s32.totalorder %s26, 1
      %p154 = scmp.ne.s32.totalorder %s149, %s151
      %p155 = scmp.eq.s32.totalorder %s26, 0
      %p156 = por %p154, %p155
      %p157 = scmp.ne.s32.totalorder %s149, %s151
      %p158 = scmp.eq.s32.totalorder %s31, 1
      %p159 = por %p157, %p158
      %p160 = scmp.ne.s32.totalorder %s151, %s152
      %p161 = scmp.eq.s32.totalorder %s31, 0
      %p162 = por %p160, %p161
      %p163 = scmp.ne.s32.totalorder %s151, %s152
      %p164 = scmp.eq.s32.totalorder %s32, 1
      %p165 = por %p163, %p164
      %p167 = scmp.ne.s32.totalorder %s152, %s166
      %p168 = scmp.eq.s32.totalorder %s32, 0
      %p169 = por %p167, %p168
      %s171 = sadd.s32 %s170, 1
      %p174 = scmp.eq.s32.totalorder %s26, 1
      %p175 = scmp.ne.s32.totalorder %s170, %s172
      %p176 = scmp.eq.s32.totalorder %s26, 0
      %p177 = por %p175, %p176
      %p178 = scmp.ne.s32.totalorder %s170, %s172
      %p179 = scmp.eq.s32.totalorder %s31, 1
      %p180 = por %p178, %p179
      %p181 = scmp.ne.s32.totalorder %s172, %s173
      %p182 = scmp.eq.s32.totalorder %s31, 0
      %p183 = por %p181, %p182
      %p184 = scmp.ne.s32.totalorder %s172, %s173
      %p185 = scmp.eq.s32.totalorder %s32, 1
      %p186 = por %p184, %p185
      %p188 = scmp.ne.s32.totalorder %s173, %s187
      %p189 = scmp.eq.s32.totalorder %s32, 0
      %p190 = por %p188, %p189
      %s192 = sadd.s32 %s191, 1
      %p195 = scmp.eq.s32.totalorder %s26, 1
      %p196 = scmp.ne.s32.totalorder %s191, %s193
      %p197 = scmp.eq.s32.totalorder %s26, 0
      %p198 = por %p196, %p197
      %p199 = scmp.ne.s32.totalorder %s191, %s193
      %p200 = scmp.eq.s32.totalorder %s31, 1
      %p201 = por %p199, %p200
      %p202 = scmp.ne.s32.totalorder %s193, %s194
      %p203 = scmp.eq.s32.totalorder %s31, 0
      %p204 = por %p202, %p203
      %p205 = scmp.ne.s32.totalorder %s193, %s194
      %p206 = scmp.eq.s32.totalorder %s32, 1
      %p207 = por %p205, %p206
      %p209 = scmp.ne.s32.totalorder %s194, %s208
      %p210 = scmp.eq.s32.totalorder %s32, 0
      %p211 = por %p209, %p210
      %s212 = ssub.s32 %s26, %s33
      %p213 = scmp.eq.s32.totalorder %s212, 0
      %s215 = sadd.s32 %s214, 1
      %s216 = scalar_select %p213, %s214, %s215
      %p219 = pneg %p213
      %p220 = scmp.eq.s32.totalorder %s26, 1
      %p221 = por %p219, %p220
      %p222 = scmp.ne.s32.totalorder %s214, %s217
      %p223 = scmp.eq.s32.totalorder %s26, 0
      %p224 = por %p222, %p223
      %p225 = scmp.ne.s32.totalorder %s214, %s217
      %p226 = scmp.eq.s32.totalorder %s31, 1
      %p227 = por %p225, %p226
      %p228 = scmp.ne.s32.totalorder %s217, %s218
      %p229 = scmp.eq.s32.totalorder %s31, 0
      %p230 = por %p228, %p229
      %p231 = scmp.ne.s32.totalorder %s217, %s218
      %p232 = scmp.eq.s32.totalorder %s32, 1
      %p233 = por %p231, %p232
      %p235 = scmp.ne.s32.totalorder %s218, %s234
      %p236 = scmp.eq.s32.totalorder %s32, 0
      %p237 = por %p235, %p236
      %p238 = scmp.le.s32.totalorder 1, %s26
      %p239 = scmp.lt.s32.totalorder %s26, 3
      %p240 = pnand %p238, %p239
      %p241 = pneg %p240
      // Predicated region
      $region9: #{tpu_custom_call.1} parent=5 // pred_check
        _
      $region10: #{tpu_custom_call.1} parent=5 // pred_check_branch
        %243 = sbr.rel (%p240) target = $region12
      $region11: #{tpu_custom_call.1} parent=5 // pred_region
        %s244 = ssub.s32 %s26, 1
        // Predicated region
        $region13: #{tpu_custom_call.1} parent=11 // pred_check
          %p245 = pneg %p99
        $region14: #{tpu_custom_call.1} parent=11 // pred_check_branch
          %247 = sbr.rel (%p245) target = $region16
        $region15: #{tpu_custom_call.1} parent=11 // pred_region
          %s249 = ssub.s32 12288, 12288
          %250 = vsyncadd [#allocation6], %s249
          %s251 = sshll.u32 [#allocation7], 4
          %s252 = int_to_ptr.vmem [resolvable:$true] %s251
          %257 = dma.hbm_to_vmem [thread:$0]  %s2, 12288, %s252, [#allocation6], 128, 128, 8
        $region16: #{tpu_custom_call.1} parent=11 // pred_fallthru
          _
        // Predicated region
        $region17: #{tpu_custom_call.1} parent=11 // pred_check
          %p258 = pneg %p120
        $region18: #{tpu_custom_call.1} parent=11 // pred_check_branch
          %260 = sbr.rel (%p258) target = $region20
        $region19: #{tpu_custom_call.1} parent=11 // pred_region
          %s262 = ssub.s32 32, 32
          %263 = vsyncadd [#allocation9], %s262
          %s265 = sshll.u32 [#allocation8], 4
          %s266 = int_to_ptr.vmem [resolvable:$true] %s265
          %268 = dma.hbm_to_vmem [thread:$0]  %s3, 32, %s266, [#allocation9]
        $region20: #{tpu_custom_call.1} parent=11 // pred_fallthru
          _
        // Predicated region
        $region21: #{tpu_custom_call.1} parent=11 // pred_check
          %p269 = pneg %p141
        $region22: #{tpu_custom_call.1} parent=11 // pred_check_branch
          %271 = sbr.rel (%p269) target = $region24
        $region23: #{tpu_custom_call.1} parent=11 // pred_region
          %s273 = ssub.s32 32, 32
          %274 = vsyncadd [#allocation9], %s273
          %s276 = sshll.u32 [#allocation10], 4
          %s277 = int_to_ptr.vmem [resolvable:$true] %s276
          %279 = dma.hbm_to_vmem [thread:$0]  %s4, 32, %s277, [#allocation9]
        $region24: #{tpu_custom_call.1} parent=11 // pred_fallthru
          _
        // Predicated region
        $region25: #{tpu_custom_call.1} parent=11 // pred_check
          %p280 = pneg %p162
        $region26: #{tpu_custom_call.1} parent=11 // pred_check_branch
          %282 = sbr.rel (%p280) target = $region28
        $region27: #{tpu_custom_call.1} parent=11 // pred_region
          %s284 = ssub.s32 32, 32
          %285 = vsyncadd [#allocation12], %s284
          %s287 = sshll.u32 [#allocation11], 4
          %s288 = int_to_ptr.vmem [resolvable:$true] %s287
          %290 = dma.hbm_to_vmem [thread:$0]  %s5, 32, %s288, [#allocation12]
        $region28: #{tpu_custom_call.1} parent=11 // pred_fallthru
          _
        // Predicated region
        $region29: #{tpu_custom_call.1} parent=11 // pred_check
          %p291 = pneg %p183
        $region30: #{tpu_custom_call.1} parent=11 // pred_check_branch
          %293 = sbr.rel (%p291) target = $region32
        $region31: #{tpu_custom_call.1} parent=11 // pred_region
          %s295 = ssub.s32 16384, 16384
          %296 = vsyncadd [#allocation12], %s295
          %s297 = sshll.u32 [#allocation13], 4
          %s298 = int_to_ptr.vmem [resolvable:$true] %s297
          %303 = dma.hbm_to_vmem [thread:$0]  %s6, 16384, %s298, [#allocation12], 512, 512, 32
        $region32: #{tpu_custom_call.1} parent=11 // pred_fallthru
          _
        // Predicated region
        $region33: #{tpu_custom_call.1} parent=11 // pred_check
          %p304 = pneg %p204
        $region34: #{tpu_custom_call.1} parent=11 // pred_check_branch
          %306 = sbr.rel (%p304) target = $region36
        $region35: #{tpu_custom_call.1} parent=11 // pred_region
          %s308 = ssub.s32 128, 128
          %309 = vsyncadd [#allocation15], %s308
          %s311 = sshll.u32 [#allocation14], 4
          %s312 = int_to_ptr.vmem [resolvable:$true] %s311
          %314 = dma.hbm_to_vmem [thread:$0]  %s7, 128, %s312, [#allocation15]
        $region36: #{tpu_custom_call.1} parent=11 // pred_fallthru
          _
      $region12: #{tpu_custom_call.1} parent=5 // pred_fallthru
        _
      %p315 = scmp.lt.s32.totalorder %s26, 2
      // Predicated region
      $region37: #{tpu_custom_call.1} parent=5 // pred_check
        %p316 = pneg %p315
      $region38: #{tpu_custom_call.1} parent=5 // pred_check_branch
        %318 = sbr.rel (%p316) target = $region40
      $region39: #{tpu_custom_call.1} parent=5 // pred_region
        // Predicated region
        $region41: #{tpu_custom_call.1} parent=39 // pred_check
          %p319 = pneg %p46
        $region42: #{tpu_custom_call.1} parent=39 // pred_check_branch
          %321 = sbr.rel (%p319) target = $region44
        $region43: #{tpu_custom_call.1} parent=39 // pred_region
          %s322 = sand.u32 %s36, 1
          %s323 = scalar_lea.sflag [#allocation3], %s322
          %s324 = sand.u32 %s36, 1
          %s325 = smul.addr %s324, 1152
          %s326 = scalar_lea.vmem [#allocation2], %s325
          %s327 = smul.u32 24, %s26
          %s329 = ssub.s32 18432, 18432
          %330 = vsyncadd %s323, %s329
          %s331 = smul.addr %s327, 6
          %s332 = smul.addr %s331, 128
          %s333 = scalar_lea.hbm %s0, %s332
          %s334 = sshll.u32 %s326, 4
          %s335 = int_to_ptr.vmem [resolvable:$true] %s334
          %340 = dma.hbm_to_vmem [thread:$0]  %s333, 18432, %s335, %s323, 768, 768, 48
        $region44: #{tpu_custom_call.1} parent=39 // pred_fallthru
          _
        // Predicated region
        $region45: #{tpu_custom_call.1} parent=39 // pred_check
          %p341 = pneg %p72
        $region46: #{tpu_custom_call.1} parent=39 // pred_check_branch
          %343 = sbr.rel (%p341) target = $region48
        $region47: #{tpu_custom_call.1} parent=39 // pred_region
          %s344 = sand.u32 %s26, 1
          %s345 = scalar_lea.sflag [#allocation6], %s344
          %s346 = sand.u32 %s62, 1
          %s347 = smul.addr %s346, 384
          %s348 = scalar_lea.vmem [#allocation5], %s347
          %s349 = smul.u32 24, %s26
          %s351 = ssub.s32 6144, 6144
          %352 = vsyncadd %s345, %s351
          %s353 = smul.addr %s349, 2
          %s354 = smul.addr %s353, 128
          %s355 = scalar_lea.hbm %s1, %s354
          %s356 = sshll.u32 %s348, 4
          %s357 = int_to_ptr.vmem [resolvable:$true] %s356
          %362 = dma.hbm_to_vmem [thread:$0]  %s355, 6144, %s357, %s345, 256, 256, 16
        $region48: #{tpu_custom_call.1} parent=39 // pred_fallthru
          _
      $region40: #{tpu_custom_call.1} parent=5 // pred_fallthru
        _
      %p363 = scmp.le.s32.totalorder 1, %s26
      %p364 = scmp.lt.s32.totalorder %s26, 3
      %p365 = pnand %p363, %p364
      %p366 = pneg %p365
      // Predicated region
      $region49: #{tpu_custom_call.1} parent=5 // pred_check
        _
      $region50: #{tpu_custom_call.1} parent=5 // pred_check_branch
        %368 = sbr.rel (%p365) target = $region52
      $region51: #{tpu_custom_call.1} parent=5 // pred_region
        %s369 = ssub.s32 %s26, 1
        %s370 = sand.u32 %s39, 1
        %s371 = scalar_lea.sflag [#allocation3], %s370
        %s372 = sand.u32 %s39, 1
        %s373 = smul.addr %s372, 1152
        %s374 = scalar_lea.vmem [#allocation2], %s373
        // Predicated region
        $region53: #{tpu_custom_call.1} parent=51 // pred_check
          %p375 = pneg %p52
        $region54: #{tpu_custom_call.1} parent=51 // pred_check_branch
          %377 = sbr.rel (%p375) target = $region56
        $region55: #{tpu_custom_call.1} parent=51 // pred_region
          %378 = dma.done %s371, 18432
        $region56: #{tpu_custom_call.1} parent=51 // pred_fallthru
          _
        %s379 = sand.u32 %s31, 1
        %s380 = scalar_lea.sflag [#allocation6], %s379
        %s381 = sand.u32 %s65, 1
        %s382 = smul.addr %s381, 384
        %s383 = scalar_lea.vmem [#allocation5], %s382
        // Predicated region
        $region57: #{tpu_custom_call.1} parent=51 // pred_check
          %p384 = pneg %p78
        $region58: #{tpu_custom_call.1} parent=51 // pred_check_branch
          %386 = sbr.rel (%p384) target = $region60
        $region59: #{tpu_custom_call.1} parent=51 // pred_region
          %387 = dma.done %s380, 6144
        $region60: #{tpu_custom_call.1} parent=51 // pred_fallthru
          _
        // Predicated region
        $region61: #{tpu_custom_call.1} parent=51 // pred_check
          %p388 = pneg %p99
        $region62: #{tpu_custom_call.1} parent=51 // pred_check_branch
          %390 = sbr.rel (%p388) target = $region64
        $region63: #{tpu_custom_call.1} parent=51 // pred_region
          %391 = dma.done [#allocation6], 12288
        $region64: #{tpu_custom_call.1} parent=51 // pred_fallthru
          _
        // Predicated region
        $region65: #{tpu_custom_call.1} parent=51 // pred_check
          %p392 = pneg %p120
        $region66: #{tpu_custom_call.1} parent=51 // pred_check_branch
          %394 = sbr.rel (%p392) target = $region68
        $region67: #{tpu_custom_call.1} parent=51 // pred_region
          %395 = dma.done [#allocation9], 32
        $region68: #{tpu_custom_call.1} parent=51 // pred_fallthru
          _
        // Predicated region
        $region69: #{tpu_custom_call.1} parent=51 // pred_check
          %p396 = pneg %p141
        $region70: #{tpu_custom_call.1} parent=51 // pred_check_branch
          %398 = sbr.rel (%p396) target = $region72
        $region71: #{tpu_custom_call.1} parent=51 // pred_region
          %399 = dma.done [#allocation9], 32
        $region72: #{tpu_custom_call.1} parent=51 // pred_fallthru
          _
        // Predicated region
        $region73: #{tpu_custom_call.1} parent=51 // pred_check
          %p400 = pneg %p162
        $region74: #{tpu_custom_call.1} parent=51 // pred_check_branch
          %402 = sbr.rel (%p400) target = $region76
        $region75: #{tpu_custom_call.1} parent=51 // pred_region
          %403 = dma.done [#allocation12], 32
        $region76: #{tpu_custom_call.1} parent=51 // pred_fallthru
          _
        // Predicated region
        $region77: #{tpu_custom_call.1} parent=51 // pred_check
          %p404 = pneg %p183
        $region78: #{tpu_custom_call.1} parent=51 // pred_check_branch
          %406 = sbr.rel (%p404) target = $region80
        $region79: #{tpu_custom_call.1} parent=51 // pred_region
          %407 = dma.done [#allocation12], 16384
        $region80: #{tpu_custom_call.1} parent=51 // pred_fallthru
          _
        // Predicated region
        $region81: #{tpu_custom_call.1} parent=51 // pred_check
          %p408 = pneg %p204
        $region82: #{tpu_custom_call.1} parent=51 // pred_check_branch
          %410 = sbr.rel (%p408) target = $region84
        $region83: #{tpu_custom_call.1} parent=51 // pred_region
          %411 = dma.done [#allocation15], 128
        $region84: #{tpu_custom_call.1} parent=51 // pred_fallthru
          _
        %s412 = sand.u32 %s39, 1
        %s413 = scalar_lea.sflag [#allocation3], %s412
        %s414 = sand.u32 %s39, 1
        %s415 = smul.addr %s414, 1152
        %s416 = scalar_lea.vmem [#allocation2], %s415
        %p417 = pneg %p52
        %p418 = pneg %p49
        %s419 = sand.u32 %s31, 1
        %s420 = scalar_lea.sflag [#allocation6], %s419
        %s421 = sand.u32 %s65, 1
        %s422 = smul.addr %s421, 384
        %s423 = scalar_lea.vmem [#allocation5], %s422
        %p424 = pneg %p78
        %p425 = pneg %p75
        %p426 = pneg %p99
        %p427 = pneg %p96
        %p428 = pneg %p120
        %p429 = pneg %p117
        %p430 = pneg %p141
        %p431 = pneg %p138
        %p432 = pneg %p162
        %p433 = pneg %p159
        %p434 = pneg %p183
        %p435 = pneg %p180
        %p436 = pneg %p204
        %p437 = pneg %p201
        %p438 = pneg %p230
        %p439 = pneg %p227
        %s440 = sand.u32 %s217, 1
        %s441 = scalar_lea.sflag [#allocation4], %s440
        %s442 = sand.u32 %s217, 1
        %s443 = smul.addr %s442, 768
        %s444 = scalar_lea.vmem [#allocation16], %s443
        %s445 = smul.u32 24, %s31
        %s446 = smul.u32 24, %s31
        %s447 = smul.u32 24, %s31
        %v448 = vld [vmem:[%s374] sm:$0xff]
        %v449 = vld [vmem:[%s374 + $0x8] sm:$0xff]
        %v450 = vld [vmem:[%s374 + $0x10] sm:$0xff]
        %v451 = vld [vmem:[%s374 + $0x18] sm:$0xff]
        %v452 = vld [vmem:[%s374 + $0x20] sm:$0xff]
        %v453 = vld [vmem:[%s374 + $0x28] sm:$0xff]
        %v454 = vld [vmem:[%s374 + $0x30] sm:$0xff]
        %v455 = vld [vmem:[%s374 + $0x38] sm:$0xff]
        %v456 = vld [vmem:[%s374 + $0x40] sm:$0xff]
        %v457 = vld [vmem:[%s374 + $0x48] sm:$0xff]
        %v458 = vld [vmem:[%s374 + $0x50] sm:$0xff]
        %v459 = vld [vmem:[%s374 + $0x58] sm:$0xff]
        %v460 = vld [vmem:[%s374 + $0x60] sm:$0xff]
        %v461 = vld [vmem:[%s374 + $0x68] sm:$0xff]
        %v462 = vld [vmem:[%s374 + $0x70] sm:$0xff]
        %v463 = vld [vmem:[%s374 + $0x78] sm:$0xff]
        %v464 = vld [vmem:[%s374 + $0x80] sm:$0xff]
        %v465 = vld [vmem:[%s374 + $0x88] sm:$0xff]
        %v466 = vld [vmem:[%s374 + $0x90] sm:$0xff]
        %v467 = vld [vmem:[%s374 + $0x98] sm:$0xff]
        %v468 = vld [vmem:[%s374 + $0xa0] sm:$0xff]
        %v469 = vld [vmem:[%s374 + $0xa8] sm:$0xff]
        %v470 = vld [vmem:[%s374 + $0xb0] sm:$0xff]
        %v471 = vld [vmem:[%s374 + $0xb8] sm:$0xff]
        %v472 = vld [vmem:[%s374 + $0xc0] sm:$0xff]
        %v473 = vld [vmem:[%s374 + $0xc8] sm:$0xff]
        %v474 = vld [vmem:[%s374 + $0xd0] sm:$0xff]
        %v475 = vld [vmem:[%s374 + $0xd8] sm:$0xff]
        %v476 = vld [vmem:[%s374 + $0xe0] sm:$0xff]
        %v477 = vld [vmem:[%s374 + $0xe8] sm:$0xff]
        %v478 = vld [vmem:[%s374 + $0xf0] sm:$0xff]
        %v479 = vld [vmem:[%s374 + $0xf8] sm:$0xff]
        %v480 = vld [vmem:[%s374 + $0x100] sm:$0xff]
        %v481 = vld [vmem:[%s374 + $0x108] sm:$0xff]
        %v482 = vld [vmem:[%s374 + $0x110] sm:$0xff]
        %v483 = vld [vmem:[%s374 + $0x118] sm:$0xff]
        %v484 = vld [vmem:[%s374 + $0x120] sm:$0xff]
        %v485 = vld [vmem:[%s374 + $0x128] sm:$0xff]
        %v486 = vld [vmem:[%s374 + $0x130] sm:$0xff]
        %v487 = vld [vmem:[%s374 + $0x138] sm:$0xff]
        %v488 = vld [vmem:[%s374 + $0x140] sm:$0xff]
        %v489 = vld [vmem:[%s374 + $0x148] sm:$0xff]
        %v490 = vld [vmem:[%s374 + $0x150] sm:$0xff]
        %v491 = vld [vmem:[%s374 + $0x158] sm:$0xff]
        %v492 = vld [vmem:[%s374 + $0x160] sm:$0xff]
        %v493 = vld [vmem:[%s374 + $0x168] sm:$0xff]
        %v494 = vld [vmem:[%s374 + $0x170] sm:$0xff]
        %v495 = vld [vmem:[%s374 + $0x178] sm:$0xff]
        %v496 = vld [vmem:[%s374 + $0x180] sm:$0xff]
        %v497 = vld [vmem:[%s374 + $0x188] sm:$0xff]
        %v498 = vld [vmem:[%s374 + $0x190] sm:$0xff]
        %v499 = vld [vmem:[%s374 + $0x198] sm:$0xff]
        %v500 = vld [vmem:[%s374 + $0x1a0] sm:$0xff]
        %v501 = vld [vmem:[%s374 + $0x1a8] sm:$0xff]
        %v502 = vld [vmem:[%s374 + $0x1b0] sm:$0xff]
        %v503 = vld [vmem:[%s374 + $0x1b8] sm:$0xff]
        %v504 = vld [vmem:[%s374 + $0x1c0] sm:$0xff]
        %v505 = vld [vmem:[%s374 + $0x1c8] sm:$0xff]
        %v506 = vld [vmem:[%s374 + $0x1d0] sm:$0xff]
        %v507 = vld [vmem:[%s374 + $0x1d8] sm:$0xff]
        %v508 = vld [vmem:[%s374 + $0x1e0] sm:$0xff]
        %v509 = vld [vmem:[%s374 + $0x1e8] sm:$0xff]
        %v510 = vld [vmem:[%s374 + $0x1f0] sm:$0xff]
        %v511 = vld [vmem:[%s374 + $0x1f8] sm:$0xff]
        %v512 = vld [vmem:[%s374 + $0x200] sm:$0xff]
        %v513 = vld [vmem:[%s374 + $0x208] sm:$0xff]
        %v514 = vld [vmem:[%s374 + $0x210] sm:$0xff]
        %v515 = vld [vmem:[%s374 + $0x218] sm:$0xff]
        %v516 = vld [vmem:[%s374 + $0x220] sm:$0xff]
        %v517 = vld [vmem:[%s374 + $0x228] sm:$0xff]
        %v518 = vld [vmem:[%s374 + $0x230] sm:$0xff]
        %v519 = vld [vmem:[%s374 + $0x238] sm:$0xff]
        %v520 = vld [vmem:[%s374 + $0x240] sm:$0xff]
        %v521 = vld [vmem:[%s374 + $0x248] sm:$0xff]
        %v522 = vld [vmem:[%s374 + $0x250] sm:$0xff]
        %v523 = vld [vmem:[%s374 + $0x258] sm:$0xff]
        %v524 = vld [vmem:[%s374 + $0x260] sm:$0xff]
        %v525 = vld [vmem:[%s374 + $0x268] sm:$0xff]
        %v526 = vld [vmem:[%s374 + $0x270] sm:$0xff]
        %v527 = vld [vmem:[%s374 + $0x278] sm:$0xff]
        %v528 = vld [vmem:[%s374 + $0x280] sm:$0xff]
        %v529 = vld [vmem:[%s374 + $0x288] sm:$0xff]
        %v530 = vld [vmem:[%s374 + $0x290] sm:$0xff]
        %v531 = vld [vmem:[%s374 + $0x298] sm:$0xff]
        %v532 = vld [vmem:[%s374 + $0x2a0] sm:$0xff]
        %v533 = vld [vmem:[%s374 + $0x2a8] sm:$0xff]
        %v534 = vld [vmem:[%s374 + $0x2b0] sm:$0xff]
        %v535 = vld [vmem:[%s374 + $0x2b8] sm:$0xff]
        %v536 = vld [vmem:[%s374 + $0x2c0] sm:$0xff]
        %v537 = vld [vmem:[%s374 + $0x2c8] sm:$0xff]
        %v538 = vld [vmem:[%s374 + $0x2d0] sm:$0xff]
        %v539 = vld [vmem:[%s374 + $0x2d8] sm:$0xff]
        %v540 = vld [vmem:[%s374 + $0x2e0] sm:$0xff]
        %v541 = vld [vmem:[%s374 + $0x2e8] sm:$0xff]
        %v542 = vld [vmem:[%s374 + $0x2f0] sm:$0xff]
        %v543 = vld [vmem:[%s374 + $0x2f8] sm:$0xff]
        %v544 = vld [vmem:[%s374 + $0x300] sm:$0xff]
        %v545 = vld [vmem:[%s374 + $0x308] sm:$0xff]
        %v546 = vld [vmem:[%s374 + $0x310] sm:$0xff]
        %v547 = vld [vmem:[%s374 + $0x318] sm:$0xff]
        %v548 = vld [vmem:[%s374 + $0x320] sm:$0xff]
        %v549 = vld [vmem:[%s374 + $0x328] sm:$0xff]
        %v550 = vld [vmem:[%s374 + $0x330] sm:$0xff]
        %v551 = vld [vmem:[%s374 + $0x338] sm:$0xff]
        %v552 = vld [vmem:[%s374 + $0x340] sm:$0xff]
        %v553 = vld [vmem:[%s374 + $0x348] sm:$0xff]
        %v554 = vld [vmem:[%s374 + $0x350] sm:$0xff]
        %v555 = vld [vmem:[%s374 + $0x358] sm:$0xff]
        %v556 = vld [vmem:[%s374 + $0x360] sm:$0xff]
        %v557 = vld [vmem:[%s374 + $0x368] sm:$0xff]
        %v558 = vld [vmem:[%s374 + $0x370] sm:$0xff]
        %v559 = vld [vmem:[%s374 + $0x378] sm:$0xff]
        %v560 = vld [vmem:[%s374 + $0x380] sm:$0xff]
        %v561 = vld [vmem:[%s374 + $0x388] sm:$0xff]
        %v562 = vld [vmem:[%s374 + $0x390] sm:$0xff]
        %v563 = vld [vmem:[%s374 + $0x398] sm:$0xff]
        %v564 = vld [vmem:[%s374 + $0x3a0] sm:$0xff]
        %v565 = vld [vmem:[%s374 + $0x3a8] sm:$0xff]
        %v566 = vld [vmem:[%s374 + $0x3b0] sm:$0xff]
        %v567 = vld [vmem:[%s374 + $0x3b8] sm:$0xff]
        %v568 = vld [vmem:[%s374 + $0x3c0] sm:$0xff]
        %v569 = vld [vmem:[%s374 + $0x3c8] sm:$0xff]
        %v570 = vld [vmem:[%s374 + $0x3d0] sm:$0xff]
        %v571 = vld [vmem:[%s374 + $0x3d8] sm:$0xff]
        %v572 = vld [vmem:[%s374 + $0x3e0] sm:$0xff]
        %v573 = vld [vmem:[%s374 + $0x3e8] sm:$0xff]
        %v574 = vld [vmem:[%s374 + $0x3f0] sm:$0xff]
        %v575 = vld [vmem:[%s374 + $0x3f8] sm:$0xff]
        %v576 = vld [vmem:[%s374 + $0x400] sm:$0xff]
        %v577 = vld [vmem:[%s374 + $0x408] sm:$0xff]
        %v578 = vld [vmem:[%s374 + $0x410] sm:$0xff]
        %v579 = vld [vmem:[%s374 + $0x418] sm:$0xff]
        %v580 = vld [vmem:[%s374 + $0x420] sm:$0xff]
        %v581 = vld [vmem:[%s374 + $0x428] sm:$0xff]
        %v582 = vld [vmem:[%s374 + $0x430] sm:$0xff]
        %v583 = vld [vmem:[%s374 + $0x438] sm:$0xff]
        %v584 = vld [vmem:[%s374 + $0x440] sm:$0xff]
        %v585 = vld [vmem:[%s374 + $0x448] sm:$0xff]
        %v586 = vld [vmem:[%s374 + $0x450] sm:$0xff]
        %v587 = vld [vmem:[%s374 + $0x458] sm:$0xff]
        %v588 = vld [vmem:[%s374 + $0x460] sm:$0xff]
        %v589 = vld [vmem:[%s374 + $0x468] sm:$0xff]
        %v590 = vld [vmem:[%s374 + $0x470] sm:$0xff]
        %v591 = vld [vmem:[%s374 + $0x478] sm:$0xff]
        %v592 = vpack.c.bf16 %v454, %v448
        %v593 = vpack.c.bf16 %v455, %v449
        %v594 = vpack.c.bf16 %v456, %v450
        %v595 = vpack.c.bf16 %v457, %v451
        %v596 = vpack.c.bf16 %v458, %v452
        %v597 = vpack.c.bf16 %v459, %v453
        %v598 = vpack.c.bf16 %v466, %v460
        %v599 = vpack.c.bf16 %v467, %v461
        %v600 = vpack.c.bf16 %v468, %v462
        %v601 = vpack.c.bf16 %v469, %v463
        %v602 = vpack.c.bf16 %v470, %v464
        %v603 = vpack.c.bf16 %v471, %v465
        %v604 = vpack.c.bf16 %v478, %v472
        %v605 = vpack.c.bf16 %v479, %v473
        %v606 = vpack.c.bf16 %v480, %v474
        %v607 = vpack.c.bf16 %v481, %v475
        %v608 = vpack.c.bf16 %v482, %v476
        %v609 = vpack.c.bf16 %v483, %v477
        %v610 = vpack.c.bf16 %v490, %v484
        %v611 = vpack.c.bf16 %v491, %v485
        %v612 = vpack.c.bf16 %v492, %v486
        %v613 = vpack.c.bf16 %v493, %v487
        %v614 = vpack.c.bf16 %v494, %v488
        %v615 = vpack.c.bf16 %v495, %v489
        %v616 = vpack.c.bf16 %v502, %v496
        %v617 = vpack.c.bf16 %v503, %v497
        %v618 = vpack.c.bf16 %v504, %v498
        %v619 = vpack.c.bf16 %v505, %v499
        %v620 = vpack.c.bf16 %v506, %v500
        %v621 = vpack.c.bf16 %v507, %v501
        %v622 = vpack.c.bf16 %v514, %v508
        %v623 = vpack.c.bf16 %v515, %v509
        %v624 = vpack.c.bf16 %v516, %v510
        %v625 = vpack.c.bf16 %v517, %v511
        %v626 = vpack.c.bf16 %v518, %v512
        %v627 = vpack.c.bf16 %v519, %v513
        %v628 = vpack.c.bf16 %v526, %v520
        %v629 = vpack.c.bf16 %v527, %v521
        %v630 = vpack.c.bf16 %v528, %v522
        %v631 = vpack.c.bf16 %v529, %v523
        %v632 = vpack.c.bf16 %v530, %v524
        %v633 = vpack.c.bf16 %v531, %v525
        %v634 = vpack.c.bf16 %v538, %v532
        %v635 = vpack.c.bf16 %v539, %v533
        %v636 = vpack.c.bf16 %v540, %v534
        %v637 = vpack.c.bf16 %v541, %v535
        %v638 = vpack.c.bf16 %v542, %v536
        %v639 = vpack.c.bf16 %v543, %v537
        %v640 = vpack.c.bf16 %v550, %v544
        %v641 = vpack.c.bf16 %v551, %v545
        %v642 = vpack.c.bf16 %v552, %v546
        %v643 = vpack.c.bf16 %v553, %v547
        %v644 = vpack.c.bf16 %v554, %v548
        %v645 = vpack.c.bf16 %v555, %v549
        %v646 = vpack.c.bf16 %v562, %v556
        %v647 = vpack.c.bf16 %v563, %v557
        %v648 = vpack.c.bf16 %v564, %v558
        %v649 = vpack.c.bf16 %v565, %v559
        %v650 = vpack.c.bf16 %v566, %v560
        %v651 = vpack.c.bf16 %v567, %v561
        %v652 = vpack.c.bf16 %v574, %v568
        %v653 = vpack.c.bf16 %v575, %v569
        %v654 = vpack.c.bf16 %v576, %v570
        %v655 = vpack.c.bf16 %v577, %v571
        %v656 = vpack.c.bf16 %v578, %v572
        %v657 = vpack.c.bf16 %v579, %v573
        %v658 = vpack.c.bf16 %v586, %v580
        %v659 = vpack.c.bf16 %v587, %v581
        %v660 = vpack.c.bf16 %v588, %v582
        %v661 = vpack.c.bf16 %v589, %v583
        %v662 = vpack.c.bf16 %v590, %v584
        %v663 = vpack.c.bf16 %v591, %v585
        %v664 = vld [vmem:[#allocation7] sm:$0xff]
        %v665 = vld [vmem:[#allocation7 + $0x8] sm:$0xff]
        %v666 = vld [vmem:[#allocation7 + $0x10] sm:$0xff]
        %v667 = vld [vmem:[#allocation7 + $0x18] sm:$0xff]
        %v668 = vld [vmem:[#allocation7 + $0x20] sm:$0xff]
        %v669 = vld [vmem:[#allocation7 + $0x28] sm:$0xff]
        %v670 = vld [vmem:[#allocation7 + $0x30] sm:$0xff]
        %v671 = vld [vmem:[#allocation7 + $0x38] sm:$0xff]
        %v672 = vld [vmem:[#allocation7 + $0x40] sm:$0xff]
        %v673 = vld [vmem:[#allocation7 + $0x48] sm:$0xff]
        %v674 = vld [vmem:[#allocation7 + $0x50] sm:$0xff]
        %v675 = vld [vmem:[#allocation7 + $0x58] sm:$0xff]
        %v676 = vld [vmem:[#allocation7 + $0x60] sm:$0xff]
        %v677 = vld [vmem:[#allocation7 + $0x68] sm:$0xff]
        %v678 = vld [vmem:[#allocation7 + $0x70] sm:$0xff]
        %v679 = vld [vmem:[#allocation7 + $0x78] sm:$0xff]
        %v680 = vld [vmem:[#allocation7 + $0x80] sm:$0xff]
        %v681 = vld [vmem:[#allocation7 + $0x88] sm:$0xff]
        %v682 = vld [vmem:[#allocation7 + $0x90] sm:$0xff]
        %v683 = vld [vmem:[#allocation7 + $0x98] sm:$0xff]
        %v684 = vld [vmem:[#allocation7 + $0xa0] sm:$0xff]
        %v685 = vld [vmem:[#allocation7 + $0xa8] sm:$0xff]
        %v686 = vld [vmem:[#allocation7 + $0xb0] sm:$0xff]
        %v687 = vld [vmem:[#allocation7 + $0xb8] sm:$0xff]
        %v688 = vld [vmem:[#allocation7 + $0xc0] sm:$0xff]
        %v689 = vld [vmem:[#allocation7 + $0xc8] sm:$0xff]
        %v690 = vld [vmem:[#allocation7 + $0xd0] sm:$0xff]
        %v691 = vld [vmem:[#allocation7 + $0xd8] sm:$0xff]
        %v692 = vld [vmem:[#allocation7 + $0xe0] sm:$0xff]
        %v693 = vld [vmem:[#allocation7 + $0xe8] sm:$0xff]
        %v694 = vld [vmem:[#allocation7 + $0xf0] sm:$0xff]
        %v695 = vld [vmem:[#allocation7 + $0xf8] sm:$0xff]
        %v696 = vld [vmem:[#allocation7 + $0x100] sm:$0xff]
        %v697 = vld [vmem:[#allocation7 + $0x108] sm:$0xff]
        %v698 = vld [vmem:[#allocation7 + $0x110] sm:$0xff]
        %v699 = vld [vmem:[#allocation7 + $0x118] sm:$0xff]
        %v700 = vld [vmem:[#allocation7 + $0x120] sm:$0xff]
        %v701 = vld [vmem:[#allocation7 + $0x128] sm:$0xff]
        %v702 = vld [vmem:[#allocation7 + $0x130] sm:$0xff]
        %v703 = vld [vmem:[#allocation7 + $0x138] sm:$0xff]
        %v704 = vld [vmem:[#allocation7 + $0x140] sm:$0xff]
        %v705 = vld [vmem:[#allocation7 + $0x148] sm:$0xff]
        %v706 = vld [vmem:[#allocation7 + $0x150] sm:$0xff]
        %v707 = vld [vmem:[#allocation7 + $0x158] sm:$0xff]
        %v708 = vld [vmem:[#allocation7 + $0x160] sm:$0xff]
        %v709 = vld [vmem:[#allocation7 + $0x168] sm:$0xff]
        %v710 = vld [vmem:[#allocation7 + $0x170] sm:$0xff]
        %v711 = vld [vmem:[#allocation7 + $0x178] sm:$0xff]
        %v712 = vld [vmem:[#allocation7 + $0x180] sm:$0xff]
        %v713 = vld [vmem:[#allocation7 + $0x188] sm:$0xff]
        %v714 = vld [vmem:[#allocation7 + $0x190] sm:$0xff]
        %v715 = vld [vmem:[#allocation7 + $0x198] sm:$0xff]
        %v716 = vld [vmem:[#allocation7 + $0x1a0] sm:$0xff]
        %v717 = vld [vmem:[#allocation7 + $0x1a8] sm:$0xff]
        %v718 = vld [vmem:[#allocation7 + $0x1b0] sm:$0xff]
        %v719 = vld [vmem:[#allocation7 + $0x1b8] sm:$0xff]
        %v720 = vld [vmem:[#allocation7 + $0x1c0] sm:$0xff]
        %v721 = vld [vmem:[#allocation7 + $0x1c8] sm:$0xff]
        %v722 = vld [vmem:[#allocation7 + $0x1d0] sm:$0xff]
        %v723 = vld [vmem:[#allocation7 + $0x1d8] sm:$0xff]
        %v724 = vld [vmem:[#allocation7 + $0x1e0] sm:$0xff]
        %v725 = vld [vmem:[#allocation7 + $0x1e8] sm:$0xff]
        %v726 = vld [vmem:[#allocation7 + $0x1f0] sm:$0xff]
        %v727 = vld [vmem:[#allocation7 + $0x1f8] sm:$0xff]
        %v728 = vld [vmem:[#allocation7 + $0x200] sm:$0xff]
        %v729 = vld [vmem:[#allocation7 + $0x208] sm:$0xff]
        %v730 = vld [vmem:[#allocation7 + $0x210] sm:$0xff]
        %v731 = vld [vmem:[#allocation7 + $0x218] sm:$0xff]
        %v732 = vld [vmem:[#allocation7 + $0x220] sm:$0xff]
        %v733 = vld [vmem:[#allocation7 + $0x228] sm:$0xff]
        %v734 = vld [vmem:[#allocation7 + $0x230] sm:$0xff]
        %v735 = vld [vmem:[#allocation7 + $0x238] sm:$0xff]
        %v736 = vld [vmem:[#allocation7 + $0x240] sm:$0xff]
        %v737 = vld [vmem:[#allocation7 + $0x248] sm:$0xff]
        %v738 = vld [vmem:[#allocation7 + $0x250] sm:$0xff]
        %v739 = vld [vmem:[#allocation7 + $0x258] sm:$0xff]
        %v740 = vld [vmem:[#allocation7 + $0x260] sm:$0xff]
        %v741 = vld [vmem:[#allocation7 + $0x268] sm:$0xff]
        %v742 = vld [vmem:[#allocation7 + $0x270] sm:$0xff]
        %v743 = vld [vmem:[#allocation7 + $0x278] sm:$0xff]
        %v744 = vld [vmem:[#allocation7 + $0x280] sm:$0xff]
        %v745 = vld [vmem:[#allocation7 + $0x288] sm:$0xff]
        %v746 = vld [vmem:[#allocation7 + $0x290] sm:$0xff]
        %v747 = vld [vmem:[#allocation7 + $0x298] sm:$0xff]
        %v748 = vld [vmem:[#allocation7 + $0x2a0] sm:$0xff]
        %v749 = vld [vmem:[#allocation7 + $0x2a8] sm:$0xff]
        %v750 = vld [vmem:[#allocation7 + $0x2b0] sm:$0xff]
        %v751 = vld [vmem:[#allocation7 + $0x2b8] sm:$0xff]
        %v752 = vld [vmem:[#allocation7 + $0x2c0] sm:$0xff]
        %v753 = vld [vmem:[#allocation7 + $0x2c8] sm:$0xff]
        %v754 = vld [vmem:[#allocation7 + $0x2d0] sm:$0xff]
        %v755 = vld [vmem:[#allocation7 + $0x2d8] sm:$0xff]
        %v756 = vld [vmem:[#allocation7 + $0x2e0] sm:$0xff]
        %v757 = vld [vmem:[#allocation7 + $0x2e8] sm:$0xff]
        %v758 = vld [vmem:[#allocation7 + $0x2f0] sm:$0xff]
        %v759 = vld [vmem:[#allocation7 + $0x2f8] sm:$0xff]
        %v760 = vld [vmem:[#allocation8] sm:$0x3]
        %v762 = vlaneseq
        %v763 = vshrl.u32 %v762, 7
        %v764 = vsub.s32 0, %v763
        %v765 = vrot.slane %v760, %v764
        %v766 = vlaneseq
        %v767 = vshrl.u32 %v766, 7
        %v768 = vsub.s32 1, %v767
        %v769 = vrot.slane %v760, %v768
        %v868 = vunpack.c.l.b16 %v664
        %v869 = vunpack.c.h.b16 %v664
        %v870 = vunpack.c.l.b16 %v665
        %v871 = vunpack.c.h.b16 %v665
        %v872 = vunpack.c.l.b16 %v666
        %v873 = vunpack.c.h.b16 %v666
        %v874 = vunpack.c.l.b16 %v667
        %v875 = vunpack.c.h.b16 %v667
        %v876 = vunpack.c.l.b16 %v668
        %v877 = vunpack.c.h.b16 %v668
        %v878 = vunpack.c.l.b16 %v669
        %v879 = vunpack.c.h.b16 %v669
        %v880 = vunpack.c.l.b16 %v670
        %v881 = vunpack.c.h.b16 %v670
        %v882 = vunpack.c.l.b16 %v671
        %v883 = vunpack.c.h.b16 %v671
        %v884 = vunpack.c.l.b16 %v672
        %v885 = vunpack.c.h.b16 %v672
        %v886 = vunpack.c.l.b16 %v673
        %v887 = vunpack.c.h.b16 %v673
        %v888 = vunpack.c.l.b16 %v674
        %v889 = vunpack.c.h.b16 %v674
        %v890 = vunpack.c.l.b16 %v675
        %v891 = vunpack.c.h.b16 %v675
        %v892 = vunpack.c.l.b16 %v676
        %v893 = vunpack.c.h.b16 %v676
        %v894 = vunpack.c.l.b16 %v677
        %v895 = vunpack.c.h.b16 %v677
        %v896 = vunpack.c.l.b16 %v678
        %v897 = vunpack.c.h.b16 %v678
        %v898 = vunpack.c.l.b16 %v679
        %v899 = vunpack.c.h.b16 %v679
        %v900 = vunpack.c.l.b16 %v680
        %v901 = vunpack.c.h.b16 %v680
        %v902 = vunpack.c.l.b16 %v681
        %v903 = vunpack.c.h.b16 %v681
        %v904 = vunpack.c.l.b16 %v682
        %v905 = vunpack.c.h.b16 %v682
        %v906 = vunpack.c.l.b16 %v683
        %v907 = vunpack.c.h.b16 %v683
        %v908 = vunpack.c.l.b16 %v684
        %v909 = vunpack.c.h.b16 %v684
        %v910 = vunpack.c.l.b16 %v685
        %v911 = vunpack.c.h.b16 %v685
        %v912 = vunpack.c.l.b16 %v686
        %v913 = vunpack.c.h.b16 %v686
        %v914 = vunpack.c.l.b16 %v687
        %v915 = vunpack.c.h.b16 %v687
        %v916 = vunpack.c.l.b16 %v688
        %v917 = vunpack.c.h.b16 %v688
        %v918 = vunpack.c.l.b16 %v689
        %v919 = vunpack.c.h.b16 %v689
        %v920 = vunpack.c.l.b16 %v690
        %v921 = vunpack.c.h.b16 %v690
        %v922 = vunpack.c.l.b16 %v691
        %v923 = vunpack.c.h.b16 %v691
        %v924 = vunpack.c.l.b16 %v692
        %v925 = vunpack.c.h.b16 %v692
        %v926 = vunpack.c.l.b16 %v693
        %v927 = vunpack.c.h.b16 %v693
        %v928 = vunpack.c.l.b16 %v694
        %v929 = vunpack.c.h.b16 %v694
        %v930 = vunpack.c.l.b16 %v695
        %v931 = vunpack.c.h.b16 %v695
        %v932 = vunpack.c.l.b16 %v696
        %v933 = vunpack.c.h.b16 %v696
        %v934 = vunpack.c.l.b16 %v697
        %v935 = vunpack.c.h.b16 %v697
        %v936 = vunpack.c.l.b16 %v698
        %v937 = vunpack.c.h.b16 %v698
        %v938 = vunpack.c.l.b16 %v699
        %v939 = vunpack.c.h.b16 %v699
        %v940 = vunpack.c.l.b16 %v700
        %v941 = vunpack.c.h.b16 %v700
        %v942 = vunpack.c.l.b16 %v701
        %v943 = vunpack.c.h.b16 %v701
        %v944 = vunpack.c.l.b16 %v702
        %v945 = vunpack.c.h.b16 %v702
        %v946 = vunpack.c.l.b16 %v703
        %v947 = vunpack.c.h.b16 %v703
        %v948 = vunpack.c.l.b16 %v704
        %v949 = vunpack.c.h.b16 %v704
        %v950 = vunpack.c.l.b16 %v705
        %v951 = vunpack.c.h.b16 %v705
        %v952 = vunpack.c.l.b16 %v706
        %v953 = vunpack.c.h.b16 %v706
        %v954 = vunpack.c.l.b16 %v707
        %v955 = vunpack.c.h.b16 %v707
        %v956 = vunpack.c.l.b16 %v708
        %v957 = vunpack.c.h.b16 %v708
        %v958 = vunpack.c.l.b16 %v709
        %v959 = vunpack.c.h.b16 %v709
        %v960 = vunpack.c.l.b16 %v710
        %v961 = vunpack.c.h.b16 %v710
        %v962 = vunpack.c.l.b16 %v711
        %v963 = vunpack.c.h.b16 %v711
        %v964 = vunpack.c.l.b16 %v712
        %v965 = vunpack.c.h.b16 %v712
        %v966 = vunpack.c.l.b16 %v713
        %v967 = vunpack.c.h.b16 %v713
        %v968 = vunpack.c.l.b16 %v714
        %v969 = vunpack.c.h.b16 %v714
        %v970 = vunpack.c.l.b16 %v715
        %v971 = vunpack.c.h.b16 %v715
        %v972 = vunpack.c.l.b16 %v716
        %v973 = vunpack.c.h.b16 %v716
        %v974 = vunpack.c.l.b16 %v717
        %v975 = vunpack.c.h.b16 %v717
        %v976 = vunpack.c.l.b16 %v718
        %v977 = vunpack.c.h.b16 %v718
        %v978 = vunpack.c.l.b16 %v719
        %v979 = vunpack.c.h.b16 %v719
        %v980 = vunpack.c.l.b16 %v720
        %v981 = vunpack.c.h.b16 %v720
        %v982 = vunpack.c.l.b16 %v721
        %v983 = vunpack.c.h.b16 %v721
        %v984 = vunpack.c.l.b16 %v722
        %v985 = vunpack.c.h.b16 %v722
        %v986 = vunpack.c.l.b16 %v723
        %v987 = vunpack.c.h.b16 %v723
        %v988 = vunpack.c.l.b16 %v724
        %v989 = vunpack.c.h.b16 %v724
        %v990 = vunpack.c.l.b16 %v725
        %v991 = vunpack.c.h.b16 %v725
        %v992 = vunpack.c.l.b16 %v726
        %v993 = vunpack.c.h.b16 %v726
        %v994 = vunpack.c.l.b16 %v727
        %v995 = vunpack.c.h.b16 %v727
        %v996 = vunpack.c.l.b16 %v728
        %v997 = vunpack.c.h.b16 %v728
        %v998 = vunpack.c.l.b16 %v729
        %v999 = vunpack.c.h.b16 %v729
        %v1000 = vunpack.c.l.b16 %v730
        %v1001 = vunpack.c.h.b16 %v730
        %v1002 = vunpack.c.l.b16 %v731
        %v1003 = vunpack.c.h.b16 %v731
        %v1004 = vunpack.c.l.b16 %v732
        %v1005 = vunpack.c.h.b16 %v732
        %v1006 = vunpack.c.l.b16 %v733
        %v1007 = vunpack.c.h.b16 %v733
        %v1008 = vunpack.c.l.b16 %v734
        %v1009 = vunpack.c.h.b16 %v734
        %v1010 = vunpack.c.l.b16 %v735
        %v1011 = vunpack.c.h.b16 %v735
        %v1012 = vunpack.c.l.b16 %v736
        %v1013 = vunpack.c.h.b16 %v736
        %v1014 = vunpack.c.l.b16 %v737
        %v1015 = vunpack.c.h.b16 %v737
        %v1016 = vunpack.c.l.b16 %v738
        %v1017 = vunpack.c.h.b16 %v738
        %v1018 = vunpack.c.l.b16 %v739
        %v1019 = vunpack.c.h.b16 %v739
        %v1020 = vunpack.c.l.b16 %v740
        %v1021 = vunpack.c.h.b16 %v740
        %v1022 = vunpack.c.l.b16 %v741
        %v1023 = vunpack.c.h.b16 %v741
        %v1024 = vunpack.c.l.b16 %v742
        %v1025 = vunpack.c.h.b16 %v742
        %v1026 = vunpack.c.l.b16 %v743
        %v1027 = vunpack.c.h.b16 %v743
        %v1028 = vunpack.c.l.b16 %v744
        %v1029 = vunpack.c.h.b16 %v744
        %v1030 = vunpack.c.l.b16 %v745
        %v1031 = vunpack.c.h.b16 %v745
        %v1032 = vunpack.c.l.b16 %v746
        %v1033 = vunpack.c.h.b16 %v746
        %v1034 = vunpack.c.l.b16 %v747
        %v1035 = vunpack.c.h.b16 %v747
        %v1036 = vunpack.c.l.b16 %v748
        %v1037 = vunpack.c.h.b16 %v748
        %v1038 = vunpack.c.l.b16 %v749
        %v1039 = vunpack.c.h.b16 %v749
        %v1040 = vunpack.c.l.b16 %v750
        %v1041 = vunpack.c.h.b16 %v750
        %v1042 = vunpack.c.l.b16 %v751
        %v1043 = vunpack.c.h.b16 %v751
        %v1044 = vunpack.c.l.b16 %v752
        %v1045 = vunpack.c.h.b16 %v752
        %v1046 = vunpack.c.l.b16 %v753
        %v1047 = vunpack.c.h.b16 %v753
        %v1048 = vunpack.c.l.b16 %v754
        %v1049 = vunpack.c.h.b16 %v754
        %v1050 = vunpack.c.l.b16 %v755
        %v1051 = vunpack.c.h.b16 %v755
        %v1052 = vunpack.c.l.b16 %v756
        %v1053 = vunpack.c.h.b16 %v756
        %v1054 = vunpack.c.l.b16 %v757
        %v1055 = vunpack.c.h.b16 %v757
        %v1056 = vunpack.c.l.b16 %v758
        %v1057 = vunpack.c.h.b16 %v758
        %v1058 = vunpack.c.l.b16 %v759
        %v1059 = vunpack.c.h.b16 %v759
        %v1060 = vpack.c.b16 %v870, %v868
        %v1061 = vpack.c.b16 %v871, %v869
        %v1062 = vpack.c.b16 %v874, %v872
        %v1063 = vpack.c.b16 %v875, %v873
        %v1064 = vpack.c.b16 %v878, %v876
        %v1065 = vpack.c.b16 %v879, %v877
        %v1066 = vpack.c.b16 %v882, %v880
        %v1067 = vpack.c.b16 %v883, %v881
        %v1068 = vpack.c.b16 %v886, %v884
        %v1069 = vpack.c.b16 %v887, %v885
        %v1070 = vpack.c.b16 %v890, %v888
        %v1071 = vpack.c.b16 %v891, %v889
        %v1072 = vpack.c.b16 %v894, %v892
        %v1073 = vpack.c.b16 %v895, %v893
        %v1074 = vpack.c.b16 %v898, %v896
        %v1075 = vpack.c.b16 %v899, %v897
        %v1076 = vpack.c.b16 %v902, %v900
        %v1077 = vpack.c.b16 %v903, %v901
        %v1078 = vpack.c.b16 %v906, %v904
        %v1079 = vpack.c.b16 %v907, %v905
        %v1080 = vpack.c.b16 %v910, %v908
        %v1081 = vpack.c.b16 %v911, %v909
        %v1082 = vpack.c.b16 %v914, %v912
        %v1083 = vpack.c.b16 %v915, %v913
        %v1084 = vpack.c.b16 %v918, %v916
        %v1085 = vpack.c.b16 %v919, %v917
        %v1086 = vpack.c.b16 %v922, %v920
        %v1087 = vpack.c.b16 %v923, %v921
        %v1088 = vpack.c.b16 %v926, %v924
        %v1089 = vpack.c.b16 %v927, %v925
        %v1090 = vpack.c.b16 %v930, %v928
        %v1091 = vpack.c.b16 %v931, %v929
        %v1092 = vpack.c.b16 %v934, %v932
        %v1093 = vpack.c.b16 %v935, %v933
        %v1094 = vpack.c.b16 %v938, %v936
        %v1095 = vpack.c.b16 %v939, %v937
        %v1096 = vpack.c.b16 %v942, %v940
        %v1097 = vpack.c.b16 %v943, %v941
        %v1098 = vpack.c.b16 %v946, %v944
        %v1099 = vpack.c.b16 %v947, %v945
        %v1100 = vpack.c.b16 %v950, %v948
        %v1101 = vpack.c.b16 %v951, %v949
        %v1102 = vpack.c.b16 %v954, %v952
        %v1103 = vpack.c.b16 %v955, %v953
        %v1104 = vpack.c.b16 %v958, %v956
        %v1105 = vpack.c.b16 %v959, %v957
        %v1106 = vpack.c.b16 %v962, %v960
        %v1107 = vpack.c.b16 %v963, %v961
        %v1108 = vpack.c.b16 %v966, %v964
        %v1109 = vpack.c.b16 %v967, %v965
        %v1110 = vpack.c.b16 %v970, %v968
        %v1111 = vpack.c.b16 %v971, %v969
        %v1112 = vpack.c.b16 %v974, %v972
        %v1113 = vpack.c.b16 %v975, %v973
        %v1114 = vpack.c.b16 %v978, %v976
        %v1115 = vpack.c.b16 %v979, %v977
        %v1116 = vpack.c.b16 %v982, %v980
        %v1117 = vpack.c.b16 %v983, %v981
        %v1118 = vpack.c.b16 %v986, %v984
        %v1119 = vpack.c.b16 %v987, %v985
        %v1120 = vpack.c.b16 %v990, %v988
        %v1121 = vpack.c.b16 %v991, %v989
        %v1122 = vpack.c.b16 %v994, %v992
        %v1123 = vpack.c.b16 %v995, %v993
        %v1124 = vpack.c.b16 %v998, %v996
        %v1125 = vpack.c.b16 %v999, %v997
        %v1126 = vpack.c.b16 %v1002, %v1000
        %v1127 = vpack.c.b16 %v1003, %v1001
        %v1128 = vpack.c.b16 %v1006, %v1004
        %v1129 = vpack.c.b16 %v1007, %v1005
        %v1130 = vpack.c.b16 %v1010, %v1008
        %v1131 = vpack.c.b16 %v1011, %v1009
        %v1132 = vpack.c.b16 %v1014, %v1012
        %v1133 = vpack.c.b16 %v1015, %v1013
        %v1134 = vpack.c.b16 %v1018, %v1016
        %v1135 = vpack.c.b16 %v1019, %v1017
        %v1136 = vpack.c.b16 %v1022, %v1020
        %v1137 = vpack.c.b16 %v1023, %v1021
        %v1138 = vpack.c.b16 %v1026, %v1024
        %v1139 = vpack.c.b16 %v1027, %v1025
        %v1140 = vpack.c.b16 %v1030, %v1028
        %v1141 = vpack.c.b16 %v1031, %v1029
        %v1142 = vpack.c.b16 %v1034, %v1032
        %v1143 = vpack.c.b16 %v1035, %v1033
        %v1144 = vpack.c.b16 %v1038, %v1036
        %v1145 = vpack.c.b16 %v1039, %v1037
        %v1146 = vpack.c.b16 %v1042, %v1040
        %v1147 = vpack.c.b16 %v1043, %v1041
        %v1148 = vpack.c.b16 %v1046, %v1044
        %v1149 = vpack.c.b16 %v1047, %v1045
        %v1150 = vpack.c.b16 %v1050, %v1048
        %v1151 = vpack.c.b16 %v1051, %v1049
        %v1152 = vpack.c.b16 %v1054, %v1052
        %v1153 = vpack.c.b16 %v1055, %v1053
        %v1154 = vpack.c.b16 %v1058, %v1056
        %v1155 = vpack.c.b16 %v1059, %v1057
        %1252 = vmatprep.subr.bf16.mxu0 %v1061
        %1253 = vmatpush1.bf16.msra.mxu0 %v1060
        %1254 = vmatprep.subr.bf16.mxu0 %v1063
        %1255 = vmatpush1.bf16.msra.mxu0 %v1062
        %1256 = vmatprep.subr.bf16.mxu0 %v1065
        %1257 = vmatpush1.bf16.msra.mxu0 %v1064
        %1258 = vmatprep.subr.bf16.mxu0 %v1067
        %1259 = vmatpush1.bf16.msra.mxu0 %v1066
        %1260 = vmatprep.subr.bf16.mxu0 %v1069
        %1261 = vmatpush1.bf16.msra.mxu0 %v1068
        %1262 = vmatprep.subr.bf16.mxu0 %v1071
        %1263 = vmatpush1.bf16.msra.mxu0 %v1070
        %1264 = vmatprep.subr.bf16.mxu0 %v1073
        %1265 = vmatpush1.bf16.msra.mxu0 %v1072
        %1266 = vmatprep.subr.bf16.mxu0 %v1075
        %1267 = vmatpush1.bf16.msra.mxu0 %v1074
        %1268 = vmatprep.subr.bf16.mxu0 %v1077
        %1269 = vmatpush1.bf16.msra.mxu0 %v1076
        %1270 = vmatprep.subr.bf16.mxu0 %v1079
        %1271 = vmatpush1.bf16.msra.mxu0 %v1078
        %1272 = vmatprep.subr.bf16.mxu0 %v1081
        %1273 = vmatpush1.bf16.msra.mxu0 %v1080
        %1274 = vmatprep.subr.bf16.mxu0 %v1083
        %1275 = vmatpush1.bf16.msra.mxu0 %v1082
        %1276 = vmatprep.subr.bf16.mxu0 %v1085
        %1277 = vmatpush1.bf16.msra.mxu0 %v1084
        %1278 = vmatprep.subr.bf16.mxu0 %v1087
        %1279 = vmatpush1.bf16.msra.mxu0 %v1086
        %1280 = vmatprep.subr.bf16.mxu0 %v1089
        %1281 = vmatpush1.bf16.msra.mxu0 %v1088
        %1282 = vmatprep.subr.bf16.mxu0 %v1091
        %1283 = vmatpush1.bf16.msra.mxu0 %v1090
        %1284 = vmatprep.mubr.bf16.mxu0 %v593
        %1285 = vmatmul.mubr.bf16.gmra.mrb[0].mxu0 %v592
        %v1286 = vpop.f32.mrb[0].mxu0
        %v1287 = vadd.f32 %v765, %v1286
        %v1288 = vpop.f32.mrb[0].mxu0
        %v1289 = vadd.f32 %v769, %v1288
        %v1290 = vpop.f32.mrb[0].mxu0
        %v1291 = vadd.f32 %v765, %v1290
        %v1292 = vpop.f32.mrb[0].mxu0
        %v1293 = vadd.f32 %v769, %v1292
        %1294 = vmatprep.mubr.bf16.mxu0 %v599
        %1295 = vmatmul.mubr.bf16.gmra.mrb[0].mxu0 %v598
        %v1296 = vpop.f32.mrb[0].mxu0
        %v1297 = vadd.f32 %v765, %v1296
        %v1298 = vpop.f32.mrb[0].mxu0
        %v1299 = vadd.f32 %v769, %v1298
        %v1300 = vpop.f32.mrb[0].mxu0
        %v1301 = vadd.f32 %v765, %v1300
        %v1302 = vpop.f32.mrb[0].mxu0
        %v1303 = vadd.f32 %v769, %v1302
        %1304 = vmatprep.mubr.bf16.mxu0 %v605
        %1305 = vmatmul.mubr.bf16.gmra.mrb[0].mxu0 %v604
        %v1306 = vpop.f32.mrb[0].mxu0
        %v1307 = vadd.f32 %v765, %v1306
        %v1308 = vpop.f32.mrb[0].mxu0
        %v1309 = vadd.f32 %v769, %v1308
        %v1310 = vpop.f32.mrb[0].mxu0
        %v1311 = vadd.f32 %v765, %v1310
        %v1312 = vpop.f32.mrb[0].mxu0
        %v1313 = vadd.f32 %v769, %v1312
        %1314 = vmatprep.mubr.bf16.mxu0 %v611
        %1315 = vmatmul.mubr.bf16.gmra.mrb[0].mxu0 %v610
        %v1316 = vpop.f32.mrb[0].mxu0
        %v1317 = vadd.f32 %v765, %v1316
        %v1318 = vpop.f32.mrb[0].mxu0
        %v1319 = vadd.f32 %v769, %v1318
        %v1320 = vpop.f32.mrb[0].mxu0
        %v1321 = vadd.f32 %v765, %v1320
        %v1322 = vpop.f32.mrb[0].mxu0
        %v1323 = vadd.f32 %v769, %v1322
        %1324 = vmatprep.mubr.bf16.mxu0 %v617
        %1325 = vmatmul.mubr.bf16.gmra.mrb[0].mxu0 %v616
        %v1326 = vpop.f32.mrb[0].mxu0
        %v1327 = vadd.f32 %v765, %v1326
        %v1328 = vpop.f32.mrb[0].mxu0
        %v1329 = vadd.f32 %v769, %v1328
        %v1330 = vpop.f32.mrb[0].mxu0
        %v1331 = vadd.f32 %v765, %v1330
        %v1332 = vpop.f32.mrb[0].mxu0
        %v1333 = vadd.f32 %v769, %v1332
        %1334 = vmatprep.mubr.bf16.mxu0 %v623
        %1335 = vmatmul.mubr.bf16.gmra.mrb[0].mxu0 %v622
        %v1336 = vpop.f32.mrb[0].mxu0
        %v1337 = vadd.f32 %v765, %v1336
        %v1338 = vpop.f32.mrb[0].mxu0
        %v1339 = vadd.f32 %v769, %v1338
        %v1340 = vpop.f32.mrb[0].mxu0
        %v1341 = vadd.f32 %v765, %v1340
        %v1342 = vpop.f32.mrb[0].mxu0
        %v1343 = vadd.f32 %v769, %v1342
        %1344 = vmatprep.mubr.bf16.mxu0 %v629
        %1345 = vmatmul.mubr.bf16.gmra.mrb[0].mxu0 %v628
        %v1346 = vpop.f32.mrb[0].mxu0
        %v1347 = vadd.f32 %v765, %v1346
        %v1348 = vpop.f32.mrb[0].mxu0
        %v1349 = vadd.f32 %v769, %v1348
        %v1350 = vpop.f32.mrb[0].mxu0
        %v1351 = vadd.f32 %v765, %v1350
        %v1352 = vpop.f32.mrb[0].mxu0
        %v1353 = vadd.f32 %v769, %v1352
        %1354 = vmatprep.mubr.bf16.mxu0 %v635
        %1355 = vmatmul.mubr.bf16.gmra.mrb[0].mxu0 %v634
        %v1356 = vpop.f32.mrb[0].mxu0
        %v1357 = vadd.f32 %v765, %v1356
        %v1358 = vpop.f32.mrb[0].mxu0
        %v1359 = vadd.f32 %v769, %v1358
        %v1360 = vpop.f32.mrb[0].mxu0
        %v1361 = vadd.f32 %v765, %v1360
        %v1362 = vpop.f32.mrb[0].mxu0
        %v1363 = vadd.f32 %v769, %v1362
        %1364 = vmatprep.mubr.bf16.mxu0 %v641
        %1365 = vmatmul.mubr.bf16.gmra.mrb[0].mxu0 %v640
        %v1366 = vpop.f32.mrb[0].mxu0
        %v1367 = vadd.f32 %v765, %v1366
        %v1368 = vpop.f32.mrb[0].mxu0
        %v1369 = vadd.f32 %v769, %v1368
        %v1370 = vpop.f32.mrb[0].mxu0
        %v1371 = vadd.f32 %v765, %v1370
        %v1372 = vpop.f32.mrb[0].mxu0
        %v1373 = vadd.f32 %v769, %v1372
        %1374 = vmatprep.mubr.bf16.mxu0 %v647
        %1375 = vmatmul.mubr.bf16.gmra.mrb[0].mxu0 %v646
        %v1376 = vpop.f32.mrb[0].mxu0
        %v1377 = vadd.f32 %v765, %v1376
        %v1378 = vpop.f32.mrb[0].mxu0
        %v1379 = vadd.f32 %v769, %v1378
        %v1380 = vpop.f32.mrb[0].mxu0
        %v1381 = vadd.f32 %v765, %v1380
        %v1382 = vpop.f32.mrb[0].mxu0
        %v1383 = vadd.f32 %v769, %v1382
        %1384 = vmatprep.mubr.bf16.mxu0 %v653
        %1385 = vmatmul.mubr.bf16.gmra.mrb[0].mxu0 %v652
        %v1386 = vpop.f32.mrb[0].mxu0
        %v1387 = vadd.f32 %v765, %v1386
        %v1388 = vpop.f32.mrb[0].mxu0
        %v1389 = vadd.f32 %v769, %v1388
        %v1390 = vpop.f32.mrb[0].mxu0
        %v1391 = vadd.f32 %v765, %v1390
        %v1392 = vpop.f32.mrb[0].mxu0
        %v1393 = vadd.f32 %v769, %v1392
        %1394 = vmatprep.mubr.bf16.mxu0 %v659
        %1395 = vmatmul.mubr.bf16.gmra.mrb[0].mxu0 %v658
        %v1396 = vpop.f32.mrb[0].mxu0
        %v1397 = vadd.f32 %v765, %v1396
        %v1398 = vpop.f32.mrb[0].mxu0
        %v1399 = vadd.f32 %v769, %v1398
        %v1400 = vpop.f32.mrb[0].mxu0
        %v1401 = vadd.f32 %v765, %v1400
        %v1402 = vpop.f32.mrb[0].mxu0
        %v1403 = vadd.f32 %v769, %v1402
        %1404 = vdwg.mxu0
        %1405 = vmatprep.subr.bf16.mxu0 %v1093
        %1406 = vmatpush1.bf16.msra.mxu0 %v1092
        %1407 = vmatprep.subr.bf16.mxu0 %v1095
        %1408 = vmatpush1.bf16.msra.mxu0 %v1094
        %1409 = vmatprep.subr.bf16.mxu0 %v1097
        %1410 = vmatpush1.bf16.msra.mxu0 %v1096
        %1411 = vmatprep.subr.bf16.mxu0 %v1099
        %1412 = vmatpush1.bf16.msra.mxu0 %v1098
        %1413 = vmatprep.subr.bf16.mxu0 %v1101
        %1414 = vmatpush1.bf16.msra.mxu0 %v1100
        %1415 = vmatprep.subr.bf16.mxu0 %v1103
        %1416 = vmatpush1.bf16.msra.mxu0 %v1102
        %1417 = vmatprep.subr.bf16.mxu0 %v1105
        %1418 = vmatpush1.bf16.msra.mxu0 %v1104
        %1419 = vmatprep.subr.bf16.mxu0 %v1107
        %1420 = vmatpush1.bf16.msra.mxu0 %v1106
        %1421 = vmatprep.subr.bf16.mxu0 %v1109
        %1422 = vmatpush1.bf16.msra.mxu0 %v1108
        %1423 = vmatprep.subr.bf16.mxu0 %v1111
        %1424 = vmatpush1.bf16.msra.mxu0 %v1110
        %1425 = vmatprep.subr.bf16.mxu0 %v1113
        %1426 = vmatpush1.bf16.msra.mxu0 %v1112
        %1427 = vmatprep.subr.bf16.mxu0 %v1115
        %1428 = vmatpush1.bf16.msra.mxu0 %v1114
        %1429 = vmatprep.subr.bf16.mxu0 %v1117
        %1430 = vmatpush1.bf16.msra.mxu0 %v1116
        %1431 = vmatprep.subr.bf16.mxu0 %v1119
        %1432 = vmatpush1.bf16.msra.mxu0 %v1118
        %1433 = vmatprep.subr.bf16.mxu0 %v1121
        %1434 = vmatpush1.bf16.msra.mxu0 %v1120
        %1435 = vmatprep.subr.bf16.mxu0 %v1123
        %1436 = vmatpush1.bf16.msra.mxu0 %v1122
        %1437 = vmatprep.mubr.bf16.mxu0 %v595
        %1438 = vmatmul.mubr.bf16.gmra.mrb[0].mxu0 %v594
        %v1439 = vpop.f32.mrb[0].mxu0
        %v1440 = vadd.f32 %v1287, %v1439
        %v1441 = vpop.f32.mrb[0].mxu0
        %v1442 = vadd.f32 %v1289, %v1441
        %v1443 = vpop.f32.mrb[0].mxu0
        %v1444 = vadd.f32 %v1291, %v1443
        %v1445 = vpop.f32.mrb[0].mxu0
        %v1446 = vadd.f32 %v1293, %v1445
        %1447 = vmatprep.mubr.bf16.mxu0 %v601
        %1448 = vmatmul.mubr.bf16.gmra.mrb[0].mxu0 %v600
        %v1449 = vpop.f32.mrb[0].mxu0
        %v1450 = vadd.f32 %v1297, %v1449
        %v1451 = vpop.f32.mrb[0].mxu0
        %v1452 = vadd.f32 %v1299, %v1451
        %v1453 = vpop.f32.mrb[0].mxu0
        %v1454 = vadd.f32 %v1301, %v1453
        %v1455 = vpop.f32.mrb[0].mxu0
        %v1456 = vadd.f32 %v1303, %v1455
        %1457 = vmatprep.mubr.bf16.mxu0 %v607
        %1458 = vmatmul.mubr.bf16.gmra.mrb[0].mxu0 %v606
        %v1459 = vpop.f32.mrb[0].mxu0
        %v1460 = vadd.f32 %v1307, %v1459
        %v1461 = vpop.f32.mrb[0].mxu0
        %v1462 = vadd.f32 %v1309, %v1461
        %v1463 = vpop.f32.mrb[0].mxu0
        %v1464 = vadd.f32 %v1311, %v1463
        %v1465 = vpop.f32.mrb[0].mxu0
        %v1466 = vadd.f32 %v1313, %v1465
        %1467 = vmatprep.mubr.bf16.mxu0 %v613
        %1468 = vmatmul.mubr.bf16.gmra.mrb[0].mxu0 %v612
        %v1469 = vpop.f32.mrb[0].mxu0
        %v1470 = vadd.f32 %v1317, %v1469
        %v1471 = vpop.f32.mrb[0].mxu0
        %v1472 = vadd.f32 %v1319, %v1471
        %v1473 = vpop.f32.mrb[0].mxu0
        %v1474 = vadd.f32 %v1321, %v1473
        %v1475 = vpop.f32.mrb[0].mxu0
        %v1476 = vadd.f32 %v1323, %v1475
        %1477 = vmatprep.mubr.bf16.mxu0 %v619
        %1478 = vmatmul.mubr.bf16.gmra.mrb[0].mxu0 %v618
        %v1479 = vpop.f32.mrb[0].mxu0
        %v1480 = vadd.f32 %v1327, %v1479
        %v1481 = vpop.f32.mrb[0].mxu0
        %v1482 = vadd.f32 %v1329, %v1481
        %v1483 = vpop.f32.mrb[0].mxu0
        %v1484 = vadd.f32 %v1331, %v1483
        %v1485 = vpop.f32.mrb[0].mxu0
        %v1486 = vadd.f32 %v1333, %v1485
        %1487 = vmatprep.mubr.bf16.mxu0 %v625
        %1488 = vmatmul.mubr.bf16.gmra.mrb[0].mxu0 %v624
        %v1489 = vpop.f32.mrb[0].mxu0
        %v1490 = vadd.f32 %v1337, %v1489
        %v1491 = vpop.f32.mrb[0].mxu0
        %v1492 = vadd.f32 %v1339, %v1491
        %v1493 = vpop.f32.mrb[0].mxu0
        %v1494 = vadd.f32 %v1341, %v1493
        %v1495 = vpop.f32.mrb[0].mxu0
        %v1496 = vadd.f32 %v1343, %v1495
        %1497 = vmatprep.mubr.bf16.mxu0 %v631
        %1498 = vmatmul.mubr.bf16.gmra.mrb[0].mxu0 %v630
        %v1499 = vpop.f32.mrb[0].mxu0
        %v1500 = vadd.f32 %v1347, %v1499
        %v1501 = vpop.f32.mrb[0].mxu0
        %v1502 = vadd.f32 %v1349, %v1501
        %v1503 = vpop.f32.mrb[0].mxu0
        %v1504 = vadd.f32 %v1351, %v1503
        %v1505 = vpop.f32.mrb[0].mxu0
        %v1506 = vadd.f32 %v1353, %v1505
        %1507 = vmatprep.mubr.bf16.mxu0 %v637
        %1508 = vmatmul.mubr.bf16.gmra.mrb[0].mxu0 %v636
        %v1509 = vpop.f32.mrb[0].mxu0
        %v1510 = vadd.f32 %v1357, %v1509
        %v1511 = vpop.f32.mrb[0].mxu0
        %v1512 = vadd.f32 %v1359, %v1511
        %v1513 = vpop.f32.mrb[0].mxu0
        %v1514 = vadd.f32 %v1361, %v1513
        %v1515 = vpop.f32.mrb[0].mxu0
        %v1516 = vadd.f32 %v1363, %v1515
        %1517 = vmatprep.mubr.bf16.mxu0 %v643
        %1518 = vmatmul.mubr.bf16.gmra.mrb[0].mxu0 %v642
        %v1519 = vpop.f32.mrb[0].mxu0
        %v1520 = vadd.f32 %v1367, %v1519
        %v1521 = vpop.f32.mrb[0].mxu0
        %v1522 = vadd.f32 %v1369, %v1521
        %v1523 = vpop.f32.mrb[0].mxu0
        %v1524 = vadd.f32 %v1371, %v1523
        %v1525 = vpop.f32.mrb[0].mxu0
        %v1526 = vadd.f32 %v1373, %v1525
        %1527 = vmatprep.mubr.bf16.mxu0 %v649
        %1528 = vmatmul.mubr.bf16.gmra.mrb[0].mxu0 %v648
        %v1529 = vpop.f32.mrb[0].mxu0
        %v1530 = vadd.f32 %v1377, %v1529
        %v1531 = vpop.f32.mrb[0].mxu0
        %v1532 = vadd.f32 %v1379, %v1531
        %v1533 = vpop.f32.mrb[0].mxu0
        %v1534 = vadd.f32 %v1381, %v1533
        %v1535 = vpop.f32.mrb[0].mxu0
        %v1536 = vadd.f32 %v1383, %v1535
        %1537 = vmatprep.mubr.bf16.mxu0 %v655
        %1538 = vmatmul.mubr.bf16.gmra.mrb[0].mxu0 %v654
        %v1539 = vpop.f32.mrb[0].mxu0
        %v1540 = vadd.f32 %v1387, %v1539
        %v1541 = vpop.f32.mrb[0].mxu0
        %v1542 = vadd.f32 %v1389, %v1541
        %v1543 = vpop.f32.mrb[0].mxu0
        %v1544 = vadd.f32 %v1391, %v1543
        %v1545 = vpop.f32.mrb[0].mxu0
        %v1546 = vadd.f32 %v1393, %v1545
        %1547 = vmatprep.mubr.bf16.mxu0 %v661
        %1548 = vmatmul.mubr.bf16.gmra.mrb[0].mxu0 %v660
        %v1549 = vpop.f32.mrb[0].mxu0
        %v1550 = vadd.f32 %v1397, %v1549
        %v1551 = vpop.f32.mrb[0].mxu0
        %v1552 = vadd.f32 %v1399, %v1551
        %v1553 = vpop.f32.mrb[0].mxu0
        %v1554 = vadd.f32 %v1401, %v1553
        %v1555 = vpop.f32.mrb[0].mxu0
        %v1556 = vadd.f32 %v1403, %v1555
        %1557 = vdwg.mxu0
        %1558 = vmatprep.subr.bf16.mxu0 %v1125
        %1559 = vmatpush1.bf16.msra.mxu0 %v1124
        %1560 = vmatprep.subr.bf16.mxu0 %v1127
        %1561 = vmatpush1.bf16.msra.mxu0 %v1126
        %1562 = vmatprep.subr.bf16.mxu0 %v1129
        %1563 = vmatpush1.bf16.msra.mxu0 %v1128
        %1564 = vmatprep.subr.bf16.mxu0 %v1131
        %1565 = vmatpush1.bf16.msra.mxu0 %v1130
        %1566 = vmatprep.subr.bf16.mxu0 %v1133
        %1567 = vmatpush1.bf16.msra.mxu0 %v1132
        %1568 = vmatprep.subr.bf16.mxu0 %v1135
        %1569 = vmatpush1.bf16.msra.mxu0 %v1134
        %1570 = vmatprep.subr.bf16.mxu0 %v1137
        %1571 = vmatpush1.bf16.msra.mxu0 %v1136
        %1572 = vmatprep.subr.bf16.mxu0 %v1139
        %1573 = vmatpush1.bf16.msra.mxu0 %v1138
        %1574 = vmatprep.subr.bf16.mxu0 %v1141
        %1575 = vmatpush1.bf16.msra.mxu0 %v1140
        %1576 = vmatprep.subr.bf16.mxu0 %v1143
        %1577 = vmatpush1.bf16.msra.mxu0 %v1142
        %1578 = vmatprep.subr.bf16.mxu0 %v1145
        %1579 = vmatpush1.bf16.msra.mxu0 %v1144
        %1580 = vmatprep.subr.bf16.mxu0 %v1147
        %1581 = vmatpush1.bf16.msra.mxu0 %v1146
        %1582 = vmatprep.subr.bf16.mxu0 %v1149
        %1583 = vmatpush1.bf16.msra.mxu0 %v1148
        %1584 = vmatprep.subr.bf16.mxu0 %v1151
        %1585 = vmatpush1.bf16.msra.mxu0 %v1150
        %1586 = vmatprep.subr.bf16.mxu0 %v1153
        %1587 = vmatpush1.bf16.msra.mxu0 %v1152
        %1588 = vmatprep.subr.bf16.mxu0 %v1155
        %1589 = vmatpush1.bf16.msra.mxu0 %v1154
        %1590 = vmatprep.mubr.bf16.mxu0 %v597
        %1591 = vmatmul.mubr.bf16.gmra.mrb[0].mxu0 %v596
        %v1592 = vpop.f32.mrb[0].mxu0
        %v1593 = vadd.f32 %v1440, %v1592
        %v1594 = vpop.f32.mrb[0].mxu0
        %v1595 = vadd.f32 %v1442, %v1594
        %v1596 = vpop.f32.mrb[0].mxu0
        %v1597 = vadd.f32 %v1444, %v1596
        %v1598 = vpop.f32.mrb[0].mxu0
        %v1599 = vadd.f32 %v1446, %v1598
        %1600 = vmatprep.mubr.bf16.mxu0 %v603
        %1601 = vmatmul.mubr.bf16.gmra.mrb[0].mxu0 %v602
        %v1602 = vpop.f32.mrb[0].mxu0
        %v1603 = vadd.f32 %v1450, %v1602
        %v1604 = vpop.f32.mrb[0].mxu0
        %v1605 = vadd.f32 %v1452, %v1604
        %v1606 = vpop.f32.mrb[0].mxu0
        %v1607 = vadd.f32 %v1454, %v1606
        %v1608 = vpop.f32.mrb[0].mxu0
        %v1609 = vadd.f32 %v1456, %v1608
        %1610 = vmatprep.mubr.bf16.mxu0 %v609
        %1611 = vmatmul.mubr.bf16.gmra.mrb[0].mxu0 %v608
        %v1612 = vpop.f32.mrb[0].mxu0
        %v1613 = vadd.f32 %v1460, %v1612
        %v1614 = vpop.f32.mrb[0].mxu0
        %v1615 = vadd.f32 %v1462, %v1614
        %v1616 = vpop.f32.mrb[0].mxu0
        %v1617 = vadd.f32 %v1464, %v1616
        %v1618 = vpop.f32.mrb[0].mxu0
        %v1619 = vadd.f32 %v1466, %v1618
        %1620 = vmatprep.mubr.bf16.mxu0 %v615
        %1621 = vmatmul.mubr.bf16.gmra.mrb[0].mxu0 %v614
        %v1622 = vpop.f32.mrb[0].mxu0
        %v1623 = vadd.f32 %v1470, %v1622
        %v1624 = vpop.f32.mrb[0].mxu0
        %v1625 = vadd.f32 %v1472, %v1624
        %v1626 = vpop.f32.mrb[0].mxu0
        %v1627 = vadd.f32 %v1474, %v1626
        %v1628 = vpop.f32.mrb[0].mxu0
        %v1629 = vadd.f32 %v1476, %v1628
        %1630 = vmatprep.mubr.bf16.mxu0 %v621
        %1631 = vmatmul.mubr.bf16.gmra.mrb[0].mxu0 %v620
        %v1632 = vpop.f32.mrb[0].mxu0
        %v1633 = vadd.f32 %v1480, %v1632
        %v1634 = vpop.f32.mrb[0].mxu0
        %v1635 = vadd.f32 %v1482, %v1634
        %v1636 = vpop.f32.mrb[0].mxu0
        %v1637 = vadd.f32 %v1484, %v1636
        %v1638 = vpop.f32.mrb[0].mxu0
        %v1639 = vadd.f32 %v1486, %v1638
        %1640 = vmatprep.mubr.bf16.mxu0 %v627
        %1641 = vmatmul.mubr.bf16.gmra.mrb[0].mxu0 %v626
        %v1642 = vpop.f32.mrb[0].mxu0
        %v1643 = vadd.f32 %v1490, %v1642
        %v1644 = vpop.f32.mrb[0].mxu0
        %v1645 = vadd.f32 %v1492, %v1644
        %v1646 = vpop.f32.mrb[0].mxu0
        %v1647 = vadd.f32 %v1494, %v1646
        %v1648 = vpop.f32.mrb[0].mxu0
        %v1649 = vadd.f32 %v1496, %v1648
        %1650 = vmatprep.mubr.bf16.mxu0 %v633
        %1651 = vmatmul.mubr.bf16.gmra.mrb[0].mxu0 %v632
        %v1652 = vpop.f32.mrb[0].mxu0
        %v1653 = vadd.f32 %v1500, %v1652
        %v1654 = vpop.f32.mrb[0].mxu0
        %v1655 = vadd.f32 %v1502, %v1654
        %v1656 = vpop.f32.mrb[0].mxu0
        %v1657 = vadd.f32 %v1504, %v1656
        %v1658 = vpop.f32.mrb[0].mxu0
        %v1659 = vadd.f32 %v1506, %v1658
        %1660 = vmatprep.mubr.bf16.mxu0 %v639
        %1661 = vmatmul.mubr.bf16.gmra.mrb[0].mxu0 %v638
        %v1662 = vpop.f32.mrb[0].mxu0
        %v1663 = vadd.f32 %v1510, %v1662
        %v1664 = vpop.f32.mrb[0].mxu0
        %v1665 = vadd.f32 %v1512, %v1664
        %v1666 = vpop.f32.mrb[0].mxu0
        %v1667 = vadd.f32 %v1514, %v1666
        %v1668 = vpop.f32.mrb[0].mxu0
        %v1669 = vadd.f32 %v1516, %v1668
        %1670 = vmatprep.mubr.bf16.mxu0 %v645
        %1671 = vmatmul.mubr.bf16.gmra.mrb[0].mxu0 %v644
        %v1672 = vpop.f32.mrb[0].mxu0
        %v1673 = vadd.f32 %v1520, %v1672
        %v1674 = vpop.f32.mrb[0].mxu0
        %v1675 = vadd.f32 %v1522, %v1674
        %v1676 = vpop.f32.mrb[0].mxu0
        %v1677 = vadd.f32 %v1524, %v1676
        %v1678 = vpop.f32.mrb[0].mxu0
        %v1679 = vadd.f32 %v1526, %v1678
        %1680 = vmatprep.mubr.bf16.mxu0 %v651
        %1681 = vmatmul.mubr.bf16.gmra.mrb[0].mxu0 %v650
        %v1682 = vpop.f32.mrb[0].mxu0
        %v1683 = vadd.f32 %v1530, %v1682
        %v1684 = vpop.f32.mrb[0].mxu0
        %v1685 = vadd.f32 %v1532, %v1684
        %v1686 = vpop.f32.mrb[0].mxu0
        %v1687 = vadd.f32 %v1534, %v1686
        %v1688 = vpop.f32.mrb[0].mxu0
        %v1689 = vadd.f32 %v1536, %v1688
        %1690 = vmatprep.mubr.bf16.mxu0 %v657
        %1691 = vmatmul.mubr.bf16.gmra.mrb[0].mxu0 %v656
        %v1692 = vpop.f32.mrb[0].mxu0
        %v1693 = vadd.f32 %v1540, %v1692
        %v1694 = vpop.f32.mrb[0].mxu0
        %v1695 = vadd.f32 %v1542, %v1694
        %v1696 = vpop.f32.mrb[0].mxu0
        %v1697 = vadd.f32 %v1544, %v1696
        %v1698 = vpop.f32.mrb[0].mxu0
        %v1699 = vadd.f32 %v1546, %v1698
        %1700 = vmatprep.mubr.bf16.mxu0 %v663
        %1701 = vmatmul.mubr.bf16.gmra.mrb[0].mxu0 %v662
        %v1702 = vpop.f32.mrb[0].mxu0
        %v1703 = vadd.f32 %v1550, %v1702
        %v1704 = vpop.f32.mrb[0].mxu0
        %v1705 = vadd.f32 %v1552, %v1704
        %v1706 = vpop.f32.mrb[0].mxu0
        %v1707 = vadd.f32 %v1554, %v1706
        %v1708 = vpop.f32.mrb[0].mxu0
        %v1709 = vadd.f32 %v1556, %v1708
        %1710 = vdwg.mxu0
        %v1711 = vld [vmem:[%s383] sm:$0xff]
        %v1712 = vld [vmem:[%s383 + $0x8] sm:$0xff]
        %v1713 = vld [vmem:[%s383 + $0x10] sm:$0xff]
        %v1714 = vld [vmem:[%s383 + $0x18] sm:$0xff]
        %v1715 = vld [vmem:[%s383 + $0x20] sm:$0xff]
        %v1716 = vld [vmem:[%s383 + $0x28] sm:$0xff]
        %v1717 = vld [vmem:[%s383 + $0x30] sm:$0xff]
        %v1718 = vld [vmem:[%s383 + $0x38] sm:$0xff]
        %v1719 = vld [vmem:[%s383 + $0x40] sm:$0xff]
        %v1720 = vld [vmem:[%s383 + $0x48] sm:$0xff]
        %v1721 = vld [vmem:[%s383 + $0x50] sm:$0xff]
        %v1722 = vld [vmem:[%s383 + $0x58] sm:$0xff]
        %v1723 = vld [vmem:[%s383 + $0x60] sm:$0xff]
        %v1724 = vld [vmem:[%s383 + $0x68] sm:$0xff]
        %v1725 = vld [vmem:[%s383 + $0x70] sm:$0xff]
        %v1726 = vld [vmem:[%s383 + $0x78] sm:$0xff]
        %v1727 = vld [vmem:[%s383 + $0x80] sm:$0xff]
        %v1728 = vld [vmem:[%s383 + $0x88] sm:$0xff]
        %v1729 = vld [vmem:[%s383 + $0x90] sm:$0xff]
        %v1730 = vld [vmem:[%s383 + $0x98] sm:$0xff]
        %v1731 = vld [vmem:[%s383 + $0xa0] sm:$0xff]
        %v1732 = vld [vmem:[%s383 + $0xa8] sm:$0xff]
        %v1733 = vld [vmem:[%s383 + $0xb0] sm:$0xff]
        %v1734 = vld [vmem:[%s383 + $0xb8] sm:$0xff]
        %v1735 = vld [vmem:[%s383 + $0xc0] sm:$0xff]
        %v1736 = vld [vmem:[%s383 + $0xc8] sm:$0xff]
        %v1737 = vld [vmem:[%s383 + $0xd0] sm:$0xff]
        %v1738 = vld [vmem:[%s383 + $0xd8] sm:$0xff]
        %v1739 = vld [vmem:[%s383 + $0xe0] sm:$0xff]
        %v1740 = vld [vmem:[%s383 + $0xe8] sm:$0xff]
        %v1741 = vld [vmem:[%s383 + $0xf0] sm:$0xff]
        %v1742 = vld [vmem:[%s383 + $0xf8] sm:$0xff]
        %v1743 = vld [vmem:[%s383 + $0x100] sm:$0xff]
        %v1744 = vld [vmem:[%s383 + $0x108] sm:$0xff]
        %v1745 = vld [vmem:[%s383 + $0x110] sm:$0xff]
        %v1746 = vld [vmem:[%s383 + $0x118] sm:$0xff]
        %v1747 = vld [vmem:[%s383 + $0x120] sm:$0xff]
        %v1748 = vld [vmem:[%s383 + $0x128] sm:$0xff]
        %v1749 = vld [vmem:[%s383 + $0x130] sm:$0xff]
        %v1750 = vld [vmem:[%s383 + $0x138] sm:$0xff]
        %v1751 = vld [vmem:[%s383 + $0x140] sm:$0xff]
        %v1752 = vld [vmem:[%s383 + $0x148] sm:$0xff]
        %v1753 = vld [vmem:[%s383 + $0x150] sm:$0xff]
        %v1754 = vld [vmem:[%s383 + $0x158] sm:$0xff]
        %v1755 = vld [vmem:[%s383 + $0x160] sm:$0xff]
        %v1756 = vld [vmem:[%s383 + $0x168] sm:$0xff]
        %v1757 = vld [vmem:[%s383 + $0x170] sm:$0xff]
        %v1758 = vld [vmem:[%s383 + $0x178] sm:$0xff]
        %v1759 = vadd.f32 %v1593, %v1711
        %v1760 = vadd.f32 %v1595, %v1712
        %v1761 = vadd.f32 %v1597, %v1713
        %v1762 = vadd.f32 %v1599, %v1714
        %v1763 = vadd.f32 %v1603, %v1715
        %v1764 = vadd.f32 %v1605, %v1716
        %v1765 = vadd.f32 %v1607, %v1717
        %v1766 = vadd.f32 %v1609, %v1718
        %v1767 = vadd.f32 %v1613, %v1719
        %v1768 = vadd.f32 %v1615, %v1720
        %v1769 = vadd.f32 %v1617, %v1721
        %v1770 = vadd.f32 %v1619, %v1722
        %v1771 = vadd.f32 %v1623, %v1723
        %v1772 = vadd.f32 %v1625, %v1724
        %v1773 = vadd.f32 %v1627, %v1725
        %v1774 = vadd.f32 %v1629, %v1726
        %v1775 = vadd.f32 %v1633, %v1727
        %v1776 = vadd.f32 %v1635, %v1728
        %v1777 = vadd.f32 %v1637, %v1729
        %v1778 = vadd.f32 %v1639, %v1730
        %v1779 = vadd.f32 %v1643, %v1731
        %v1780 = vadd.f32 %v1645, %v1732
        %v1781 = vadd.f32 %v1647, %v1733
        %v1782 = vadd.f32 %v1649, %v1734
        %v1783 = vadd.f32 %v1653, %v1735
        %v1784 = vadd.f32 %v1655, %v1736
        %v1785 = vadd.f32 %v1657, %v1737
        %v1786 = vadd.f32 %v1659, %v1738
        %v1787 = vadd.f32 %v1663, %v1739
        %v1788 = vadd.f32 %v1665, %v1740
        %v1789 = vadd.f32 %v1667, %v1741
        %v1790 = vadd.f32 %v1669, %v1742
        %v1791 = vadd.f32 %v1673, %v1743
        %v1792 = vadd.f32 %v1675, %v1744
        %v1793 = vadd.f32 %v1677, %v1745
        %v1794 = vadd.f32 %v1679, %v1746
        %v1795 = vadd.f32 %v1683, %v1747
        %v1796 = vadd.f32 %v1685, %v1748
        %v1797 = vadd.f32 %v1687, %v1749
        %v1798 = vadd.f32 %v1689, %v1750
        %v1799 = vadd.f32 %v1693, %v1751
        %v1800 = vadd.f32 %v1695, %v1752
        %v1801 = vadd.f32 %v1697, %v1753
        %v1802 = vadd.f32 %v1699, %v1754
        %v1803 = vadd.f32 %v1703, %v1755
        %v1804 = vadd.f32 %v1705, %v1756
        %v1805 = vadd.f32 %v1707, %v1757
        %v1806 = vadd.f32 %v1709, %v1758
        %v1807 = vadd.f32 %v1759, %v1760
        %1808 = vadd.xlane.f32.xlu0 %v1807
        %v1809 = vpop.xlane.xlu0 %1808
        %v1810 = vadd.f32 %v1761, %v1762
        %1811 = vadd.xlane.f32.xlu0 %v1810
        %v1812 = vpop.xlane.xlu0 %1811
        %v1813 = vadd.f32 %v1763, %v1764
        %1814 = vadd.xlane.f32.xlu0 %v1813
        %v1815 = vpop.xlane.xlu0 %1814
        %v1816 = vadd.f32 %v1765, %v1766
        %1817 = vadd.xlane.f32.xlu0 %v1816
        %v1818 = vpop.xlane.xlu0 %1817
        %v1819 = vadd.f32 %v1767, %v1768
        %1820 = vadd.xlane.f32.xlu0 %v1819
        %v1821 = vpop.xlane.xlu0 %1820
        %v1822 = vadd.f32 %v1769, %v1770
        %1823 = vadd.xlane.f32.xlu0 %v1822
        %v1824 = vpop.xlane.xlu0 %1823
        %v1825 = vadd.f32 %v1771, %v1772
        %1826 = vadd.xlane.f32.xlu0 %v1825
        %v1827 = vpop.xlane.xlu0 %1826
        %v1828 = vadd.f32 %v1773, %v1774
        %1829 = vadd.xlane.f32.xlu0 %v1828
        %v1830 = vpop.xlane.xlu0 %1829
        %v1831 = vadd.f32 %v1775, %v1776
        %1832 = vadd.xlane.f32.xlu0 %v1831
        %v1833 = vpop.xlane.xlu0 %1832
        %v1834 = vadd.f32 %v1777, %v1778
        %1835 = vadd.xlane.f32.xlu0 %v1834
        %v1836 = vpop.xlane.xlu0 %1835
        %v1837 = vadd.f32 %v1779, %v1780
        %1838 = vadd.xlane.f32.xlu0 %v1837
        %v1839 = vpop.xlane.xlu0 %1838
        %v1840 = vadd.f32 %v1781, %v1782
        %1841 = vadd.xlane.f32.xlu0 %v1840
        %v1842 = vpop.xlane.xlu0 %1841
        %v1843 = vadd.f32 %v1783, %v1784
        %1844 = vadd.xlane.f32.xlu0 %v1843
        %v1845 = vpop.xlane.xlu0 %1844
        %v1846 = vadd.f32 %v1785, %v1786
        %1847 = vadd.xlane.f32.xlu0 %v1846
        %v1848 = vpop.xlane.xlu0 %1847
        %v1849 = vadd.f32 %v1787, %v1788
        %1850 = vadd.xlane.f32.xlu0 %v1849
        %v1851 = vpop.xlane.xlu0 %1850
        %v1852 = vadd.f32 %v1789, %v1790
        %1853 = vadd.xlane.f32.xlu0 %v1852
        %v1854 = vpop.xlane.xlu0 %1853
        %v1855 = vadd.f32 %v1791, %v1792
        %1856 = vadd.xlane.f32.xlu0 %v1855
        %v1857 = vpop.xlane.xlu0 %1856
        %v1858 = vadd.f32 %v1793, %v1794
        %1859 = vadd.xlane.f32.xlu0 %v1858
        %v1860 = vpop.xlane.xlu0 %1859
        %v1861 = vadd.f32 %v1795, %v1796
        %1862 = vadd.xlane.f32.xlu0 %v1861
        %v1863 = vpop.xlane.xlu0 %1862
        %v1864 = vadd.f32 %v1797, %v1798
        %1865 = vadd.xlane.f32.xlu0 %v1864
        %v1866 = vpop.xlane.xlu0 %1865
        %v1867 = vadd.f32 %v1799, %v1800
        %1868 = vadd.xlane.f32.xlu0 %v1867
        %v1869 = vpop.xlane.xlu0 %1868
        %v1870 = vadd.f32 %v1801, %v1802
        %1871 = vadd.xlane.f32.xlu0 %v1870
        %v1872 = vpop.xlane.xlu0 %1871
        %v1873 = vadd.f32 %v1803, %v1804
        %1874 = vadd.xlane.f32.xlu0 %v1873
        %v1875 = vpop.xlane.xlu0 %1874
        %v1876 = vadd.f32 %v1805, %v1806
        %1877 = vadd.xlane.f32.xlu0 %v1876
        %v1878 = vpop.xlane.xlu0 %1877
        %v1879 = vmul.f32 %v1809, 0.00390625
        %v1880 = vmul.f32 %v1812, 0.00390625
        %v1881 = vmul.f32 %v1815, 0.00390625
        %v1882 = vmul.f32 %v1818, 0.00390625
        %v1883 = vmul.f32 %v1821, 0.00390625
        %v1884 = vmul.f32 %v1824, 0.00390625
        %v1885 = vmul.f32 %v1827, 0.00390625
        %v1886 = vmul.f32 %v1830, 0.00390625
        %v1887 = vmul.f32 %v1833, 0.00390625
        %v1888 = vmul.f32 %v1836, 0.00390625
        %v1889 = vmul.f32 %v1839, 0.00390625
        %v1890 = vmul.f32 %v1842, 0.00390625
        %v1891 = vmul.f32 %v1845, 0.00390625
        %v1892 = vmul.f32 %v1848, 0.00390625
        %v1893 = vmul.f32 %v1851, 0.00390625
        %v1894 = vmul.f32 %v1854, 0.00390625
        %v1895 = vmul.f32 %v1857, 0.00390625
        %v1896 = vmul.f32 %v1860, 0.00390625
        %v1897 = vmul.f32 %v1863, 0.00390625
        %v1898 = vmul.f32 %v1866, 0.00390625
        %v1899 = vmul.f32 %v1869, 0.00390625
        %v1900 = vmul.f32 %v1872, 0.00390625
        %v1901 = vmul.f32 %v1875, 0.00390625
        %v1902 = vmul.f32 %v1878, 0.00390625
        %v1903 = vsub.f32 %v1759, %v1879
        %v1904 = vsub.f32 %v1760, %v1879
        %v1905 = vsub.f32 %v1761, %v1880
        %v1906 = vsub.f32 %v1762, %v1880
        %v1907 = vsub.f32 %v1763, %v1881
        %v1908 = vsub.f32 %v1764, %v1881
        %v1909 = vsub.f32 %v1765, %v1882
        %v1910 = vsub.f32 %v1766, %v1882
        %v1911 = vsub.f32 %v1767, %v1883
        %v1912 = vsub.f32 %v1768, %v1883
        %v1913 = vsub.f32 %v1769, %v1884
        %v1914 = vsub.f32 %v1770, %v1884
        %v1915 = vsub.f32 %v1771, %v1885
        %v1916 = vsub.f32 %v1772, %v1885
        %v1917 = vsub.f32 %v1773, %v1886
        %v1918 = vsub.f32 %v1774, %v1886
        %v1919 = vsub.f32 %v1775, %v1887
        %v1920 = vsub.f32 %v1776, %v1887
        %v1921 = vsub.f32 %v1777, %v1888
        %v1922 = vsub.f32 %v1778, %v1888
        %v1923 = vsub.f32 %v1779, %v1889
        %v1924 = vsub.f32 %v1780, %v1889
        %v1925 = vsub.f32 %v1781, %v1890
        %v1926 = vsub.f32 %v1782, %v1890
        %v1927 = vsub.f32 %v1783, %v1891
        %v1928 = vsub.f32 %v1784, %v1891
        %v1929 = vsub.f32 %v1785, %v1892
        %v1930 = vsub.f32 %v1786, %v1892
        %v1931 = vsub.f32 %v1787, %v1893
        %v1932 = vsub.f32 %v1788, %v1893
        %v1933 = vsub.f32 %v1789, %v1894
        %v1934 = vsub.f32 %v1790, %v1894
        %v1935 = vsub.f32 %v1791, %v1895
        %v1936 = vsub.f32 %v1792, %v1895
        %v1937 = vsub.f32 %v1793, %v1896
        %v1938 = vsub.f32 %v1794, %v1896
        %v1939 = vsub.f32 %v1795, %v1897
        %v1940 = vsub.f32 %v1796, %v1897
        %v1941 = vsub.f32 %v1797, %v1898
        %v1942 = vsub.f32 %v1798, %v1898
        %v1943 = vsub.f32 %v1799, %v1899
        %v1944 = vsub.f32 %v1800, %v1899
        %v1945 = vsub.f32 %v1801, %v1900
        %v1946 = vsub.f32 %v1802, %v1900
        %v1947 = vsub.f32 %v1803, %v1901
        %v1948 = vsub.f32 %v1804, %v1901
        %v1949 = vsub.f32 %v1805, %v1902
        %v1950 = vsub.f32 %v1806, %v1902
        %v1951 = vmul.f32 %v1903, %v1903
        %v1952 = vmul.f32 %v1904, %v1904
        %v1953 = vmul.f32 %v1905, %v1905
        %v1954 = vmul.f32 %v1906, %v1906
        %v1955 = vmul.f32 %v1907, %v1907
        %v1956 = vmul.f32 %v1908, %v1908
        %v1957 = vmul.f32 %v1909, %v1909
        %v1958 = vmul.f32 %v1910, %v1910
        %v1959 = vmul.f32 %v1911, %v1911
        %v1960 = vmul.f32 %v1912, %v1912
        %v1961 = vmul.f32 %v1913, %v1913
        %v1962 = vmul.f32 %v1914, %v1914
        %v1963 = vmul.f32 %v1915, %v1915
        %v1964 = vmul.f32 %v1916, %v1916
        %v1965 = vmul.f32 %v1917, %v1917
        %v1966 = vmul.f32 %v1918, %v1918
        %v1967 = vmul.f32 %v1919, %v1919
        %v1968 = vmul.f32 %v1920, %v1920
        %v1969 = vmul.f32 %v1921, %v1921
        %v1970 = vmul.f32 %v1922, %v1922
        %v1971 = vmul.f32 %v1923, %v1923
        %v1972 = vmul.f32 %v1924, %v1924
        %v1973 = vmul.f32 %v1925, %v1925
        %v1974 = vmul.f32 %v1926, %v1926
        %v1975 = vmul.f32 %v1927, %v1927
        %v1976 = vmul.f32 %v1928, %v1928
        %v1977 = vmul.f32 %v1929, %v1929
        %v1978 = vmul.f32 %v1930, %v1930
        %v1979 = vmul.f32 %v1931, %v1931
        %v1980 = vmul.f32 %v1932, %v1932
        %v1981 = vmul.f32 %v1933, %v1933
        %v1982 = vmul.f32 %v1934, %v1934
        %v1983 = vmul.f32 %v1935, %v1935
        %v1984 = vmul.f32 %v1936, %v1936
        %v1985 = vmul.f32 %v1937, %v1937
        %v1986 = vmul.f32 %v1938, %v1938
        %v1987 = vmul.f32 %v1939, %v1939
        %v1988 = vmul.f32 %v1940, %v1940
        %v1989 = vmul.f32 %v1941, %v1941
        %v1990 = vmul.f32 %v1942, %v1942
        %v1991 = vmul.f32 %v1943, %v1943
        %v1992 = vmul.f32 %v1944, %v1944
        %v1993 = vmul.f32 %v1945, %v1945
        %v1994 = vmul.f32 %v1946, %v1946
        %v1995 = vmul.f32 %v1947, %v1947
        %v1996 = vmul.f32 %v1948, %v1948
        %v1997 = vmul.f32 %v1949, %v1949
        %v1998 = vmul.f32 %v1950, %v1950
        %v1999 = vadd.f32 %v1951, %v1952
        %2000 = vadd.xlane.f32.xlu0 %v1999
        %v2001 = vpop.xlane.xlu0 %2000
        %v2002 = vadd.f32 %v1953, %v1954
        %2003 = vadd.xlane.f32.xlu0 %v2002
        %v2004 = vpop.xlane.xlu0 %2003
        %v2005 = vadd.f32 %v1955, %v1956
        %2006 = vadd.xlane.f32.xlu0 %v2005
        %v2007 = vpop.xlane.xlu0 %2006
        %v2008 = vadd.f32 %v1957, %v1958
        %2009 = vadd.xlane.f32.xlu0 %v2008
        %v2010 = vpop.xlane.xlu0 %2009
        %v2011 = vadd.f32 %v1959, %v1960
        %2012 = vadd.xlane.f32.xlu0 %v2011
        %v2013 = vpop.xlane.xlu0 %2012
        %v2014 = vadd.f32 %v1961, %v1962
        %2015 = vadd.xlane.f32.xlu0 %v2014
        %v2016 = vpop.xlane.xlu0 %2015
        %v2017 = vadd.f32 %v1963, %v1964
        %2018 = vadd.xlane.f32.xlu0 %v2017
        %v2019 = vpop.xlane.xlu0 %2018
        %v2020 = vadd.f32 %v1965, %v1966
        %2021 = vadd.xlane.f32.xlu0 %v2020
        %v2022 = vpop.xlane.xlu0 %2021
        %v2023 = vadd.f32 %v1967, %v1968
        %2024 = vadd.xlane.f32.xlu0 %v2023
        %v2025 = vpop.xlane.xlu0 %2024
        %v2026 = vadd.f32 %v1969, %v1970
        %2027 = vadd.xlane.f32.xlu0 %v2026
        %v2028 = vpop.xlane.xlu0 %2027
        %v2029 = vadd.f32 %v1971, %v1972
        %2030 = vadd.xlane.f32.xlu0 %v2029
        %v2031 = vpop.xlane.xlu0 %2030
        %v2032 = vadd.f32 %v1973, %v1974
        %2033 = vadd.xlane.f32.xlu0 %v2032
        %v2034 = vpop.xlane.xlu0 %2033
        %v2035 = vadd.f32 %v1975, %v1976
        %2036 = vadd.xlane.f32.xlu0 %v2035
        %v2037 = vpop.xlane.xlu0 %2036
        %v2038 = vadd.f32 %v1977, %v1978
        %2039 = vadd.xlane.f32.xlu0 %v2038
        %v2040 = vpop.xlane.xlu0 %2039
        %v2041 = vadd.f32 %v1979, %v1980
        %2042 = vadd.xlane.f32.xlu0 %v2041
        %v2043 = vpop.xlane.xlu0 %2042
        %v2044 = vadd.f32 %v1981, %v1982
        %2045 = vadd.xlane.f32.xlu0 %v2044
        %v2046 = vpop.xlane.xlu0 %2045
        %v2047 = vadd.f32 %v1983, %v1984
        %2048 = vadd.xlane.f32.xlu0 %v2047
        %v2049 = vpop.xlane.xlu0 %2048
        %v2050 = vadd.f32 %v1985, %v1986
        %2051 = vadd.xlane.f32.xlu0 %v2050
        %v2052 = vpop.xlane.xlu0 %2051
        %v2053 = vadd.f32 %v1987, %v1988
        %2054 = vadd.xlane.f32.xlu0 %v2053
        %v2055 = vpop.xlane.xlu0 %2054
        %v2056 = vadd.f32 %v1989, %v1990
        %2057 = vadd.xlane.f32.xlu0 %v2056
        %v2058 = vpop.xlane.xlu0 %2057
        %v2059 = vadd.f32 %v1991, %v1992
        %2060 = vadd.xlane.f32.xlu0 %v2059
        %v2061 = vpop.xlane.xlu0 %2060
        %v2062 = vadd.f32 %v1993, %v1994
        %2063 = vadd.xlane.f32.xlu0 %v2062
        %v2064 = vpop.xlane.xlu0 %2063
        %v2065 = vadd.f32 %v1995, %v1996
        %2066 = vadd.xlane.f32.xlu0 %v2065
        %v2067 = vpop.xlane.xlu0 %2066
        %v2068 = vadd.f32 %v1997, %v1998
        %2069 = vadd.xlane.f32.xlu0 %v2068
        %v2070 = vpop.xlane.xlu0 %2069
        %v2071 = vmul.f32 %v2001, 0.00390625
        %v2072 = vmul.f32 %v2004, 0.00390625
        %v2073 = vmul.f32 %v2007, 0.00390625
        %v2074 = vmul.f32 %v2010, 0.00390625
        %v2075 = vmul.f32 %v2013, 0.00390625
        %v2076 = vmul.f32 %v2016, 0.00390625
        %v2077 = vmul.f32 %v2019, 0.00390625
        %v2078 = vmul.f32 %v2022, 0.00390625
        %v2079 = vmul.f32 %v2025, 0.00390625
        %v2080 = vmul.f32 %v2028, 0.00390625
        %v2081 = vmul.f32 %v2031, 0.00390625
        %v2082 = vmul.f32 %v2034, 0.00390625
        %v2083 = vmul.f32 %v2037, 0.00390625
        %v2084 = vmul.f32 %v2040, 0.00390625
        %v2085 = vmul.f32 %v2043, 0.00390625
        %v2086 = vmul.f32 %v2046, 0.00390625
        %v2087 = vmul.f32 %v2049, 0.00390625
        %v2088 = vmul.f32 %v2052, 0.00390625
        %v2089 = vmul.f32 %v2055, 0.00390625
        %v2090 = vmul.f32 %v2058, 0.00390625
        %v2091 = vmul.f32 %v2061, 0.00390625
        %v2092 = vmul.f32 %v2064, 0.00390625
        %v2093 = vmul.f32 %v2067, 0.00390625
        %v2094 = vmul.f32 %v2070, 0.00390625
        %v2095 = vadd.f32 %v2071, 1e-12
        %v2096 = vadd.f32 %v2072, 1e-12
        %v2097 = vadd.f32 %v2073, 1e-12
        %v2098 = vadd.f32 %v2074, 1e-12
        %v2099 = vadd.f32 %v2075, 1e-12
        %v2100 = vadd.f32 %v2076, 1e-12
        %v2101 = vadd.f32 %v2077, 1e-12
        %v2102 = vadd.f32 %v2078, 1e-12
        %v2103 = vadd.f32 %v2079, 1e-12
        %v2104 = vadd.f32 %v2080, 1e-12
        %v2105 = vadd.f32 %v2081, 1e-12
        %v2106 = vadd.f32 %v2082, 1e-12
        %v2107 = vadd.f32 %v2083, 1e-12
        %v2108 = vadd.f32 %v2084, 1e-12
        %v2109 = vadd.f32 %v2085, 1e-12
        %v2110 = vadd.f32 %v2086, 1e-12
        %v2111 = vadd.f32 %v2087, 1e-12
        %v2112 = vadd.f32 %v2088, 1e-12
        %v2113 = vadd.f32 %v2089, 1e-12
        %v2114 = vadd.f32 %v2090, 1e-12
        %v2115 = vadd.f32 %v2091, 1e-12
        %v2116 = vadd.f32 %v2092, 1e-12
        %v2117 = vadd.f32 %v2093, 1e-12
        %v2118 = vadd.f32 %v2094, 1e-12
        %v2119 = vrsqrt.pop %v2095
        %v2120 = vrsqrt.pop %v2096
        %v2121 = vrsqrt.pop %v2097
        %v2122 = vrsqrt.pop %v2098
        %v2123 = vrsqrt.pop %v2099
        %v2124 = vrsqrt.pop %v2100
        %v2125 = vrsqrt.pop %v2101
        %v2126 = vrsqrt.pop %v2102
        %v2127 = vrsqrt.pop %v2103
        %v2128 = vrsqrt.pop %v2104
        %v2129 = vrsqrt.pop %v2105
        %v2130 = vrsqrt.pop %v2106
        %v2131 = vrsqrt.pop %v2107
        %v2132 = vrsqrt.pop %v2108
        %v2133 = vrsqrt.pop %v2109
        %v2134 = vrsqrt.pop %v2110
        %v2135 = vrsqrt.pop %v2111
        %v2136 = vrsqrt.pop %v2112
        %v2137 = vrsqrt.pop %v2113
        %v2138 = vrsqrt.pop %v2114
        %v2139 = vrsqrt.pop %v2115
        %v2140 = vrsqrt.pop %v2116
        %v2141 = vrsqrt.pop %v2117
        %v2142 = vrsqrt.pop %v2118
        %v2143 = vld [vmem:[#allocation10] sm:$0x3]
        %v2145 = vlaneseq
        %v2146 = vshrl.u32 %v2145, 7
        %v2147 = vsub.s32 0, %v2146
        %v2148 = vrot.slane %v2143, %v2147
        %v2149 = vlaneseq
        %v2150 = vshrl.u32 %v2149, 7
        %v2151 = vsub.s32 1, %v2150
        %v2152 = vrot.slane %v2143, %v2151
        %v2155 = vmul.f32 %v2119, %v2148
        %v2156 = vmul.f32 %v2119, %v2152
        %v2157 = vmul.f32 %v2120, %v2148
        %v2158 = vmul.f32 %v2120, %v2152
        %v2159 = vmul.f32 %v2121, %v2148
        %v2160 = vmul.f32 %v2121, %v2152
        %v2161 = vmul.f32 %v2122, %v2148
        %v2162 = vmul.f32 %v2122, %v2152
        %v2163 = vmul.f32 %v2123, %v2148
        %v2164 = vmul.f32 %v2123, %v2152
        %v2165 = vmul.f32 %v2124, %v2148
        %v2166 = vmul.f32 %v2124, %v2152
        %v2167 = vmul.f32 %v2125, %v2148
        %v2168 = vmul.f32 %v2125, %v2152
        %v2169 = vmul.f32 %v2126, %v2148
        %v2170 = vmul.f32 %v2126, %v2152
        %v2171 = vmul.f32 %v2127, %v2148
        %v2172 = vmul.f32 %v2127, %v2152
        %v2173 = vmul.f32 %v2128, %v2148
        %v2174 = vmul.f32 %v2128, %v2152
        %v2175 = vmul.f32 %v2129, %v2148
        %v2176 = vmul.f32 %v2129, %v2152
        %v2177 = vmul.f32 %v2130, %v2148
        %v2178 = vmul.f32 %v2130, %v2152
        %v2179 = vmul.f32 %v2131, %v2148
        %v2180 = vmul.f32 %v2131, %v2152
        %v2181 = vmul.f32 %v2132, %v2148
        %v2182 = vmul.f32 %v2132, %v2152
        %v2183 = vmul.f32 %v2133, %v2148
        %v2184 = vmul.f32 %v2133, %v2152
        %v2185 = vmul.f32 %v2134, %v2148
        %v2186 = vmul.f32 %v2134, %v2152
        %v2187 = vmul.f32 %v2135, %v2148
        %v2188 = vmul.f32 %v2135, %v2152
        %v2189 = vmul.f32 %v2136, %v2148
        %v2190 = vmul.f32 %v2136, %v2152
        %v2191 = vmul.f32 %v2137, %v2148
        %v2192 = vmul.f32 %v2137, %v2152
        %v2193 = vmul.f32 %v2138, %v2148
        %v2194 = vmul.f32 %v2138, %v2152
        %v2195 = vmul.f32 %v2139, %v2148
        %v2196 = vmul.f32 %v2139, %v2152
        %v2197 = vmul.f32 %v2140, %v2148
        %v2198 = vmul.f32 %v2140, %v2152
        %v2199 = vmul.f32 %v2141, %v2148
        %v2200 = vmul.f32 %v2141, %v2152
        %v2201 = vmul.f32 %v2142, %v2148
        %v2202 = vmul.f32 %v2142, %v2152
        %v2203 = vmul.f32 %v1903, %v2155
        %v2204 = vmul.f32 %v1904, %v2156
        %v2205 = vmul.f32 %v1905, %v2157
        %v2206 = vmul.f32 %v1906, %v2158
        %v2207 = vmul.f32 %v1907, %v2159
        %v2208 = vmul.f32 %v1908, %v2160
        %v2209 = vmul.f32 %v1909, %v2161
        %v2210 = vmul.f32 %v1910, %v2162
        %v2211 = vmul.f32 %v1911, %v2163
        %v2212 = vmul.f32 %v1912, %v2164
        %v2213 = vmul.f32 %v1913, %v2165
        %v2214 = vmul.f32 %v1914, %v2166
        %v2215 = vmul.f32 %v1915, %v2167
        %v2216 = vmul.f32 %v1916, %v2168
        %v2217 = vmul.f32 %v1917, %v2169
        %v2218 = vmul.f32 %v1918, %v2170
        %v2219 = vmul.f32 %v1919, %v2171
        %v2220 = vmul.f32 %v1920, %v2172
        %v2221 = vmul.f32 %v1921, %v2173
        %v2222 = vmul.f32 %v1922, %v2174
        %v2223 = vmul.f32 %v1923, %v2175
        %v2224 = vmul.f32 %v1924, %v2176
        %v2225 = vmul.f32 %v1925, %v2177
        %v2226 = vmul.f32 %v1926, %v2178
        %v2227 = vmul.f32 %v1927, %v2179
        %v2228 = vmul.f32 %v1928, %v2180
        %v2229 = vmul.f32 %v1929, %v2181
        %v2230 = vmul.f32 %v1930, %v2182
        %v2231 = vmul.f32 %v1931, %v2183
        %v2232 = vmul.f32 %v1932, %v2184
        %v2233 = vmul.f32 %v1933, %v2185
        %v2234 = vmul.f32 %v1934, %v2186
        %v2235 = vmul.f32 %v1935, %v2187
        %v2236 = vmul.f32 %v1936, %v2188
        %v2237 = vmul.f32 %v1937, %v2189
        %v2238 = vmul.f32 %v1938, %v2190
        %v2239 = vmul.f32 %v1939, %v2191
        %v2240 = vmul.f32 %v1940, %v2192
        %v2241 = vmul.f32 %v1941, %v2193
        %v2242 = vmul.f32 %v1942, %v2194
        %v2243 = vmul.f32 %v1943, %v2195
        %v2244 = vmul.f32 %v1944, %v2196
        %v2245 = vmul.f32 %v1945, %v2197
        %v2246 = vmul.f32 %v1946, %v2198
        %v2247 = vmul.f32 %v1947, %v2199
        %v2248 = vmul.f32 %v1948, %v2200
        %v2249 = vmul.f32 %v1949, %v2201
        %v2250 = vmul.f32 %v1950, %v2202
        %v2251 = vld [vmem:[#allocation11] sm:$0x3]
        %v2253 = vlaneseq
        %v2254 = vshrl.u32 %v2253, 7
        %v2255 = vsub.s32 0, %v2254
        %v2256 = vrot.slane %v2251, %v2255
        %v2257 = vlaneseq
        %v2258 = vshrl.u32 %v2257, 7
        %v2259 = vsub.s32 1, %v2258
        %v2260 = vrot.slane %v2251, %v2259
        %v2263 = vadd.f32 %v2203, %v2256
        %v2264 = vadd.f32 %v2204, %v2260
        %v2265 = vadd.f32 %v2205, %v2256
        %v2266 = vadd.f32 %v2206, %v2260
        %v2267 = vadd.f32 %v2207, %v2256
        %v2268 = vadd.f32 %v2208, %v2260
        %v2269 = vadd.f32 %v2209, %v2256
        %v2270 = vadd.f32 %v2210, %v2260
        %v2271 = vadd.f32 %v2211, %v2256
        %v2272 = vadd.f32 %v2212, %v2260
        %v2273 = vadd.f32 %v2213, %v2256
        %v2274 = vadd.f32 %v2214, %v2260
        %v2275 = vadd.f32 %v2215, %v2256
        %v2276 = vadd.f32 %v2216, %v2260
        %v2277 = vadd.f32 %v2217, %v2256
        %v2278 = vadd.f32 %v2218, %v2260
        %v2279 = vadd.f32 %v2219, %v2256
        %v2280 = vadd.f32 %v2220, %v2260
        %v2281 = vadd.f32 %v2221, %v2256
        %v2282 = vadd.f32 %v2222, %v2260
        %v2283 = vadd.f32 %v2223, %v2256
        %v2284 = vadd.f32 %v2224, %v2260
        %v2285 = vadd.f32 %v2225, %v2256
        %v2286 = vadd.f32 %v2226, %v2260
        %v2287 = vadd.f32 %v2227, %v2256
        %v2288 = vadd.f32 %v2228, %v2260
        %v2289 = vadd.f32 %v2229, %v2256
        %v2290 = vadd.f32 %v2230, %v2260
        %v2291 = vadd.f32 %v2231, %v2256
        %v2292 = vadd.f32 %v2232, %v2260
        %v2293 = vadd.f32 %v2233, %v2256
        %v2294 = vadd.f32 %v2234, %v2260
        %v2295 = vadd.f32 %v2235, %v2256
        %v2296 = vadd.f32 %v2236, %v2260
        %v2297 = vadd.f32 %v2237, %v2256
        %v2298 = vadd.f32 %v2238, %v2260
        %v2299 = vadd.f32 %v2239, %v2256
        %v2300 = vadd.f32 %v2240, %v2260
        %v2301 = vadd.f32 %v2241, %v2256
        %v2302 = vadd.f32 %v2242, %v2260
        %v2303 = vadd.f32 %v2243, %v2256
        %v2304 = vadd.f32 %v2244, %v2260
        %v2305 = vadd.f32 %v2245, %v2256
        %v2306 = vadd.f32 %v2246, %v2260
        %v2307 = vadd.f32 %v2247, %v2256
        %v2308 = vadd.f32 %v2248, %v2260
        %v2309 = vadd.f32 %v2249, %v2256
        %v2310 = vadd.f32 %v2250, %v2260
        %v2311 = vpack.c.bf16 %v2265, %v2263
        %v2312 = vpack.c.bf16 %v2266, %v2264
        %v2313 = vpack.c.bf16 %v2269, %v2267
        %v2314 = vpack.c.bf16 %v2270, %v2268
        %v2315 = vpack.c.bf16 %v2273, %v2271
        %v2316 = vpack.c.bf16 %v2274, %v2272
        %v2317 = vpack.c.bf16 %v2277, %v2275
        %v2318 = vpack.c.bf16 %v2278, %v2276
        %v2319 = vpack.c.bf16 %v2281, %v2279
        %v2320 = vpack.c.bf16 %v2282, %v2280
        %v2321 = vpack.c.bf16 %v2285, %v2283
        %v2322 = vpack.c.bf16 %v2286, %v2284
        %v2323 = vpack.c.bf16 %v2289, %v2287
        %v2324 = vpack.c.bf16 %v2290, %v2288
        %v2325 = vpack.c.bf16 %v2293, %v2291
        %v2326 = vpack.c.bf16 %v2294, %v2292
        %v2327 = vpack.c.bf16 %v2297, %v2295
        %v2328 = vpack.c.bf16 %v2298, %v2296
        %v2329 = vpack.c.bf16 %v2301, %v2299
        %v2330 = vpack.c.bf16 %v2302, %v2300
        %v2331 = vpack.c.bf16 %v2305, %v2303
        %v2332 = vpack.c.bf16 %v2306, %v2304
        %v2333 = vpack.c.bf16 %v2309, %v2307
        %v2334 = vpack.c.bf16 %v2310, %v2308
        %v2335 = vld [vmem:[#allocation13] sm:$0xff]
        %v2336 = vld [vmem:[#allocation13 + $0x8] sm:$0xff]
        %v2337 = vld [vmem:[#allocation13 + $0x10] sm:$0xff]
        %v2338 = vld [vmem:[#allocation13 + $0x18] sm:$0xff]
        %v2339 = vld [vmem:[#allocation13 + $0x20] sm:$0xff]
        %v2340 = vld [vmem:[#allocation13 + $0x28] sm:$0xff]
        %v2341 = vld [vmem:[#allocation13 + $0x30] sm:$0xff]
        %v2342 = vld [vmem:[#allocation13 + $0x38] sm:$0xff]
        %v2343 = vld [vmem:[#allocation13 + $0x40] sm:$0xff]
        %v2344 = vld [vmem:[#allocation13 + $0x48] sm:$0xff]
        %v2345 = vld [vmem:[#allocation13 + $0x50] sm:$0xff]
        %v2346 = vld [vmem:[#allocation13 + $0x58] sm:$0xff]
        %v2347 = vld [vmem:[#allocation13 + $0x60] sm:$0xff]
        %v2348 = vld [vmem:[#allocation13 + $0x68] sm:$0xff]
        %v2349 = vld [vmem:[#allocation13 + $0x70] sm:$0xff]
        %v2350 = vld [vmem:[#allocation13 + $0x78] sm:$0xff]
        %v2351 = vld [vmem:[#allocation13 + $0x80] sm:$0xff]
        %v2352 = vld [vmem:[#allocation13 + $0x88] sm:$0xff]
        %v2353 = vld [vmem:[#allocation13 + $0x90] sm:$0xff]
        %v2354 = vld [vmem:[#allocation13 + $0x98] sm:$0xff]
        %v2355 = vld [vmem:[#allocation13 + $0xa0] sm:$0xff]
        %v2356 = vld [vmem:[#allocation13 + $0xa8] sm:$0xff]
        %v2357 = vld [vmem:[#allocation13 + $0xb0] sm:$0xff]
        %v2358 = vld [vmem:[#allocation13 + $0xb8] sm:$0xff]
        %v2359 = vld [vmem:[#allocation13 + $0xc0] sm:$0xff]
        %v2360 = vld [vmem:[#allocation13 + $0xc8] sm:$0xff]
        %v2361 = vld [vmem:[#allocation13 + $0xd0] sm:$0xff]
        %v2362 = vld [vmem:[#allocation13 + $0xd8] sm:$0xff]
        %v2363 = vld [vmem:[#allocation13 + $0xe0] sm:$0xff]
        %v2364 = vld [vmem:[#allocation13 + $0xe8] sm:$0xff]
        %v2365 = vld [vmem:[#allocation13 + $0xf0] sm:$0xff]
        %v2366 = vld [vmem:[#allocation13 + $0xf8] sm:$0xff]
        %v2367 = vld [vmem:[#allocation13 + $0x100] sm:$0xff]
        %v2368 = vld [vmem:[#allocation13 + $0x108] sm:$0xff]
        %v2369 = vld [vmem:[#allocation13 + $0x110] sm:$0xff]
        %v2370 = vld [vmem:[#allocation13 + $0x118] sm:$0xff]
        %v2371 = vld [vmem:[#allocation13 + $0x120] sm:$0xff]
        %v2372 = vld [vmem:[#allocation13 + $0x128] sm:$0xff]
        %v2373 = vld [vmem:[#allocation13 + $0x130] sm:$0xff]
        %v2374 = vld [vmem:[#allocation13 + $0x138] sm:$0xff]
        %v2375 = vld [vmem:[#allocation13 + $0x140] sm:$0xff]
        %v2376 = vld [vmem:[#allocation13 + $0x148] sm:$0xff]
        %v2377 = vld [vmem:[#allocation13 + $0x150] sm:$0xff]
        %v2378 = vld [vmem:[#allocation13 + $0x158] sm:$0xff]
        %v2379 = vld [vmem:[#allocation13 + $0x160] sm:$0xff]
        %v2380 = vld [vmem:[#allocation13 + $0x168] sm:$0xff]
        %v2381 = vld [vmem:[#allocation13 + $0x170] sm:$0xff]
        %v2382 = vld [vmem:[#allocation13 + $0x178] sm:$0xff]
        %v2383 = vld [vmem:[#allocation13 + $0x180] sm:$0xff]
        %v2384 = vld [vmem:[#allocation13 + $0x188] sm:$0xff]
        %v2385 = vld [vmem:[#allocation13 + $0x190] sm:$0xff]
        %v2386 = vld [vmem:[#allocation13 + $0x198] sm:$0xff]
        %v2387 = vld [vmem:[#allocation13 + $0x1a0] sm:$0xff]
        %v2388 = vld [vmem:[#allocation13 + $0x1a8] sm:$0xff]
        %v2389 = vld [vmem:[#allocation13 + $0x1b0] sm:$0xff]
        %v2390 = vld [vmem:[#allocation13 + $0x1b8] sm:$0xff]
        %v2391 = vld [vmem:[#allocation13 + $0x1c0] sm:$0xff]
        %v2392 = vld [vmem:[#allocation13 + $0x1c8] sm:$0xff]
        %v2393 = vld [vmem:[#allocation13 + $0x1d0] sm:$0xff]
        %v2394 = vld [vmem:[#allocation13 + $0x1d8] sm:$0xff]
        %v2395 = vld [vmem:[#allocation13 + $0x1e0] sm:$0xff]
        %v2396 = vld [vmem:[#allocation13 + $0x1e8] sm:$0xff]
        %v2397 = vld [vmem:[#allocation13 + $0x1f0] sm:$0xff]
        %v2398 = vld [vmem:[#allocation13 + $0x1f8] sm:$0xff]
        %v2399 = vld [vmem:[#allocation13 + $0x200] sm:$0xff]
        %v2400 = vld [vmem:[#allocation13 + $0x208] sm:$0xff]
        %v2401 = vld [vmem:[#allocation13 + $0x210] sm:$0xff]
        %v2402 = vld [vmem:[#allocation13 + $0x218] sm:$0xff]
        %v2403 = vld [vmem:[#allocation13 + $0x220] sm:$0xff]
        %v2404 = vld [vmem:[#allocation13 + $0x228] sm:$0xff]
        %v2405 = vld [vmem:[#allocation13 + $0x230] sm:$0xff]
        %v2406 = vld [vmem:[#allocation13 + $0x238] sm:$0xff]
        %v2407 = vld [vmem:[#allocation13 + $0x240] sm:$0xff]
        %v2408 = vld [vmem:[#allocation13 + $0x248] sm:$0xff]
        %v2409 = vld [vmem:[#allocation13 + $0x250] sm:$0xff]
        %v2410 = vld [vmem:[#allocation13 + $0x258] sm:$0xff]
        %v2411 = vld [vmem:[#allocation13 + $0x260] sm:$0xff]
        %v2412 = vld [vmem:[#allocation13 + $0x268] sm:$0xff]
        %v2413 = vld [vmem:[#allocation13 + $0x270] sm:$0xff]
        %v2414 = vld [vmem:[#allocation13 + $0x278] sm:$0xff]
        %v2415 = vld [vmem:[#allocation13 + $0x280] sm:$0xff]
        %v2416 = vld [vmem:[#allocation13 + $0x288] sm:$0xff]
        %v2417 = vld [vmem:[#allocation13 + $0x290] sm:$0xff]
        %v2418 = vld [vmem:[#allocation13 + $0x298] sm:$0xff]
        %v2419 = vld [vmem:[#allocation13 + $0x2a0] sm:$0xff]
        %v2420 = vld [vmem:[#allocation13 + $0x2a8] sm:$0xff]
        %v2421 = vld [vmem:[#allocation13 + $0x2b0] sm:$0xff]
        %v2422 = vld [vmem:[#allocation13 + $0x2b8] sm:$0xff]
        %v2423 = vld [vmem:[#allocation13 + $0x2c0] sm:$0xff]
        %v2424 = vld [vmem:[#allocation13 + $0x2c8] sm:$0xff]
        %v2425 = vld [vmem:[#allocation13 + $0x2d0] sm:$0xff]
        %v2426 = vld [vmem:[#allocation13 + $0x2d8] sm:$0xff]
        %v2427 = vld [vmem:[#allocation13 + $0x2e0] sm:$0xff]
        %v2428 = vld [vmem:[#allocation13 + $0x2e8] sm:$0xff]
        %v2429 = vld [vmem:[#allocation13 + $0x2f0] sm:$0xff]
        %v2430 = vld [vmem:[#allocation13 + $0x2f8] sm:$0xff]
        %v2431 = vld [vmem:[#allocation13 + $0x300] sm:$0xff]
        %v2432 = vld [vmem:[#allocation13 + $0x308] sm:$0xff]
        %v2433 = vld [vmem:[#allocation13 + $0x310] sm:$0xff]
        %v2434 = vld [vmem:[#allocation13 + $0x318] sm:$0xff]
        %v2435 = vld [vmem:[#allocation13 + $0x320] sm:$0xff]
        %v2436 = vld [vmem:[#allocation13 + $0x328] sm:$0xff]
        %v2437 = vld [vmem:[#allocation13 + $0x330] sm:$0xff]
        %v2438 = vld [vmem:[#allocation13 + $0x338] sm:$0xff]
        %v2439 = vld [vmem:[#allocation13 + $0x340] sm:$0xff]
        %v2440 = vld [vmem:[#allocation13 + $0x348] sm:$0xff]
        %v2441 = vld [vmem:[#allocation13 + $0x350] sm:$0xff]
        %v2442 = vld [vmem:[#allocation13 + $0x358] sm:$0xff]
        %v2443 = vld [vmem:[#allocation13 + $0x360] sm:$0xff]
        %v2444 = vld [vmem:[#allocation13 + $0x368] sm:$0xff]
        %v2445 = vld [vmem:[#allocation13 + $0x370] sm:$0xff]
        %v2446 = vld [vmem:[#allocation13 + $0x378] sm:$0xff]
        %v2447 = vld [vmem:[#allocation13 + $0x380] sm:$0xff]
        %v2448 = vld [vmem:[#allocation13 + $0x388] sm:$0xff]
        %v2449 = vld [vmem:[#allocation13 + $0x390] sm:$0xff]
        %v2450 = vld [vmem:[#allocation13 + $0x398] sm:$0xff]
        %v2451 = vld [vmem:[#allocation13 + $0x3a0] sm:$0xff]
        %v2452 = vld [vmem:[#allocation13 + $0x3a8] sm:$0xff]
        %v2453 = vld [vmem:[#allocation13 + $0x3b0] sm:$0xff]
        %v2454 = vld [vmem:[#allocation13 + $0x3b8] sm:$0xff]
        %v2455 = vld [vmem:[#allocation13 + $0x3c0] sm:$0xff]
        %v2456 = vld [vmem:[#allocation13 + $0x3c8] sm:$0xff]
        %v2457 = vld [vmem:[#allocation13 + $0x3d0] sm:$0xff]
        %v2458 = vld [vmem:[#allocation13 + $0x3d8] sm:$0xff]
        %v2459 = vld [vmem:[#allocation13 + $0x3e0] sm:$0xff]
        %v2460 = vld [vmem:[#allocation13 + $0x3e8] sm:$0xff]
        %v2461 = vld [vmem:[#allocation13 + $0x3f0] sm:$0xff]
        %v2462 = vld [vmem:[#allocation13 + $0x3f8] sm:$0xff]
        %v2463 = vld [vmem:[#allocation14] sm:$0xff]
        %v2465 = vlaneseq
        %v2466 = vshrl.u32 %v2465, 7
        %v2467 = vsub.s32 0, %v2466
        %v2468 = vrot.slane %v2463, %v2467
        %v2469 = vlaneseq
        %v2470 = vshrl.u32 %v2469, 7
        %v2471 = vsub.s32 1, %v2470
        %v2472 = vrot.slane %v2463, %v2471
        %v2473 = vlaneseq
        %v2474 = vshrl.u32 %v2473, 7
        %v2475 = vsub.s32 2, %v2474
        %v2476 = vrot.slane %v2463, %v2475
        %v2477 = vlaneseq
        %v2478 = vshrl.u32 %v2477, 7
        %v2479 = vsub.s32 3, %v2478
        %v2480 = vrot.slane %v2463, %v2479
        %v2481 = vlaneseq
        %v2482 = vshrl.u32 %v2481, 7
        %v2483 = vsub.s32 4, %v2482
        %v2484 = vrot.slane %v2463, %v2483
        %v2485 = vlaneseq
        %v2486 = vshrl.u32 %v2485, 7
        %v2487 = vsub.s32 5, %v2486
        %v2488 = vrot.slane %v2463, %v2487
        %v2489 = vlaneseq
        %v2490 = vshrl.u32 %v2489, 7
        %v2491 = vsub.s32 6, %v2490
        %v2492 = vrot.slane %v2463, %v2491
        %v2493 = vlaneseq
        %v2494 = vshrl.u32 %v2493, 7
        %v2495 = vsub.s32 7, %v2494
        %v2496 = vrot.slane %v2463, %v2495
        %v2633 = vunpack.c.l.b16 %v2335
        %v2634 = vunpack.c.h.b16 %v2335
        %v2635 = vunpack.c.l.b16 %v2336
        %v2636 = vunpack.c.h.b16 %v2336
        %v2637 = vunpack.c.l.b16 %v2337
        %v2638 = vunpack.c.h.b16 %v2337
        %v2639 = vunpack.c.l.b16 %v2338
        %v2640 = vunpack.c.h.b16 %v2338
        %v2641 = vunpack.c.l.b16 %v2339
        %v2642 = vunpack.c.h.b16 %v2339
        %v2643 = vunpack.c.l.b16 %v2340
        %v2644 = vunpack.c.h.b16 %v2340
        %v2645 = vunpack.c.l.b16 %v2341
        %v2646 = vunpack.c.h.b16 %v2341
        %v2647 = vunpack.c.l.b16 %v2342
        %v2648 = vunpack.c.h.b16 %v2342
        %v2649 = vunpack.c.l.b16 %v2343
        %v2650 = vunpack.c.h.b16 %v2343
        %v2651 = vunpack.c.l.b16 %v2344
        %v2652 = vunpack.c.h.b16 %v2344
        %v2653 = vunpack.c.l.b16 %v2345
        %v2654 = vunpack.c.h.b16 %v2345
        %v2655 = vunpack.c.l.b16 %v2346
        %v2656 = vunpack.c.h.b16 %v2346
        %v2657 = vunpack.c.l.b16 %v2347
        %v2658 = vunpack.c.h.b16 %v2347
        %v2659 = vunpack.c.l.b16 %v2348
        %v2660 = vunpack.c.h.b16 %v2348
        %v2661 = vunpack.c.l.b16 %v2349
        %v2662 = vunpack.c.h.b16 %v2349
        %v2663 = vunpack.c.l.b16 %v2350
        %v2664 = vunpack.c.h.b16 %v2350
        %v2665 = vunpack.c.l.b16 %v2351
        %v2666 = vunpack.c.h.b16 %v2351
        %v2667 = vunpack.c.l.b16 %v2352
        %v2668 = vunpack.c.h.b16 %v2352
        %v2669 = vunpack.c.l.b16 %v2353
        %v2670 = vunpack.c.h.b16 %v2353
        %v2671 = vunpack.c.l.b16 %v2354
        %v2672 = vunpack.c.h.b16 %v2354
        %v2673 = vunpack.c.l.b16 %v2355
        %v2674 = vunpack.c.h.b16 %v2355
        %v2675 = vunpack.c.l.b16 %v2356
        %v2676 = vunpack.c.h.b16 %v2356
        %v2677 = vunpack.c.l.b16 %v2357
        %v2678 = vunpack.c.h.b16 %v2357
        %v2679 = vunpack.c.l.b16 %v2358
        %v2680 = vunpack.c.h.b16 %v2358
        %v2681 = vunpack.c.l.b16 %v2359
        %v2682 = vunpack.c.h.b16 %v2359
        %v2683 = vunpack.c.l.b16 %v2360
        %v2684 = vunpack.c.h.b16 %v2360
        %v2685 = vunpack.c.l.b16 %v2361
        %v2686 = vunpack.c.h.b16 %v2361
        %v2687 = vunpack.c.l.b16 %v2362
        %v2688 = vunpack.c.h.b16 %v2362
        %v2689 = vunpack.c.l.b16 %v2363
        %v2690 = vunpack.c.h.b16 %v2363
        %v2691 = vunpack.c.l.b16 %v2364
        %v2692 = vunpack.c.h.b16 %v2364
        %v2693 = vunpack.c.l.b16 %v2365
        %v2694 = vunpack.c.h.b16 %v2365
        %v2695 = vunpack.c.l.b16 %v2366
        %v2696 = vunpack.c.h.b16 %v2366
        %v2697 = vunpack.c.l.b16 %v2367
        %v2698 = vunpack.c.h.b16 %v2367
        %v2699 = vunpack.c.l.b16 %v2368
        %v2700 = vunpack.c.h.b16 %v2368
        %v2701 = vunpack.c.l.b16 %v2369
        %v2702 = vunpack.c.h.b16 %v2369
        %v2703 = vunpack.c.l.b16 %v2370
        %v2704 = vunpack.c.h.b16 %v2370
        %v2705 = vunpack.c.l.b16 %v2371
        %v2706 = vunpack.c.h.b16 %v2371
        %v2707 = vunpack.c.l.b16 %v2372
        %v2708 = vunpack.c.h.b16 %v2372
        %v2709 = vunpack.c.l.b16 %v2373
        %v2710 = vunpack.c.h.b16 %v2373
        %v2711 = vunpack.c.l.b16 %v2374
        %v2712 = vunpack.c.h.b16 %v2374
        %v2713 = vunpack.c.l.b16 %v2375
        %v2714 = vunpack.c.h.b16 %v2375
        %v2715 = vunpack.c.l.b16 %v2376
        %v2716 = vunpack.c.h.b16 %v2376
        %v2717 = vunpack.c.l.b16 %v2377
        %v2718 = vunpack.c.h.b16 %v2377
        %v2719 = vunpack.c.l.b16 %v2378
        %v2720 = vunpack.c.h.b16 %v2378
        %v2721 = vunpack.c.l.b16 %v2379
        %v2722 = vunpack.c.h.b16 %v2379
        %v2723 = vunpack.c.l.b16 %v2380
        %v2724 = vunpack.c.h.b16 %v2380
        %v2725 = vunpack.c.l.b16 %v2381
        %v2726 = vunpack.c.h.b16 %v2381
        %v2727 = vunpack.c.l.b16 %v2382
        %v2728 = vunpack.c.h.b16 %v2382
        %v2729 = vunpack.c.l.b16 %v2383
        %v2730 = vunpack.c.h.b16 %v2383
        %v2731 = vunpack.c.l.b16 %v2384
        %v2732 = vunpack.c.h.b16 %v2384
        %v2733 = vunpack.c.l.b16 %v2385
        %v2734 = vunpack.c.h.b16 %v2385
        %v2735 = vunpack.c.l.b16 %v2386
        %v2736 = vunpack.c.h.b16 %v2386
        %v2737 = vunpack.c.l.b16 %v2387
        %v2738 = vunpack.c.h.b16 %v2387
        %v2739 = vunpack.c.l.b16 %v2388
        %v2740 = vunpack.c.h.b16 %v2388
        %v2741 = vunpack.c.l.b16 %v2389
        %v2742 = vunpack.c.h.b16 %v2389
        %v2743 = vunpack.c.l.b16 %v2390
        %v2744 = vunpack.c.h.b16 %v2390
        %v2745 = vunpack.c.l.b16 %v2391
        %v2746 = vunpack.c.h.b16 %v2391
        %v2747 = vunpack.c.l.b16 %v2392
        %v2748 = vunpack.c.h.b16 %v2392
        %v2749 = vunpack.c.l.b16 %v2393
        %v2750 = vunpack.c.h.b16 %v2393
        %v2751 = vunpack.c.l.b16 %v2394
        %v2752 = vunpack.c.h.b16 %v2394
        %v2753 = vunpack.c.l.b16 %v2395
        %v2754 = vunpack.c.h.b16 %v2395
        %v2755 = vunpack.c.l.b16 %v2396
        %v2756 = vunpack.c.h.b16 %v2396
        %v2757 = vunpack.c.l.b16 %v2397
        %v2758 = vunpack.c.h.b16 %v2397
        %v2759 = vunpack.c.l.b16 %v2398
        %v2760 = vunpack.c.h.b16 %v2398
        %v2761 = vunpack.c.l.b16 %v2399
        %v2762 = vunpack.c.h.b16 %v2399
        %v2763 = vunpack.c.l.b16 %v2400
        %v2764 = vunpack.c.h.b16 %v2400
        %v2765 = vunpack.c.l.b16 %v2401
        %v2766 = vunpack.c.h.b16 %v2401
        %v2767 = vunpack.c.l.b16 %v2402
        %v2768 = vunpack.c.h.b16 %v2402
        %v2769 = vunpack.c.l.b16 %v2403
        %v2770 = vunpack.c.h.b16 %v2403
        %v2771 = vunpack.c.l.b16 %v2404
        %v2772 = vunpack.c.h.b16 %v2404
        %v2773 = vunpack.c.l.b16 %v2405
        %v2774 = vunpack.c.h.b16 %v2405
        %v2775 = vunpack.c.l.b16 %v2406
        %v2776 = vunpack.c.h.b16 %v2406
        %v2777 = vunpack.c.l.b16 %v2407
        %v2778 = vunpack.c.h.b16 %v2407
        %v2779 = vunpack.c.l.b16 %v2408
        %v2780 = vunpack.c.h.b16 %v2408
        %v2781 = vunpack.c.l.b16 %v2409
        %v2782 = vunpack.c.h.b16 %v2409
        %v2783 = vunpack.c.l.b16 %v2410
        %v2784 = vunpack.c.h.b16 %v2410
        %v2785 = vunpack.c.l.b16 %v2411
        %v2786 = vunpack.c.h.b16 %v2411
        %v2787 = vunpack.c.l.b16 %v2412
        %v2788 = vunpack.c.h.b16 %v2412
        %v2789 = vunpack.c.l.b16 %v2413
        %v2790 = vunpack.c.h.b16 %v2413
        %v2791 = vunpack.c.l.b16 %v2414
        %v2792 = vunpack.c.h.b16 %v2414
        %v2793 = vunpack.c.l.b16 %v2415
        %v2794 = vunpack.c.h.b16 %v2415
        %v2795 = vunpack.c.l.b16 %v2416
        %v2796 = vunpack.c.h.b16 %v2416
        %v2797 = vunpack.c.l.b16 %v2417
        %v2798 = vunpack.c.h.b16 %v2417
        %v2799 = vunpack.c.l.b16 %v2418
        %v2800 = vunpack.c.h.b16 %v2418
        %v2801 = vunpack.c.l.b16 %v2419
        %v2802 = vunpack.c.h.b16 %v2419
        %v2803 = vunpack.c.l.b16 %v2420
        %v2804 = vunpack.c.h.b16 %v2420
        %v2805 = vunpack.c.l.b16 %v2421
        %v2806 = vunpack.c.h.b16 %v2421
        %v2807 = vunpack.c.l.b16 %v2422
        %v2808 = vunpack.c.h.b16 %v2422
        %v2809 = vunpack.c.l.b16 %v2423
        %v2810 = vunpack.c.h.b16 %v2423
        %v2811 = vunpack.c.l.b16 %v2424
        %v2812 = vunpack.c.h.b16 %v2424
        %v2813 = vunpack.c.l.b16 %v2425
        %v2814 = vunpack.c.h.b16 %v2425
        %v2815 = vunpack.c.l.b16 %v2426
        %v2816 = vunpack.c.h.b16 %v2426
        %v2817 = vunpack.c.l.b16 %v2427
        %v2818 = vunpack.c.h.b16 %v2427
        %v2819 = vunpack.c.l.b16 %v2428
        %v2820 = vunpack.c.h.b16 %v2428
        %v2821 = vunpack.c.l.b16 %v2429
        %v2822 = vunpack.c.h.b16 %v2429
        %v2823 = vunpack.c.l.b16 %v2430
        %v2824 = vunpack.c.h.b16 %v2430
        %v2825 = vunpack.c.l.b16 %v2431
        %v2826 = vunpack.c.h.b16 %v2431
        %v2827 = vunpack.c.l.b16 %v2432
        %v2828 = vunpack.c.h.b16 %v2432
        %v2829 = vunpack.c.l.b16 %v2433
        %v2830 = vunpack.c.h.b16 %v2433
        %v2831 = vunpack.c.l.b16 %v2434
        %v2832 = vunpack.c.h.b16 %v2434
        %v2833 = vunpack.c.l.b16 %v2435
        %v2834 = vunpack.c.h.b16 %v2435
        %v2835 = vunpack.c.l.b16 %v2436
        %v2836 = vunpack.c.h.b16 %v2436
        %v2837 = vunpack.c.l.b16 %v2437
        %v2838 = vunpack.c.h.b16 %v2437
        %v2839 = vunpack.c.l.b16 %v2438
        %v2840 = vunpack.c.h.b16 %v2438
        %v2841 = vunpack.c.l.b16 %v2439
        %v2842 = vunpack.c.h.b16 %v2439
        %v2843 = vunpack.c.l.b16 %v2440
        %v2844 = vunpack.c.h.b16 %v2440
        %v2845 = vunpack.c.l.b16 %v2441
        %v2846 = vunpack.c.h.b16 %v2441
        %v2847 = vunpack.c.l.b16 %v2442
        %v2848 = vunpack.c.h.b16 %v2442
        %v2849 = vunpack.c.l.b16 %v2443
        %v2850 = vunpack.c.h.b16 %v2443
        %v2851 = vunpack.c.l.b16 %v2444
        %v2852 = vunpack.c.h.b16 %v2444
        %v2853 = vunpack.c.l.b16 %v2445
        %v2854 = vunpack.c.h.b16 %v2445
        %v2855 = vunpack.c.l.b16 %v2446
        %v2856 = vunpack.c.h.b16 %v2446
        %v2857 = vunpack.c.l.b16 %v2447
        %v2858 = vunpack.c.h.b16 %v2447
        %v2859 = vunpack.c.l.b16 %v2448
        %v2860 = vunpack.c.h.b16 %v2448
        %v2861 = vunpack.c.l.b16 %v2449
        %v2862 = vunpack.c.h.b16 %v2449
        %v2863 = vunpack.c.l.b16 %v2450
        %v2864 = vunpack.c.h.b16 %v2450
        %v2865 = vunpack.c.l.b16 %v2451
        %v2866 = vunpack.c.h.b16 %v2451
        %v2867 = vunpack.c.l.b16 %v2452
        %v2868 = vunpack.c.h.b16 %v2452
        %v2869 = vunpack.c.l.b16 %v2453
        %v2870 = vunpack.c.h.b16 %v2453
        %v2871 = vunpack.c.l.b16 %v2454
        %v2872 = vunpack.c.h.b16 %v2454
        %v2873 = vunpack.c.l.b16 %v2455
        %v2874 = vunpack.c.h.b16 %v2455
        %v2875 = vunpack.c.l.b16 %v2456
        %v2876 = vunpack.c.h.b16 %v2456
        %v2877 = vunpack.c.l.b16 %v2457
        %v2878 = vunpack.c.h.b16 %v2457
        %v2879 = vunpack.c.l.b16 %v2458
        %v2880 = vunpack.c.h.b16 %v2458
        %v2881 = vunpack.c.l.b16 %v2459
        %v2882 = vunpack.c.h.b16 %v2459
        %v2883 = vunpack.c.l.b16 %v2460
        %v2884 = vunpack.c.h.b16 %v2460
        %v2885 = vunpack.c.l.b16 %v2461
        %v2886 = vunpack.c.h.b16 %v2461
        %v2887 = vunpack.c.l.b16 %v2462
        %v2888 = vunpack.c.h.b16 %v2462
        %v2889 = vpack.c.b16 %v2641, %v2633
        %v2890 = vpack.c.b16 %v2642, %v2634
        %v2891 = vpack.c.b16 %v2643, %v2635
        %v2892 = vpack.c.b16 %v2644, %v2636
        %v2893 = vpack.c.b16 %v2645, %v2637
        %v2894 = vpack.c.b16 %v2646, %v2638
        %v2895 = vpack.c.b16 %v2647, %v2639
        %v2896 = vpack.c.b16 %v2648, %v2640
        %v2897 = vpack.c.b16 %v2657, %v2649
        %v2898 = vpack.c.b16 %v2658, %v2650
        %v2899 = vpack.c.b16 %v2659, %v2651
        %v2900 = vpack.c.b16 %v2660, %v2652
        %v2901 = vpack.c.b16 %v2661, %v2653
        %v2902 = vpack.c.b16 %v2662, %v2654
        %v2903 = vpack.c.b16 %v2663, %v2655
        %v2904 = vpack.c.b16 %v2664, %v2656
        %v2905 = vpack.c.b16 %v2673, %v2665
        %v2906 = vpack.c.b16 %v2674, %v2666
        %v2907 = vpack.c.b16 %v2675, %v2667
        %v2908 = vpack.c.b16 %v2676, %v2668
        %v2909 = vpack.c.b16 %v2677, %v2669
        %v2910 = vpack.c.b16 %v2678, %v2670
        %v2911 = vpack.c.b16 %v2679, %v2671
        %v2912 = vpack.c.b16 %v2680, %v2672
        %v2913 = vpack.c.b16 %v2689, %v2681
        %v2914 = vpack.c.b16 %v2690, %v2682
        %v2915 = vpack.c.b16 %v2691, %v2683
        %v2916 = vpack.c.b16 %v2692, %v2684
        %v2917 = vpack.c.b16 %v2693, %v2685
        %v2918 = vpack.c.b16 %v2694, %v2686
        %v2919 = vpack.c.b16 %v2695, %v2687
        %v2920 = vpack.c.b16 %v2696, %v2688
        %v2921 = vpack.c.b16 %v2705, %v2697
        %v2922 = vpack.c.b16 %v2706, %v2698
        %v2923 = vpack.c.b16 %v2707, %v2699
        %v2924 = vpack.c.b16 %v2708, %v2700
        %v2925 = vpack.c.b16 %v2709, %v2701
        %v2926 = vpack.c.b16 %v2710, %v2702
        %v2927 = vpack.c.b16 %v2711, %v2703
        %v2928 = vpack.c.b16 %v2712, %v2704
        %v2929 = vpack.c.b16 %v2721, %v2713
        %v2930 = vpack.c.b16 %v2722, %v2714
        %v2931 = vpack.c.b16 %v2723, %v2715
        %v2932 = vpack.c.b16 %v2724, %v2716
        %v2933 = vpack.c.b16 %v2725, %v2717
        %v2934 = vpack.c.b16 %v2726, %v2718
        %v2935 = vpack.c.b16 %v2727, %v2719
        %v2936 = vpack.c.b16 %v2728, %v2720
        %v2937 = vpack.c.b16 %v2737, %v2729
        %v2938 = vpack.c.b16 %v2738, %v2730
        %v2939 = vpack.c.b16 %v2739, %v2731
        %v2940 = vpack.c.b16 %v2740, %v2732
        %v2941 = vpack.c.b16 %v2741, %v2733
        %v2942 = vpack.c.b16 %v2742, %v2734
        %v2943 = vpack.c.b16 %v2743, %v2735
        %v2944 = vpack.c.b16 %v2744, %v2736
        %v2945 = vpack.c.b16 %v2753, %v2745
        %v2946 = vpack.c.b16 %v2754, %v2746
        %v2947 = vpack.c.b16 %v2755, %v2747
        %v2948 = vpack.c.b16 %v2756, %v2748
        %v2949 = vpack.c.b16 %v2757, %v2749
        %v2950 = vpack.c.b16 %v2758, %v2750
        %v2951 = vpack.c.b16 %v2759, %v2751
        %v2952 = vpack.c.b16 %v2760, %v2752
        %v2953 = vpack.c.b16 %v2769, %v2761
        %v2954 = vpack.c.b16 %v2770, %v2762
        %v2955 = vpack.c.b16 %v2771, %v2763
        %v2956 = vpack.c.b16 %v2772, %v2764
        %v2957 = vpack.c.b16 %v2773, %v2765
        %v2958 = vpack.c.b16 %v2774, %v2766
        %v2959 = vpack.c.b16 %v2775, %v2767
        %v2960 = vpack.c.b16 %v2776, %v2768
        %v2961 = vpack.c.b16 %v2785, %v2777
        %v2962 = vpack.c.b16 %v2786, %v2778
        %v2963 = vpack.c.b16 %v2787, %v2779
        %v2964 = vpack.c.b16 %v2788, %v2780
        %v2965 = vpack.c.b16 %v2789, %v2781
        %v2966 = vpack.c.b16 %v2790, %v2782
        %v2967 = vpack.c.b16 %v2791, %v2783
        %v2968 = vpack.c.b16 %v2792, %v2784
        %v2969 = vpack.c.b16 %v2801, %v2793
        %v2970 = vpack.c.b16 %v2802, %v2794
        %v2971 = vpack.c.b16 %v2803, %v2795
        %v2972 = vpack.c.b16 %v2804, %v2796
        %v2973 = vpack.c.b16 %v2805, %v2797
        %v2974 = vpack.c.b16 %v2806, %v2798
        %v2975 = vpack.c.b16 %v2807, %v2799
        %v2976 = vpack.c.b16 %v2808, %v2800
        %v2977 = vpack.c.b16 %v2817, %v2809
        %v2978 = vpack.c.b16 %v2818, %v2810
        %v2979 = vpack.c.b16 %v2819, %v2811
        %v2980 = vpack.c.b16 %v2820, %v2812
        %v2981 = vpack.c.b16 %v2821, %v2813
        %v2982 = vpack.c.b16 %v2822, %v2814
        %v2983 = vpack.c.b16 %v2823, %v2815
        %v2984 = vpack.c.b16 %v2824, %v2816
        %v2985 = vpack.c.b16 %v2833, %v2825
        %v2986 = vpack.c.b16 %v2834, %v2826
        %v2987 = vpack.c.b16 %v2835, %v2827
        %v2988 = vpack.c.b16 %v2836, %v2828
        %v2989 = vpack.c.b16 %v2837, %v2829
        %v2990 = vpack.c.b16 %v2838, %v2830
        %v2991 = vpack.c.b16 %v2839, %v2831
        %v2992 = vpack.c.b16 %v2840, %v2832
        %v2993 = vpack.c.b16 %v2849, %v2841
        %v2994 = vpack.c.b16 %v2850, %v2842
        %v2995 = vpack.c.b16 %v2851, %v2843
        %v2996 = vpack.c.b16 %v2852, %v2844
        %v2997 = vpack.c.b16 %v2853, %v2845
        %v2998 = vpack.c.b16 %v2854, %v2846
        %v2999 = vpack.c.b16 %v2855, %v2847
        %v3000 = vpack.c.b16 %v2856, %v2848
        %v3001 = vpack.c.b16 %v2865, %v2857
        %v3002 = vpack.c.b16 %v2866, %v2858
        %v3003 = vpack.c.b16 %v2867, %v2859
        %v3004 = vpack.c.b16 %v2868, %v2860
        %v3005 = vpack.c.b16 %v2869, %v2861
        %v3006 = vpack.c.b16 %v2870, %v2862
        %v3007 = vpack.c.b16 %v2871, %v2863
        %v3008 = vpack.c.b16 %v2872, %v2864
        %v3009 = vpack.c.b16 %v2881, %v2873
        %v3010 = vpack.c.b16 %v2882, %v2874
        %v3011 = vpack.c.b16 %v2883, %v2875
        %v3012 = vpack.c.b16 %v2884, %v2876
        %v3013 = vpack.c.b16 %v2885, %v2877
        %v3014 = vpack.c.b16 %v2886, %v2878
        %v3015 = vpack.c.b16 %v2887, %v2879
        %v3016 = vpack.c.b16 %v2888, %v2880
        %3145 = vmatprep.subr.bf16.mxu0 %v2890
        %3146 = vmatpush1.bf16.msra.mxu0 %v2889
        %3147 = vmatprep.subr.bf16.mxu0 %v2898
        %3148 = vmatpush1.bf16.msra.mxu0 %v2897
        %3149 = vmatprep.subr.bf16.mxu0 %v2906
        %3150 = vmatpush1.bf16.msra.mxu0 %v2905
        %3151 = vmatprep.subr.bf16.mxu0 %v2914
        %3152 = vmatpush1.bf16.msra.mxu0 %v2913
        %3153 = vmatprep.subr.bf16.mxu0 %v2922
        %3154 = vmatpush1.bf16.msra.mxu0 %v2921
        %3155 = vmatprep.subr.bf16.mxu0 %v2930
        %3156 = vmatpush1.bf16.msra.mxu0 %v2929
        %3157 = vmatprep.subr.bf16.mxu0 %v2938
        %3158 = vmatpush1.bf16.msra.mxu0 %v2937
        %3159 = vmatprep.subr.bf16.mxu0 %v2946
        %3160 = vmatpush1.bf16.msra.mxu0 %v2945
        %3161 = vmatprep.subr.bf16.mxu0 %v2954
        %3162 = vmatpush1.bf16.msra.mxu0 %v2953
        %3163 = vmatprep.subr.bf16.mxu0 %v2962
        %3164 = vmatpush1.bf16.msra.mxu0 %v2961
        %3165 = vmatprep.subr.bf16.mxu0 %v2970
        %3166 = vmatpush1.bf16.msra.mxu0 %v2969
        %3167 = vmatprep.subr.bf16.mxu0 %v2978
        %3168 = vmatpush1.bf16.msra.mxu0 %v2977
        %3169 = vmatprep.subr.bf16.mxu0 %v2986
        %3170 = vmatpush1.bf16.msra.mxu0 %v2985
        %3171 = vmatprep.subr.bf16.mxu0 %v2994
        %3172 = vmatpush1.bf16.msra.mxu0 %v2993
        %3173 = vmatprep.subr.bf16.mxu0 %v3002
        %3174 = vmatpush1.bf16.msra.mxu0 %v3001
        %3175 = vmatprep.subr.bf16.mxu0 %v3010
        %3176 = vmatpush1.bf16.msra.mxu0 %v3009
        %3177 = vmatprep.mubr.bf16.mxu0 %v2312
        %3178 = vmatmul.mubr.bf16.gmra.mrb[0].mxu0 %v2311
        %v3179 = vpop.f32.mrb[0].mxu0
        %v3180 = vadd.f32 %v2468, %v3179
        %v3181 = vpop.f32.mrb[0].mxu0
        %v3182 = vadd.f32 %v2472, %v3181
        %v3183 = vpop.f32.mrb[0].mxu0
        %v3184 = vadd.f32 %v2468, %v3183
        %v3185 = vpop.f32.mrb[0].mxu0
        %v3186 = vadd.f32 %v2472, %v3185
        %3187 = vmatprep.mubr.bf16.mxu0 %v2314
        %3188 = vmatmul.mubr.bf16.gmra.mrb[0].mxu0 %v2313
        %v3189 = vpop.f32.mrb[0].mxu0
        %v3190 = vadd.f32 %v2468, %v3189
        %v3191 = vpop.f32.mrb[0].mxu0
        %v3192 = vadd.f32 %v2472, %v3191
        %v3193 = vpop.f32.mrb[0].mxu0
        %v3194 = vadd.f32 %v2468, %v3193
        %v3195 = vpop.f32.mrb[0].mxu0
        %v3196 = vadd.f32 %v2472, %v3195
        %3197 = vmatprep.mubr.bf16.mxu0 %v2316
        %3198 = vmatmul.mubr.bf16.gmra.mrb[0].mxu0 %v2315
        %v3199 = vpop.f32.mrb[0].mxu0
        %v3200 = vadd.f32 %v2468, %v3199
        %v3201 = vpop.f32.mrb[0].mxu0
        %v3202 = vadd.f32 %v2472, %v3201
        %v3203 = vpop.f32.mrb[0].mxu0
        %v3204 = vadd.f32 %v2468, %v3203
        %v3205 = vpop.f32.mrb[0].mxu0
        %v3206 = vadd.f32 %v2472, %v3205
        %3207 = vmatprep.mubr.bf16.mxu0 %v2318
        %3208 = vmatmul.mubr.bf16.gmra.mrb[0].mxu0 %v2317
        %v3209 = vpop.f32.mrb[0].mxu0
        %v3210 = vadd.f32 %v2468, %v3209
        %v3211 = vpop.f32.mrb[0].mxu0
        %v3212 = vadd.f32 %v2472, %v3211
        %v3213 = vpop.f32.mrb[0].mxu0
        %v3214 = vadd.f32 %v2468, %v3213
        %v3215 = vpop.f32.mrb[0].mxu0
        %v3216 = vadd.f32 %v2472, %v3215
        %3217 = vmatprep.mubr.bf16.mxu0 %v2320
        %3218 = vmatmul.mubr.bf16.gmra.mrb[0].mxu0 %v2319
        %v3219 = vpop.f32.mrb[0].mxu0
        %v3220 = vadd.f32 %v2468, %v3219
        %v3221 = vpop.f32.mrb[0].mxu0
        %v3222 = vadd.f32 %v2472, %v3221
        %v3223 = vpop.f32.mrb[0].mxu0
        %v3224 = vadd.f32 %v2468, %v3223
        %v3225 = vpop.f32.mrb[0].mxu0
        %v3226 = vadd.f32 %v2472, %v3225
        %3227 = vmatprep.mubr.bf16.mxu0 %v2322
        %3228 = vmatmul.mubr.bf16.gmra.mrb[0].mxu0 %v2321
        %v3229 = vpop.f32.mrb[0].mxu0
        %v3230 = vadd.f32 %v2468, %v3229
        %v3231 = vpop.f32.mrb[0].mxu0
        %v3232 = vadd.f32 %v2472, %v3231
        %v3233 = vpop.f32.mrb[0].mxu0
        %v3234 = vadd.f32 %v2468, %v3233
        %v3235 = vpop.f32.mrb[0].mxu0
        %v3236 = vadd.f32 %v2472, %v3235
        %3237 = vmatprep.mubr.bf16.mxu0 %v2324
        %3238 = vmatmul.mubr.bf16.gmra.mrb[0].mxu0 %v2323
        %v3239 = vpop.f32.mrb[0].mxu0
        %v3240 = vadd.f32 %v2468, %v3239
        %v3241 = vpop.f32.mrb[0].mxu0
        %v3242 = vadd.f32 %v2472, %v3241
        %v3243 = vpop.f32.mrb[0].mxu0
        %v3244 = vadd.f32 %v2468, %v3243
        %v3245 = vpop.f32.mrb[0].mxu0
        %v3246 = vadd.f32 %v2472, %v3245
        %3247 = vmatprep.mubr.bf16.mxu0 %v2326
        %3248 = vmatmul.mubr.bf16.gmra.mrb[0].mxu0 %v2325
        %v3249 = vpop.f32.mrb[0].mxu0
        %v3250 = vadd.f32 %v2468, %v3249
        %v3251 = vpop.f32.mrb[0].mxu0
        %v3252 = vadd.f32 %v2472, %v3251
        %v3253 = vpop.f32.mrb[0].mxu0
        %v3254 = vadd.f32 %v2468, %v3253
        %v3255 = vpop.f32.mrb[0].mxu0
        %v3256 = vadd.f32 %v2472, %v3255
        %3257 = vmatprep.mubr.bf16.mxu0 %v2328
        %3258 = vmatmul.mubr.bf16.gmra.mrb[0].mxu0 %v2327
        %v3259 = vpop.f32.mrb[0].mxu0
        %v3260 = vadd.f32 %v2468, %v3259
        %v3261 = vpop.f32.mrb[0].mxu0
        %v3262 = vadd.f32 %v2472, %v3261
        %v3263 = vpop.f32.mrb[0].mxu0
        %v3264 = vadd.f32 %v2468, %v3263
        %v3265 = vpop.f32.mrb[0].mxu0
        %v3266 = vadd.f32 %v2472, %v3265
        %3267 = vmatprep.mubr.bf16.mxu0 %v2330
        %3268 = vmatmul.mubr.bf16.gmra.mrb[0].mxu0 %v2329
        %v3269 = vpop.f32.mrb[0].mxu0
        %v3270 = vadd.f32 %v2468, %v3269
        %v3271 = vpop.f32.mrb[0].mxu0
        %v3272 = vadd.f32 %v2472, %v3271
        %v3273 = vpop.f32.mrb[0].mxu0
        %v3274 = vadd.f32 %v2468, %v3273
        %v3275 = vpop.f32.mrb[0].mxu0
        %v3276 = vadd.f32 %v2472, %v3275
        %3277 = vmatprep.mubr.bf16.mxu0 %v2332
        %3278 = vmatmul.mubr.bf16.gmra.mrb[0].mxu0 %v2331
        %v3279 = vpop.f32.mrb[0].mxu0
        %v3280 = vadd.f32 %v2468, %v3279
        %v3281 = vpop.f32.mrb[0].mxu0
        %v3282 = vadd.f32 %v2472, %v3281
        %v3283 = vpop.f32.mrb[0].mxu0
        %v3284 = vadd.f32 %v2468, %v3283
        %v3285 = vpop.f32.mrb[0].mxu0
        %v3286 = vadd.f32 %v2472, %v3285
        %3287 = vmatprep.mubr.bf16.mxu0 %v2334
        %3288 = vmatmul.mubr.bf16.gmra.mrb[0].mxu0 %v2333
        %v3289 = vpop.f32.mrb[0].mxu0
        %v3290 = vadd.f32 %v2468, %v3289
        %v3291 = vpop.f32.mrb[0].mxu0
        %v3292 = vadd.f32 %v2472, %v3291
        %v3293 = vpop.f32.mrb[0].mxu0
        %v3294 = vadd.f32 %v2468, %v3293
        %v3295 = vpop.f32.mrb[0].mxu0
        %v3296 = vadd.f32 %v2472, %v3295
        %3297 = vdwg.mxu0
        %3298 = vmatprep.subr.bf16.mxu0 %v2892
        %3299 = vmatpush1.bf16.msra.mxu0 %v2891
        %3300 = vmatprep.subr.bf16.mxu0 %v2900
        %3301 = vmatpush1.bf16.msra.mxu0 %v2899
        %3302 = vmatprep.subr.bf16.mxu0 %v2908
        %3303 = vmatpush1.bf16.msra.mxu0 %v2907
        %3304 = vmatprep.subr.bf16.mxu0 %v2916
        %3305 = vmatpush1.bf16.msra.mxu0 %v2915
        %3306 = vmatprep.subr.bf16.mxu0 %v2924
        %3307 = vmatpush1.bf16.msra.mxu0 %v2923
        %3308 = vmatprep.subr.bf16.mxu0 %v2932
        %3309 = vmatpush1.bf16.msra.mxu0 %v2931
        %3310 = vmatprep.subr.bf16.mxu0 %v2940
        %3311 = vmatpush1.bf16.msra.mxu0 %v2939
        %3312 = vmatprep.subr.bf16.mxu0 %v2948
        %3313 = vmatpush1.bf16.msra.mxu0 %v2947
        %3314 = vmatprep.subr.bf16.mxu0 %v2956
        %3315 = vmatpush1.bf16.msra.mxu0 %v2955
        %3316 = vmatprep.subr.bf16.mxu0 %v2964
        %3317 = vmatpush1.bf16.msra.mxu0 %v2963
        %3318 = vmatprep.subr.bf16.mxu0 %v2972
        %3319 = vmatpush1.bf16.msra.mxu0 %v2971
        %3320 = vmatprep.subr.bf16.mxu0 %v2980
        %3321 = vmatpush1.bf16.msra.mxu0 %v2979
        %3322 = vmatprep.subr.bf16.mxu0 %v2988
        %3323 = vmatpush1.bf16.msra.mxu0 %v2987
        %3324 = vmatprep.subr.bf16.mxu0 %v2996
        %3325 = vmatpush1.bf16.msra.mxu0 %v2995
        %3326 = vmatprep.subr.bf16.mxu0 %v3004
        %3327 = vmatpush1.bf16.msra.mxu0 %v3003
        %3328 = vmatprep.subr.bf16.mxu0 %v3012
        %3329 = vmatpush1.bf16.msra.mxu0 %v3011
        %3330 = vmatprep.mubr.bf16.mxu0 %v2312
        %3331 = vmatmul.mubr.bf16.gmra.mrb[0].mxu0 %v2311
        %v3332 = vpop.f32.mrb[0].mxu0
        %v3333 = vadd.f32 %v2476, %v3332
        %v3334 = vpop.f32.mrb[0].mxu0
        %v3335 = vadd.f32 %v2480, %v3334
        %v3336 = vpop.f32.mrb[0].mxu0
        %v3337 = vadd.f32 %v2476, %v3336
        %v3338 = vpop.f32.mrb[0].mxu0
        %v3339 = vadd.f32 %v2480, %v3338
        %3340 = vmatprep.mubr.bf16.mxu0 %v2314
        %3341 = vmatmul.mubr.bf16.gmra.mrb[0].mxu0 %v2313
        %v3342 = vpop.f32.mrb[0].mxu0
        %v3343 = vadd.f32 %v2476, %v3342
        %v3344 = vpop.f32.mrb[0].mxu0
        %v3345 = vadd.f32 %v2480, %v3344
        %v3346 = vpop.f32.mrb[0].mxu0
        %v3347 = vadd.f32 %v2476, %v3346
        %v3348 = vpop.f32.mrb[0].mxu0
        %v3349 = vadd.f32 %v2480, %v3348
        %3350 = vmatprep.mubr.bf16.mxu0 %v2316
        %3351 = vmatmul.mubr.bf16.gmra.mrb[0].mxu0 %v2315
        %v3352 = vpop.f32.mrb[0].mxu0
        %v3353 = vadd.f32 %v2476, %v3352
        %v3354 = vpop.f32.mrb[0].mxu0
        %v3355 = vadd.f32 %v2480, %v3354
        %v3356 = vpop.f32.mrb[0].mxu0
        %v3357 = vadd.f32 %v2476, %v3356
        %v3358 = vpop.f32.mrb[0].mxu0
        %v3359 = vadd.f32 %v2480, %v3358
        %3360 = vmatprep.mubr.bf16.mxu0 %v2318
        %3361 = vmatmul.mubr.bf16.gmra.mrb[0].mxu0 %v2317
        %v3362 = vpop.f32.mrb[0].mxu0
        %v3363 = vadd.f32 %v2476, %v3362
        %v3364 = vpop.f32.mrb[0].mxu0
        %v3365 = vadd.f32 %v2480, %v3364
        %v3366 = vpop.f32.mrb[0].mxu0
        %v3367 = vadd.f32 %v2476, %v3366
        %v3368 = vpop.f32.mrb[0].mxu0
        %v3369 = vadd.f32 %v2480, %v3368
        %3370 = vmatprep.mubr.bf16.mxu0 %v2320
        %3371 = vmatmul.mubr.bf16.gmra.mrb[0].mxu0 %v2319
        %v3372 = vpop.f32.mrb[0].mxu0
        %v3373 = vadd.f32 %v2476, %v3372
        %v3374 = vpop.f32.mrb[0].mxu0
        %v3375 = vadd.f32 %v2480, %v3374
        %v3376 = vpop.f32.mrb[0].mxu0
        %v3377 = vadd.f32 %v2476, %v3376
        %v3378 = vpop.f32.mrb[0].mxu0
        %v3379 = vadd.f32 %v2480, %v3378
        %3380 = vmatprep.mubr.bf16.mxu0 %v2322
        %3381 = vmatmul.mubr.bf16.gmra.mrb[0].mxu0 %v2321
        %v3382 = vpop.f32.mrb[0].mxu0
        %v3383 = vadd.f32 %v2476, %v3382
        %v3384 = vpop.f32.mrb[0].mxu0
        %v3385 = vadd.f32 %v2480, %v3384
        %v3386 = vpop.f32.mrb[0].mxu0
        %v3387 = vadd.f32 %v2476, %v3386
        %v3388 = vpop.f32.mrb[0].mxu0
        %v3389 = vadd.f32 %v2480, %v3388
        %3390 = vmatprep.mubr.bf16.mxu0 %v2324
        %3391 = vmatmul.mubr.bf16.gmra.mrb[0].mxu0 %v2323
        %v3392 = vpop.f32.mrb[0].mxu0
        %v3393 = vadd.f32 %v2476, %v3392
        %v3394 = vpop.f32.mrb[0].mxu0
        %v3395 = vadd.f32 %v2480, %v3394
        %v3396 = vpop.f32.mrb[0].mxu0
        %v3397 = vadd.f32 %v2476, %v3396
        %v3398 = vpop.f32.mrb[0].mxu0
        %v3399 = vadd.f32 %v2480, %v3398
        %3400 = vmatprep.mubr.bf16.mxu0 %v2326
        %3401 = vmatmul.mubr.bf16.gmra.mrb[0].mxu0 %v2325
        %v3402 = vpop.f32.mrb[0].mxu0
        %v3403 = vadd.f32 %v2476, %v3402
        %v3404 = vpop.f32.mrb[0].mxu0
        %v3405 = vadd.f32 %v2480, %v3404
        %v3406 = vpop.f32.mrb[0].mxu0
        %v3407 = vadd.f32 %v2476, %v3406
        %v3408 = vpop.f32.mrb[0].mxu0
        %v3409 = vadd.f32 %v2480, %v3408
        %3410 = vmatprep.mubr.bf16.mxu0 %v2328
        %3411 = vmatmul.mubr.bf16.gmra.mrb[0].mxu0 %v2327
        %v3412 = vpop.f32.mrb[0].mxu0
        %v3413 = vadd.f32 %v2476, %v3412
        %v3414 = vpop.f32.mrb[0].mxu0
        %v3415 = vadd.f32 %v2480, %v3414
        %v3416 = vpop.f32.mrb[0].mxu0
        %v3417 = vadd.f32 %v2476, %v3416
        %v3418 = vpop.f32.mrb[0].mxu0
        %v3419 = vadd.f32 %v2480, %v3418
        %3420 = vmatprep.mubr.bf16.mxu0 %v2330
        %3421 = vmatmul.mubr.bf16.gmra.mrb[0].mxu0 %v2329
        %v3422 = vpop.f32.mrb[0].mxu0
        %v3423 = vadd.f32 %v2476, %v3422
        %v3424 = vpop.f32.mrb[0].mxu0
        %v3425 = vadd.f32 %v2480, %v3424
        %v3426 = vpop.f32.mrb[0].mxu0
        %v3427 = vadd.f32 %v2476, %v3426
        %v3428 = vpop.f32.mrb[0].mxu0
        %v3429 = vadd.f32 %v2480, %v3428
        %3430 = vmatprep.mubr.bf16.mxu0 %v2332
        %3431 = vmatmul.mubr.bf16.gmra.mrb[0].mxu0 %v2331
        %v3432 = vpop.f32.mrb[0].mxu0
        %v3433 = vadd.f32 %v2476, %v3432
        %v3434 = vpop.f32.mrb[0].mxu0
        %v3435 = vadd.f32 %v2480, %v3434
        %v3436 = vpop.f32.mrb[0].mxu0
        %v3437 = vadd.f32 %v2476, %v3436
        %v3438 = vpop.f32.mrb[0].mxu0
        %v3439 = vadd.f32 %v2480, %v3438
        %3440 = vmatprep.mubr.bf16.mxu0 %v2334
        %3441 = vmatmul.mubr.bf16.gmra.mrb[0].mxu0 %v2333
        %v3442 = vpop.f32.mrb[0].mxu0
        %v3443 = vadd.f32 %v2476, %v3442
        %v3444 = vpop.f32.mrb[0].mxu0
        %v3445 = vadd.f32 %v2480, %v3444
        %v3446 = vpop.f32.mrb[0].mxu0
        %v3447 = vadd.f32 %v2476, %v3446
        %v3448 = vpop.f32.mrb[0].mxu0
        %v3449 = vadd.f32 %v2480, %v3448
        %3450 = vdwg.mxu0
        %3451 = vmatprep.subr.bf16.mxu0 %v2894
        %3452 = vmatpush1.bf16.msra.mxu0 %v2893
        %3453 = vmatprep.subr.bf16.mxu0 %v2902
        %3454 = vmatpush1.bf16.msra.mxu0 %v2901
        %3455 = vmatprep.subr.bf16.mxu0 %v2910
        %3456 = vmatpush1.bf16.msra.mxu0 %v2909
        %3457 = vmatprep.subr.bf16.mxu0 %v2918
        %3458 = vmatpush1.bf16.msra.mxu0 %v2917
        %3459 = vmatprep.subr.bf16.mxu0 %v2926
        %3460 = vmatpush1.bf16.msra.mxu0 %v2925
        %3461 = vmatprep.subr.bf16.mxu0 %v2934
        %3462 = vmatpush1.bf16.msra.mxu0 %v2933
        %3463 = vmatprep.subr.bf16.mxu0 %v2942
        %3464 = vmatpush1.bf16.msra.mxu0 %v2941
        %3465 = vmatprep.subr.bf16.mxu0 %v2950
        %3466 = vmatpush1.bf16.msra.mxu0 %v2949
        %3467 = vmatprep.subr.bf16.mxu0 %v2958
        %3468 = vmatpush1.bf16.msra.mxu0 %v2957
        %3469 = vmatprep.subr.bf16.mxu0 %v2966
        %3470 = vmatpush1.bf16.msra.mxu0 %v2965
        %3471 = vmatprep.subr.bf16.mxu0 %v2974
        %3472 = vmatpush1.bf16.msra.mxu0 %v2973
        %3473 = vmatprep.subr.bf16.mxu0 %v2982
        %3474 = vmatpush1.bf16.msra.mxu0 %v2981
        %3475 = vmatprep.subr.bf16.mxu0 %v2990
        %3476 = vmatpush1.bf16.msra.mxu0 %v2989
        %3477 = vmatprep.subr.bf16.mxu0 %v2998
        %3478 = vmatpush1.bf16.msra.mxu0 %v2997
        %3479 = vmatprep.subr.bf16.mxu0 %v3006
        %3480 = vmatpush1.bf16.msra.mxu0 %v3005
        %3481 = vmatprep.subr.bf16.mxu0 %v3014
        %3482 = vmatpush1.bf16.msra.mxu0 %v3013
        %3483 = vmatprep.mubr.bf16.mxu0 %v2312
        %3484 = vmatmul.mubr.bf16.gmra.mrb[0].mxu0 %v2311
        %v3485 = vpop.f32.mrb[0].mxu0
        %v3486 = vadd.f32 %v2484, %v3485
        %v3487 = vpop.f32.mrb[0].mxu0
        %v3488 = vadd.f32 %v2488, %v3487
        %v3489 = vpop.f32.mrb[0].mxu0
        %v3490 = vadd.f32 %v2484, %v3489
        %v3491 = vpop.f32.mrb[0].mxu0
        %v3492 = vadd.f32 %v2488, %v3491
        %3493 = vmatprep.mubr.bf16.mxu0 %v2314
        %3494 = vmatmul.mubr.bf16.gmra.mrb[0].mxu0 %v2313
        %v3495 = vpop.f32.mrb[0].mxu0
        %v3496 = vadd.f32 %v2484, %v3495
        %v3497 = vpop.f32.mrb[0].mxu0
        %v3498 = vadd.f32 %v2488, %v3497
        %v3499 = vpop.f32.mrb[0].mxu0
        %v3500 = vadd.f32 %v2484, %v3499
        %v3501 = vpop.f32.mrb[0].mxu0
        %v3502 = vadd.f32 %v2488, %v3501
        %3503 = vmatprep.mubr.bf16.mxu0 %v2316
        %3504 = vmatmul.mubr.bf16.gmra.mrb[0].mxu0 %v2315
        %v3505 = vpop.f32.mrb[0].mxu0
        %v3506 = vadd.f32 %v2484, %v3505
        %v3507 = vpop.f32.mrb[0].mxu0
        %v3508 = vadd.f32 %v2488, %v3507
        %v3509 = vpop.f32.mrb[0].mxu0
        %v3510 = vadd.f32 %v2484, %v3509
        %v3511 = vpop.f32.mrb[0].mxu0
        %v3512 = vadd.f32 %v2488, %v3511
        %3513 = vmatprep.mubr.bf16.mxu0 %v2318
        %3514 = vmatmul.mubr.bf16.gmra.mrb[0].mxu0 %v2317
        %v3515 = vpop.f32.mrb[0].mxu0
        %v3516 = vadd.f32 %v2484, %v3515
        %v3517 = vpop.f32.mrb[0].mxu0
        %v3518 = vadd.f32 %v2488, %v3517
        %v3519 = vpop.f32.mrb[0].mxu0
        %v3520 = vadd.f32 %v2484, %v3519
        %v3521 = vpop.f32.mrb[0].mxu0
        %v3522 = vadd.f32 %v2488, %v3521
        %3523 = vmatprep.mubr.bf16.mxu0 %v2320
        %3524 = vmatmul.mubr.bf16.gmra.mrb[0].mxu0 %v2319
        %v3525 = vpop.f32.mrb[0].mxu0
        %v3526 = vadd.f32 %v2484, %v3525
        %v3527 = vpop.f32.mrb[0].mxu0
        %v3528 = vadd.f32 %v2488, %v3527
        %v3529 = vpop.f32.mrb[0].mxu0
        %v3530 = vadd.f32 %v2484, %v3529
        %v3531 = vpop.f32.mrb[0].mxu0
        %v3532 = vadd.f32 %v2488, %v3531
        %3533 = vmatprep.mubr.bf16.mxu0 %v2322
        %3534 = vmatmul.mubr.bf16.gmra.mrb[0].mxu0 %v2321
        %v3535 = vpop.f32.mrb[0].mxu0
        %v3536 = vadd.f32 %v2484, %v3535
        %v3537 = vpop.f32.mrb[0].mxu0
        %v3538 = vadd.f32 %v2488, %v3537
        %v3539 = vpop.f32.mrb[0].mxu0
        %v3540 = vadd.f32 %v2484, %v3539
        %v3541 = vpop.f32.mrb[0].mxu0
        %v3542 = vadd.f32 %v2488, %v3541
        %3543 = vmatprep.mubr.bf16.mxu0 %v2324
        %3544 = vmatmul.mubr.bf16.gmra.mrb[0].mxu0 %v2323
        %v3545 = vpop.f32.mrb[0].mxu0
        %v3546 = vadd.f32 %v2484, %v3545
        %v3547 = vpop.f32.mrb[0].mxu0
        %v3548 = vadd.f32 %v2488, %v3547
        %v3549 = vpop.f32.mrb[0].mxu0
        %v3550 = vadd.f32 %v2484, %v3549
        %v3551 = vpop.f32.mrb[0].mxu0
        %v3552 = vadd.f32 %v2488, %v3551
        %3553 = vmatprep.mubr.bf16.mxu0 %v2326
        %3554 = vmatmul.mubr.bf16.gmra.mrb[0].mxu0 %v2325
        %v3555 = vpop.f32.mrb[0].mxu0
        %v3556 = vadd.f32 %v2484, %v3555
        %v3557 = vpop.f32.mrb[0].mxu0
        %v3558 = vadd.f32 %v2488, %v3557
        %v3559 = vpop.f32.mrb[0].mxu0
        %v3560 = vadd.f32 %v2484, %v3559
        %v3561 = vpop.f32.mrb[0].mxu0
        %v3562 = vadd.f32 %v2488, %v3561
        %3563 = vmatprep.mubr.bf16.mxu0 %v2328
        %3564 = vmatmul.mubr.bf16.gmra.mrb[0].mxu0 %v2327
        %v3565 = vpop.f32.mrb[0].mxu0
        %v3566 = vadd.f32 %v2484, %v3565
        %v3567 = vpop.f32.mrb[0].mxu0
        %v3568 = vadd.f32 %v2488, %v3567
        %v3569 = vpop.f32.mrb[0].mxu0
        %v3570 = vadd.f32 %v2484, %v3569
        %v3571 = vpop.f32.mrb[0].mxu0
        %v3572 = vadd.f32 %v2488, %v3571
        %3573 = vmatprep.mubr.bf16.mxu0 %v2330
        %3574 = vmatmul.mubr.bf16.gmra.mrb[0].mxu0 %v2329
        %v3575 = vpop.f32.mrb[0].mxu0
        %v3576 = vadd.f32 %v2484, %v3575
        %v3577 = vpop.f32.mrb[0].mxu0
        %v3578 = vadd.f32 %v2488, %v3577
        %v3579 = vpop.f32.mrb[0].mxu0
        %v3580 = vadd.f32 %v2484, %v3579
        %v3581 = vpop.f32.mrb[0].mxu0
        %v3582 = vadd.f32 %v2488, %v3581
        %3583 = vmatprep.mubr.bf16.mxu0 %v2332
        %3584 = vmatmul.mubr.bf16.gmra.mrb[0].mxu0 %v2331
        %v3585 = vpop.f32.mrb[0].mxu0
        %v3586 = vadd.f32 %v2484, %v3585
        %v3587 = vpop.f32.mrb[0].mxu0
        %v3588 = vadd.f32 %v2488, %v3587
        %v3589 = vpop.f32.mrb[0].mxu0
        %v3590 = vadd.f32 %v2484, %v3589
        %v3591 = vpop.f32.mrb[0].mxu0
        %v3592 = vadd.f32 %v2488, %v3591
        %3593 = vmatprep.mubr.bf16.mxu0 %v2334
        %3594 = vmatmul.mubr.bf16.gmra.mrb[0].mxu0 %v2333
        %v3595 = vpop.f32.mrb[0].mxu0
        %v3596 = vadd.f32 %v2484, %v3595
        %v3597 = vpop.f32.mrb[0].mxu0
        %v3598 = vadd.f32 %v2488, %v3597
        %v3599 = vpop.f32.mrb[0].mxu0
        %v3600 = vadd.f32 %v2484, %v3599
        %v3601 = vpop.f32.mrb[0].mxu0
        %v3602 = vadd.f32 %v2488, %v3601
        %3603 = vdwg.mxu0
        %3604 = vmatprep.subr.bf16.mxu0 %v2896
        %3605 = vmatpush1.bf16.msra.mxu0 %v2895
        %3606 = vmatprep.subr.bf16.mxu0 %v2904
        %3607 = vmatpush1.bf16.msra.mxu0 %v2903
        %3608 = vmatprep.subr.bf16.mxu0 %v2912
        %3609 = vmatpush1.bf16.msra.mxu0 %v2911
        %3610 = vmatprep.subr.bf16.mxu0 %v2920
        %3611 = vmatpush1.bf16.msra.mxu0 %v2919
        %3612 = vmatprep.subr.bf16.mxu0 %v2928
        %3613 = vmatpush1.bf16.msra.mxu0 %v2927
        %3614 = vmatprep.subr.bf16.mxu0 %v2936
        %3615 = vmatpush1.bf16.msra.mxu0 %v2935
        %3616 = vmatprep.subr.bf16.mxu0 %v2944
        %3617 = vmatpush1.bf16.msra.mxu0 %v2943
        %3618 = vmatprep.subr.bf16.mxu0 %v2952
        %3619 = vmatpush1.bf16.msra.mxu0 %v2951
        %3620 = vmatprep.subr.bf16.mxu0 %v2960
        %3621 = vmatpush1.bf16.msra.mxu0 %v2959
        %3622 = vmatprep.subr.bf16.mxu0 %v2968
        %3623 = vmatpush1.bf16.msra.mxu0 %v2967
        %3624 = vmatprep.subr.bf16.mxu0 %v2976
        %3625 = vmatpush1.bf16.msra.mxu0 %v2975
        %3626 = vmatprep.subr.bf16.mxu0 %v2984
        %3627 = vmatpush1.bf16.msra.mxu0 %v2983
        %3628 = vmatprep.subr.bf16.mxu0 %v2992
        %3629 = vmatpush1.bf16.msra.mxu0 %v2991
        %3630 = vmatprep.subr.bf16.mxu0 %v3000
        %3631 = vmatpush1.bf16.msra.mxu0 %v2999
        %3632 = vmatprep.subr.bf16.mxu0 %v3008
        %3633 = vmatpush1.bf16.msra.mxu0 %v3007
        %3634 = vmatprep.subr.bf16.mxu0 %v3016
        %3635 = vmatpush1.bf16.msra.mxu0 %v3015
        %3636 = vmatprep.mubr.bf16.mxu0 %v2312
        %3637 = vmatmul.mubr.bf16.gmra.mrb[0].mxu0 %v2311
        %v3638 = vpop.f32.mrb[0].mxu0
        %v3639 = vadd.f32 %v2492, %v3638
        %v3640 = vpop.f32.mrb[0].mxu0
        %v3641 = vadd.f32 %v2496, %v3640
        %v3642 = vpop.f32.mrb[0].mxu0
        %v3643 = vadd.f32 %v2492, %v3642
        %v3644 = vpop.f32.mrb[0].mxu0
        %v3645 = vadd.f32 %v2496, %v3644
        %3646 = vmatprep.mubr.bf16.mxu0 %v2314
        %3647 = vmatmul.mubr.bf16.gmra.mrb[0].mxu0 %v2313
        %v3648 = vpop.f32.mrb[0].mxu0
        %v3649 = vadd.f32 %v2492, %v3648
        %v3650 = vpop.f32.mrb[0].mxu0
        %v3651 = vadd.f32 %v2496, %v3650
        %v3652 = vpop.f32.mrb[0].mxu0
        %v3653 = vadd.f32 %v2492, %v3652
        %v3654 = vpop.f32.mrb[0].mxu0
        %v3655 = vadd.f32 %v2496, %v3654
        %3656 = vmatprep.mubr.bf16.mxu0 %v2316
        %3657 = vmatmul.mubr.bf16.gmra.mrb[0].mxu0 %v2315
        %v3658 = vpop.f32.mrb[0].mxu0
        %v3659 = vadd.f32 %v2492, %v3658
        %v3660 = vpop.f32.mrb[0].mxu0
        %v3661 = vadd.f32 %v2496, %v3660
        %v3662 = vpop.f32.mrb[0].mxu0
        %v3663 = vadd.f32 %v2492, %v3662
        %v3664 = vpop.f32.mrb[0].mxu0
        %v3665 = vadd.f32 %v2496, %v3664
        %3666 = vmatprep.mubr.bf16.mxu0 %v2318
        %3667 = vmatmul.mubr.bf16.gmra.mrb[0].mxu0 %v2317
        %v3668 = vpop.f32.mrb[0].mxu0
        %v3669 = vadd.f32 %v2492, %v3668
        %v3670 = vpop.f32.mrb[0].mxu0
        %v3671 = vadd.f32 %v2496, %v3670
        %v3672 = vpop.f32.mrb[0].mxu0
        %v3673 = vadd.f32 %v2492, %v3672
        %v3674 = vpop.f32.mrb[0].mxu0
        %v3675 = vadd.f32 %v2496, %v3674
        %3676 = vmatprep.mubr.bf16.mxu0 %v2320
        %3677 = vmatmul.mubr.bf16.gmra.mrb[0].mxu0 %v2319
        %v3678 = vpop.f32.mrb[0].mxu0
        %v3679 = vadd.f32 %v2492, %v3678
        %v3680 = vpop.f32.mrb[0].mxu0
        %v3681 = vadd.f32 %v2496, %v3680
        %v3682 = vpop.f32.mrb[0].mxu0
        %v3683 = vadd.f32 %v2492, %v3682
        %v3684 = vpop.f32.mrb[0].mxu0
        %v3685 = vadd.f32 %v2496, %v3684
        %3686 = vmatprep.mubr.bf16.mxu0 %v2322
        %3687 = vmatmul.mubr.bf16.gmra.mrb[0].mxu0 %v2321
        %v3688 = vpop.f32.mrb[0].mxu0
        %v3689 = vadd.f32 %v2492, %v3688
        %v3690 = vpop.f32.mrb[0].mxu0
        %v3691 = vadd.f32 %v2496, %v3690
        %v3692 = vpop.f32.mrb[0].mxu0
        %v3693 = vadd.f32 %v2492, %v3692
        %v3694 = vpop.f32.mrb[0].mxu0
        %v3695 = vadd.f32 %v2496, %v3694
        %3696 = vmatprep.mubr.bf16.mxu0 %v2324
        %3697 = vmatmul.mubr.bf16.gmra.mrb[0].mxu0 %v2323
        %v3698 = vpop.f32.mrb[0].mxu0
        %v3699 = vadd.f32 %v2492, %v3698
        %v3700 = vpop.f32.mrb[0].mxu0
        %v3701 = vadd.f32 %v2496, %v3700
        %v3702 = vpop.f32.mrb[0].mxu0
        %v3703 = vadd.f32 %v2492, %v3702
        %v3704 = vpop.f32.mrb[0].mxu0
        %v3705 = vadd.f32 %v2496, %v3704
        %3706 = vmatprep.mubr.bf16.mxu0 %v2326
        %3707 = vmatmul.mubr.bf16.gmra.mrb[0].mxu0 %v2325
        %v3708 = vpop.f32.mrb[0].mxu0
        %v3709 = vadd.f32 %v2492, %v3708
        %v3710 = vpop.f32.mrb[0].mxu0
        %v3711 = vadd.f32 %v2496, %v3710
        %v3712 = vpop.f32.mrb[0].mxu0
        %v3713 = vadd.f32 %v2492, %v3712
        %v3714 = vpop.f32.mrb[0].mxu0
        %v3715 = vadd.f32 %v2496, %v3714
        %3716 = vmatprep.mubr.bf16.mxu0 %v2328
        %3717 = vmatmul.mubr.bf16.gmra.mrb[0].mxu0 %v2327
        %v3718 = vpop.f32.mrb[0].mxu0
        %v3719 = vadd.f32 %v2492, %v3718
        %v3720 = vpop.f32.mrb[0].mxu0
        %v3721 = vadd.f32 %v2496, %v3720
        %v3722 = vpop.f32.mrb[0].mxu0
        %v3723 = vadd.f32 %v2492, %v3722
        %v3724 = vpop.f32.mrb[0].mxu0
        %v3725 = vadd.f32 %v2496, %v3724
        %3726 = vmatprep.mubr.bf16.mxu0 %v2330
        %3727 = vmatmul.mubr.bf16.gmra.mrb[0].mxu0 %v2329
        %v3728 = vpop.f32.mrb[0].mxu0
        %v3729 = vadd.f32 %v2492, %v3728
        %v3730 = vpop.f32.mrb[0].mxu0
        %v3731 = vadd.f32 %v2496, %v3730
        %v3732 = vpop.f32.mrb[0].mxu0
        %v3733 = vadd.f32 %v2492, %v3732
        %v3734 = vpop.f32.mrb[0].mxu0
        %v3735 = vadd.f32 %v2496, %v3734
        %3736 = vmatprep.mubr.bf16.mxu0 %v2332
        %3737 = vmatmul.mubr.bf16.gmra.mrb[0].mxu0 %v2331
        %v3738 = vpop.f32.mrb[0].mxu0
        %v3739 = vadd.f32 %v2492, %v3738
        %v3740 = vpop.f32.mrb[0].mxu0
        %v3741 = vadd.f32 %v2496, %v3740
        %v3742 = vpop.f32.mrb[0].mxu0
        %v3743 = vadd.f32 %v2492, %v3742
        %v3744 = vpop.f32.mrb[0].mxu0
        %v3745 = vadd.f32 %v2496, %v3744
        %3746 = vmatprep.mubr.bf16.mxu0 %v2334
        %3747 = vmatmul.mubr.bf16.gmra.mrb[0].mxu0 %v2333
        %v3748 = vpop.f32.mrb[0].mxu0
        %v3749 = vadd.f32 %v2492, %v3748
        %v3750 = vpop.f32.mrb[0].mxu0
        %v3751 = vadd.f32 %v2496, %v3750
        %v3752 = vpop.f32.mrb[0].mxu0
        %v3753 = vadd.f32 %v2492, %v3752
        %v3754 = vpop.f32.mrb[0].mxu0
        %v3755 = vadd.f32 %v2496, %v3754
        %3756 = vdwg.mxu0
        %v3757 = vmul.f32 %v3180, 0.5
        %v3758 = vmul.f32 %v3182, 0.5
        %v3759 = vmul.f32 %v3333, 0.5
        %v3760 = vmul.f32 %v3335, 0.5
        %v3761 = vmul.f32 %v3486, 0.5
        %v3762 = vmul.f32 %v3488, 0.5
        %v3763 = vmul.f32 %v3639, 0.5
        %v3764 = vmul.f32 %v3641, 0.5
        %v3765 = vmul.f32 %v3184, 0.5
        %v3766 = vmul.f32 %v3186, 0.5
        %v3767 = vmul.f32 %v3337, 0.5
        %v3768 = vmul.f32 %v3339, 0.5
        %v3769 = vmul.f32 %v3490, 0.5
        %v3770 = vmul.f32 %v3492, 0.5
        %v3771 = vmul.f32 %v3643, 0.5
        %v3772 = vmul.f32 %v3645, 0.5
        %v3773 = vmul.f32 %v3190, 0.5
        %v3774 = vmul.f32 %v3192, 0.5
        %v3775 = vmul.f32 %v3343, 0.5
        %v3776 = vmul.f32 %v3345, 0.5
        %v3777 = vmul.f32 %v3496, 0.5
        %v3778 = vmul.f32 %v3498, 0.5
        %v3779 = vmul.f32 %v3649, 0.5
        %v3780 = vmul.f32 %v3651, 0.5
        %v3781 = vmul.f32 %v3194, 0.5
        %v3782 = vmul.f32 %v3196, 0.5
        %v3783 = vmul.f32 %v3347, 0.5
        %v3784 = vmul.f32 %v3349, 0.5
        %v3785 = vmul.f32 %v3500, 0.5
        %v3786 = vmul.f32 %v3502, 0.5
        %v3787 = vmul.f32 %v3653, 0.5
        %v3788 = vmul.f32 %v3655, 0.5
        %v3789 = vmul.f32 %v3200, 0.5
        %v3790 = vmul.f32 %v3202, 0.5
        %v3791 = vmul.f32 %v3353, 0.5
        %v3792 = vmul.f32 %v3355, 0.5
        %v3793 = vmul.f32 %v3506, 0.5
        %v3794 = vmul.f32 %v3508, 0.5
        %v3795 = vmul.f32 %v3659, 0.5
        %v3796 = vmul.f32 %v3661, 0.5
        %v3797 = vmul.f32 %v3204, 0.5
        %v3798 = vmul.f32 %v3206, 0.5
        %v3799 = vmul.f32 %v3357, 0.5
        %v3800 = vmul.f32 %v3359, 0.5
        %v3801 = vmul.f32 %v3510, 0.5
        %v3802 = vmul.f32 %v3512, 0.5
        %v3803 = vmul.f32 %v3663, 0.5
        %v3804 = vmul.f32 %v3665, 0.5
        %v3805 = vmul.f32 %v3210, 0.5
        %v3806 = vmul.f32 %v3212, 0.5
        %v3807 = vmul.f32 %v3363, 0.5
        %v3808 = vmul.f32 %v3365, 0.5
        %v3809 = vmul.f32 %v3516, 0.5
        %v3810 = vmul.f32 %v3518, 0.5
        %v3811 = vmul.f32 %v3669, 0.5
        %v3812 = vmul.f32 %v3671, 0.5
        %v3813 = vmul.f32 %v3214, 0.5
        %v3814 = vmul.f32 %v3216, 0.5
        %v3815 = vmul.f32 %v3367, 0.5
        %v3816 = vmul.f32 %v3369, 0.5
        %v3817 = vmul.f32 %v3520, 0.5
        %v3818 = vmul.f32 %v3522, 0.5
        %v3819 = vmul.f32 %v3673, 0.5
        %v3820 = vmul.f32 %v3675, 0.5
        %v3821 = vmul.f32 %v3220, 0.5
        %v3822 = vmul.f32 %v3222, 0.5
        %v3823 = vmul.f32 %v3373, 0.5
        %v3824 = vmul.f32 %v3375, 0.5
        %v3825 = vmul.f32 %v3526, 0.5
        %v3826 = vmul.f32 %v3528, 0.5
        %v3827 = vmul.f32 %v3679, 0.5
        %v3828 = vmul.f32 %v3681, 0.5
        %v3829 = vmul.f32 %v3224, 0.5
        %v3830 = vmul.f32 %v3226, 0.5
        %v3831 = vmul.f32 %v3377, 0.5
        %v3832 = vmul.f32 %v3379, 0.5
        %v3833 = vmul.f32 %v3530, 0.5
        %v3834 = vmul.f32 %v3532, 0.5
        %v3835 = vmul.f32 %v3683, 0.5
        %v3836 = vmul.f32 %v3685, 0.5
        %v3837 = vmul.f32 %v3230, 0.5
        %v3838 = vmul.f32 %v3232, 0.5
        %v3839 = vmul.f32 %v3383, 0.5
        %v3840 = vmul.f32 %v3385, 0.5
        %v3841 = vmul.f32 %v3536, 0.5
        %v3842 = vmul.f32 %v3538, 0.5
        %v3843 = vmul.f32 %v3689, 0.5
        %v3844 = vmul.f32 %v3691, 0.5
        %v3845 = vmul.f32 %v3234, 0.5
        %v3846 = vmul.f32 %v3236, 0.5
        %v3847 = vmul.f32 %v3387, 0.5
        %v3848 = vmul.f32 %v3389, 0.5
        %v3849 = vmul.f32 %v3540, 0.5
        %v3850 = vmul.f32 %v3542, 0.5
        %v3851 = vmul.f32 %v3693, 0.5
        %v3852 = vmul.f32 %v3695, 0.5
        %v3853 = vmul.f32 %v3240, 0.5
        %v3854 = vmul.f32 %v3242, 0.5
        %v3855 = vmul.f32 %v3393, 0.5
        %v3856 = vmul.f32 %v3395, 0.5
        %v3857 = vmul.f32 %v3546, 0.5
        %v3858 = vmul.f32 %v3548, 0.5
        %v3859 = vmul.f32 %v3699, 0.5
        %v3860 = vmul.f32 %v3701, 0.5
        %v3861 = vmul.f32 %v3244, 0.5
        %v3862 = vmul.f32 %v3246, 0.5
        %v3863 = vmul.f32 %v3397, 0.5
        %v3864 = vmul.f32 %v3399, 0.5
        %v3865 = vmul.f32 %v3550, 0.5
        %v3866 = vmul.f32 %v3552, 0.5
        %v3867 = vmul.f32 %v3703, 0.5
        %v3868 = vmul.f32 %v3705, 0.5
        %v3869 = vmul.f32 %v3250, 0.5
        %v3870 = vmul.f32 %v3252, 0.5
        %v3871 = vmul.f32 %v3403, 0.5
        %v3872 = vmul.f32 %v3405, 0.5
        %v3873 = vmul.f32 %v3556, 0.5
        %v3874 = vmul.f32 %v3558, 0.5
        %v3875 = vmul.f32 %v3709, 0.5
        %v3876 = vmul.f32 %v3711, 0.5
        %v3877 = vmul.f32 %v3254, 0.5
        %v3878 = vmul.f32 %v3256, 0.5
        %v3879 = vmul.f32 %v3407, 0.5
        %v3880 = vmul.f32 %v3409, 0.5
        %v3881 = vmul.f32 %v3560, 0.5
        %v3882 = vmul.f32 %v3562, 0.5
        %v3883 = vmul.f32 %v3713, 0.5
        %v3884 = vmul.f32 %v3715, 0.5
        %v3885 = vmul.f32 %v3260, 0.5
        %v3886 = vmul.f32 %v3262, 0.5
        %v3887 = vmul.f32 %v3413, 0.5
        %v3888 = vmul.f32 %v3415, 0.5
        %v3889 = vmul.f32 %v3566, 0.5
        %v3890 = vmul.f32 %v3568, 0.5
        %v3891 = vmul.f32 %v3719, 0.5
        %v3892 = vmul.f32 %v3721, 0.5
        %v3893 = vmul.f32 %v3264, 0.5
        %v3894 = vmul.f32 %v3266, 0.5
        %v3895 = vmul.f32 %v3417, 0.5
        %v3896 = vmul.f32 %v3419, 0.5
        %v3897 = vmul.f32 %v3570, 0.5
        %v3898 = vmul.f32 %v3572, 0.5
        %v3899 = vmul.f32 %v3723, 0.5
        %v3900 = vmul.f32 %v3725, 0.5
        %v3901 = vmul.f32 %v3270, 0.5
        %v3902 = vmul.f32 %v3272, 0.5
        %v3903 = vmul.f32 %v3423, 0.5
        %v3904 = vmul.f32 %v3425, 0.5
        %v3905 = vmul.f32 %v3576, 0.5
        %v3906 = vmul.f32 %v3578, 0.5
        %v3907 = vmul.f32 %v3729, 0.5
        %v3908 = vmul.f32 %v3731, 0.5
        %v3909 = vmul.f32 %v3274, 0.5
        %v3910 = vmul.f32 %v3276, 0.5
        %v3911 = vmul.f32 %v3427, 0.5
        %v3912 = vmul.f32 %v3429, 0.5
        %v3913 = vmul.f32 %v3580, 0.5
        %v3914 = vmul.f32 %v3582, 0.5
        %v3915 = vmul.f32 %v3733, 0.5
        %v3916 = vmul.f32 %v3735, 0.5
        %v3917 = vmul.f32 %v3280, 0.5
        %v3918 = vmul.f32 %v3282, 0.5
        %v3919 = vmul.f32 %v3433, 0.5
        %v3920 = vmul.f32 %v3435, 0.5
        %v3921 = vmul.f32 %v3586, 0.5
        %v3922 = vmul.f32 %v3588, 0.5
        %v3923 = vmul.f32 %v3739, 0.5
        %v3924 = vmul.f32 %v3741, 0.5
        %v3925 = vmul.f32 %v3284, 0.5
        %v3926 = vmul.f32 %v3286, 0.5
        %v3927 = vmul.f32 %v3437, 0.5
        %v3928 = vmul.f32 %v3439, 0.5
        %v3929 = vmul.f32 %v3590, 0.5
        %v3930 = vmul.f32 %v3592, 0.5
        %v3931 = vmul.f32 %v3743, 0.5
        %v3932 = vmul.f32 %v3745, 0.5
        %v3933 = vmul.f32 %v3290, 0.5
        %v3934 = vmul.f32 %v3292, 0.5
        %v3935 = vmul.f32 %v3443, 0.5
        %v3936 = vmul.f32 %v3445, 0.5
        %v3937 = vmul.f32 %v3596, 0.5
        %v3938 = vmul.f32 %v3598, 0.5
        %v3939 = vmul.f32 %v3749, 0.5
        %v3940 = vmul.f32 %v3751, 0.5
        %v3941 = vmul.f32 %v3294, 0.5
        %v3942 = vmul.f32 %v3296, 0.5
        %v3943 = vmul.f32 %v3447, 0.5
        %v3944 = vmul.f32 %v3449, 0.5
        %v3945 = vmul.f32 %v3600, 0.5
        %v3946 = vmul.f32 %v3602, 0.5
        %v3947 = vmul.f32 %v3753, 0.5
        %v3948 = vmul.f32 %v3755, 0.5
        %v3949 = vmul.f32 %v3180, 0.70710677
        %v3950 = vmul.f32 %v3182, 0.70710677
        %v3951 = vmul.f32 %v3333, 0.70710677
        %v3952 = vmul.f32 %v3335, 0.70710677
        %v3953 = vmul.f32 %v3486, 0.70710677
        %v3954 = vmul.f32 %v3488, 0.70710677
        %v3955 = vmul.f32 %v3639, 0.70710677
        %v3956 = vmul.f32 %v3641, 0.70710677
        %v3957 = vmul.f32 %v3184, 0.70710677
        %v3958 = vmul.f32 %v3186, 0.70710677
        %v3959 = vmul.f32 %v3337, 0.70710677
        %v3960 = vmul.f32 %v3339, 0.70710677
        %v3961 = vmul.f32 %v3490, 0.70710677
        %v3962 = vmul.f32 %v3492, 0.70710677
        %v3963 = vmul.f32 %v3643, 0.70710677
        %v3964 = vmul.f32 %v3645, 0.70710677
        %v3965 = vmul.f32 %v3190, 0.70710677
        %v3966 = vmul.f32 %v3192, 0.70710677
        %v3967 = vmul.f32 %v3343, 0.70710677
        %v3968 = vmul.f32 %v3345, 0.70710677
        %v3969 = vmul.f32 %v3496, 0.70710677
        %v3970 = vmul.f32 %v3498, 0.70710677
        %v3971 = vmul.f32 %v3649, 0.70710677
        %v3972 = vmul.f32 %v3651, 0.70710677
        %v3973 = vmul.f32 %v3194, 0.70710677
        %v3974 = vmul.f32 %v3196, 0.70710677
        %v3975 = vmul.f32 %v3347, 0.70710677
        %v3976 = vmul.f32 %v3349, 0.70710677
        %v3977 = vmul.f32 %v3500, 0.70710677
        %v3978 = vmul.f32 %v3502, 0.70710677
        %v3979 = vmul.f32 %v3653, 0.70710677
        %v3980 = vmul.f32 %v3655, 0.70710677
        %v3981 = vmul.f32 %v3200, 0.70710677
        %v3982 = vmul.f32 %v3202, 0.70710677
        %v3983 = vmul.f32 %v3353, 0.70710677
        %v3984 = vmul.f32 %v3355, 0.70710677
        %v3985 = vmul.f32 %v3506, 0.70710677
        %v3986 = vmul.f32 %v3508, 0.70710677
        %v3987 = vmul.f32 %v3659, 0.70710677
        %v3988 = vmul.f32 %v3661, 0.70710677
        %v3989 = vmul.f32 %v3204, 0.70710677
        %v3990 = vmul.f32 %v3206, 0.70710677
        %v3991 = vmul.f32 %v3357, 0.70710677
        %v3992 = vmul.f32 %v3359, 0.70710677
        %v3993 = vmul.f32 %v3510, 0.70710677
        %v3994 = vmul.f32 %v3512, 0.70710677
        %v3995 = vmul.f32 %v3663, 0.70710677
        %v3996 = vmul.f32 %v3665, 0.70710677
        %v3997 = vmul.f32 %v3210, 0.70710677
        %v3998 = vmul.f32 %v3212, 0.70710677
        %v3999 = vmul.f32 %v3363, 0.70710677
        %v4000 = vmul.f32 %v3365, 0.70710677
        %v4001 = vmul.f32 %v3516, 0.70710677
        %v4002 = vmul.f32 %v3518, 0.70710677
        %v4003 = vmul.f32 %v3669, 0.70710677
        %v4004 = vmul.f32 %v3671, 0.70710677
        %v4005 = vmul.f32 %v3214, 0.70710677
        %v4006 = vmul.f32 %v3216, 0.70710677
        %v4007 = vmul.f32 %v3367, 0.70710677
        %v4008 = vmul.f32 %v3369, 0.70710677
        %v4009 = vmul.f32 %v3520, 0.70710677
        %v4010 = vmul.f32 %v3522, 0.70710677
        %v4011 = vmul.f32 %v3673, 0.70710677
        %v4012 = vmul.f32 %v3675, 0.70710677
        %v4013 = vmul.f32 %v3220, 0.70710677
        %v4014 = vmul.f32 %v3222, 0.70710677
        %v4015 = vmul.f32 %v3373, 0.70710677
        %v4016 = vmul.f32 %v3375, 0.70710677
        %v4017 = vmul.f32 %v3526, 0.70710677
        %v4018 = vmul.f32 %v3528, 0.70710677
        %v4019 = vmul.f32 %v3679, 0.70710677
        %v4020 = vmul.f32 %v3681, 0.70710677
        %v4021 = vmul.f32 %v3224, 0.70710677
        %v4022 = vmul.f32 %v3226, 0.70710677
        %v4023 = vmul.f32 %v3377, 0.70710677
        %v4024 = vmul.f32 %v3379, 0.70710677
        %v4025 = vmul.f32 %v3530, 0.70710677
        %v4026 = vmul.f32 %v3532, 0.70710677
        %v4027 = vmul.f32 %v3683, 0.70710677
        %v4028 = vmul.f32 %v3685, 0.70710677
        %v4029 = vmul.f32 %v3230, 0.70710677
        %v4030 = vmul.f32 %v3232, 0.70710677
        %v4031 = vmul.f32 %v3383, 0.70710677
        %v4032 = vmul.f32 %v3385, 0.70710677
        %v4033 = vmul.f32 %v3536, 0.70710677
        %v4034 = vmul.f32 %v3538, 0.70710677
        %v4035 = vmul.f32 %v3689, 0.70710677
        %v4036 = vmul.f32 %v3691, 0.70710677
        %v4037 = vmul.f32 %v3234, 0.70710677
        %v4038 = vmul.f32 %v3236, 0.70710677
        %v4039 = vmul.f32 %v3387, 0.70710677
        %v4040 = vmul.f32 %v3389, 0.70710677
        %v4041 = vmul.f32 %v3540, 0.70710677
        %v4042 = vmul.f32 %v3542, 0.70710677
        %v4043 = vmul.f32 %v3693, 0.70710677
        %v4044 = vmul.f32 %v3695, 0.70710677
        %v4045 = vmul.f32 %v3240, 0.70710677
        %v4046 = vmul.f32 %v3242, 0.70710677
        %v4047 = vmul.f32 %v3393, 0.70710677
        %v4048 = vmul.f32 %v3395, 0.70710677
        %v4049 = vmul.f32 %v3546, 0.70710677
        %v4050 = vmul.f32 %v3548, 0.70710677
        %v4051 = vmul.f32 %v3699, 0.70710677
        %v4052 = vmul.f32 %v3701, 0.70710677
        %v4053 = vmul.f32 %v3244, 0.70710677
        %v4054 = vmul.f32 %v3246, 0.70710677
        %v4055 = vmul.f32 %v3397, 0.70710677
        %v4056 = vmul.f32 %v3399, 0.70710677
        %v4057 = vmul.f32 %v3550, 0.70710677
        %v4058 = vmul.f32 %v3552, 0.70710677
        %v4059 = vmul.f32 %v3703, 0.70710677
        %v4060 = vmul.f32 %v3705, 0.70710677
        %v4061 = vmul.f32 %v3250, 0.70710677
        %v4062 = vmul.f32 %v3252, 0.70710677
        %v4063 = vmul.f32 %v3403, 0.70710677
        %v4064 = vmul.f32 %v3405, 0.70710677
        %v4065 = vmul.f32 %v3556, 0.70710677
        %v4066 = vmul.f32 %v3558, 0.70710677
        %v4067 = vmul.f32 %v3709, 0.70710677
        %v4068 = vmul.f32 %v3711, 0.70710677
        %v4069 = vmul.f32 %v3254, 0.70710677
        %v4070 = vmul.f32 %v3256, 0.70710677
        %v4071 = vmul.f32 %v3407, 0.70710677
        %v4072 = vmul.f32 %v3409, 0.70710677
        %v4073 = vmul.f32 %v3560, 0.70710677
        %v4074 = vmul.f32 %v3562, 0.70710677
        %v4075 = vmul.f32 %v3713, 0.70710677
        %v4076 = vmul.f32 %v3715, 0.70710677
        %v4077 = vmul.f32 %v3260, 0.70710677
        %v4078 = vmul.f32 %v3262, 0.70710677
        %v4079 = vmul.f32 %v3413, 0.70710677
        %v4080 = vmul.f32 %v3415, 0.70710677
        %v4081 = vmul.f32 %v3566, 0.70710677
        %v4082 = vmul.f32 %v3568, 0.70710677
        %v4083 = vmul.f32 %v3719, 0.70710677
        %v4084 = vmul.f32 %v3721, 0.70710677
        %v4085 = vmul.f32 %v3264, 0.70710677
        %v4086 = vmul.f32 %v3266, 0.70710677
        %v4087 = vmul.f32 %v3417, 0.70710677
        %v4088 = vmul.f32 %v3419, 0.70710677
        %v4089 = vmul.f32 %v3570, 0.70710677
        %v4090 = vmul.f32 %v3572, 0.70710677
        %v4091 = vmul.f32 %v3723, 0.70710677
        %v4092 = vmul.f32 %v3725, 0.70710677
        %v4093 = vmul.f32 %v3270, 0.70710677
        %v4094 = vmul.f32 %v3272, 0.70710677
        %v4095 = vmul.f32 %v3423, 0.70710677
        %v4096 = vmul.f32 %v3425, 0.70710677
        %v4097 = vmul.f32 %v3576, 0.70710677
        %v4098 = vmul.f32 %v3578, 0.70710677
        %v4099 = vmul.f32 %v3729, 0.70710677
        %v4100 = vmul.f32 %v3731, 0.70710677
        %v4101 = vmul.f32 %v3274, 0.70710677
        %v4102 = vmul.f32 %v3276, 0.70710677
        %v4103 = vmul.f32 %v3427, 0.70710677
        %v4104 = vmul.f32 %v3429, 0.70710677
        %v4105 = vmul.f32 %v3580, 0.70710677
        %v4106 = vmul.f32 %v3582, 0.70710677
        %v4107 = vmul.f32 %v3733, 0.70710677
        %v4108 = vmul.f32 %v3735, 0.70710677
        %v4109 = vmul.f32 %v3280, 0.70710677
        %v4110 = vmul.f32 %v3282, 0.70710677
        %v4111 = vmul.f32 %v3433, 0.70710677
        %v4112 = vmul.f32 %v3435, 0.70710677
        %v4113 = vmul.f32 %v3586, 0.70710677
        %v4114 = vmul.f32 %v3588, 0.70710677
        %v4115 = vmul.f32 %v3739, 0.70710677
        %v4116 = vmul.f32 %v3741, 0.70710677
        %v4117 = vmul.f32 %v3284, 0.70710677
        %v4118 = vmul.f32 %v3286, 0.70710677
        %v4119 = vmul.f32 %v3437, 0.70710677
        %v4120 = vmul.f32 %v3439, 0.70710677
        %v4121 = vmul.f32 %v3590, 0.70710677
        %v4122 = vmul.f32 %v3592, 0.70710677
        %v4123 = vmul.f32 %v3743, 0.70710677
        %v4124 = vmul.f32 %v3745, 0.70710677
        %v4125 = vmul.f32 %v3290, 0.70710677
        %v4126 = vmul.f32 %v3292, 0.70710677
        %v4127 = vmul.f32 %v3443, 0.70710677
        %v4128 = vmul.f32 %v3445, 0.70710677
        %v4129 = vmul.f32 %v3596, 0.70710677
        %v4130 = vmul.f32 %v3598, 0.70710677
        %v4131 = vmul.f32 %v3749, 0.70710677
        %v4132 = vmul.f32 %v3751, 0.70710677
        %v4133 = vmul.f32 %v3294, 0.70710677
        %v4134 = vmul.f32 %v3296, 0.70710677
        %v4135 = vmul.f32 %v3447, 0.70710677
        %v4136 = vmul.f32 %v3449, 0.70710677
        %v4137 = vmul.f32 %v3600, 0.70710677
        %v4138 = vmul.f32 %v3602, 0.70710677
        %v4139 = vmul.f32 %v3753, 0.70710677
        %v4140 = vmul.f32 %v3755, 0.70710677
        %v4141 = verf.f32.pop %v3949
        %v4142 = verf.f32.pop %v3950
        %v4143 = verf.f32.pop %v3951
        %v4144 = verf.f32.pop %v3952
        %v4145 = verf.f32.pop %v3953
        %v4146 = verf.f32.pop %v3954
        %v4147 = verf.f32.pop %v3955
        %v4148 = verf.f32.pop %v3956
        %v4149 = verf.f32.pop %v3957
        %v4150 = verf.f32.pop %v3958
        %v4151 = verf.f32.pop %v3959
        %v4152 = verf.f32.pop %v3960
        %v4153 = verf.f32.pop %v3961
        %v4154 = verf.f32.pop %v3962
        %v4155 = verf.f32.pop %v3963
        %v4156 = verf.f32.pop %v3964
        %v4157 = verf.f32.pop %v3965
        %v4158 = verf.f32.pop %v3966
        %v4159 = verf.f32.pop %v3967
        %v4160 = verf.f32.pop %v3968
        %v4161 = verf.f32.pop %v3969
        %v4162 = verf.f32.pop %v3970
        %v4163 = verf.f32.pop %v3971
        %v4164 = verf.f32.pop %v3972
        %v4165 = verf.f32.pop %v3973
        %v4166 = verf.f32.pop %v3974
        %v4167 = verf.f32.pop %v3975
        %v4168 = verf.f32.pop %v3976
        %v4169 = verf.f32.pop %v3977
        %v4170 = verf.f32.pop %v3978
        %v4171 = verf.f32.pop %v3979
        %v4172 = verf.f32.pop %v3980
        %v4173 = verf.f32.pop %v3981
        %v4174 = verf.f32.pop %v3982
        %v4175 = verf.f32.pop %v3983
        %v4176 = verf.f32.pop %v3984
        %v4177 = verf.f32.pop %v3985
        %v4178 = verf.f32.pop %v3986
        %v4179 = verf.f32.pop %v3987
        %v4180 = verf.f32.pop %v3988
        %v4181 = verf.f32.pop %v3989
        %v4182 = verf.f32.pop %v3990
        %v4183 = verf.f32.pop %v3991
        %v4184 = verf.f32.pop %v3992
        %v4185 = verf.f32.pop %v3993
        %v4186 = verf.f32.pop %v3994
        %v4187 = verf.f32.pop %v3995
        %v4188 = verf.f32.pop %v3996
        %v4189 = verf.f32.pop %v3997
        %v4190 = verf.f32.pop %v3998
        %v4191 = verf.f32.pop %v3999
        %v4192 = verf.f32.pop %v4000
        %v4193 = verf.f32.pop %v4001
        %v4194 = verf.f32.pop %v4002
        %v4195 = verf.f32.pop %v4003
        %v4196 = verf.f32.pop %v4004
        %v4197 = verf.f32.pop %v4005
        %v4198 = verf.f32.pop %v4006
        %v4199 = verf.f32.pop %v4007
        %v4200 = verf.f32.pop %v4008
        %v4201 = verf.f32.pop %v4009
        %v4202 = verf.f32.pop %v4010
        %v4203 = verf.f32.pop %v4011
        %v4204 = verf.f32.pop %v4012
        %v4205 = verf.f32.pop %v4013
        %v4206 = verf.f32.pop %v4014
        %v4207 = verf.f32.pop %v4015
        %v4208 = verf.f32.pop %v4016
        %v4209 = verf.f32.pop %v4017
        %v4210 = verf.f32.pop %v4018
        %v4211 = verf.f32.pop %v4019
        %v4212 = verf.f32.pop %v4020
        %v4213 = verf.f32.pop %v4021
        %v4214 = verf.f32.pop %v4022
        %v4215 = verf.f32.pop %v4023
        %v4216 = verf.f32.pop %v4024
        %v4217 = verf.f32.pop %v4025
        %v4218 = verf.f32.pop %v4026
        %v4219 = verf.f32.pop %v4027
        %v4220 = verf.f32.pop %v4028
        %v4221 = verf.f32.pop %v4029
        %v4222 = verf.f32.pop %v4030
        %v4223 = verf.f32.pop %v4031
        %v4224 = verf.f32.pop %v4032
        %v4225 = verf.f32.pop %v4033
        %v4226 = verf.f32.pop %v4034
        %v4227 = verf.f32.pop %v4035
        %v4228 = verf.f32.pop %v4036
        %v4229 = verf.f32.pop %v4037
        %v4230 = verf.f32.pop %v4038
        %v4231 = verf.f32.pop %v4039
        %v4232 = verf.f32.pop %v4040
        %v4233 = verf.f32.pop %v4041
        %v4234 = verf.f32.pop %v4042
        %v4235 = verf.f32.pop %v4043
        %v4236 = verf.f32.pop %v4044
        %v4237 = verf.f32.pop %v4045
        %v4238 = verf.f32.pop %v4046
        %v4239 = verf.f32.pop %v4047
        %v4240 = verf.f32.pop %v4048
        %v4241 = verf.f32.pop %v4049
        %v4242 = verf.f32.pop %v4050
        %v4243 = verf.f32.pop %v4051
        %v4244 = verf.f32.pop %v4052
        %v4245 = verf.f32.pop %v4053
        %v4246 = verf.f32.pop %v4054
        %v4247 = verf.f32.pop %v4055
        %v4248 = verf.f32.pop %v4056
        %v4249 = verf.f32.pop %v4057
        %v4250 = verf.f32.pop %v4058
        %v4251 = verf.f32.pop %v4059
        %v4252 = verf.f32.pop %v4060
        %v4253 = verf.f32.pop %v4061
        %v4254 = verf.f32.pop %v4062
        %v4255 = verf.f32.pop %v4063
        %v4256 = verf.f32.pop %v4064
        %v4257 = verf.f32.pop %v4065
        %v4258 = verf.f32.pop %v4066
        %v4259 = verf.f32.pop %v4067
        %v4260 = verf.f32.pop %v4068
        %v4261 = verf.f32.pop %v4069
        %v4262 = verf.f32.pop %v4070
        %v4263 = verf.f32.pop %v4071
        %v4264 = verf.f32.pop %v4072
        %v4265 = verf.f32.pop %v4073
        %v4266 = verf.f32.pop %v4074
        %v4267 = verf.f32.pop %v4075
        %v4268 = verf.f32.pop %v4076
        %v4269 = verf.f32.pop %v4077
        %v4270 = verf.f32.pop %v4078
        %v4271 = verf.f32.pop %v4079
        %v4272 = verf.f32.pop %v4080
        %v4273 = verf.f32.pop %v4081
        %v4274 = verf.f32.pop %v4082
        %v4275 = verf.f32.pop %v4083
        %v4276 = verf.f32.pop %v4084
        %v4277 = verf.f32.pop %v4085
        %v4278 = verf.f32.pop %v4086
        %v4279 = verf.f32.pop %v4087
        %v4280 = verf.f32.pop %v4088
        %v4281 = verf.f32.pop %v4089
        %v4282 = verf.f32.pop %v4090
        %v4283 = verf.f32.pop %v4091
        %v4284 = verf.f32.pop %v4092
        %v4285 = verf.f32.pop %v4093
        %v4286 = verf.f32.pop %v4094
        %v4287 = verf.f32.pop %v4095
        %v4288 = verf.f32.pop %v4096
        %v4289 = verf.f32.pop %v4097
        %v4290 = verf.f32.pop %v4098
        %v4291 = verf.f32.pop %v4099
        %v4292 = verf.f32.pop %v4100
        %v4293 = verf.f32.pop %v4101
        %v4294 = verf.f32.pop %v4102
        %v4295 = verf.f32.pop %v4103
        %v4296 = verf.f32.pop %v4104
        %v4297 = verf.f32.pop %v4105
        %v4298 = verf.f32.pop %v4106
        %v4299 = verf.f32.pop %v4107
        %v4300 = verf.f32.pop %v4108
        %v4301 = verf.f32.pop %v4109
        %v4302 = verf.f32.pop %v4110
        %v4303 = verf.f32.pop %v4111
        %v4304 = verf.f32.pop %v4112
        %v4305 = verf.f32.pop %v4113
        %v4306 = verf.f32.pop %v4114
        %v4307 = verf.f32.pop %v4115
        %v4308 = verf.f32.pop %v4116
        %v4309 = verf.f32.pop %v4117
        %v4310 = verf.f32.pop %v4118
        %v4311 = verf.f32.pop %v4119
        %v4312 = verf.f32.pop %v4120
        %v4313 = verf.f32.pop %v4121
        %v4314 = verf.f32.pop %v4122
        %v4315 = verf.f32.pop %v4123
        %v4316 = verf.f32.pop %v4124
        %v4317 = verf.f32.pop %v4125
        %v4318 = verf.f32.pop %v4126
        %v4319 = verf.f32.pop %v4127
        %v4320 = verf.f32.pop %v4128
        %v4321 = verf.f32.pop %v4129
        %v4322 = verf.f32.pop %v4130
        %v4323 = verf.f32.pop %v4131
        %v4324 = verf.f32.pop %v4132
        %v4325 = verf.f32.pop %v4133
        %v4326 = verf.f32.pop %v4134
        %v4327 = verf.f32.pop %v4135
        %v4328 = verf.f32.pop %v4136
        %v4329 = verf.f32.pop %v4137
        %v4330 = verf.f32.pop %v4138
        %v4331 = verf.f32.pop %v4139
        %v4332 = verf.f32.pop %v4140
        %v4333 = vadd.f32 %v4141, 1.0
        %v4334 = vadd.f32 %v4142, 1.0
        %v4335 = vadd.f32 %v4143, 1.0
        %v4336 = vadd.f32 %v4144, 1.0
        %v4337 = vadd.f32 %v4145, 1.0
        %v4338 = vadd.f32 %v4146, 1.0
        %v4339 = vadd.f32 %v4147, 1.0
        %v4340 = vadd.f32 %v4148, 1.0
        %v4341 = vadd.f32 %v4149, 1.0
        %v4342 = vadd.f32 %v4150, 1.0
        %v4343 = vadd.f32 %v4151, 1.0
        %v4344 = vadd.f32 %v4152, 1.0
        %v4345 = vadd.f32 %v4153, 1.0
        %v4346 = vadd.f32 %v4154, 1.0
        %v4347 = vadd.f32 %v4155, 1.0
        %v4348 = vadd.f32 %v4156, 1.0
        %v4349 = vadd.f32 %v4157, 1.0
        %v4350 = vadd.f32 %v4158, 1.0
        %v4351 = vadd.f32 %v4159, 1.0
        %v4352 = vadd.f32 %v4160, 1.0
        %v4353 = vadd.f32 %v4161, 1.0
        %v4354 = vadd.f32 %v4162, 1.0
        %v4355 = vadd.f32 %v4163, 1.0
        %v4356 = vadd.f32 %v4164, 1.0
        %v4357 = vadd.f32 %v4165, 1.0
        %v4358 = vadd.f32 %v4166, 1.0
        %v4359 = vadd.f32 %v4167, 1.0
        %v4360 = vadd.f32 %v4168, 1.0
        %v4361 = vadd.f32 %v4169, 1.0
        %v4362 = vadd.f32 %v4170, 1.0
        %v4363 = vadd.f32 %v4171, 1.0
        %v4364 = vadd.f32 %v4172, 1.0
        %v4365 = vadd.f32 %v4173, 1.0
        %v4366 = vadd.f32 %v4174, 1.0
        %v4367 = vadd.f32 %v4175, 1.0
        %v4368 = vadd.f32 %v4176, 1.0
        %v4369 = vadd.f32 %v4177, 1.0
        %v4370 = vadd.f32 %v4178, 1.0
        %v4371 = vadd.f32 %v4179, 1.0
        %v4372 = vadd.f32 %v4180, 1.0
        %v4373 = vadd.f32 %v4181, 1.0
        %v4374 = vadd.f32 %v4182, 1.0
        %v4375 = vadd.f32 %v4183, 1.0
        %v4376 = vadd.f32 %v4184, 1.0
        %v4377 = vadd.f32 %v4185, 1.0
        %v4378 = vadd.f32 %v4186, 1.0
        %v4379 = vadd.f32 %v4187, 1.0
        %v4380 = vadd.f32 %v4188, 1.0
        %v4381 = vadd.f32 %v4189, 1.0
        %v4382 = vadd.f32 %v4190, 1.0
        %v4383 = vadd.f32 %v4191, 1.0
        %v4384 = vadd.f32 %v4192, 1.0
        %v4385 = vadd.f32 %v4193, 1.0
        %v4386 = vadd.f32 %v4194, 1.0
        %v4387 = vadd.f32 %v4195, 1.0
        %v4388 = vadd.f32 %v4196, 1.0
        %v4389 = vadd.f32 %v4197, 1.0
        %v4390 = vadd.f32 %v4198, 1.0
        %v4391 = vadd.f32 %v4199, 1.0
        %v4392 = vadd.f32 %v4200, 1.0
        %v4393 = vadd.f32 %v4201, 1.0
        %v4394 = vadd.f32 %v4202, 1.0
        %v4395 = vadd.f32 %v4203, 1.0
        %v4396 = vadd.f32 %v4204, 1.0
        %v4397 = vadd.f32 %v4205, 1.0
        %v4398 = vadd.f32 %v4206, 1.0
        %v4399 = vadd.f32 %v4207, 1.0
        %v4400 = vadd.f32 %v4208, 1.0
        %v4401 = vadd.f32 %v4209, 1.0
        %v4402 = vadd.f32 %v4210, 1.0
        %v4403 = vadd.f32 %v4211, 1.0
        %v4404 = vadd.f32 %v4212, 1.0
        %v4405 = vadd.f32 %v4213, 1.0
        %v4406 = vadd.f32 %v4214, 1.0
        %v4407 = vadd.f32 %v4215, 1.0
        %v4408 = vadd.f32 %v4216, 1.0
        %v4409 = vadd.f32 %v4217, 1.0
        %v4410 = vadd.f32 %v4218, 1.0
        %v4411 = vadd.f32 %v4219, 1.0
        %v4412 = vadd.f32 %v4220, 1.0
        %v4413 = vadd.f32 %v4221, 1.0
        %v4414 = vadd.f32 %v4222, 1.0
        %v4415 = vadd.f32 %v4223, 1.0
        %v4416 = vadd.f32 %v4224, 1.0
        %v4417 = vadd.f32 %v4225, 1.0
        %v4418 = vadd.f32 %v4226, 1.0
        %v4419 = vadd.f32 %v4227, 1.0
        %v4420 = vadd.f32 %v4228, 1.0
        %v4421 = vadd.f32 %v4229, 1.0
        %v4422 = vadd.f32 %v4230, 1.0
        %v4423 = vadd.f32 %v4231, 1.0
        %v4424 = vadd.f32 %v4232, 1.0
        %v4425 = vadd.f32 %v4233, 1.0
        %v4426 = vadd.f32 %v4234, 1.0
        %v4427 = vadd.f32 %v4235, 1.0
        %v4428 = vadd.f32 %v4236, 1.0
        %v4429 = vadd.f32 %v4237, 1.0
        %v4430 = vadd.f32 %v4238, 1.0
        %v4431 = vadd.f32 %v4239, 1.0
        %v4432 = vadd.f32 %v4240, 1.0
        %v4433 = vadd.f32 %v4241, 1.0
        %v4434 = vadd.f32 %v4242, 1.0
        %v4435 = vadd.f32 %v4243, 1.0
        %v4436 = vadd.f32 %v4244, 1.0
        %v4437 = vadd.f32 %v4245, 1.0
        %v4438 = vadd.f32 %v4246, 1.0
        %v4439 = vadd.f32 %v4247, 1.0
        %v4440 = vadd.f32 %v4248, 1.0
        %v4441 = vadd.f32 %v4249, 1.0
        %v4442 = vadd.f32 %v4250, 1.0
        %v4443 = vadd.f32 %v4251, 1.0
        %v4444 = vadd.f32 %v4252, 1.0
        %v4445 = vadd.f32 %v4253, 1.0
        %v4446 = vadd.f32 %v4254, 1.0
        %v4447 = vadd.f32 %v4255, 1.0
        %v4448 = vadd.f32 %v4256, 1.0
        %v4449 = vadd.f32 %v4257, 1.0
        %v4450 = vadd.f32 %v4258, 1.0
        %v4451 = vadd.f32 %v4259, 1.0
        %v4452 = vadd.f32 %v4260, 1.0
        %v4453 = vadd.f32 %v4261, 1.0
        %v4454 = vadd.f32 %v4262, 1.0
        %v4455 = vadd.f32 %v4263, 1.0
        %v4456 = vadd.f32 %v4264, 1.0
        %v4457 = vadd.f32 %v4265, 1.0
        %v4458 = vadd.f32 %v4266, 1.0
        %v4459 = vadd.f32 %v4267, 1.0
        %v4460 = vadd.f32 %v4268, 1.0
        %v4461 = vadd.f32 %v4269, 1.0
        %v4462 = vadd.f32 %v4270, 1.0
        %v4463 = vadd.f32 %v4271, 1.0
        %v4464 = vadd.f32 %v4272, 1.0
        %v4465 = vadd.f32 %v4273, 1.0
        %v4466 = vadd.f32 %v4274, 1.0
        %v4467 = vadd.f32 %v4275, 1.0
        %v4468 = vadd.f32 %v4276, 1.0
        %v4469 = vadd.f32 %v4277, 1.0
        %v4470 = vadd.f32 %v4278, 1.0
        %v4471 = vadd.f32 %v4279, 1.0
        %v4472 = vadd.f32 %v4280, 1.0
        %v4473 = vadd.f32 %v4281, 1.0
        %v4474 = vadd.f32 %v4282, 1.0
        %v4475 = vadd.f32 %v4283, 1.0
        %v4476 = vadd.f32 %v4284, 1.0
        %v4477 = vadd.f32 %v4285, 1.0
        %v4478 = vadd.f32 %v4286, 1.0
        %v4479 = vadd.f32 %v4287, 1.0
        %v4480 = vadd.f32 %v4288, 1.0
        %v4481 = vadd.f32 %v4289, 1.0
        %v4482 = vadd.f32 %v4290, 1.0
        %v4483 = vadd.f32 %v4291, 1.0
        %v4484 = vadd.f32 %v4292, 1.0
        %v4485 = vadd.f32 %v4293, 1.0
        %v4486 = vadd.f32 %v4294, 1.0
        %v4487 = vadd.f32 %v4295, 1.0
        %v4488 = vadd.f32 %v4296, 1.0
        %v4489 = vadd.f32 %v4297, 1.0
        %v4490 = vadd.f32 %v4298, 1.0
        %v4491 = vadd.f32 %v4299, 1.0
        %v4492 = vadd.f32 %v4300, 1.0
        %v4493 = vadd.f32 %v4301, 1.0
        %v4494 = vadd.f32 %v4302, 1.0
        %v4495 = vadd.f32 %v4303, 1.0
        %v4496 = vadd.f32 %v4304, 1.0
        %v4497 = vadd.f32 %v4305, 1.0
        %v4498 = vadd.f32 %v4306, 1.0
        %v4499 = vadd.f32 %v4307, 1.0
        %v4500 = vadd.f32 %v4308, 1.0
        %v4501 = vadd.f32 %v4309, 1.0
        %v4502 = vadd.f32 %v4310, 1.0
        %v4503 = vadd.f32 %v4311, 1.0
        %v4504 = vadd.f32 %v4312, 1.0
        %v4505 = vadd.f32 %v4313, 1.0
        %v4506 = vadd.f32 %v4314, 1.0
        %v4507 = vadd.f32 %v4315, 1.0
        %v4508 = vadd.f32 %v4316, 1.0
        %v4509 = vadd.f32 %v4317, 1.0
        %v4510 = vadd.f32 %v4318, 1.0
        %v4511 = vadd.f32 %v4319, 1.0
        %v4512 = vadd.f32 %v4320, 1.0
        %v4513 = vadd.f32 %v4321, 1.0
        %v4514 = vadd.f32 %v4322, 1.0
        %v4515 = vadd.f32 %v4323, 1.0
        %v4516 = vadd.f32 %v4324, 1.0
        %v4517 = vadd.f32 %v4325, 1.0
        %v4518 = vadd.f32 %v4326, 1.0
        %v4519 = vadd.f32 %v4327, 1.0
        %v4520 = vadd.f32 %v4328, 1.0
        %v4521 = vadd.f32 %v4329, 1.0
        %v4522 = vadd.f32 %v4330, 1.0
        %v4523 = vadd.f32 %v4331, 1.0
        %v4524 = vadd.f32 %v4332, 1.0
        %v4525 = vmul.f32 %v3757, %v4333
        %v4526 = vmul.f32 %v3758, %v4334
        %v4527 = vmul.f32 %v3759, %v4335
        %v4528 = vmul.f32 %v3760, %v4336
        %v4529 = vmul.f32 %v3761, %v4337
        %v4530 = vmul.f32 %v3762, %v4338
        %v4531 = vmul.f32 %v3763, %v4339
        %v4532 = vmul.f32 %v3764, %v4340
        %v4533 = vmul.f32 %v3765, %v4341
        %v4534 = vmul.f32 %v3766, %v4342
        %v4535 = vmul.f32 %v3767, %v4343
        %v4536 = vmul.f32 %v3768, %v4344
        %v4537 = vmul.f32 %v3769, %v4345
        %v4538 = vmul.f32 %v3770, %v4346
        %v4539 = vmul.f32 %v3771, %v4347
        %v4540 = vmul.f32 %v3772, %v4348
        %v4541 = vmul.f32 %v3773, %v4349
        %v4542 = vmul.f32 %v3774, %v4350
        %v4543 = vmul.f32 %v3775, %v4351
        %v4544 = vmul.f32 %v3776, %v4352
        %v4545 = vmul.f32 %v3777, %v4353
        %v4546 = vmul.f32 %v3778, %v4354
        %v4547 = vmul.f32 %v3779, %v4355
        %v4548 = vmul.f32 %v3780, %v4356
        %v4549 = vmul.f32 %v3781, %v4357
        %v4550 = vmul.f32 %v3782, %v4358
        %v4551 = vmul.f32 %v3783, %v4359
        %v4552 = vmul.f32 %v3784, %v4360
        %v4553 = vmul.f32 %v3785, %v4361
        %v4554 = vmul.f32 %v3786, %v4362
        %v4555 = vmul.f32 %v3787, %v4363
        %v4556 = vmul.f32 %v3788, %v4364
        %v4557 = vmul.f32 %v3789, %v4365
        %v4558 = vmul.f32 %v3790, %v4366
        %v4559 = vmul.f32 %v3791, %v4367
        %v4560 = vmul.f32 %v3792, %v4368
        %v4561 = vmul.f32 %v3793, %v4369
        %v4562 = vmul.f32 %v3794, %v4370
        %v4563 = vmul.f32 %v3795, %v4371
        %v4564 = vmul.f32 %v3796, %v4372
        %v4565 = vmul.f32 %v3797, %v4373
        %v4566 = vmul.f32 %v3798, %v4374
        %v4567 = vmul.f32 %v3799, %v4375
        %v4568 = vmul.f32 %v3800, %v4376
        %v4569 = vmul.f32 %v3801, %v4377
        %v4570 = vmul.f32 %v3802, %v4378
        %v4571 = vmul.f32 %v3803, %v4379
        %v4572 = vmul.f32 %v3804, %v4380
        %v4573 = vmul.f32 %v3805, %v4381
        %v4574 = vmul.f32 %v3806, %v4382
        %v4575 = vmul.f32 %v3807, %v4383
        %v4576 = vmul.f32 %v3808, %v4384
        %v4577 = vmul.f32 %v3809, %v4385
        %v4578 = vmul.f32 %v3810, %v4386
        %v4579 = vmul.f32 %v3811, %v4387
        %v4580 = vmul.f32 %v3812, %v4388
        %v4581 = vmul.f32 %v3813, %v4389
        %v4582 = vmul.f32 %v3814, %v4390
        %v4583 = vmul.f32 %v3815, %v4391
        %v4584 = vmul.f32 %v3816, %v4392
        %v4585 = vmul.f32 %v3817, %v4393
        %v4586 = vmul.f32 %v3818, %v4394
        %v4587 = vmul.f32 %v3819, %v4395
        %v4588 = vmul.f32 %v3820, %v4396
        %v4589 = vmul.f32 %v3821, %v4397
        %v4590 = vmul.f32 %v3822, %v4398
        %v4591 = vmul.f32 %v3823, %v4399
        %v4592 = vmul.f32 %v3824, %v4400
        %v4593 = vmul.f32 %v3825, %v4401
        %v4594 = vmul.f32 %v3826, %v4402
        %v4595 = vmul.f32 %v3827, %v4403
        %v4596 = vmul.f32 %v3828, %v4404
        %v4597 = vmul.f32 %v3829, %v4405
        %v4598 = vmul.f32 %v3830, %v4406
        %v4599 = vmul.f32 %v3831, %v4407
        %v4600 = vmul.f32 %v3832, %v4408
        %v4601 = vmul.f32 %v3833, %v4409
        %v4602 = vmul.f32 %v3834, %v4410
        %v4603 = vmul.f32 %v3835, %v4411
        %v4604 = vmul.f32 %v3836, %v4412
        %v4605 = vmul.f32 %v3837, %v4413
        %v4606 = vmul.f32 %v3838, %v4414
        %v4607 = vmul.f32 %v3839, %v4415
        %v4608 = vmul.f32 %v3840, %v4416
        %v4609 = vmul.f32 %v3841, %v4417
        %v4610 = vmul.f32 %v3842, %v4418
        %v4611 = vmul.f32 %v3843, %v4419
        %v4612 = vmul.f32 %v3844, %v4420
        %v4613 = vmul.f32 %v3845, %v4421
        %v4614 = vmul.f32 %v3846, %v4422
        %v4615 = vmul.f32 %v3847, %v4423
        %v4616 = vmul.f32 %v3848, %v4424
        %v4617 = vmul.f32 %v3849, %v4425
        %v4618 = vmul.f32 %v3850, %v4426
        %v4619 = vmul.f32 %v3851, %v4427
        %v4620 = vmul.f32 %v3852, %v4428
        %v4621 = vmul.f32 %v3853, %v4429
        %v4622 = vmul.f32 %v3854, %v4430
        %v4623 = vmul.f32 %v3855, %v4431
        %v4624 = vmul.f32 %v3856, %v4432
        %v4625 = vmul.f32 %v3857, %v4433
        %v4626 = vmul.f32 %v3858, %v4434
        %v4627 = vmul.f32 %v3859, %v4435
        %v4628 = vmul.f32 %v3860, %v4436
        %v4629 = vmul.f32 %v3861, %v4437
        %v4630 = vmul.f32 %v3862, %v4438
        %v4631 = vmul.f32 %v3863, %v4439
        %v4632 = vmul.f32 %v3864, %v4440
        %v4633 = vmul.f32 %v3865, %v4441
        %v4634 = vmul.f32 %v3866, %v4442
        %v4635 = vmul.f32 %v3867, %v4443
        %v4636 = vmul.f32 %v3868, %v4444
        %v4637 = vmul.f32 %v3869, %v4445
        %v4638 = vmul.f32 %v3870, %v4446
        %v4639 = vmul.f32 %v3871, %v4447
        %v4640 = vmul.f32 %v3872, %v4448
        %v4641 = vmul.f32 %v3873, %v4449
        %v4642 = vmul.f32 %v3874, %v4450
        %v4643 = vmul.f32 %v3875, %v4451
        %v4644 = vmul.f32 %v3876, %v4452
        %v4645 = vmul.f32 %v3877, %v4453
        %v4646 = vmul.f32 %v3878, %v4454
        %v4647 = vmul.f32 %v3879, %v4455
        %v4648 = vmul.f32 %v3880, %v4456
        %v4649 = vmul.f32 %v3881, %v4457
        %v4650 = vmul.f32 %v3882, %v4458
        %v4651 = vmul.f32 %v3883, %v4459
        %v4652 = vmul.f32 %v3884, %v4460
        %v4653 = vmul.f32 %v3885, %v4461
        %v4654 = vmul.f32 %v3886, %v4462
        %v4655 = vmul.f32 %v3887, %v4463
        %v4656 = vmul.f32 %v3888, %v4464
        %v4657 = vmul.f32 %v3889, %v4465
        %v4658 = vmul.f32 %v3890, %v4466
        %v4659 = vmul.f32 %v3891, %v4467
        %v4660 = vmul.f32 %v3892, %v4468
        %v4661 = vmul.f32 %v3893, %v4469
        %v4662 = vmul.f32 %v3894, %v4470
        %v4663 = vmul.f32 %v3895, %v4471
        %v4664 = vmul.f32 %v3896, %v4472
        %v4665 = vmul.f32 %v3897, %v4473
        %v4666 = vmul.f32 %v3898, %v4474
        %v4667 = vmul.f32 %v3899, %v4475
        %v4668 = vmul.f32 %v3900, %v4476
        %v4669 = vmul.f32 %v3901, %v4477
        %v4670 = vmul.f32 %v3902, %v4478
        %v4671 = vmul.f32 %v3903, %v4479
        %v4672 = vmul.f32 %v3904, %v4480
        %v4673 = vmul.f32 %v3905, %v4481
        %v4674 = vmul.f32 %v3906, %v4482
        %v4675 = vmul.f32 %v3907, %v4483
        %v4676 = vmul.f32 %v3908, %v4484
        %v4677 = vmul.f32 %v3909, %v4485
        %v4678 = vmul.f32 %v3910, %v4486
        %v4679 = vmul.f32 %v3911, %v4487
        %v4680 = vmul.f32 %v3912, %v4488
        %v4681 = vmul.f32 %v3913, %v4489
        %v4682 = vmul.f32 %v3914, %v4490
        %v4683 = vmul.f32 %v3915, %v4491
        %v4684 = vmul.f32 %v3916, %v4492
        %v4685 = vmul.f32 %v3917, %v4493
        %v4686 = vmul.f32 %v3918, %v4494
        %v4687 = vmul.f32 %v3919, %v4495
        %v4688 = vmul.f32 %v3920, %v4496
        %v4689 = vmul.f32 %v3921, %v4497
        %v4690 = vmul.f32 %v3922, %v4498
        %v4691 = vmul.f32 %v3923, %v4499
        %v4692 = vmul.f32 %v3924, %v4500
        %v4693 = vmul.f32 %v3925, %v4501
        %v4694 = vmul.f32 %v3926, %v4502
        %v4695 = vmul.f32 %v3927, %v4503
        %v4696 = vmul.f32 %v3928, %v4504
        %v4697 = vmul.f32 %v3929, %v4505
        %v4698 = vmul.f32 %v3930, %v4506
        %v4699 = vmul.f32 %v3931, %v4507
        %v4700 = vmul.f32 %v3932, %v4508
        %v4701 = vmul.f32 %v3933, %v4509
        %v4702 = vmul.f32 %v3934, %v4510
        %v4703 = vmul.f32 %v3935, %v4511
        %v4704 = vmul.f32 %v3936, %v4512
        %v4705 = vmul.f32 %v3937, %v4513
        %v4706 = vmul.f32 %v3938, %v4514
        %v4707 = vmul.f32 %v3939, %v4515
        %v4708 = vmul.f32 %v3940, %v4516
        %v4709 = vmul.f32 %v3941, %v4517
        %v4710 = vmul.f32 %v3942, %v4518
        %v4711 = vmul.f32 %v3943, %v4519
        %v4712 = vmul.f32 %v3944, %v4520
        %v4713 = vmul.f32 %v3945, %v4521
        %v4714 = vmul.f32 %v3946, %v4522
        %v4715 = vmul.f32 %v3947, %v4523
        %v4716 = vmul.f32 %v3948, %v4524
        %v4717 = vpack.c.bf16 %v4533, %v4525
        %v4718 = vpack.c.bf16 %v4534, %v4526
        %v4719 = vpack.c.bf16 %v4535, %v4527
        %v4720 = vpack.c.bf16 %v4536, %v4528
        %v4721 = vpack.c.bf16 %v4537, %v4529
        %v4722 = vpack.c.bf16 %v4538, %v4530
        %v4723 = vpack.c.bf16 %v4539, %v4531
        %v4724 = vpack.c.bf16 %v4540, %v4532
        %v4725 = vpack.c.bf16 %v4549, %v4541
        %v4726 = vpack.c.bf16 %v4550, %v4542
        %v4727 = vpack.c.bf16 %v4551, %v4543
        %v4728 = vpack.c.bf16 %v4552, %v4544
        %v4729 = vpack.c.bf16 %v4553, %v4545
        %v4730 = vpack.c.bf16 %v4554, %v4546
        %v4731 = vpack.c.bf16 %v4555, %v4547
        %v4732 = vpack.c.bf16 %v4556, %v4548
        %v4733 = vpack.c.bf16 %v4565, %v4557
        %v4734 = vpack.c.bf16 %v4566, %v4558
        %v4735 = vpack.c.bf16 %v4567, %v4559
        %v4736 = vpack.c.bf16 %v4568, %v4560
        %v4737 = vpack.c.bf16 %v4569, %v4561
        %v4738 = vpack.c.bf16 %v4570, %v4562
        %v4739 = vpack.c.bf16 %v4571, %v4563
        %v4740 = vpack.c.bf16 %v4572, %v4564
        %v4741 = vpack.c.bf16 %v4581, %v4573
        %v4742 = vpack.c.bf16 %v4582, %v4574
        %v4743 = vpack.c.bf16 %v4583, %v4575
        %v4744 = vpack.c.bf16 %v4584, %v4576
        %v4745 = vpack.c.bf16 %v4585, %v4577
        %v4746 = vpack.c.bf16 %v4586, %v4578
        %v4747 = vpack.c.bf16 %v4587, %v4579
        %v4748 = vpack.c.bf16 %v4588, %v4580
        %v4749 = vpack.c.bf16 %v4597, %v4589
        %v4750 = vpack.c.bf16 %v4598, %v4590
        %v4751 = vpack.c.bf16 %v4599, %v4591
        %v4752 = vpack.c.bf16 %v4600, %v4592
        %v4753 = vpack.c.bf16 %v4601, %v4593
        %v4754 = vpack.c.bf16 %v4602, %v4594
        %v4755 = vpack.c.bf16 %v4603, %v4595
        %v4756 = vpack.c.bf16 %v4604, %v4596
        %v4757 = vpack.c.bf16 %v4613, %v4605
        %v4758 = vpack.c.bf16 %v4614, %v4606
        %v4759 = vpack.c.bf16 %v4615, %v4607
        %v4760 = vpack.c.bf16 %v4616, %v4608
        %v4761 = vpack.c.bf16 %v4617, %v4609
        %v4762 = vpack.c.bf16 %v4618, %v4610
        %v4763 = vpack.c.bf16 %v4619, %v4611
        %v4764 = vpack.c.bf16 %v4620, %v4612
        %v4765 = vpack.c.bf16 %v4629, %v4621
        %v4766 = vpack.c.bf16 %v4630, %v4622
        %v4767 = vpack.c.bf16 %v4631, %v4623
        %v4768 = vpack.c.bf16 %v4632, %v4624
        %v4769 = vpack.c.bf16 %v4633, %v4625
        %v4770 = vpack.c.bf16 %v4634, %v4626
        %v4771 = vpack.c.bf16 %v4635, %v4627
        %v4772 = vpack.c.bf16 %v4636, %v4628
        %v4773 = vpack.c.bf16 %v4645, %v4637
        %v4774 = vpack.c.bf16 %v4646, %v4638
        %v4775 = vpack.c.bf16 %v4647, %v4639
        %v4776 = vpack.c.bf16 %v4648, %v4640
        %v4777 = vpack.c.bf16 %v4649, %v4641
        %v4778 = vpack.c.bf16 %v4650, %v4642
        %v4779 = vpack.c.bf16 %v4651, %v4643
        %v4780 = vpack.c.bf16 %v4652, %v4644
        %v4781 = vpack.c.bf16 %v4661, %v4653
        %v4782 = vpack.c.bf16 %v4662, %v4654
        %v4783 = vpack.c.bf16 %v4663, %v4655
        %v4784 = vpack.c.bf16 %v4664, %v4656
        %v4785 = vpack.c.bf16 %v4665, %v4657
        %v4786 = vpack.c.bf16 %v4666, %v4658
        %v4787 = vpack.c.bf16 %v4667, %v4659
        %v4788 = vpack.c.bf16 %v4668, %v4660
        %v4789 = vpack.c.bf16 %v4677, %v4669
        %v4790 = vpack.c.bf16 %v4678, %v4670
        %v4791 = vpack.c.bf16 %v4679, %v4671
        %v4792 = vpack.c.bf16 %v4680, %v4672
        %v4793 = vpack.c.bf16 %v4681, %v4673
        %v4794 = vpack.c.bf16 %v4682, %v4674
        %v4795 = vpack.c.bf16 %v4683, %v4675
        %v4796 = vpack.c.bf16 %v4684, %v4676
        %v4797 = vpack.c.bf16 %v4693, %v4685
        %v4798 = vpack.c.bf16 %v4694, %v4686
        %v4799 = vpack.c.bf16 %v4695, %v4687
        %v4800 = vpack.c.bf16 %v4696, %v4688
        %v4801 = vpack.c.bf16 %v4697, %v4689
        %v4802 = vpack.c.bf16 %v4698, %v4690
        %v4803 = vpack.c.bf16 %v4699, %v4691
        %v4804 = vpack.c.bf16 %v4700, %v4692
        %v4805 = vpack.c.bf16 %v4709, %v4701
        %v4806 = vpack.c.bf16 %v4710, %v4702
        %v4807 = vpack.c.bf16 %v4711, %v4703
        %v4808 = vpack.c.bf16 %v4712, %v4704
        %v4809 = vpack.c.bf16 %v4713, %v4705
        %v4810 = vpack.c.bf16 %v4714, %v4706
        %v4811 = vpack.c.bf16 %v4715, %v4707
        %v4812 = vpack.c.bf16 %v4716, %v4708
        %v4909 = vunpack.c.l.b16 %v4717
        %v4910 = vunpack.c.l.b16 %v4718
        %v4911 = vunpack.c.l.b16 %v4719
        %v4912 = vunpack.c.l.b16 %v4720
        %v4913 = vunpack.c.l.b16 %v4721
        %v4914 = vunpack.c.l.b16 %v4722
        %v4915 = vunpack.c.l.b16 %v4723
        %v4916 = vunpack.c.l.b16 %v4724
        %v4917 = vunpack.c.h.b16 %v4717
        %v4918 = vunpack.c.h.b16 %v4718
        %v4919 = vunpack.c.h.b16 %v4719
        %v4920 = vunpack.c.h.b16 %v4720
        %v4921 = vunpack.c.h.b16 %v4721
        %v4922 = vunpack.c.h.b16 %v4722
        %v4923 = vunpack.c.h.b16 %v4723
        %v4924 = vunpack.c.h.b16 %v4724
        %v4925 = vunpack.c.l.b16 %v4725
        %v4926 = vunpack.c.l.b16 %v4726
        %v4927 = vunpack.c.l.b16 %v4727
        %v4928 = vunpack.c.l.b16 %v4728
        %v4929 = vunpack.c.l.b16 %v4729
        %v4930 = vunpack.c.l.b16 %v4730
        %v4931 = vunpack.c.l.b16 %v4731
        %v4932 = vunpack.c.l.b16 %v4732
        %v4933 = vunpack.c.h.b16 %v4725
        %v4934 = vunpack.c.h.b16 %v4726
        %v4935 = vunpack.c.h.b16 %v4727
        %v4936 = vunpack.c.h.b16 %v4728
        %v4937 = vunpack.c.h.b16 %v4729
        %v4938 = vunpack.c.h.b16 %v4730
        %v4939 = vunpack.c.h.b16 %v4731
        %v4940 = vunpack.c.h.b16 %v4732
        %v4941 = vunpack.c.l.b16 %v4733
        %v4942 = vunpack.c.l.b16 %v4734
        %v4943 = vunpack.c.l.b16 %v4735
        %v4944 = vunpack.c.l.b16 %v4736
        %v4945 = vunpack.c.l.b16 %v4737
        %v4946 = vunpack.c.l.b16 %v4738
        %v4947 = vunpack.c.l.b16 %v4739
        %v4948 = vunpack.c.l.b16 %v4740
        %v4949 = vunpack.c.h.b16 %v4733
        %v4950 = vunpack.c.h.b16 %v4734
        %v4951 = vunpack.c.h.b16 %v4735
        %v4952 = vunpack.c.h.b16 %v4736
        %v4953 = vunpack.c.h.b16 %v4737
        %v4954 = vunpack.c.h.b16 %v4738
        %v4955 = vunpack.c.h.b16 %v4739
        %v4956 = vunpack.c.h.b16 %v4740
        %v4957 = vunpack.c.l.b16 %v4741
        %v4958 = vunpack.c.l.b16 %v4742
        %v4959 = vunpack.c.l.b16 %v4743
        %v4960 = vunpack.c.l.b16 %v4744
        %v4961 = vunpack.c.l.b16 %v4745
        %v4962 = vunpack.c.l.b16 %v4746
        %v4963 = vunpack.c.l.b16 %v4747
        %v4964 = vunpack.c.l.b16 %v4748
        %v4965 = vunpack.c.h.b16 %v4741
        %v4966 = vunpack.c.h.b16 %v4742
        %v4967 = vunpack.c.h.b16 %v4743
        %v4968 = vunpack.c.h.b16 %v4744
        %v4969 = vunpack.c.h.b16 %v4745
        %v4970 = vunpack.c.h.b16 %v4746
        %v4971 = vunpack.c.h.b16 %v4747
        %v4972 = vunpack.c.h.b16 %v4748
        %v4973 = vunpack.c.l.b16 %v4749
        %v4974 = vunpack.c.l.b16 %v4750
        %v4975 = vunpack.c.l.b16 %v4751
        %v4976 = vunpack.c.l.b16 %v4752
        %v4977 = vunpack.c.l.b16 %v4753
        %v4978 = vunpack.c.l.b16 %v4754
        %v4979 = vunpack.c.l.b16 %v4755
        %v4980 = vunpack.c.l.b16 %v4756
        %v4981 = vunpack.c.h.b16 %v4749
        %v4982 = vunpack.c.h.b16 %v4750
        %v4983 = vunpack.c.h.b16 %v4751
        %v4984 = vunpack.c.h.b16 %v4752
        %v4985 = vunpack.c.h.b16 %v4753
        %v4986 = vunpack.c.h.b16 %v4754
        %v4987 = vunpack.c.h.b16 %v4755
        %v4988 = vunpack.c.h.b16 %v4756
        %v4989 = vunpack.c.l.b16 %v4757
        %v4990 = vunpack.c.l.b16 %v4758
        %v4991 = vunpack.c.l.b16 %v4759
        %v4992 = vunpack.c.l.b16 %v4760
        %v4993 = vunpack.c.l.b16 %v4761
        %v4994 = vunpack.c.l.b16 %v4762
        %v4995 = vunpack.c.l.b16 %v4763
        %v4996 = vunpack.c.l.b16 %v4764
        %v4997 = vunpack.c.h.b16 %v4757
        %v4998 = vunpack.c.h.b16 %v4758
        %v4999 = vunpack.c.h.b16 %v4759
        %v5000 = vunpack.c.h.b16 %v4760
        %v5001 = vunpack.c.h.b16 %v4761
        %v5002 = vunpack.c.h.b16 %v4762
        %v5003 = vunpack.c.h.b16 %v4763
        %v5004 = vunpack.c.h.b16 %v4764
        %v5005 = vunpack.c.l.b16 %v4765
        %v5006 = vunpack.c.l.b16 %v4766
        %v5007 = vunpack.c.l.b16 %v4767
        %v5008 = vunpack.c.l.b16 %v4768
        %v5009 = vunpack.c.l.b16 %v4769
        %v5010 = vunpack.c.l.b16 %v4770
        %v5011 = vunpack.c.l.b16 %v4771
        %v5012 = vunpack.c.l.b16 %v4772
        %v5013 = vunpack.c.h.b16 %v4765
        %v5014 = vunpack.c.h.b16 %v4766
        %v5015 = vunpack.c.h.b16 %v4767
        %v5016 = vunpack.c.h.b16 %v4768
        %v5017 = vunpack.c.h.b16 %v4769
        %v5018 = vunpack.c.h.b16 %v4770
        %v5019 = vunpack.c.h.b16 %v4771
        %v5020 = vunpack.c.h.b16 %v4772
        %v5021 = vunpack.c.l.b16 %v4773
        %v5022 = vunpack.c.l.b16 %v4774
        %v5023 = vunpack.c.l.b16 %v4775
        %v5024 = vunpack.c.l.b16 %v4776
        %v5025 = vunpack.c.l.b16 %v4777
        %v5026 = vunpack.c.l.b16 %v4778
        %v5027 = vunpack.c.l.b16 %v4779
        %v5028 = vunpack.c.l.b16 %v4780
        %v5029 = vunpack.c.h.b16 %v4773
        %v5030 = vunpack.c.h.b16 %v4774
        %v5031 = vunpack.c.h.b16 %v4775
        %v5032 = vunpack.c.h.b16 %v4776
        %v5033 = vunpack.c.h.b16 %v4777
        %v5034 = vunpack.c.h.b16 %v4778
        %v5035 = vunpack.c.h.b16 %v4779
        %v5036 = vunpack.c.h.b16 %v4780
        %v5037 = vunpack.c.l.b16 %v4781
        %v5038 = vunpack.c.l.b16 %v4782
        %v5039 = vunpack.c.l.b16 %v4783
        %v5040 = vunpack.c.l.b16 %v4784
        %v5041 = vunpack.c.l.b16 %v4785
        %v5042 = vunpack.c.l.b16 %v4786
        %v5043 = vunpack.c.l.b16 %v4787
        %v5044 = vunpack.c.l.b16 %v4788
        %v5045 = vunpack.c.h.b16 %v4781
        %v5046 = vunpack.c.h.b16 %v4782
        %v5047 = vunpack.c.h.b16 %v4783
        %v5048 = vunpack.c.h.b16 %v4784
        %v5049 = vunpack.c.h.b16 %v4785
        %v5050 = vunpack.c.h.b16 %v4786
        %v5051 = vunpack.c.h.b16 %v4787
        %v5052 = vunpack.c.h.b16 %v4788
        %v5053 = vunpack.c.l.b16 %v4789
        %v5054 = vunpack.c.l.b16 %v4790
        %v5055 = vunpack.c.l.b16 %v4791
        %v5056 = vunpack.c.l.b16 %v4792
        %v5057 = vunpack.c.l.b16 %v4793
        %v5058 = vunpack.c.l.b16 %v4794
        %v5059 = vunpack.c.l.b16 %v4795
        %v5060 = vunpack.c.l.b16 %v4796
        %v5061 = vunpack.c.h.b16 %v4789
        %v5062 = vunpack.c.h.b16 %v4790
        %v5063 = vunpack.c.h.b16 %v4791
        %v5064 = vunpack.c.h.b16 %v4792
        %v5065 = vunpack.c.h.b16 %v4793
        %v5066 = vunpack.c.h.b16 %v4794
        %v5067 = vunpack.c.h.b16 %v4795
        %v5068 = vunpack.c.h.b16 %v4796
        %v5069 = vunpack.c.l.b16 %v4797
        %v5070 = vunpack.c.l.b16 %v4798
        %v5071 = vunpack.c.l.b16 %v4799
        %v5072 = vunpack.c.l.b16 %v4800
        %v5073 = vunpack.c.l.b16 %v4801
        %v5074 = vunpack.c.l.b16 %v4802
        %v5075 = vunpack.c.l.b16 %v4803
        %v5076 = vunpack.c.l.b16 %v4804
        %v5077 = vunpack.c.h.b16 %v4797
        %v5078 = vunpack.c.h.b16 %v4798
        %v5079 = vunpack.c.h.b16 %v4799
        %v5080 = vunpack.c.h.b16 %v4800
        %v5081 = vunpack.c.h.b16 %v4801
        %v5082 = vunpack.c.h.b16 %v4802
        %v5083 = vunpack.c.h.b16 %v4803
        %v5084 = vunpack.c.h.b16 %v4804
        %v5085 = vunpack.c.l.b16 %v4805
        %v5086 = vunpack.c.l.b16 %v4806
        %v5087 = vunpack.c.l.b16 %v4807
        %v5088 = vunpack.c.l.b16 %v4808
        %v5089 = vunpack.c.l.b16 %v4809
        %v5090 = vunpack.c.l.b16 %v4810
        %v5091 = vunpack.c.l.b16 %v4811
        %v5092 = vunpack.c.l.b16 %v4812
        %v5093 = vunpack.c.h.b16 %v4805
        %v5094 = vunpack.c.h.b16 %v4806
        %v5095 = vunpack.c.h.b16 %v4807
        %v5096 = vunpack.c.h.b16 %v4808
        %v5097 = vunpack.c.h.b16 %v4809
        %v5098 = vunpack.c.h.b16 %v4810
        %v5099 = vunpack.c.h.b16 %v4811
        %v5100 = vunpack.c.h.b16 %v4812
        %v5101 = vpack.c.b16 %v4910, %v4909
        %v5102 = vpack.c.b16 %v4912, %v4911
        %v5103 = vpack.c.b16 %v4914, %v4913
        %v5104 = vpack.c.b16 %v4916, %v4915
        %v5105 = vpack.c.b16 %v4918, %v4917
        %v5106 = vpack.c.b16 %v4920, %v4919
        %v5107 = vpack.c.b16 %v4922, %v4921
        %v5108 = vpack.c.b16 %v4924, %v4923
        %v5109 = vpack.c.b16 %v4926, %v4925
        %v5110 = vpack.c.b16 %v4928, %v4927
        %v5111 = vpack.c.b16 %v4930, %v4929
        %v5112 = vpack.c.b16 %v4932, %v4931
        %v5113 = vpack.c.b16 %v4934, %v4933
        %v5114 = vpack.c.b16 %v4936, %v4935
        %v5115 = vpack.c.b16 %v4938, %v4937
        %v5116 = vpack.c.b16 %v4940, %v4939
        %v5117 = vpack.c.b16 %v4942, %v4941
        %v5118 = vpack.c.b16 %v4944, %v4943
        %v5119 = vpack.c.b16 %v4946, %v4945
        %v5120 = vpack.c.b16 %v4948, %v4947
        %v5121 = vpack.c.b16 %v4950, %v4949
        %v5122 = vpack.c.b16 %v4952, %v4951
        %v5123 = vpack.c.b16 %v4954, %v4953
        %v5124 = vpack.c.b16 %v4956, %v4955
        %v5125 = vpack.c.b16 %v4958, %v4957
        %v5126 = vpack.c.b16 %v4960, %v4959
        %v5127 = vpack.c.b16 %v4962, %v4961
        %v5128 = vpack.c.b16 %v4964, %v4963
        %v5129 = vpack.c.b16 %v4966, %v4965
        %v5130 = vpack.c.b16 %v4968, %v4967
        %v5131 = vpack.c.b16 %v4970, %v4969
        %v5132 = vpack.c.b16 %v4972, %v4971
        %v5133 = vpack.c.b16 %v4974, %v4973
        %v5134 = vpack.c.b16 %v4976, %v4975
        %v5135 = vpack.c.b16 %v4978, %v4977
        %v5136 = vpack.c.b16 %v4980, %v4979
        %v5137 = vpack.c.b16 %v4982, %v4981
        %v5138 = vpack.c.b16 %v4984, %v4983
        %v5139 = vpack.c.b16 %v4986, %v4985
        %v5140 = vpack.c.b16 %v4988, %v4987
        %v5141 = vpack.c.b16 %v4990, %v4989
        %v5142 = vpack.c.b16 %v4992, %v4991
        %v5143 = vpack.c.b16 %v4994, %v4993
        %v5144 = vpack.c.b16 %v4996, %v4995
        %v5145 = vpack.c.b16 %v4998, %v4997
        %v5146 = vpack.c.b16 %v5000, %v4999
        %v5147 = vpack.c.b16 %v5002, %v5001
        %v5148 = vpack.c.b16 %v5004, %v5003
        %v5149 = vpack.c.b16 %v5006, %v5005
        %v5150 = vpack.c.b16 %v5008, %v5007
        %v5151 = vpack.c.b16 %v5010, %v5009
        %v5152 = vpack.c.b16 %v5012, %v5011
        %v5153 = vpack.c.b16 %v5014, %v5013
        %v5154 = vpack.c.b16 %v5016, %v5015
        %v5155 = vpack.c.b16 %v5018, %v5017
        %v5156 = vpack.c.b16 %v5020, %v5019
        %v5157 = vpack.c.b16 %v5022, %v5021
        %v5158 = vpack.c.b16 %v5024, %v5023
        %v5159 = vpack.c.b16 %v5026, %v5025
        %v5160 = vpack.c.b16 %v5028, %v5027
        %v5161 = vpack.c.b16 %v5030, %v5029
        %v5162 = vpack.c.b16 %v5032, %v5031
        %v5163 = vpack.c.b16 %v5034, %v5033
        %v5164 = vpack.c.b16 %v5036, %v5035
        %v5165 = vpack.c.b16 %v5038, %v5037
        %v5166 = vpack.c.b16 %v5040, %v5039
        %v5167 = vpack.c.b16 %v5042, %v5041
        %v5168 = vpack.c.b16 %v5044, %v5043
        %v5169 = vpack.c.b16 %v5046, %v5045
        %v5170 = vpack.c.b16 %v5048, %v5047
        %v5171 = vpack.c.b16 %v5050, %v5049
        %v5172 = vpack.c.b16 %v5052, %v5051
        %v5173 = vpack.c.b16 %v5054, %v5053
        %v5174 = vpack.c.b16 %v5056, %v5055
        %v5175 = vpack.c.b16 %v5058, %v5057
        %v5176 = vpack.c.b16 %v5060, %v5059
        %v5177 = vpack.c.b16 %v5062, %v5061
        %v5178 = vpack.c.b16 %v5064, %v5063
        %v5179 = vpack.c.b16 %v5066, %v5065
        %v5180 = vpack.c.b16 %v5068, %v5067
        %v5181 = vpack.c.b16 %v5070, %v5069
        %v5182 = vpack.c.b16 %v5072, %v5071
        %v5183 = vpack.c.b16 %v5074, %v5073
        %v5184 = vpack.c.b16 %v5076, %v5075
        %v5185 = vpack.c.b16 %v5078, %v5077
        %v5186 = vpack.c.b16 %v5080, %v5079
        %v5187 = vpack.c.b16 %v5082, %v5081
        %v5188 = vpack.c.b16 %v5084, %v5083
        %v5189 = vpack.c.b16 %v5086, %v5085
        %v5190 = vpack.c.b16 %v5088, %v5087
        %v5191 = vpack.c.b16 %v5090, %v5089
        %v5192 = vpack.c.b16 %v5092, %v5091
        %v5193 = vpack.c.b16 %v5094, %v5093
        %v5194 = vpack.c.b16 %v5096, %v5095
        %v5195 = vpack.c.b16 %v5098, %v5097
        %v5196 = vpack.c.b16 %v5100, %v5099
        %5293 = vst [vmem:[%s444] sm:$0xff] %v5101
        %5294 = vst [vmem:[%s444 + $0x8] sm:$0xff] %v5102
        %5295 = vst [vmem:[%s444 + $0x10] sm:$0xff] %v5103
        %5296 = vst [vmem:[%s444 + $0x18] sm:$0xff] %v5104
        %5297 = vst [vmem:[%s444 + $0x20] sm:$0xff] %v5105
        %5298 = vst [vmem:[%s444 + $0x28] sm:$0xff] %v5106
        %5299 = vst [vmem:[%s444 + $0x30] sm:$0xff] %v5107
        %5300 = vst [vmem:[%s444 + $0x38] sm:$0xff] %v5108
        %5301 = vst [vmem:[%s444 + $0x40] sm:$0xff] %v5109
        %5302 = vst [vmem:[%s444 + $0x48] sm:$0xff] %v5110
        %5303 = vst [vmem:[%s444 + $0x50] sm:$0xff] %v5111
        %5304 = vst [vmem:[%s444 + $0x58] sm:$0xff] %v5112
        %5305 = vst [vmem:[%s444 + $0x60] sm:$0xff] %v5113
        %5306 = vst [vmem:[%s444 + $0x68] sm:$0xff] %v5114
        %5307 = vst [vmem:[%s444 + $0x70] sm:$0xff] %v5115
        %5308 = vst [vmem:[%s444 + $0x78] sm:$0xff] %v5116
        %5309 = vst [vmem:[%s444 + $0x80] sm:$0xff] %v5117
        %5310 = vst [vmem:[%s444 + $0x88] sm:$0xff] %v5118
        %5311 = vst [vmem:[%s444 + $0x90] sm:$0xff] %v5119
        %5312 = vst [vmem:[%s444 + $0x98] sm:$0xff] %v5120
        %5313 = vst [vmem:[%s444 + $0xa0] sm:$0xff] %v5121
        %5314 = vst [vmem:[%s444 + $0xa8] sm:$0xff] %v5122
        %5315 = vst [vmem:[%s444 + $0xb0] sm:$0xff] %v5123
        %5316 = vst [vmem:[%s444 + $0xb8] sm:$0xff] %v5124
        %5317 = vst [vmem:[%s444 + $0xc0] sm:$0xff] %v5125
        %5318 = vst [vmem:[%s444 + $0xc8] sm:$0xff] %v5126
        %5319 = vst [vmem:[%s444 + $0xd0] sm:$0xff] %v5127
        %5320 = vst [vmem:[%s444 + $0xd8] sm:$0xff] %v5128
        %5321 = vst [vmem:[%s444 + $0xe0] sm:$0xff] %v5129
        %5322 = vst [vmem:[%s444 + $0xe8] sm:$0xff] %v5130
        %5323 = vst [vmem:[%s444 + $0xf0] sm:$0xff] %v5131
        %5324 = vst [vmem:[%s444 + $0xf8] sm:$0xff] %v5132
        %5325 = vst [vmem:[%s444 + $0x100] sm:$0xff] %v5133
        %5326 = vst [vmem:[%s444 + $0x108] sm:$0xff] %v5134
        %5327 = vst [vmem:[%s444 + $0x110] sm:$0xff] %v5135
        %5328 = vst [vmem:[%s444 + $0x118] sm:$0xff] %v5136
        %5329 = vst [vmem:[%s444 + $0x120] sm:$0xff] %v5137
        %5330 = vst [vmem:[%s444 + $0x128] sm:$0xff] %v5138
        %5331 = vst [vmem:[%s444 + $0x130] sm:$0xff] %v5139
        %5332 = vst [vmem:[%s444 + $0x138] sm:$0xff] %v5140
        %5333 = vst [vmem:[%s444 + $0x140] sm:$0xff] %v5141
        %5334 = vst [vmem:[%s444 + $0x148] sm:$0xff] %v5142
        %5335 = vst [vmem:[%s444 + $0x150] sm:$0xff] %v5143
        %5336 = vst [vmem:[%s444 + $0x158] sm:$0xff] %v5144
        %5337 = vst [vmem:[%s444 + $0x160] sm:$0xff] %v5145
        %5338 = vst [vmem:[%s444 + $0x168] sm:$0xff] %v5146
        %5339 = vst [vmem:[%s444 + $0x170] sm:$0xff] %v5147
        %5340 = vst [vmem:[%s444 + $0x178] sm:$0xff] %v5148
        %5341 = vst [vmem:[%s444 + $0x180] sm:$0xff] %v5149
        %5342 = vst [vmem:[%s444 + $0x188] sm:$0xff] %v5150
        %5343 = vst [vmem:[%s444 + $0x190] sm:$0xff] %v5151
        %5344 = vst [vmem:[%s444 + $0x198] sm:$0xff] %v5152
        %5345 = vst [vmem:[%s444 + $0x1a0] sm:$0xff] %v5153
        %5346 = vst [vmem:[%s444 + $0x1a8] sm:$0xff] %v5154
        %5347 = vst [vmem:[%s444 + $0x1b0] sm:$0xff] %v5155
        %5348 = vst [vmem:[%s444 + $0x1b8] sm:$0xff] %v5156
        %5349 = vst [vmem:[%s444 + $0x1c0] sm:$0xff] %v5157
        %5350 = vst [vmem:[%s444 + $0x1c8] sm:$0xff] %v5158
        %5351 = vst [vmem:[%s444 + $0x1d0] sm:$0xff] %v5159
        %5352 = vst [vmem:[%s444 + $0x1d8] sm:$0xff] %v5160
        %5353 = vst [vmem:[%s444 + $0x1e0] sm:$0xff] %v5161
        %5354 = vst [vmem:[%s444 + $0x1e8] sm:$0xff] %v5162
        %5355 = vst [vmem:[%s444 + $0x1f0] sm:$0xff] %v5163
        %5356 = vst [vmem:[%s444 + $0x1f8] sm:$0xff] %v5164
        %5357 = vst [vmem:[%s444 + $0x200] sm:$0xff] %v5165
        %5358 = vst [vmem:[%s444 + $0x208] sm:$0xff] %v5166
        %5359 = vst [vmem:[%s444 + $0x210] sm:$0xff] %v5167
        %5360 = vst [vmem:[%s444 + $0x218] sm:$0xff] %v5168
        %5361 = vst [vmem:[%s444 + $0x220] sm:$0xff] %v5169
        %5362 = vst [vmem:[%s444 + $0x228] sm:$0xff] %v5170
        %5363 = vst [vmem:[%s444 + $0x230] sm:$0xff] %v5171
        %5364 = vst [vmem:[%s444 + $0x238] sm:$0xff] %v5172
        %5365 = vst [vmem:[%s444 + $0x240] sm:$0xff] %v5173
        %5366 = vst [vmem:[%s444 + $0x248] sm:$0xff] %v5174
        %5367 = vst [vmem:[%s444 + $0x250] sm:$0xff] %v5175
        %5368 = vst [vmem:[%s444 + $0x258] sm:$0xff] %v5176
        %5369 = vst [vmem:[%s444 + $0x260] sm:$0xff] %v5177
        %5370 = vst [vmem:[%s444 + $0x268] sm:$0xff] %v5178
        %5371 = vst [vmem:[%s444 + $0x270] sm:$0xff] %v5179
        %5372 = vst [vmem:[%s444 + $0x278] sm:$0xff] %v5180
        %5373 = vst [vmem:[%s444 + $0x280] sm:$0xff] %v5181
        %5374 = vst [vmem:[%s444 + $0x288] sm:$0xff] %v5182
        %5375 = vst [vmem:[%s444 + $0x290] sm:$0xff] %v5183
        %5376 = vst [vmem:[%s444 + $0x298] sm:$0xff] %v5184
        %5377 = vst [vmem:[%s444 + $0x2a0] sm:$0xff] %v5185
        %5378 = vst [vmem:[%s444 + $0x2a8] sm:$0xff] %v5186
        %5379 = vst [vmem:[%s444 + $0x2b0] sm:$0xff] %v5187
        %5380 = vst [vmem:[%s444 + $0x2b8] sm:$0xff] %v5188
        %5381 = vst [vmem:[%s444 + $0x2c0] sm:$0xff] %v5189
        %5382 = vst [vmem:[%s444 + $0x2c8] sm:$0xff] %v5190
        %5383 = vst [vmem:[%s444 + $0x2d0] sm:$0xff] %v5191
        %5384 = vst [vmem:[%s444 + $0x2d8] sm:$0xff] %v5192
        %5385 = vst [vmem:[%s444 + $0x2e0] sm:$0xff] %v5193
        %5386 = vst [vmem:[%s444 + $0x2e8] sm:$0xff] %v5194
        %5387 = vst [vmem:[%s444 + $0x2f0] sm:$0xff] %v5195
        %5388 = vst [vmem:[%s444 + $0x2f8] sm:$0xff] %v5196
        %s5389 = sand.u32 %s217, 1
        %s5390 = scalar_lea.sflag [#allocation4], %s5389
        %s5391 = sand.u32 %s217, 1
        %s5392 = smul.addr %s5391, 768
        %s5393 = scalar_lea.vmem [#allocation16], %s5392
        // Predicated region
        $region85: #{tpu_custom_call.1} parent=51 // pred_check
          %p5394 = pneg %p227
        $region86: #{tpu_custom_call.1} parent=51 // pred_check_branch
          %5396 = sbr.rel (%p5394) target = $region88
        $region87: #{tpu_custom_call.1} parent=51 // pred_region
          %s5397 = smul.u32 24, %s31
          %s5399 = ssub.s32 12288, 12288
          %5400 = vsyncadd %s5390, %s5399
          %s5401 = smul.addr %s5397, 8
          %s5402 = smul.addr %s5401, 64
          %s5403 = scalar_lea.hbm %s8, %s5402
          %s5404 = sshll.u32 %s5393, 4
          %s5405 = int_to_ptr.vmem [resolvable:$true] %s5404
          %5410 = dma.vmem_to_hbm [thread:$0]  %s5405, 12288, %s5403, %s5390, 512, 512, 32
        $region88: #{tpu_custom_call.1} parent=51 // pred_fallthru
          _
      $region52: #{tpu_custom_call.1} parent=5 // pred_fallthru
        _
      %p5411 = scmp.le.s32.totalorder 2, %s26
      // Predicated region
      $region89: #{tpu_custom_call.1} parent=5 // pred_check
        %p5412 = pneg %p5411
      $region90: #{tpu_custom_call.1} parent=5 // pred_check_branch
        %5414 = sbr.rel (%p5412) target = $region92
      $region91: #{tpu_custom_call.1} parent=5 // pred_region
        %s5415 = ssub.s32 %s26, 2
        // Predicated region
        $region93: #{tpu_custom_call.1} parent=91 // pred_check
          %p5416 = pneg %p233
        $region94: #{tpu_custom_call.1} parent=91 // pred_check_branch
          %5418 = sbr.rel (%p5416) target = $region96
        $region95: #{tpu_custom_call.1} parent=91 // pred_region
          %s5419 = sand.u32 %s218, 1
          %s5420 = scalar_lea.sflag [#allocation4], %s5419
          %s5421 = sand.u32 %s218, 1
          %s5422 = smul.addr %s5421, 768
          %s5423 = scalar_lea.vmem [#allocation16], %s5422
          %5424 = dma.done %s5420, 12288
        $region96: #{tpu_custom_call.1} parent=91 // pred_fallthru
          _
      $region92: #{tpu_custom_call.1} parent=5 // pred_fallthru
        _
    $region6: #{tpu_custom_call.1} parent=1 // loop_footer
      %s30 = sadd.s32 1, %s26
    $region7: #{tpu_custom_call.1} parent=1 // loop_footer_branch
      %25 = sbr.rel target = $region3
    $region8: #{tpu_custom_call.1} parent=1 // loop_exit
      _
    %5425 = vsyncpa [#allocation3], 1
    %s5426 = scalar_lea.sflag [#allocation3], 1
    %5427 = vsyncpa %s5426, 1
    %5428 = vsyncpa [#allocation6], 1
    %s5429 = scalar_lea.sflag [#allocation6], 1
    %5430 = vsyncpa %s5429, 1
    %5431 = vsyncpa [#allocation9], 1
    %5432 = vsyncpa [#allocation12], 1
    %5433 = vsyncpa [#allocation15], 1
    %5434 = vsyncpa [#allocation4], 1
    %s5435 = scalar_lea.sflag [#allocation4], 1
    %5436 = vsyncpa %s5435, 1

</llo_original>
